<compile_context>
chip_gen: v7x
topology: tpu7x:2x2x1
jax: 0.10.0
libtpu: 0.0.40
codegen_flags: <defaults>
</compile_context>

<pallas_src>
import jax
import jax.numpy as jnp
import numpy as np
from jax.experimental import pallas as pl
from jax.experimental.pallas import tpu as pltpu

# ----------------------------- config (small) --------------------------------
BATCH = 2
B_PAD = 8              # batch padded to one full f32 sublane tile
VOCAB_SIZE = 50
SENT_LEN = 16          # also the LSTM input_size (module sets input_size=SENT_LEN)
EMBEDDING_DIM = 16     # must equal SENT_LEN for the PyTorch module to run at all
E_PAD = 128            # input-feature dim padded to one full lane tile
HIDDEN = 32            # analogue of 512
NUM_LAYERS = 3
FC_IN = SENT_LEN * HIDDEN     # analogue of 51200
FC_HID = 128                  # analogue of 1024
NUM_CLASS_1, NUM_CLASS_2, NUM_CLASS_3 = 4, 6, 8
NUM_CLASS_TOTAL = NUM_CLASS_1 + NUM_CLASS_2 + NUM_CLASS_3
OUT_PAD = 128                 # lane-dense packed head-output width
BN_EPS = 1e-5


def _sig(x):
    # sigmoid(x) == 0.5 * (1 + tanh(x/2)): one EUP op instead of exp + divide.
    return 0.5 * (1.0 + jnp.tanh(0.5 * x))


# ------------------------- fully fused forward kernel ------------------------
def _lstm_fused_kernel(
    x_ref,                                    # (T*Bp, E_PAD) time-major padded input
    bmask_ref,                                # (Bp, 1) 1.0 for real batch rows
    w_ih0_ref, w_hh0_ref, b0_ref,             # LSTM layer 0 (w_ih0 zero-padded to E_PAD rows)
    w_ih1_ref, w_hh1_ref, b1_ref,             # LSTM layer 1
    w_ih2_ref, w_hh2_ref, b2_ref,             # LSTM layer 2
    w1_ref, hb1_ref, gamma_ref, beta_ref,     # 3 heads' Linear1 + BN, feature-concat
    w2_ref, hb2_ref,                          # 3 heads' Linear2, block-diag + padded
    out_ref,                                  # (Bp, OUT_PAD) packed logits
):
    H = HIDDEN
    Bp = B_PAD
    T = x_ref.shape[0] // Bp

    def run_layer(x_val, w_ih_ref, w_hh_ref, b_ref):
        # Input projection hoisted out of the recurrence: one (T*Bp, I) @ (I, 4H)
        # MXU call; bias broadcast once per layer.
        w_hh = w_hh_ref[...]
        gates_in = (jnp.dot(x_val, w_ih_ref[...],
                            preferred_element_type=jnp.float32) + b_ref[...])
        h = jnp.zeros((Bp, H), jnp.float32)
        c = jnp.zeros((Bp, H), jnp.float32)
        hs = []
        # Fully unrolled, static indices (Bp=8 => every slice is a full sublane
        # tile).  TODO(synk): at production T=100 use lax.fori_loop(unroll=2-4).
        for t in range(T):
            g = gates_in[t * Bp:(t + 1) * Bp, :] + jnp.dot(
                h, w_hh, preferred_element_type=jnp.float32)     # (Bp, 4H=128)
            # Activations on the FULL 128-lane gate vreg, slice afterwards
            # (2 full-width EUP passes instead of 4 quarter-width + pre-slices).
            sg = _sig(g)
            tg = jnp.tanh(g)
            i = sg[:, 0 * H:1 * H]
            f = sg[:, 1 * H:2 * H]
            gg = tg[:, 2 * H:3 * H]
            o = sg[:, 3 * H:4 * H]
            c = f * c + i * gg
            h = o * jnp.tanh(c)
            hs.append(h)
        return hs

    hs0 = run_layer(x_ref[...], w_ih0_ref, w_hh0_ref, b0_ref)
    x1 = jnp.concatenate(hs0, axis=0)                       # (T*Bp, H) layer-1 input
    hs1 = run_layer(x1, w_ih1_ref, w_hh1_ref, b1_ref)
    x2 = jnp.concatenate(hs1, axis=0)                       # (T*Bp, H) layer-2 input
    hs2 = run_layer(x2, w_ih2_ref, w_hh2_ref, b2_ref)
    # Feature slab in the exact (B, T*H) flatten order the heads consume;
    # built as a value -> no per-step 32-lane masked stores into VMEM scratch.
    feat = jnp.concatenate(hs2, axis=1)                     # (Bp, T*H)

    # ---- fused FC heads: Linear -> BatchNorm1d(train) -> ReLU -> Linear -----
    hidden = jnp.dot(feat, w1_ref[...],
                     preferred_element_type=jnp.float32) + hb1_ref[...]   # (Bp, 3*FC_HID)
    # Batch statistics over REAL rows only (batch is padded 2 -> 8).
    msk = bmask_ref[...]                                     # (Bp, 1)
    inv_b = 1.0 / float(BATCH)
    mean = jnp.sum(hidden * msk, axis=0, keepdims=True) * inv_b
    diff = hidden - mean
    var = jnp.sum(diff * diff * msk, axis=0, keepdims=True) * inv_b
    hn = diff * jax.lax.rsqrt(var + BN_EPS) * gamma_ref[...] + beta_ref[...]
    act = jnp.maximum(hn, 0.0)
    # Block-diagonal second Linear: one MXU call produces all 3 heads, packed
    # lane-dense into a single (Bp, 128) output slab.
    out_ref[...] = jnp.dot(act, w2_ref[...],
                           preferred_element_type=jnp.float32) + hb2_ref[...]


def fused_forward(x_tb_e, bmask, lstm_packed, head_packed):
    """x_tb_e: (T*B_PAD, E_PAD) time-major padded embeddings -> (B_PAD, OUT_PAD)."""
    (w_ih0, w_hh0, b0), (w_ih1, w_hh1, b1), (w_ih2, w_hh2, b2) = lstm_packed
    w1c, b1c, gc, bc, w2blk, b2pad = head_packed

    in_arrays = [x_tb_e, bmask,
                 w_ih0, w_hh0, b0,
                 w_ih1, w_hh1, b1,
                 w_ih2, w_hh2, b2,
                 w1c, b1c, gc, bc, w2blk, b2pad]

    def full2d(a):
        return pl.BlockSpec(a.shape, lambda i: (0, 0))

    return pl.pallas_call(
        _lstm_fused_kernel,
        out_shape=jax.ShapeDtypeStruct((B_PAD, OUT_PAD), jnp.float32),
        grid_spec=pltpu.PrefetchScalarGridSpec(
            num_scalar_prefetch=0,
            grid=(1,),                                   # single launch, no per-step grid overhead
            in_specs=[full2d(a) for a in in_arrays],
            out_specs=pl.BlockSpec((B_PAD, OUT_PAD), lambda i: (0, 0)),
            scratch_shapes=[],
        ),
        compiler_params=pltpu.CompilerParams(
            dimension_semantics=("arbitrary",)),
    )(*in_arrays)


# ----------------------------- parameter init --------------------------------
def _uniform(key, shape, scale):
    return jax.random.uniform(key, shape, jnp.float32, -scale, scale)


def pack_head_params(heads):
    """Concat the 3 heads' Linear1/BN along features; block-diagonal, lane-dense
    padded Linear2 so all heads run in 2 matmuls."""
    w1c = jnp.concatenate([h[0] for h in heads], axis=1)     # (FC_IN, 3*FC_HID)
    b1c = jnp.concatenate([h[1] for h in heads], axis=1)     # (1, 3*FC_HID)
    gc = jnp.concatenate([h[2] for h in heads], axis=1)
    bc = jnp.concatenate([h[3] for h in heads], axis=1)
    w2blk = jnp.zeros((3 * FC_HID, OUT_PAD), jnp.float32)
    b2pad = jnp.zeros((1, OUT_PAD), jnp.float32)
    col = 0
    for k, (w1, b1, gamma, beta, w2, b2) in enumerate(heads):
        n = w2.shape[1]
        w2blk = w2blk.at[k * FC_HID:(k + 1) * FC_HID, col:col + n].set(w2)
        b2pad = b2pad.at[:, col:col + n].set(b2)
        col += n
    return (w1c, b1c, gc, bc, w2blk, b2pad)


def pack_lstm_params(lstm):
    """Zero-pad layer-0 input-projection rows to E_PAD = 128 lanes."""
    (w_ih0, w_hh0, b0) = lstm[0]
    w_ih0_p = jnp.zeros((E_PAD, 4 * HIDDEN), jnp.float32).at[:w_ih0.shape[0]].set(w_ih0)
    return [(w_ih0_p, w_hh0, b0), lstm[1], lstm[2]]


def init_params(key):
    keys = iter(jax.random.split(key, 64))
    params = {}
    params["embedding"] = jax.random.normal(next(keys), (VOCAB_SIZE, EMBEDDING_DIM),
                                            jnp.float32)
    # LSTM: 3 layers; PyTorch weight_ih (4H, I), weight_hh (4H, H) — stored transposed.
    lstm = []
    k = 1.0 / np.sqrt(HIDDEN)
    for layer in range(NUM_LAYERS):
        in_dim = EMBEDDING_DIM if layer == 0 else HIDDEN
        w_ih = _uniform(next(keys), (in_dim, 4 * HIDDEN), k)
        w_hh = _uniform(next(keys), (HIDDEN, 4 * HIDDEN), k)
        b = (_uniform(next(keys), (1, 4 * HIDDEN), k)
             + _uniform(next(keys), (1, 4 * HIDDEN), k))     # b_ih + b_hh
        lstm.append((w_ih, w_hh, b))
    params["lstm"] = lstm
    params["lstm_packed"] = pack_lstm_params(lstm)
    # FC heads (per-head params kept for the reference; packed copies for the kernel).
    heads = []
    for n_cls in (NUM_CLASS_1, NUM_CLASS_2, NUM_CLASS_3):
        k1 = 1.0 / np.sqrt(FC_IN)
        k2 = 1.0 / np.sqrt(FC_HID)
        w1 = _uniform(next(keys), (FC_IN, FC_HID), k1)
        b1 = _uniform(next(keys), (1, FC_HID), k1)
        gamma = 1.0 + _uniform(next(keys), (1, FC_HID), 0.5)
        beta = _uniform(next(keys), (1, FC_HID), 0.1)
        w2 = _uniform(next(keys), (FC_HID, n_cls), k2)
        b2 = _uniform(next(keys), (1, n_cls), k2)
        heads.append((w1, b1, gamma, beta, w2, b2))
    params["heads"] = heads
    params["heads_packed"] = pack_head_params(heads)
    return params


# ----------------------------- forward (Pallas) -------------------------------
@jax.jit
def lstm_model_forward(params, tokens):
    B, T = tokens.shape
    # Embedding lookup: gather stays in plain JAX glue (no clean tiny-Pallas gather).
    emb = jnp.take(params["embedding"], tokens, axis=0)            # (B, T, E)
    x_tbe = jnp.transpose(emb, (1, 0, 2))                          # (T, B, E) time-major
    # Pad batch -> B_PAD sublanes and features -> E_PAD lanes (zeros).
    x_pad = jnp.zeros((T, B_PAD, E_PAD), jnp.float32)
    x_pad = x_pad.at[:, :B, :EMBEDDING_DIM].set(x_tbe)
    x_flat = x_pad.reshape(T * B_PAD, E_PAD)
    bmask = (jnp.arange(B_PAD, dtype=jnp.float32) < B).astype(jnp.float32)[:, None]
    packed = fused_forward(x_flat, bmask, params["lstm_packed"],
                           params["heads_packed"])                 # (B_PAD, 128)
    o1 = packed[:B, 0:NUM_CLASS_1]
    o2 = packed[:B, NUM_CLASS_1:NUM_CLASS_1 + NUM_CLASS_2]
    o3 = packed[:B, NUM_CLASS_1 + NUM_CLASS_2:NUM_CLASS_TOTAL]
    return o1, o2, o3


# ----------------------------- pure-JAX reference ------------------------------
def _ref_forward(params, tokens):
    emb = jnp.take(params["embedding"], tokens, axis=0)
    x = jnp.transpose(emb, (1, 0, 2))
    for (w_ih, w_hh, b) in params["lstm"]:
        T, B, _ = x.shape
        H = w_hh.shape[0]
        h = jnp.zeros((B, H), jnp.float32)
        c = jnp.zeros((B, H), jnp.float32)
        outs = []
        for t in range(T):
            g = x[t] @ w_ih + h @ w_hh + b
            i = jax.nn.sigmoid(g[:, 0 * H:1 * H])
            f = jax.nn.sigmoid(g[:, 1 * H:2 * H])
            gg = jnp.tanh(g[:, 2 * H:3 * H])
            o = jax.nn.sigmoid(g[:, 3 * H:4 * H])
            c = f * c + i * gg
            h = o * jnp.tanh(c)
            outs.append(h)
        x = jnp.stack(outs, axis=0)
    out = jnp.transpose(x, (1, 0, 2)).reshape(tokens.shape[0], -1)

    def head(xx, w1, b1, gamma, beta, w2, b2):
        hh = xx @ w1 + b1
        mean = jnp.mean(hh, axis=0, keepdims=True)
        var = jnp.mean((hh - mean) ** 2, axis=0, keepdims=True)
        hn = (hh - mean) * jax.lax.rsqrt(var + BN_EPS) * gamma + beta
        return jnp.maximum(hn, 0.0) @ w2 + b2

    return tuple(head(out, *p) for p in params["heads"])


# --------------------------------- main ---------------------------------------
if __name__ == "__main__":
    key = jax.random.PRNGKey(0)
    pkey, xkey = jax.random.split(key)
    params = init_params(pkey)
    tokens = jax.random.randint(xkey, (BATCH, SENT_LEN), 0, VOCAB_SIZE, jnp.int32)

    o1, o2, o3 = lstm_model_forward(params, tokens)
    jax.block_until_ready((o1, o2, o3))

    r1, r2, r3 = _ref_forward(params, tokens)
    for got, ref in ((o1, r1), (o2, r2), (o3, r3)):
        np.testing.assert_allclose(np.asarray(got), np.asarray(ref),
                                   rtol=1e-2, atol=1e-2)

    assert o1.shape == (BATCH, NUM_CLASS_1)
    assert o2.shape == (BATCH, NUM_CLASS_2)
    assert o3.shape == (BATCH, NUM_CLASS_3)
    print("KERNEL_OK")
</pallas_src>

<mosaic_0001>
module attributes {stable_mosaic.version = 11 : i64} {
  func.func @_lstm_fused_kernel(%arg0: i32, %arg1: memref<128x128xf32, #tpu.memory_space<vmem>>, %arg2: memref<8x1xf32, #tpu.memory_space<vmem>>, %arg3: memref<128x128xf32, #tpu.memory_space<vmem>>, %arg4: memref<32x128xf32, #tpu.memory_space<vmem>>, %arg5: memref<1x128xf32, #tpu.memory_space<vmem>>, %arg6: memref<32x128xf32, #tpu.memory_space<vmem>>, %arg7: memref<32x128xf32, #tpu.memory_space<vmem>>, %arg8: memref<1x128xf32, #tpu.memory_space<vmem>>, %arg9: memref<32x128xf32, #tpu.memory_space<vmem>>, %arg10: memref<32x128xf32, #tpu.memory_space<vmem>>, %arg11: memref<1x128xf32, #tpu.memory_space<vmem>>, %arg12: memref<512x384xf32, #tpu.memory_space<vmem>>, %arg13: memref<1x384xf32, #tpu.memory_space<vmem>>, %arg14: memref<1x384xf32, #tpu.memory_space<vmem>>, %arg15: memref<1x384xf32, #tpu.memory_space<vmem>>, %arg16: memref<384x128xf32, #tpu.memory_space<vmem>>, %arg17: memref<1x128xf32, #tpu.memory_space<vmem>>, %arg18: memref<8x128xf32, #tpu.memory_space<vmem>>) attributes {dimension_semantics = [#tpu.dimension_semantics<arbitrary>], iteration_bounds = array<i64: 1>, scalar_prefetch = 0 : i64, scratch_operands = 0 : i64, tpu.core_type = #tpu.core_type<tc>, window_params = [{pipeline_mode = #tpu.pipeline_mode<synchronous>, transform_indices = @transform_0, window_bounds = array<i64: 128, 128>}, {pipeline_mode = #tpu.pipeline_mode<synchronous>, transform_indices = @transform_1, window_bounds = array<i64: 8, 1>}, {pipeline_mode = #tpu.pipeline_mode<synchronous>, transform_indices = @transform_2, window_bounds = array<i64: 128, 128>}, {pipeline_mode = #tpu.pipeline_mode<synchronous>, transform_indices = @transform_3, window_bounds = array<i64: 32, 128>}, {pipeline_mode = #tpu.pipeline_mode<synchronous>, transform_indices = @transform_4, window_bounds = array<i64: 1, 128>}, {pipeline_mode = #tpu.pipeline_mode<synchronous>, transform_indices = @transform_5, window_bounds = array<i64: 32, 128>}, {pipeline_mode = #tpu.pipeline_mode<synchronous>, transform_indices = @transform_6, window_bounds = array<i64: 32, 128>}, {pipeline_mode = #tpu.pipeline_mode<synchronous>, transform_indices = @transform_7, window_bounds = array<i64: 1, 128>}, {pipeline_mode = #tpu.pipeline_mode<synchronous>, transform_indices = @transform_8, window_bounds = array<i64: 32, 128>}, {pipeline_mode = #tpu.pipeline_mode<synchronous>, transform_indices = @transform_9, window_bounds = array<i64: 32, 128>}, {pipeline_mode = #tpu.pipeline_mode<synchronous>, transform_indices = @transform_10, window_bounds = array<i64: 1, 128>}, {pipeline_mode = #tpu.pipeline_mode<synchronous>, transform_indices = @transform_11, window_bounds = array<i64: 512, 384>}, {pipeline_mode = #tpu.pipeline_mode<synchronous>, transform_indices = @transform_12, window_bounds = array<i64: 1, 384>}, {pipeline_mode = #tpu.pipeline_mode<synchronous>, transform_indices = @transform_13, window_bounds = array<i64: 1, 384>}, {pipeline_mode = #tpu.pipeline_mode<synchronous>, transform_indices = @transform_14, window_bounds = array<i64: 1, 384>}, {pipeline_mode = #tpu.pipeline_mode<synchronous>, transform_indices = @transform_15, window_bounds = array<i64: 384, 128>}, {pipeline_mode = #tpu.pipeline_mode<synchronous>, transform_indices = @transform_16, window_bounds = array<i64: 1, 128>}, {pipeline_mode = #tpu.pipeline_mode<synchronous>, transform_indices = @transform_17, window_bounds = array<i64: 8, 128>}]} {
    %c0 = arith.constant 0 : index
    %c0_0 = arith.constant 0 : index
    %0 = vector.load %arg1[%c0, %c0_0] : memref<128x128xf32, #tpu.memory_space<vmem>>, vector<128x128xf32>
    %c0_1 = arith.constant 0 : index
    %c0_2 = arith.constant 0 : index
    %1 = vector.load %arg4[%c0_1, %c0_2] : memref<32x128xf32, #tpu.memory_space<vmem>>, vector<32x128xf32>
    %c0_3 = arith.constant 0 : index
    %c0_4 = arith.constant 0 : index
    %2 = vector.load %arg3[%c0_3, %c0_4] : memref<128x128xf32, #tpu.memory_space<vmem>>, vector<128x128xf32>
    %cst = arith.constant dense<0.000000e+00> : vector<128x128xf32>
    %3 = tpu.matmul %0, %2, %cst {dimension_numbers = #tpu.dot_dimension_numbers<[1], [0], [0], [1], [0, 0, 1, 1], [], []>} : vector<128x128xf32>, vector<128x128xf32>, vector<128x128xf32> -> vector<128x128xf32>
    %c0_5 = arith.constant 0 : index
    %c0_6 = arith.constant 0 : index
    %4 = vector.load %arg5[%c0_5, %c0_6] : memref<1x128xf32, #tpu.memory_space<vmem>>, vector<1x128xf32>
    %5 = vector.broadcast %4 : vector<1x128xf32> to vector<128x128xf32>
    %6 = arith.addf %3, %5 : vector<128x128xf32>
    %cst_7 = arith.constant 0.000000e+00 : f32
    %7 = vector.broadcast %cst_7 : f32 to vector<8x32xf32>
    %cst_8 = arith.constant 0.000000e+00 : f32
    %8 = vector.broadcast %cst_8 : f32 to vector<8x32xf32>
    %9 = vector.extract_strided_slice %6 {offsets = [0, 0], sizes = [8, 128], strides = [1, 1]} : vector<128x128xf32> to vector<8x128xf32>
    %cst_9 = arith.constant dense<0.000000e+00> : vector<8x128xf32>
    %10 = tpu.matmul %7, %1, %cst_9 {dimension_numbers = #tpu.dot_dimension_numbers<[1], [0], [0], [1], [0, 0, 1, 1], [], []>} : vector<8x32xf32>, vector<32x128xf32>, vector<8x128xf32> -> vector<8x128xf32>
    %11 = arith.addf %9, %10 : vector<8x128xf32>
    %cst_10 = arith.constant 5.000000e-01 : f32
    %12 = vector.broadcast %cst_10 : f32 to vector<8x128xf32>
    %13 = arith.mulf %12, %11 : vector<8x128xf32>
    %14 = math.tanh %13 : vector<8x128xf32>
    %cst_11 = arith.constant 1.000000e+00 : f32
    %15 = vector.broadcast %cst_11 : f32 to vector<8x128xf32>
    %16 = arith.addf %15, %14 : vector<8x128xf32>
    %cst_12 = arith.constant 5.000000e-01 : f32
    %17 = vector.broadcast %cst_12 : f32 to vector<8x128xf32>
    %18 = arith.mulf %17, %16 : vector<8x128xf32>
    %19 = math.tanh %11 : vector<8x128xf32>
    %20 = vector.extract_strided_slice %18 {offsets = [0, 0], sizes = [8, 32], strides = [1, 1]} : vector<8x128xf32> to vector<8x32xf32>
    %21 = vector.extract_strided_slice %18 {offsets = [0, 32], sizes = [8, 32], strides = [1, 1]} : vector<8x128xf32> to vector<8x32xf32>
    %22 = vector.extract_strided_slice %19 {offsets = [0, 64], sizes = [8, 32], strides = [1, 1]} : vector<8x128xf32> to vector<8x32xf32>
    %23 = vector.extract_strided_slice %18 {offsets = [0, 96], sizes = [8, 32], strides = [1, 1]} : vector<8x128xf32> to vector<8x32xf32>
    %24 = arith.mulf %21, %8 : vector<8x32xf32>
    %25 = arith.mulf %20, %22 : vector<8x32xf32>
    %26 = arith.addf %24, %25 : vector<8x32xf32>
    %27 = math.tanh %26 : vector<8x32xf32>
    %28 = arith.mulf %23, %27 : vector<8x32xf32>
    %29 = vector.extract_strided_slice %6 {offsets = [8, 0], sizes = [8, 128], strides = [1, 1]} : vector<128x128xf32> to vector<8x128xf32>
    %cst_13 = arith.constant dense<0.000000e+00> : vector<8x128xf32>
    %30 = tpu.matmul %28, %1, %cst_13 {dimension_numbers = #tpu.dot_dimension_numbers<[1], [0], [0], [1], [0, 0, 1, 1], [], []>} : vector<8x32xf32>, vector<32x128xf32>, vector<8x128xf32> -> vector<8x128xf32>
    %31 = arith.addf %29, %30 : vector<8x128xf32>
    %cst_14 = arith.constant 5.000000e-01 : f32
    %32 = vector.broadcast %cst_14 : f32 to vector<8x128xf32>
    %33 = arith.mulf %32, %31 : vector<8x128xf32>
    %34 = math.tanh %33 : vector<8x128xf32>
    %cst_15 = arith.constant 1.000000e+00 : f32
    %35 = vector.broadcast %cst_15 : f32 to vector<8x128xf32>
    %36 = arith.addf %35, %34 : vector<8x128xf32>
    %cst_16 = arith.constant 5.000000e-01 : f32
    %37 = vector.broadcast %cst_16 : f32 to vector<8x128xf32>
    %38 = arith.mulf %37, %36 : vector<8x128xf32>
    %39 = math.tanh %31 : vector<8x128xf32>
    %40 = vector.extract_strided_slice %38 {offsets = [0, 0], sizes = [8, 32], strides = [1, 1]} : vector<8x128xf32> to vector<8x32xf32>
    %41 = vector.extract_strided_slice %38 {offsets = [0, 32], sizes = [8, 32], strides = [1, 1]} : vector<8x128xf32> to vector<8x32xf32>
    %42 = vector.extract_strided_slice %39 {offsets = [0, 64], sizes = [8, 32], strides = [1, 1]} : vector<8x128xf32> to vector<8x32xf32>
    %43 = vector.extract_strided_slice %38 {offsets = [0, 96], sizes = [8, 32], strides = [1, 1]} : vector<8x128xf32> to vector<8x32xf32>
    %44 = arith.mulf %41, %26 : vector<8x32xf32>
    %45 = arith.mulf %40, %42 : vector<8x32xf32>
    %46 = arith.addf %44, %45 : vector<8x32xf32>
    %47 = math.tanh %46 : vector<8x32xf32>
    %48 = arith.mulf %43, %47 : vector<8x32xf32>
    %49 = vector.extract_strided_slice %6 {offsets = [16, 0], sizes = [8, 128], strides = [1, 1]} : vector<128x128xf32> to vector<8x128xf32>
    %cst_17 = arith.constant dense<0.000000e+00> : vector<8x128xf32>
    %50 = tpu.matmul %48, %1, %cst_17 {dimension_numbers = #tpu.dot_dimension_numbers<[1], [0], [0], [1], [0, 0, 1, 1], [], []>} : vector<8x32xf32>, vector<32x128xf32>, vector<8x128xf32> -> vector<8x128xf32>
    %51 = arith.addf %49, %50 : vector<8x128xf32>
    %cst_18 = arith.constant 5.000000e-01 : f32
    %52 = vector.broadcast %cst_18 : f32 to vector<8x128xf32>
    %53 = arith.mulf %52, %51 : vector<8x128xf32>
    %54 = math.tanh %53 : vector<8x128xf32>
    %cst_19 = arith.constant 1.000000e+00 : f32
    %55 = vector.broadcast %cst_19 : f32 to vector<8x128xf32>
    %56 = arith.addf %55, %54 : vector<8x128xf32>
    %cst_20 = arith.constant 5.000000e-01 : f32
    %57 = vector.broadcast %cst_20 : f32 to vector<8x128xf32>
    %58 = arith.mulf %57, %56 : vector<8x128xf32>
    %59 = math.tanh %51 : vector<8x128xf32>
    %60 = vector.extract_strided_slice %58 {offsets = [0, 0], sizes = [8, 32], strides = [1, 1]} : vector<8x128xf32> to vector<8x32xf32>
    %61 = vector.extract_strided_slice %58 {offsets = [0, 32], sizes = [8, 32], strides = [1, 1]} : vector<8x128xf32> to vector<8x32xf32>
    %62 = vector.extract_strided_slice %59 {offsets = [0, 64], sizes = [8, 32], strides = [1, 1]} : vector<8x128xf32> to vector<8x32xf32>
    %63 = vector.extract_strided_slice %58 {offsets = [0, 96], sizes = [8, 32], strides = [1, 1]} : vector<8x128xf32> to vector<8x32xf32>
    %64 = arith.mulf %61, %46 : vector<8x32xf32>
    %65 = arith.mulf %60, %62 : vector<8x32xf32>
    %66 = arith.addf %64, %65 : vector<8x32xf32>
    %67 = math.tanh %66 : vector<8x32xf32>
    %68 = arith.mulf %63, %67 : vector<8x32xf32>
    %69 = vector.extract_strided_slice %6 {offsets = [24, 0], sizes = [8, 128], strides = [1, 1]} : vector<128x128xf32> to vector<8x128xf32>
    %cst_21 = arith.constant dense<0.000000e+00> : vector<8x128xf32>
    %70 = tpu.matmul %68, %1, %cst_21 {dimension_numbers = #tpu.dot_dimension_numbers<[1], [0], [0], [1], [0, 0, 1, 1], [], []>} : vector<8x32xf32>, vector<32x128xf32>, vector<8x128xf32> -> vector<8x128xf32>
    %71 = arith.addf %69, %70 : vector<8x128xf32>
    %cst_22 = arith.constant 5.000000e-01 : f32
    %72 = vector.broadcast %cst_22 : f32 to vector<8x128xf32>
    %73 = arith.mulf %72, %71 : vector<8x128xf32>
    %74 = math.tanh %73 : vector<8x128xf32>
    %cst_23 = arith.constant 1.000000e+00 : f32
    %75 = vector.broadcast %cst_23 : f32 to vector<8x128xf32>
    %76 = arith.addf %75, %74 : vector<8x128xf32>
    %cst_24 = arith.constant 5.000000e-01 : f32
    %77 = vector.broadcast %cst_24 : f32 to vector<8x128xf32>
    %78 = arith.mulf %77, %76 : vector<8x128xf32>
    %79 = math.tanh %71 : vector<8x128xf32>
    %80 = vector.extract_strided_slice %78 {offsets = [0, 0], sizes = [8, 32], strides = [1, 1]} : vector<8x128xf32> to vector<8x32xf32>
    %81 = vector.extract_strided_slice %78 {offsets = [0, 32], sizes = [8, 32], strides = [1, 1]} : vector<8x128xf32> to vector<8x32xf32>
    %82 = vector.extract_strided_slice %79 {offsets = [0, 64], sizes = [8, 32], strides = [1, 1]} : vector<8x128xf32> to vector<8x32xf32>
    %83 = vector.extract_strided_slice %78 {offsets = [0, 96], sizes = [8, 32], strides = [1, 1]} : vector<8x128xf32> to vector<8x32xf32>
    %84 = arith.mulf %81, %66 : vector<8x32xf32>
    %85 = arith.mulf %80, %82 : vector<8x32xf32>
    %86 = arith.addf %84, %85 : vector<8x32xf32>
    %87 = math.tanh %86 : vector<8x32xf32>
    %88 = arith.mulf %83, %87 : vector<8x32xf32>
    %89 = vector.extract_strided_slice %6 {offsets = [32, 0], sizes = [8, 128], strides = [1, 1]} : vector<128x128xf32> to vector<8x128xf32>
    %cst_25 = arith.constant dense<0.000000e+00> : vector<8x128xf32>
    %90 = tpu.matmul %88, %1, %cst_25 {dimension_numbers = #tpu.dot_dimension_numbers<[1], [0], [0], [1], [0, 0, 1, 1], [], []>} : vector<8x32xf32>, vector<32x128xf32>, vector<8x128xf32> -> vector<8x128xf32>
    %91 = arith.addf %89, %90 : vector<8x128xf32>
    %cst_26 = arith.constant 5.000000e-01 : f32
    %92 = vector.broadcast %cst_26 : f32 to vector<8x128xf32>
    %93 = arith.mulf %92, %91 : vector<8x128xf32>
    %94 = math.tanh %93 : vector<8x128xf32>
    %cst_27 = arith.constant 1.000000e+00 : f32
    %95 = vector.broadcast %cst_27 : f32 to vector<8x128xf32>
    %96 = arith.addf %95, %94 : vector<8x128xf32>
    %cst_28 = arith.constant 5.000000e-01 : f32
    %97 = vector.broadcast %cst_28 : f32 to vector<8x128xf32>
    %98 = arith.mulf %97, %96 : vector<8x128xf32>
    %99 = math.tanh %91 : vector<8x128xf32>
    %100 = vector.extract_strided_slice %98 {offsets = [0, 0], sizes = [8, 32], strides = [1, 1]} : vector<8x128xf32> to vector<8x32xf32>
    %101 = vector.extract_strided_slice %98 {offsets = [0, 32], sizes = [8, 32], strides = [1, 1]} : vector<8x128xf32> to vector<8x32xf32>
    %102 = vector.extract_strided_slice %99 {offsets = [0, 64], sizes = [8, 32], strides = [1, 1]} : vector<8x128xf32> to vector<8x32xf32>
    %103 = vector.extract_strided_slice %98 {offsets = [0, 96], sizes = [8, 32], strides = [1, 1]} : vector<8x128xf32> to vector<8x32xf32>
    %104 = arith.mulf %101, %86 : vector<8x32xf32>
    %105 = arith.mulf %100, %102 : vector<8x32xf32>
    %106 = arith.addf %104, %105 : vector<8x32xf32>
    %107 = math.tanh %106 : vector<8x32xf32>
    %108 = arith.mulf %103, %107 : vector<8x32xf32>
    %109 = vector.extract_strided_slice %6 {offsets = [40, 0], sizes = [8, 128], strides = [1, 1]} : vector<128x128xf32> to vector<8x128xf32>
    %cst_29 = arith.constant dense<0.000000e+00> : vector<8x128xf32>
    %110 = tpu.matmul %108, %1, %cst_29 {dimension_numbers = #tpu.dot_dimension_numbers<[1], [0], [0], [1], [0, 0, 1, 1], [], []>} : vector<8x32xf32>, vector<32x128xf32>, vector<8x128xf32> -> vector<8x128xf32>
    %111 = arith.addf %109, %110 : vector<8x128xf32>
    %cst_30 = arith.constant 5.000000e-01 : f32
    %112 = vector.broadcast %cst_30 : f32 to vector<8x128xf32>
    %113 = arith.mulf %112, %111 : vector<8x128xf32>
    %114 = math.tanh %113 : vector<8x128xf32>
    %cst_31 = arith.constant 1.000000e+00 : f32
    %115 = vector.broadcast %cst_31 : f32 to vector<8x128xf32>
    %116 = arith.addf %115, %114 : vector<8x128xf32>
    %cst_32 = arith.constant 5.000000e-01 : f32
    %117 = vector.broadcast %cst_32 : f32 to vector<8x128xf32>
    %118 = arith.mulf %117, %116 : vector<8x128xf32>
    %119 = math.tanh %111 : vector<8x128xf32>
    %120 = vector.extract_strided_slice %118 {offsets = [0, 0], sizes = [8, 32], strides = [1, 1]} : vector<8x128xf32> to vector<8x32xf32>
    %121 = vector.extract_strided_slice %118 {offsets = [0, 32], sizes = [8, 32], strides = [1, 1]} : vector<8x128xf32> to vector<8x32xf32>
    %122 = vector.extract_strided_slice %119 {offsets = [0, 64], sizes = [8, 32], strides = [1, 1]} : vector<8x128xf32> to vector<8x32xf32>
    %123 = vector.extract_strided_slice %118 {offsets = [0, 96], sizes = [8, 32], strides = [1, 1]} : vector<8x128xf32> to vector<8x32xf32>
    %124 = arith.mulf %121, %106 : vector<8x32xf32>
    %125 = arith.mulf %120, %122 : vector<8x32xf32>
    %126 = arith.addf %124, %125 : vector<8x32xf32>
    %127 = math.tanh %126 : vector<8x32xf32>
    %128 = arith.mulf %123, %127 : vector<8x32xf32>
    %129 = vector.extract_strided_slice %6 {offsets = [48, 0], sizes = [8, 128], strides = [1, 1]} : vector<128x128xf32> to vector<8x128xf32>
    %cst_33 = arith.constant dense<0.000000e+00> : vector<8x128xf32>
    %130 = tpu.matmul %128, %1, %cst_33 {dimension_numbers = #tpu.dot_dimension_numbers<[1], [0], [0], [1], [0, 0, 1, 1], [], []>} : vector<8x32xf32>, vector<32x128xf32>, vector<8x128xf32> -> vector<8x128xf32>
    %131 = arith.addf %129, %130 : vector<8x128xf32>
    %cst_34 = arith.constant 5.000000e-01 : f32
    %132 = vector.broadcast %cst_34 : f32 to vector<8x128xf32>
    %133 = arith.mulf %132, %131 : vector<8x128xf32>
    %134 = math.tanh %133 : vector<8x128xf32>
    %cst_35 = arith.constant 1.000000e+00 : f32
    %135 = vector.broadcast %cst_35 : f32 to vector<8x128xf32>
    %136 = arith.addf %135, %134 : vector<8x128xf32>
    %cst_36 = arith.constant 5.000000e-01 : f32
    %137 = vector.broadcast %cst_36 : f32 to vector<8x128xf32>
    %138 = arith.mulf %137, %136 : vector<8x128xf32>
    %139 = math.tanh %131 : vector<8x128xf32>
    %140 = vector.extract_strided_slice %138 {offsets = [0, 0], sizes = [8, 32], strides = [1, 1]} : vector<8x128xf32> to vector<8x32xf32>
    %141 = vector.extract_strided_slice %138 {offsets = [0, 32], sizes = [8, 32], strides = [1, 1]} : vector<8x128xf32> to vector<8x32xf32>
    %142 = vector.extract_strided_slice %139 {offsets = [0, 64], sizes = [8, 32], strides = [1, 1]} : vector<8x128xf32> to vector<8x32xf32>
    %143 = vector.extract_strided_slice %138 {offsets = [0, 96], sizes = [8, 32], strides = [1, 1]} : vector<8x128xf32> to vector<8x32xf32>
    %144 = arith.mulf %141, %126 : vector<8x32xf32>
    %145 = arith.mulf %140, %142 : vector<8x32xf32>
    %146 = arith.addf %144, %145 : vector<8x32xf32>
    %147 = math.tanh %146 : vector<8x32xf32>
    %148 = arith.mulf %143, %147 : vector<8x32xf32>
    %149 = vector.extract_strided_slice %6 {offsets = [56, 0], sizes = [8, 128], strides = [1, 1]} : vector<128x128xf32> to vector<8x128xf32>
    %cst_37 = arith.constant dense<0.000000e+00> : vector<8x128xf32>
    %150 = tpu.matmul %148, %1, %cst_37 {dimension_numbers = #tpu.dot_dimension_numbers<[1], [0], [0], [1], [0, 0, 1, 1], [], []>} : vector<8x32xf32>, vector<32x128xf32>, vector<8x128xf32> -> vector<8x128xf32>
    %151 = arith.addf %149, %150 : vector<8x128xf32>
    %cst_38 = arith.constant 5.000000e-01 : f32
    %152 = vector.broadcast %cst_38 : f32 to vector<8x128xf32>
    %153 = arith.mulf %152, %151 : vector<8x128xf32>
    %154 = math.tanh %153 : vector<8x128xf32>
    %cst_39 = arith.constant 1.000000e+00 : f32
    %155 = vector.broadcast %cst_39 : f32 to vector<8x128xf32>
    %156 = arith.addf %155, %154 : vector<8x128xf32>
    %cst_40 = arith.constant 5.000000e-01 : f32
    %157 = vector.broadcast %cst_40 : f32 to vector<8x128xf32>
    %158 = arith.mulf %157, %156 : vector<8x128xf32>
    %159 = math.tanh %151 : vector<8x128xf32>
    %160 = vector.extract_strided_slice %158 {offsets = [0, 0], sizes = [8, 32], strides = [1, 1]} : vector<8x128xf32> to vector<8x32xf32>
    %161 = vector.extract_strided_slice %158 {offsets = [0, 32], sizes = [8, 32], strides = [1, 1]} : vector<8x128xf32> to vector<8x32xf32>
    %162 = vector.extract_strided_slice %159 {offsets = [0, 64], sizes = [8, 32], strides = [1, 1]} : vector<8x128xf32> to vector<8x32xf32>
    %163 = vector.extract_strided_slice %158 {offsets = [0, 96], sizes = [8, 32], strides = [1, 1]} : vector<8x128xf32> to vector<8x32xf32>
    %164 = arith.mulf %161, %146 : vector<8x32xf32>
    %165 = arith.mulf %160, %162 : vector<8x32xf32>
    %166 = arith.addf %164, %165 : vector<8x32xf32>
    %167 = math.tanh %166 : vector<8x32xf32>
    %168 = arith.mulf %163, %167 : vector<8x32xf32>
    %169 = vector.extract_strided_slice %6 {offsets = [64, 0], sizes = [8, 128], strides = [1, 1]} : vector<128x128xf32> to vector<8x128xf32>
    %cst_41 = arith.constant dense<0.000000e+00> : vector<8x128xf32>
    %170 = tpu.matmul %168, %1, %cst_41 {dimension_numbers = #tpu.dot_dimension_numbers<[1], [0], [0], [1], [0, 0, 1, 1], [], []>} : vector<8x32xf32>, vector<32x128xf32>, vector<8x128xf32> -> vector<8x128xf32>
    %171 = arith.addf %169, %170 : vector<8x128xf32>
    %cst_42 = arith.constant 5.000000e-01 : f32
    %172 = vector.broadcast %cst_42 : f32 to vector<8x128xf32>
    %173 = arith.mulf %172, %171 : vector<8x128xf32>
    %174 = math.tanh %173 : vector<8x128xf32>
    %cst_43 = arith.constant 1.000000e+00 : f32
    %175 = vector.broadcast %cst_43 : f32 to vector<8x128xf32>
    %176 = arith.addf %175, %174 : vector<8x128xf32>
    %cst_44 = arith.constant 5.000000e-01 : f32
    %177 = vector.broadcast %cst_44 : f32 to vector<8x128xf32>
    %178 = arith.mulf %177, %176 : vector<8x128xf32>
    %179 = math.tanh %171 : vector<8x128xf32>
    %180 = vector.extract_strided_slice %178 {offsets = [0, 0], sizes = [8, 32], strides = [1, 1]} : vector<8x128xf32> to vector<8x32xf32>
    %181 = vector.extract_strided_slice %178 {offsets = [0, 32], sizes = [8, 32], strides = [1, 1]} : vector<8x128xf32> to vector<8x32xf32>
    %182 = vector.extract_strided_slice %179 {offsets = [0, 64], sizes = [8, 32], strides = [1, 1]} : vector<8x128xf32> to vector<8x32xf32>
    %183 = vector.extract_strided_slice %178 {offsets = [0, 96], sizes = [8, 32], strides = [1, 1]} : vector<8x128xf32> to vector<8x32xf32>
    %184 = arith.mulf %181, %166 : vector<8x32xf32>
    %185 = arith.mulf %180, %182 : vector<8x32xf32>
    %186 = arith.addf %184, %185 : vector<8x32xf32>
    %187 = math.tanh %186 : vector<8x32xf32>
    %188 = arith.mulf %183, %187 : vector<8x32xf32>
    %189 = vector.extract_strided_slice %6 {offsets = [72, 0], sizes = [8, 128], strides = [1, 1]} : vector<128x128xf32> to vector<8x128xf32>
    %cst_45 = arith.constant dense<0.000000e+00> : vector<8x128xf32>
    %190 = tpu.matmul %188, %1, %cst_45 {dimension_numbers = #tpu.dot_dimension_numbers<[1], [0], [0], [1], [0, 0, 1, 1], [], []>} : vector<8x32xf32>, vector<32x128xf32>, vector<8x128xf32> -> vector<8x128xf32>
    %191 = arith.addf %189, %190 : vector<8x128xf32>
    %cst_46 = arith.constant 5.000000e-01 : f32
    %192 = vector.broadcast %cst_46 : f32 to vector<8x128xf32>
    %193 = arith.mulf %192, %191 : vector<8x128xf32>
    %194 = math.tanh %193 : vector<8x128xf32>
    %cst_47 = arith.constant 1.000000e+00 : f32
    %195 = vector.broadcast %cst_47 : f32 to vector<8x128xf32>
    %196 = arith.addf %195, %194 : vector<8x128xf32>
    %cst_48 = arith.constant 5.000000e-01 : f32
    %197 = vector.broadcast %cst_48 : f32 to vector<8x128xf32>
    %198 = arith.mulf %197, %196 : vector<8x128xf32>
    %199 = math.tanh %191 : vector<8x128xf32>
    %200 = vector.extract_strided_slice %198 {offsets = [0, 0], sizes = [8, 32], strides = [1, 1]} : vector<8x128xf32> to vector<8x32xf32>
    %201 = vector.extract_strided_slice %198 {offsets = [0, 32], sizes = [8, 32], strides = [1, 1]} : vector<8x128xf32> to vector<8x32xf32>
    %202 = vector.extract_strided_slice %199 {offsets = [0, 64], sizes = [8, 32], strides = [1, 1]} : vector<8x128xf32> to vector<8x32xf32>
    %203 = vector.extract_strided_slice %198 {offsets = [0, 96], sizes = [8, 32], strides = [1, 1]} : vector<8x128xf32> to vector<8x32xf32>
    %204 = arith.mulf %201, %186 : vector<8x32xf32>
    %205 = arith.mulf %200, %202 : vector<8x32xf32>
    %206 = arith.addf %204, %205 : vector<8x32xf32>
    %207 = math.tanh %206 : vector<8x32xf32>
    %208 = arith.mulf %203, %207 : vector<8x32xf32>
    %209 = vector.extract_strided_slice %6 {offsets = [80, 0], sizes = [8, 128], strides = [1, 1]} : vector<128x128xf32> to vector<8x128xf32>
    %cst_49 = arith.constant dense<0.000000e+00> : vector<8x128xf32>
    %210 = tpu.matmul %208, %1, %cst_49 {dimension_numbers = #tpu.dot_dimension_numbers<[1], [0], [0], [1], [0, 0, 1, 1], [], []>} : vector<8x32xf32>, vector<32x128xf32>, vector<8x128xf32> -> vector<8x128xf32>
    %211 = arith.addf %209, %210 : vector<8x128xf32>
    %cst_50 = arith.constant 5.000000e-01 : f32
    %212 = vector.broadcast %cst_50 : f32 to vector<8x128xf32>
    %213 = arith.mulf %212, %211 : vector<8x128xf32>
    %214 = math.tanh %213 : vector<8x128xf32>
    %cst_51 = arith.constant 1.000000e+00 : f32
    %215 = vector.broadcast %cst_51 : f32 to vector<8x128xf32>
    %216 = arith.addf %215, %214 : vector<8x128xf32>
    %cst_52 = arith.constant 5.000000e-01 : f32
    %217 = vector.broadcast %cst_52 : f32 to vector<8x128xf32>
    %218 = arith.mulf %217, %216 : vector<8x128xf32>
    %219 = math.tanh %211 : vector<8x128xf32>
    %220 = vector.extract_strided_slice %218 {offsets = [0, 0], sizes = [8, 32], strides = [1, 1]} : vector<8x128xf32> to vector<8x32xf32>
    %221 = vector.extract_strided_slice %218 {offsets = [0, 32], sizes = [8, 32], strides = [1, 1]} : vector<8x128xf32> to vector<8x32xf32>
    %222 = vector.extract_strided_slice %219 {offsets = [0, 64], sizes = [8, 32], strides = [1, 1]} : vector<8x128xf32> to vector<8x32xf32>
    %223 = vector.extract_strided_slice %218 {offsets = [0, 96], sizes = [8, 32], strides = [1, 1]} : vector<8x128xf32> to vector<8x32xf32>
    %224 = arith.mulf %221, %206 : vector<8x32xf32>
    %225 = arith.mulf %220, %222 : vector<8x32xf32>
    %226 = arith.addf %224, %225 : vector<8x32xf32>
    %227 = math.tanh %226 : vector<8x32xf32>
    %228 = arith.mulf %223, %227 : vector<8x32xf32>
    %229 = vector.extract_strided_slice %6 {offsets = [88, 0], sizes = [8, 128], strides = [1, 1]} : vector<128x128xf32> to vector<8x128xf32>
    %cst_53 = arith.constant dense<0.000000e+00> : vector<8x128xf32>
    %230 = tpu.matmul %228, %1, %cst_53 {dimension_numbers = #tpu.dot_dimension_numbers<[1], [0], [0], [1], [0, 0, 1, 1], [], []>} : vector<8x32xf32>, vector<32x128xf32>, vector<8x128xf32> -> vector<8x128xf32>
    %231 = arith.addf %229, %230 : vector<8x128xf32>
    %cst_54 = arith.constant 5.000000e-01 : f32
    %232 = vector.broadcast %cst_54 : f32 to vector<8x128xf32>
    %233 = arith.mulf %232, %231 : vector<8x128xf32>
    %234 = math.tanh %233 : vector<8x128xf32>
    %cst_55 = arith.constant 1.000000e+00 : f32
    %235 = vector.broadcast %cst_55 : f32 to vector<8x128xf32>
    %236 = arith.addf %235, %234 : vector<8x128xf32>
    %cst_56 = arith.constant 5.000000e-01 : f32
    %237 = vector.broadcast %cst_56 : f32 to vector<8x128xf32>
    %238 = arith.mulf %237, %236 : vector<8x128xf32>
    %239 = math.tanh %231 : vector<8x128xf32>
    %240 = vector.extract_strided_slice %238 {offsets = [0, 0], sizes = [8, 32], strides = [1, 1]} : vector<8x128xf32> to vector<8x32xf32>
    %241 = vector.extract_strided_slice %238 {offsets = [0, 32], sizes = [8, 32], strides = [1, 1]} : vector<8x128xf32> to vector<8x32xf32>
    %242 = vector.extract_strided_slice %239 {offsets = [0, 64], sizes = [8, 32], strides = [1, 1]} : vector<8x128xf32> to vector<8x32xf32>
    %243 = vector.extract_strided_slice %238 {offsets = [0, 96], sizes = [8, 32], strides = [1, 1]} : vector<8x128xf32> to vector<8x32xf32>
    %244 = arith.mulf %241, %226 : vector<8x32xf32>
    %245 = arith.mulf %240, %242 : vector<8x32xf32>
    %246 = arith.addf %244, %245 : vector<8x32xf32>
    %247 = math.tanh %246 : vector<8x32xf32>
    %248 = arith.mulf %243, %247 : vector<8x32xf32>
    %249 = vector.extract_strided_slice %6 {offsets = [96, 0], sizes = [8, 128], strides = [1, 1]} : vector<128x128xf32> to vector<8x128xf32>
    %cst_57 = arith.constant dense<0.000000e+00> : vector<8x128xf32>
    %250 = tpu.matmul %248, %1, %cst_57 {dimension_numbers = #tpu.dot_dimension_numbers<[1], [0], [0], [1], [0, 0, 1, 1], [], []>} : vector<8x32xf32>, vector<32x128xf32>, vector<8x128xf32> -> vector<8x128xf32>
    %251 = arith.addf %249, %250 : vector<8x128xf32>
    %cst_58 = arith.constant 5.000000e-01 : f32
    %252 = vector.broadcast %cst_58 : f32 to vector<8x128xf32>
    %253 = arith.mulf %252, %251 : vector<8x128xf32>
    %254 = math.tanh %253 : vector<8x128xf32>
    %cst_59 = arith.constant 1.000000e+00 : f32
    %255 = vector.broadcast %cst_59 : f32 to vector<8x128xf32>
    %256 = arith.addf %255, %254 : vector<8x128xf32>
    %cst_60 = arith.constant 5.000000e-01 : f32
    %257 = vector.broadcast %cst_60 : f32 to vector<8x128xf32>
    %258 = arith.mulf %257, %256 : vector<8x128xf32>
    %259 = math.tanh %251 : vector<8x128xf32>
    %260 = vector.extract_strided_slice %258 {offsets = [0, 0], sizes = [8, 32], strides = [1, 1]} : vector<8x128xf32> to vector<8x32xf32>
    %261 = vector.extract_strided_slice %258 {offsets = [0, 32], sizes = [8, 32], strides = [1, 1]} : vector<8x128xf32> to vector<8x32xf32>
    %262 = vector.extract_strided_slice %259 {offsets = [0, 64], sizes = [8, 32], strides = [1, 1]} : vector<8x128xf32> to vector<8x32xf32>
    %263 = vector.extract_strided_slice %258 {offsets = [0, 96], sizes = [8, 32], strides = [1, 1]} : vector<8x128xf32> to vector<8x32xf32>
    %264 = arith.mulf %261, %246 : vector<8x32xf32>
    %265 = arith.mulf %260, %262 : vector<8x32xf32>
    %266 = arith.addf %264, %265 : vector<8x32xf32>
    %267 = math.tanh %266 : vector<8x32xf32>
    %268 = arith.mulf %263, %267 : vector<8x32xf32>
    %269 = vector.extract_strided_slice %6 {offsets = [104, 0], sizes = [8, 128], strides = [1, 1]} : vector<128x128xf32> to vector<8x128xf32>
    %cst_61 = arith.constant dense<0.000000e+00> : vector<8x128xf32>
    %270 = tpu.matmul %268, %1, %cst_61 {dimension_numbers = #tpu.dot_dimension_numbers<[1], [0], [0], [1], [0, 0, 1, 1], [], []>} : vector<8x32xf32>, vector<32x128xf32>, vector<8x128xf32> -> vector<8x128xf32>
    %271 = arith.addf %269, %270 : vector<8x128xf32>
    %cst_62 = arith.constant 5.000000e-01 : f32
    %272 = vector.broadcast %cst_62 : f32 to vector<8x128xf32>
    %273 = arith.mulf %272, %271 : vector<8x128xf32>
    %274 = math.tanh %273 : vector<8x128xf32>
    %cst_63 = arith.constant 1.000000e+00 : f32
    %275 = vector.broadcast %cst_63 : f32 to vector<8x128xf32>
    %276 = arith.addf %275, %274 : vector<8x128xf32>
    %cst_64 = arith.constant 5.000000e-01 : f32
    %277 = vector.broadcast %cst_64 : f32 to vector<8x128xf32>
    %278 = arith.mulf %277, %276 : vector<8x128xf32>
    %279 = math.tanh %271 : vector<8x128xf32>
    %280 = vector.extract_strided_slice %278 {offsets = [0, 0], sizes = [8, 32], strides = [1, 1]} : vector<8x128xf32> to vector<8x32xf32>
    %281 = vector.extract_strided_slice %278 {offsets = [0, 32], sizes = [8, 32], strides = [1, 1]} : vector<8x128xf32> to vector<8x32xf32>
    %282 = vector.extract_strided_slice %279 {offsets = [0, 64], sizes = [8, 32], strides = [1, 1]} : vector<8x128xf32> to vector<8x32xf32>
    %283 = vector.extract_strided_slice %278 {offsets = [0, 96], sizes = [8, 32], strides = [1, 1]} : vector<8x128xf32> to vector<8x32xf32>
    %284 = arith.mulf %281, %266 : vector<8x32xf32>
    %285 = arith.mulf %280, %282 : vector<8x32xf32>
    %286 = arith.addf %284, %285 : vector<8x32xf32>
    %287 = math.tanh %286 : vector<8x32xf32>
    %288 = arith.mulf %283, %287 : vector<8x32xf32>
    %289 = vector.extract_strided_slice %6 {offsets = [112, 0], sizes = [8, 128], strides = [1, 1]} : vector<128x128xf32> to vector<8x128xf32>
    %cst_65 = arith.constant dense<0.000000e+00> : vector<8x128xf32>
    %290 = tpu.matmul %288, %1, %cst_65 {dimension_numbers = #tpu.dot_dimension_numbers<[1], [0], [0], [1], [0, 0, 1, 1], [], []>} : vector<8x32xf32>, vector<32x128xf32>, vector<8x128xf32> -> vector<8x128xf32>
    %291 = arith.addf %289, %290 : vector<8x128xf32>
    %cst_66 = arith.constant 5.000000e-01 : f32
    %292 = vector.broadcast %cst_66 : f32 to vector<8x128xf32>
    %293 = arith.mulf %292, %291 : vector<8x128xf32>
    %294 = math.tanh %293 : vector<8x128xf32>
    %cst_67 = arith.constant 1.000000e+00 : f32
    %295 = vector.broadcast %cst_67 : f32 to vector<8x128xf32>
    %296 = arith.addf %295, %294 : vector<8x128xf32>
    %cst_68 = arith.constant 5.000000e-01 : f32
    %297 = vector.broadcast %cst_68 : f32 to vector<8x128xf32>
    %298 = arith.mulf %297, %296 : vector<8x128xf32>
    %299 = math.tanh %291 : vector<8x128xf32>
    %300 = vector.extract_strided_slice %298 {offsets = [0, 0], sizes = [8, 32], strides = [1, 1]} : vector<8x128xf32> to vector<8x32xf32>
    %301 = vector.extract_strided_slice %298 {offsets = [0, 32], sizes = [8, 32], strides = [1, 1]} : vector<8x128xf32> to vector<8x32xf32>
    %302 = vector.extract_strided_slice %299 {offsets = [0, 64], sizes = [8, 32], strides = [1, 1]} : vector<8x128xf32> to vector<8x32xf32>
    %303 = vector.extract_strided_slice %298 {offsets = [0, 96], sizes = [8, 32], strides = [1, 1]} : vector<8x128xf32> to vector<8x32xf32>
    %304 = arith.mulf %301, %286 : vector<8x32xf32>
    %305 = arith.mulf %300, %302 : vector<8x32xf32>
    %306 = arith.addf %304, %305 : vector<8x32xf32>
    %307 = math.tanh %306 : vector<8x32xf32>
    %308 = arith.mulf %303, %307 : vector<8x32xf32>
    %309 = vector.extract_strided_slice %6 {offsets = [120, 0], sizes = [8, 128], strides = [1, 1]} : vector<128x128xf32> to vector<8x128xf32>
    %cst_69 = arith.constant dense<0.000000e+00> : vector<8x128xf32>
    %310 = tpu.matmul %308, %1, %cst_69 {dimension_numbers = #tpu.dot_dimension_numbers<[1], [0], [0], [1], [0, 0, 1, 1], [], []>} : vector<8x32xf32>, vector<32x128xf32>, vector<8x128xf32> -> vector<8x128xf32>
    %311 = arith.addf %309, %310 : vector<8x128xf32>
    %cst_70 = arith.constant 5.000000e-01 : f32
    %312 = vector.broadcast %cst_70 : f32 to vector<8x128xf32>
    %313 = arith.mulf %312, %311 : vector<8x128xf32>
    %314 = math.tanh %313 : vector<8x128xf32>
    %cst_71 = arith.constant 1.000000e+00 : f32
    %315 = vector.broadcast %cst_71 : f32 to vector<8x128xf32>
    %316 = arith.addf %315, %314 : vector<8x128xf32>
    %cst_72 = arith.constant 5.000000e-01 : f32
    %317 = vector.broadcast %cst_72 : f32 to vector<8x128xf32>
    %318 = arith.mulf %317, %316 : vector<8x128xf32>
    %319 = math.tanh %311 : vector<8x128xf32>
    %320 = vector.extract_strided_slice %318 {offsets = [0, 0], sizes = [8, 32], strides = [1, 1]} : vector<8x128xf32> to vector<8x32xf32>
    %321 = vector.extract_strided_slice %318 {offsets = [0, 32], sizes = [8, 32], strides = [1, 1]} : vector<8x128xf32> to vector<8x32xf32>
    %322 = vector.extract_strided_slice %319 {offsets = [0, 64], sizes = [8, 32], strides = [1, 1]} : vector<8x128xf32> to vector<8x32xf32>
    %323 = vector.extract_strided_slice %318 {offsets = [0, 96], sizes = [8, 32], strides = [1, 1]} : vector<8x128xf32> to vector<8x32xf32>
    %324 = arith.mulf %321, %306 : vector<8x32xf32>
    %325 = arith.mulf %320, %322 : vector<8x32xf32>
    %326 = arith.addf %324, %325 : vector<8x32xf32>
    %327 = math.tanh %326 : vector<8x32xf32>
    %328 = arith.mulf %323, %327 : vector<8x32xf32>
    %329 = tpu.concatenate %28, %48, %68, %88, %108, %128, %148, %168, %188, %208, %228, %248, %268, %288, %308, %328 in 0 : vector<8x32xf32>, vector<8x32xf32>, vector<8x32xf32>, vector<8x32xf32>, vector<8x32xf32>, vector<8x32xf32>, vector<8x32xf32>, vector<8x32xf32>, vector<8x32xf32>, vector<8x32xf32>, vector<8x32xf32>, vector<8x32xf32>, vector<8x32xf32>, vector<8x32xf32>, vector<8x32xf32>, vector<8x32xf32> -> vector<128x32xf32>
    %c0_73 = arith.constant 0 : index
    %c0_74 = arith.constant 0 : index
    %330 = vector.load %arg7[%c0_73, %c0_74] : memref<32x128xf32, #tpu.memory_space<vmem>>, vector<32x128xf32>
    %c0_75 = arith.constant 0 : index
    %c0_76 = arith.constant 0 : index
    %331 = vector.load %arg6[%c0_75, %c0_76] : memref<32x128xf32, #tpu.memory_space<vmem>>, vector<32x128xf32>
    %cst_77 = arith.constant dense<0.000000e+00> : vector<128x128xf32>
    %332 = tpu.matmul %329, %331, %cst_77 {dimension_numbers = #tpu.dot_dimension_numbers<[1], [0], [0], [1], [0, 0, 1, 1], [], []>} : vector<128x32xf32>, vector<32x128xf32>, vector<128x128xf32> -> vector<128x128xf32>
    %c0_78 = arith.constant 0 : index
    %c0_79 = arith.constant 0 : index
    %333 = vector.load %arg8[%c0_78, %c0_79] : memref<1x128xf32, #tpu.memory_space<vmem>>, vector<1x128xf32>
    %334 = vector.broadcast %333 : vector<1x128xf32> to vector<128x128xf32>
    %335 = arith.addf %332, %334 : vector<128x128xf32>
    %cst_80 = arith.constant 0.000000e+00 : f32
    %336 = vector.broadcast %cst_80 : f32 to vector<8x32xf32>
    %cst_81 = arith.constant 0.000000e+00 : f32
    %337 = vector.broadcast %cst_81 : f32 to vector<8x32xf32>
    %338 = vector.extract_strided_slice %335 {offsets = [0, 0], sizes = [8, 128], strides = [1, 1]} : vector<128x128xf32> to vector<8x128xf32>
    %cst_82 = arith.constant dense<0.000000e+00> : vector<8x128xf32>
    %339 = tpu.matmul %336, %330, %cst_82 {dimension_numbers = #tpu.dot_dimension_numbers<[1], [0], [0], [1], [0, 0, 1, 1], [], []>} : vector<8x32xf32>, vector<32x128xf32>, vector<8x128xf32> -> vector<8x128xf32>
    %340 = arith.addf %338, %339 : vector<8x128xf32>
    %cst_83 = arith.constant 5.000000e-01 : f32
    %341 = vector.broadcast %cst_83 : f32 to vector<8x128xf32>
    %342 = arith.mulf %341, %340 : vector<8x128xf32>
    %343 = math.tanh %342 : vector<8x128xf32>
    %cst_84 = arith.constant 1.000000e+00 : f32
    %344 = vector.broadcast %cst_84 : f32 to vector<8x128xf32>
    %345 = arith.addf %344, %343 : vector<8x128xf32>
    %cst_85 = arith.constant 5.000000e-01 : f32
    %346 = vector.broadcast %cst_85 : f32 to vector<8x128xf32>
    %347 = arith.mulf %346, %345 : vector<8x128xf32>
    %348 = math.tanh %340 : vector<8x128xf32>
    %349 = vector.extract_strided_slice %347 {offsets = [0, 0], sizes = [8, 32], strides = [1, 1]} : vector<8x128xf32> to vector<8x32xf32>
    %350 = vector.extract_strided_slice %347 {offsets = [0, 32], sizes = [8, 32], strides = [1, 1]} : vector<8x128xf32> to vector<8x32xf32>
    %351 = vector.extract_strided_slice %348 {offsets = [0, 64], sizes = [8, 32], strides = [1, 1]} : vector<8x128xf32> to vector<8x32xf32>
    %352 = vector.extract_strided_slice %347 {offsets = [0, 96], sizes = [8, 32], strides = [1, 1]} : vector<8x128xf32> to vector<8x32xf32>
    %353 = arith.mulf %350, %337 : vector<8x32xf32>
    %354 = arith.mulf %349, %351 : vector<8x32xf32>
    %355 = arith.addf %353, %354 : vector<8x32xf32>
    %356 = math.tanh %355 : vector<8x32xf32>
    %357 = arith.mulf %352, %356 : vector<8x32xf32>
    %358 = vector.extract_strided_slice %335 {offsets = [8, 0], sizes = [8, 128], strides = [1, 1]} : vector<128x128xf32> to vector<8x128xf32>
    %cst_86 = arith.constant dense<0.000000e+00> : vector<8x128xf32>
    %359 = tpu.matmul %357, %330, %cst_86 {dimension_numbers = #tpu.dot_dimension_numbers<[1], [0], [0], [1], [0, 0, 1, 1], [], []>} : vector<8x32xf32>, vector<32x128xf32>, vector<8x128xf32> -> vector<8x128xf32>
    %360 = arith.addf %358, %359 : vector<8x128xf32>
    %cst_87 = arith.constant 5.000000e-01 : f32
    %361 = vector.broadcast %cst_87 : f32 to vector<8x128xf32>
    %362 = arith.mulf %361, %360 : vector<8x128xf32>
    %363 = math.tanh %362 : vector<8x128xf32>
    %cst_88 = arith.constant 1.000000e+00 : f32
    %364 = vector.broadcast %cst_88 : f32 to vector<8x128xf32>
    %365 = arith.addf %364, %363 : vector<8x128xf32>
    %cst_89 = arith.constant 5.000000e-01 : f32
    %366 = vector.broadcast %cst_89 : f32 to vector<8x128xf32>
    %367 = arith.mulf %366, %365 : vector<8x128xf32>
    %368 = math.tanh %360 : vector<8x128xf32>
    %369 = vector.extract_strided_slice %367 {offsets = [0, 0], sizes = [8, 32], strides = [1, 1]} : vector<8x128xf32> to vector<8x32xf32>
    %370 = vector.extract_strided_slice %367 {offsets = [0, 32], sizes = [8, 32], strides = [1, 1]} : vector<8x128xf32> to vector<8x32xf32>
    %371 = vector.extract_strided_slice %368 {offsets = [0, 64], sizes = [8, 32], strides = [1, 1]} : vector<8x128xf32> to vector<8x32xf32>
    %372 = vector.extract_strided_slice %367 {offsets = [0, 96], sizes = [8, 32], strides = [1, 1]} : vector<8x128xf32> to vector<8x32xf32>
    %373 = arith.mulf %370, %355 : vector<8x32xf32>
    %374 = arith.mulf %369, %371 : vector<8x32xf32>
    %375 = arith.addf %373, %374 : vector<8x32xf32>
    %376 = math.tanh %375 : vector<8x32xf32>
    %377 = arith.mulf %372, %376 : vector<8x32xf32>
    %378 = vector.extract_strided_slice %335 {offsets = [16, 0], sizes = [8, 128], strides = [1, 1]} : vector<128x128xf32> to vector<8x128xf32>
    %cst_90 = arith.constant dense<0.000000e+00> : vector<8x128xf32>
    %379 = tpu.matmul %377, %330, %cst_90 {dimension_numbers = #tpu.dot_dimension_numbers<[1], [0], [0], [1], [0, 0, 1, 1], [], []>} : vector<8x32xf32>, vector<32x128xf32>, vector<8x128xf32> -> vector<8x128xf32>
    %380 = arith.addf %378, %379 : vector<8x128xf32>
    %cst_91 = arith.constant 5.000000e-01 : f32
    %381 = vector.broadcast %cst_91 : f32 to vector<8x128xf32>
    %382 = arith.mulf %381, %380 : vector<8x128xf32>
    %383 = math.tanh %382 : vector<8x128xf32>
    %cst_92 = arith.constant 1.000000e+00 : f32
    %384 = vector.broadcast %cst_92 : f32 to vector<8x128xf32>
    %385 = arith.addf %384, %383 : vector<8x128xf32>
    %cst_93 = arith.constant 5.000000e-01 : f32
    %386 = vector.broadcast %cst_93 : f32 to vector<8x128xf32>
    %387 = arith.mulf %386, %385 : vector<8x128xf32>
    %388 = math.tanh %380 : vector<8x128xf32>
    %389 = vector.extract_strided_slice %387 {offsets = [0, 0], sizes = [8, 32], strides = [1, 1]} : vector<8x128xf32> to vector<8x32xf32>
    %390 = vector.extract_strided_slice %387 {offsets = [0, 32], sizes = [8, 32], strides = [1, 1]} : vector<8x128xf32> to vector<8x32xf32>
    %391 = vector.extract_strided_slice %388 {offsets = [0, 64], sizes = [8, 32], strides = [1, 1]} : vector<8x128xf32> to vector<8x32xf32>
    %392 = vector.extract_strided_slice %387 {offsets = [0, 96], sizes = [8, 32], strides = [1, 1]} : vector<8x128xf32> to vector<8x32xf32>
    %393 = arith.mulf %390, %375 : vector<8x32xf32>
    %394 = arith.mulf %389, %391 : vector<8x32xf32>
    %395 = arith.addf %393, %394 : vector<8x32xf32>
    %396 = math.tanh %395 : vector<8x32xf32>
    %397 = arith.mulf %392, %396 : vector<8x32xf32>
    %398 = vector.extract_strided_slice %335 {offsets = [24, 0], sizes = [8, 128], strides = [1, 1]} : vector<128x128xf32> to vector<8x128xf32>
    %cst_94 = arith.constant dense<0.000000e+00> : vector<8x128xf32>
    %399 = tpu.matmul %397, %330, %cst_94 {dimension_numbers = #tpu.dot_dimension_numbers<[1], [0], [0], [1], [0, 0, 1, 1], [], []>} : vector<8x32xf32>, vector<32x128xf32>, vector<8x128xf32> -> vector<8x128xf32>
    %400 = arith.addf %398, %399 : vector<8x128xf32>
    %cst_95 = arith.constant 5.000000e-01 : f32
    %401 = vector.broadcast %cst_95 : f32 to vector<8x128xf32>
    %402 = arith.mulf %401, %400 : vector<8x128xf32>
    %403 = math.tanh %402 : vector<8x128xf32>
    %cst_96 = arith.constant 1.000000e+00 : f32
    %404 = vector.broadcast %cst_96 : f32 to vector<8x128xf32>
    %405 = arith.addf %404, %403 : vector<8x128xf32>
    %cst_97 = arith.constant 5.000000e-01 : f32
    %406 = vector.broadcast %cst_97 : f32 to vector<8x128xf32>
    %407 = arith.mulf %406, %405 : vector<8x128xf32>
    %408 = math.tanh %400 : vector<8x128xf32>
    %409 = vector.extract_strided_slice %407 {offsets = [0, 0], sizes = [8, 32], strides = [1, 1]} : vector<8x128xf32> to vector<8x32xf32>
    %410 = vector.extract_strided_slice %407 {offsets = [0, 32], sizes = [8, 32], strides = [1, 1]} : vector<8x128xf32> to vector<8x32xf32>
    %411 = vector.extract_strided_slice %408 {offsets = [0, 64], sizes = [8, 32], strides = [1, 1]} : vector<8x128xf32> to vector<8x32xf32>
    %412 = vector.extract_strided_slice %407 {offsets = [0, 96], sizes = [8, 32], strides = [1, 1]} : vector<8x128xf32> to vector<8x32xf32>
    %413 = arith.mulf %410, %395 : vector<8x32xf32>
    %414 = arith.mulf %409, %411 : vector<8x32xf32>
    %415 = arith.addf %413, %414 : vector<8x32xf32>
    %416 = math.tanh %415 : vector<8x32xf32>
    %417 = arith.mulf %412, %416 : vector<8x32xf32>
    %418 = vector.extract_strided_slice %335 {offsets = [32, 0], sizes = [8, 128], strides = [1, 1]} : vector<128x128xf32> to vector<8x128xf32>
    %cst_98 = arith.constant dense<0.000000e+00> : vector<8x128xf32>
    %419 = tpu.matmul %417, %330, %cst_98 {dimension_numbers = #tpu.dot_dimension_numbers<[1], [0], [0], [1], [0, 0, 1, 1], [], []>} : vector<8x32xf32>, vector<32x128xf32>, vector<8x128xf32> -> vector<8x128xf32>
    %420 = arith.addf %418, %419 : vector<8x128xf32>
    %cst_99 = arith.constant 5.000000e-01 : f32
    %421 = vector.broadcast %cst_99 : f32 to vector<8x128xf32>
    %422 = arith.mulf %421, %420 : vector<8x128xf32>
    %423 = math.tanh %422 : vector<8x128xf32>
    %cst_100 = arith.constant 1.000000e+00 : f32
    %424 = vector.broadcast %cst_100 : f32 to vector<8x128xf32>
    %425 = arith.addf %424, %423 : vector<8x128xf32>
    %cst_101 = arith.constant 5.000000e-01 : f32
    %426 = vector.broadcast %cst_101 : f32 to vector<8x128xf32>
    %427 = arith.mulf %426, %425 : vector<8x128xf32>
    %428 = math.tanh %420 : vector<8x128xf32>
    %429 = vector.extract_strided_slice %427 {offsets = [0, 0], sizes = [8, 32], strides = [1, 1]} : vector<8x128xf32> to vector<8x32xf32>
    %430 = vector.extract_strided_slice %427 {offsets = [0, 32], sizes = [8, 32], strides = [1, 1]} : vector<8x128xf32> to vector<8x32xf32>
    %431 = vector.extract_strided_slice %428 {offsets = [0, 64], sizes = [8, 32], strides = [1, 1]} : vector<8x128xf32> to vector<8x32xf32>
    %432 = vector.extract_strided_slice %427 {offsets = [0, 96], sizes = [8, 32], strides = [1, 1]} : vector<8x128xf32> to vector<8x32xf32>
    %433 = arith.mulf %430, %415 : vector<8x32xf32>
    %434 = arith.mulf %429, %431 : vector<8x32xf32>
    %435 = arith.addf %433, %434 : vector<8x32xf32>
    %436 = math.tanh %435 : vector<8x32xf32>
    %437 = arith.mulf %432, %436 : vector<8x32xf32>
    %438 = vector.extract_strided_slice %335 {offsets = [40, 0], sizes = [8, 128], strides = [1, 1]} : vector<128x128xf32> to vector<8x128xf32>
    %cst_102 = arith.constant dense<0.000000e+00> : vector<8x128xf32>
    %439 = tpu.matmul %437, %330, %cst_102 {dimension_numbers = #tpu.dot_dimension_numbers<[1], [0], [0], [1], [0, 0, 1, 1], [], []>} : vector<8x32xf32>, vector<32x128xf32>, vector<8x128xf32> -> vector<8x128xf32>
    %440 = arith.addf %438, %439 : vector<8x128xf32>
    %cst_103 = arith.constant 5.000000e-01 : f32
    %441 = vector.broadcast %cst_103 : f32 to vector<8x128xf32>
    %442 = arith.mulf %441, %440 : vector<8x128xf32>
    %443 = math.tanh %442 : vector<8x128xf32>
    %cst_104 = arith.constant 1.000000e+00 : f32
    %444 = vector.broadcast %cst_104 : f32 to vector<8x128xf32>
    %445 = arith.addf %444, %443 : vector<8x128xf32>
    %cst_105 = arith.constant 5.000000e-01 : f32
    %446 = vector.broadcast %cst_105 : f32 to vector<8x128xf32>
    %447 = arith.mulf %446, %445 : vector<8x128xf32>
    %448 = math.tanh %440 : vector<8x128xf32>
    %449 = vector.extract_strided_slice %447 {offsets = [0, 0], sizes = [8, 32], strides = [1, 1]} : vector<8x128xf32> to vector<8x32xf32>
    %450 = vector.extract_strided_slice %447 {offsets = [0, 32], sizes = [8, 32], strides = [1, 1]} : vector<8x128xf32> to vector<8x32xf32>
    %451 = vector.extract_strided_slice %448 {offsets = [0, 64], sizes = [8, 32], strides = [1, 1]} : vector<8x128xf32> to vector<8x32xf32>
    %452 = vector.extract_strided_slice %447 {offsets = [0, 96], sizes = [8, 32], strides = [1, 1]} : vector<8x128xf32> to vector<8x32xf32>
    %453 = arith.mulf %450, %435 : vector<8x32xf32>
    %454 = arith.mulf %449, %451 : vector<8x32xf32>
    %455 = arith.addf %453, %454 : vector<8x32xf32>
    %456 = math.tanh %455 : vector<8x32xf32>
    %457 = arith.mulf %452, %456 : vector<8x32xf32>
    %458 = vector.extract_strided_slice %335 {offsets = [48, 0], sizes = [8, 128], strides = [1, 1]} : vector<128x128xf32> to vector<8x128xf32>
    %cst_106 = arith.constant dense<0.000000e+00> : vector<8x128xf32>
    %459 = tpu.matmul %457, %330, %cst_106 {dimension_numbers = #tpu.dot_dimension_numbers<[1], [0], [0], [1], [0, 0, 1, 1], [], []>} : vector<8x32xf32>, vector<32x128xf32>, vector<8x128xf32> -> vector<8x128xf32>
    %460 = arith.addf %458, %459 : vector<8x128xf32>
    %cst_107 = arith.constant 5.000000e-01 : f32
    %461 = vector.broadcast %cst_107 : f32 to vector<8x128xf32>
    %462 = arith.mulf %461, %460 : vector<8x128xf32>
    %463 = math.tanh %462 : vector<8x128xf32>
    %cst_108 = arith.constant 1.000000e+00 : f32
    %464 = vector.broadcast %cst_108 : f32 to vector<8x128xf32>
    %465 = arith.addf %464, %463 : vector<8x128xf32>
    %cst_109 = arith.constant 5.000000e-01 : f32
    %466 = vector.broadcast %cst_109 : f32 to vector<8x128xf32>
    %467 = arith.mulf %466, %465 : vector<8x128xf32>
    %468 = math.tanh %460 : vector<8x128xf32>
    %469 = vector.extract_strided_slice %467 {offsets = [0, 0], sizes = [8, 32], strides = [1, 1]} : vector<8x128xf32> to vector<8x32xf32>
    %470 = vector.extract_strided_slice %467 {offsets = [0, 32], sizes = [8, 32], strides = [1, 1]} : vector<8x128xf32> to vector<8x32xf32>
    %471 = vector.extract_strided_slice %468 {offsets = [0, 64], sizes = [8, 32], strides = [1, 1]} : vector<8x128xf32> to vector<8x32xf32>
    %472 = vector.extract_strided_slice %467 {offsets = [0, 96], sizes = [8, 32], strides = [1, 1]} : vector<8x128xf32> to vector<8x32xf32>
    %473 = arith.mulf %470, %455 : vector<8x32xf32>
    %474 = arith.mulf %469, %471 : vector<8x32xf32>
    %475 = arith.addf %473, %474 : vector<8x32xf32>
    %476 = math.tanh %475 : vector<8x32xf32>
    %477 = arith.mulf %472, %476 : vector<8x32xf32>
    %478 = vector.extract_strided_slice %335 {offsets = [56, 0], sizes = [8, 128], strides = [1, 1]} : vector<128x128xf32> to vector<8x128xf32>
    %cst_110 = arith.constant dense<0.000000e+00> : vector<8x128xf32>
    %479 = tpu.matmul %477, %330, %cst_110 {dimension_numbers = #tpu.dot_dimension_numbers<[1], [0], [0], [1], [0, 0, 1, 1], [], []>} : vector<8x32xf32>, vector<32x128xf32>, vector<8x128xf32> -> vector<8x128xf32>
    %480 = arith.addf %478, %479 : vector<8x128xf32>
    %cst_111 = arith.constant 5.000000e-01 : f32
    %481 = vector.broadcast %cst_111 : f32 to vector<8x128xf32>
    %482 = arith.mulf %481, %480 : vector<8x128xf32>
    %483 = math.tanh %482 : vector<8x128xf32>
    %cst_112 = arith.constant 1.000000e+00 : f32
    %484 = vector.broadcast %cst_112 : f32 to vector<8x128xf32>
    %485 = arith.addf %484, %483 : vector<8x128xf32>
    %cst_113 = arith.constant 5.000000e-01 : f32
    %486 = vector.broadcast %cst_113 : f32 to vector<8x128xf32>
    %487 = arith.mulf %486, %485 : vector<8x128xf32>
    %488 = math.tanh %480 : vector<8x128xf32>
    %489 = vector.extract_strided_slice %487 {offsets = [0, 0], sizes = [8, 32], strides = [1, 1]} : vector<8x128xf32> to vector<8x32xf32>
    %490 = vector.extract_strided_slice %487 {offsets = [0, 32], sizes = [8, 32], strides = [1, 1]} : vector<8x128xf32> to vector<8x32xf32>
    %491 = vector.extract_strided_slice %488 {offsets = [0, 64], sizes = [8, 32], strides = [1, 1]} : vector<8x128xf32> to vector<8x32xf32>
    %492 = vector.extract_strided_slice %487 {offsets = [0, 96], sizes = [8, 32], strides = [1, 1]} : vector<8x128xf32> to vector<8x32xf32>
    %493 = arith.mulf %490, %475 : vector<8x32xf32>
    %494 = arith.mulf %489, %491 : vector<8x32xf32>
    %495 = arith.addf %493, %494 : vector<8x32xf32>
    %496 = math.tanh %495 : vector<8x32xf32>
    %497 = arith.mulf %492, %496 : vector<8x32xf32>
    %498 = vector.extract_strided_slice %335 {offsets = [64, 0], sizes = [8, 128], strides = [1, 1]} : vector<128x128xf32> to vector<8x128xf32>
    %cst_114 = arith.constant dense<0.000000e+00> : vector<8x128xf32>
    %499 = tpu.matmul %497, %330, %cst_114 {dimension_numbers = #tpu.dot_dimension_numbers<[1], [0], [0], [1], [0, 0, 1, 1], [], []>} : vector<8x32xf32>, vector<32x128xf32>, vector<8x128xf32> -> vector<8x128xf32>
    %500 = arith.addf %498, %499 : vector<8x128xf32>
    %cst_115 = arith.constant 5.000000e-01 : f32
    %501 = vector.broadcast %cst_115 : f32 to vector<8x128xf32>
    %502 = arith.mulf %501, %500 : vector<8x128xf32>
    %503 = math.tanh %502 : vector<8x128xf32>
    %cst_116 = arith.constant 1.000000e+00 : f32
    %504 = vector.broadcast %cst_116 : f32 to vector<8x128xf32>
    %505 = arith.addf %504, %503 : vector<8x128xf32>
    %cst_117 = arith.constant 5.000000e-01 : f32
    %506 = vector.broadcast %cst_117 : f32 to vector<8x128xf32>
    %507 = arith.mulf %506, %505 : vector<8x128xf32>
    %508 = math.tanh %500 : vector<8x128xf32>
    %509 = vector.extract_strided_slice %507 {offsets = [0, 0], sizes = [8, 32], strides = [1, 1]} : vector<8x128xf32> to vector<8x32xf32>
    %510 = vector.extract_strided_slice %507 {offsets = [0, 32], sizes = [8, 32], strides = [1, 1]} : vector<8x128xf32> to vector<8x32xf32>
    %511 = vector.extract_strided_slice %508 {offsets = [0, 64], sizes = [8, 32], strides = [1, 1]} : vector<8x128xf32> to vector<8x32xf32>
    %512 = vector.extract_strided_slice %507 {offsets = [0, 96], sizes = [8, 32], strides = [1, 1]} : vector<8x128xf32> to vector<8x32xf32>
    %513 = arith.mulf %510, %495 : vector<8x32xf32>
    %514 = arith.mulf %509, %511 : vector<8x32xf32>
    %515 = arith.addf %513, %514 : vector<8x32xf32>
    %516 = math.tanh %515 : vector<8x32xf32>
    %517 = arith.mulf %512, %516 : vector<8x32xf32>
    %518 = vector.extract_strided_slice %335 {offsets = [72, 0], sizes = [8, 128], strides = [1, 1]} : vector<128x128xf32> to vector<8x128xf32>
    %cst_118 = arith.constant dense<0.000000e+00> : vector<8x128xf32>
    %519 = tpu.matmul %517, %330, %cst_118 {dimension_numbers = #tpu.dot_dimension_numbers<[1], [0], [0], [1], [0, 0, 1, 1], [], []>} : vector<8x32xf32>, vector<32x128xf32>, vector<8x128xf32> -> vector<8x128xf32>
    %520 = arith.addf %518, %519 : vector<8x128xf32>
    %cst_119 = arith.constant 5.000000e-01 : f32
    %521 = vector.broadcast %cst_119 : f32 to vector<8x128xf32>
    %522 = arith.mulf %521, %520 : vector<8x128xf32>
    %523 = math.tanh %522 : vector<8x128xf32>
    %cst_120 = arith.constant 1.000000e+00 : f32
    %524 = vector.broadcast %cst_120 : f32 to vector<8x128xf32>
    %525 = arith.addf %524, %523 : vector<8x128xf32>
    %cst_121 = arith.constant 5.000000e-01 : f32
    %526 = vector.broadcast %cst_121 : f32 to vector<8x128xf32>
    %527 = arith.mulf %526, %525 : vector<8x128xf32>
    %528 = math.tanh %520 : vector<8x128xf32>
    %529 = vector.extract_strided_slice %527 {offsets = [0, 0], sizes = [8, 32], strides = [1, 1]} : vector<8x128xf32> to vector<8x32xf32>
    %530 = vector.extract_strided_slice %527 {offsets = [0, 32], sizes = [8, 32], strides = [1, 1]} : vector<8x128xf32> to vector<8x32xf32>
    %531 = vector.extract_strided_slice %528 {offsets = [0, 64], sizes = [8, 32], strides = [1, 1]} : vector<8x128xf32> to vector<8x32xf32>
    %532 = vector.extract_strided_slice %527 {offsets = [0, 96], sizes = [8, 32], strides = [1, 1]} : vector<8x128xf32> to vector<8x32xf32>
    %533 = arith.mulf %530, %515 : vector<8x32xf32>
    %534 = arith.mulf %529, %531 : vector<8x32xf32>
    %535 = arith.addf %533, %534 : vector<8x32xf32>
    %536 = math.tanh %535 : vector<8x32xf32>
    %537 = arith.mulf %532, %536 : vector<8x32xf32>
    %538 = vector.extract_strided_slice %335 {offsets = [80, 0], sizes = [8, 128], strides = [1, 1]} : vector<128x128xf32> to vector<8x128xf32>
    %cst_122 = arith.constant dense<0.000000e+00> : vector<8x128xf32>
    %539 = tpu.matmul %537, %330, %cst_122 {dimension_numbers = #tpu.dot_dimension_numbers<[1], [0], [0], [1], [0, 0, 1, 1], [], []>} : vector<8x32xf32>, vector<32x128xf32>, vector<8x128xf32> -> vector<8x128xf32>
    %540 = arith.addf %538, %539 : vector<8x128xf32>
    %cst_123 = arith.constant 5.000000e-01 : f32
    %541 = vector.broadcast %cst_123 : f32 to vector<8x128xf32>
    %542 = arith.mulf %541, %540 : vector<8x128xf32>
    %543 = math.tanh %542 : vector<8x128xf32>
    %cst_124 = arith.constant 1.000000e+00 : f32
    %544 = vector.broadcast %cst_124 : f32 to vector<8x128xf32>
    %545 = arith.addf %544, %543 : vector<8x128xf32>
    %cst_125 = arith.constant 5.000000e-01 : f32
    %546 = vector.broadcast %cst_125 : f32 to vector<8x128xf32>
    %547 = arith.mulf %546, %545 : vector<8x128xf32>
    %548 = math.tanh %540 : vector<8x128xf32>
    %549 = vector.extract_strided_slice %547 {offsets = [0, 0], sizes = [8, 32], strides = [1, 1]} : vector<8x128xf32> to vector<8x32xf32>
    %550 = vector.extract_strided_slice %547 {offsets = [0, 32], sizes = [8, 32], strides = [1, 1]} : vector<8x128xf32> to vector<8x32xf32>
    %551 = vector.extract_strided_slice %548 {offsets = [0, 64], sizes = [8, 32], strides = [1, 1]} : vector<8x128xf32> to vector<8x32xf32>
    %552 = vector.extract_strided_slice %547 {offsets = [0, 96], sizes = [8, 32], strides = [1, 1]} : vector<8x128xf32> to vector<8x32xf32>
    %553 = arith.mulf %550, %535 : vector<8x32xf32>
    %554 = arith.mulf %549, %551 : vector<8x32xf32>
    %555 = arith.addf %553, %554 : vector<8x32xf32>
    %556 = math.tanh %555 : vector<8x32xf32>
    %557 = arith.mulf %552, %556 : vector<8x32xf32>
    %558 = vector.extract_strided_slice %335 {offsets = [88, 0], sizes = [8, 128], strides = [1, 1]} : vector<128x128xf32> to vector<8x128xf32>
    %cst_126 = arith.constant dense<0.000000e+00> : vector<8x128xf32>
    %559 = tpu.matmul %557, %330, %cst_126 {dimension_numbers = #tpu.dot_dimension_numbers<[1], [0], [0], [1], [0, 0, 1, 1], [], []>} : vector<8x32xf32>, vector<32x128xf32>, vector<8x128xf32> -> vector<8x128xf32>
    %560 = arith.addf %558, %559 : vector<8x128xf32>
    %cst_127 = arith.constant 5.000000e-01 : f32
    %561 = vector.broadcast %cst_127 : f32 to vector<8x128xf32>
    %562 = arith.mulf %561, %560 : vector<8x128xf32>
    %563 = math.tanh %562 : vector<8x128xf32>
    %cst_128 = arith.constant 1.000000e+00 : f32
    %564 = vector.broadcast %cst_128 : f32 to vector<8x128xf32>
    %565 = arith.addf %564, %563 : vector<8x128xf32>
    %cst_129 = arith.constant 5.000000e-01 : f32
    %566 = vector.broadcast %cst_129 : f32 to vector<8x128xf32>
    %567 = arith.mulf %566, %565 : vector<8x128xf32>
    %568 = math.tanh %560 : vector<8x128xf32>
    %569 = vector.extract_strided_slice %567 {offsets = [0, 0], sizes = [8, 32], strides = [1, 1]} : vector<8x128xf32> to vector<8x32xf32>
    %570 = vector.extract_strided_slice %567 {offsets = [0, 32], sizes = [8, 32], strides = [1, 1]} : vector<8x128xf32> to vector<8x32xf32>
    %571 = vector.extract_strided_slice %568 {offsets = [0, 64], sizes = [8, 32], strides = [1, 1]} : vector<8x128xf32> to vector<8x32xf32>
    %572 = vector.extract_strided_slice %567 {offsets = [0, 96], sizes = [8, 32], strides = [1, 1]} : vector<8x128xf32> to vector<8x32xf32>
    %573 = arith.mulf %570, %555 : vector<8x32xf32>
    %574 = arith.mulf %569, %571 : vector<8x32xf32>
    %575 = arith.addf %573, %574 : vector<8x32xf32>
    %576 = math.tanh %575 : vector<8x32xf32>
    %577 = arith.mulf %572, %576 : vector<8x32xf32>
    %578 = vector.extract_strided_slice %335 {offsets = [96, 0], sizes = [8, 128], strides = [1, 1]} : vector<128x128xf32> to vector<8x128xf32>
    %cst_130 = arith.constant dense<0.000000e+00> : vector<8x128xf32>
    %579 = tpu.matmul %577, %330, %cst_130 {dimension_numbers = #tpu.dot_dimension_numbers<[1], [0], [0], [1], [0, 0, 1, 1], [], []>} : vector<8x32xf32>, vector<32x128xf32>, vector<8x128xf32> -> vector<8x128xf32>
    %580 = arith.addf %578, %579 : vector<8x128xf32>
    %cst_131 = arith.constant 5.000000e-01 : f32
    %581 = vector.broadcast %cst_131 : f32 to vector<8x128xf32>
    %582 = arith.mulf %581, %580 : vector<8x128xf32>
    %583 = math.tanh %582 : vector<8x128xf32>
    %cst_132 = arith.constant 1.000000e+00 : f32
    %584 = vector.broadcast %cst_132 : f32 to vector<8x128xf32>
    %585 = arith.addf %584, %583 : vector<8x128xf32>
    %cst_133 = arith.constant 5.000000e-01 : f32
    %586 = vector.broadcast %cst_133 : f32 to vector<8x128xf32>
    %587 = arith.mulf %586, %585 : vector<8x128xf32>
    %588 = math.tanh %580 : vector<8x128xf32>
    %589 = vector.extract_strided_slice %587 {offsets = [0, 0], sizes = [8, 32], strides = [1, 1]} : vector<8x128xf32> to vector<8x32xf32>
    %590 = vector.extract_strided_slice %587 {offsets = [0, 32], sizes = [8, 32], strides = [1, 1]} : vector<8x128xf32> to vector<8x32xf32>
    %591 = vector.extract_strided_slice %588 {offsets = [0, 64], sizes = [8, 32], strides = [1, 1]} : vector<8x128xf32> to vector<8x32xf32>
    %592 = vector.extract_strided_slice %587 {offsets = [0, 96], sizes = [8, 32], strides = [1, 1]} : vector<8x128xf32> to vector<8x32xf32>
    %593 = arith.mulf %590, %575 : vector<8x32xf32>
    %594 = arith.mulf %589, %591 : vector<8x32xf32>
    %595 = arith.addf %593, %594 : vector<8x32xf32>
    %596 = math.tanh %595 : vector<8x32xf32>
    %597 = arith.mulf %592, %596 : vector<8x32xf32>
    %598 = vector.extract_strided_slice %335 {offsets = [104, 0], sizes = [8, 128], strides = [1, 1]} : vector<128x128xf32> to vector<8x128xf32>
    %cst_134 = arith.constant dense<0.000000e+00> : vector<8x128xf32>
    %599 = tpu.matmul %597, %330, %cst_134 {dimension_numbers = #tpu.dot_dimension_numbers<[1], [0], [0], [1], [0, 0, 1, 1], [], []>} : vector<8x32xf32>, vector<32x128xf32>, vector<8x128xf32> -> vector<8x128xf32>
    %600 = arith.addf %598, %599 : vector<8x128xf32>
    %cst_135 = arith.constant 5.000000e-01 : f32
    %601 = vector.broadcast %cst_135 : f32 to vector<8x128xf32>
    %602 = arith.mulf %601, %600 : vector<8x128xf32>
    %603 = math.tanh %602 : vector<8x128xf32>
    %cst_136 = arith.constant 1.000000e+00 : f32
    %604 = vector.broadcast %cst_136 : f32 to vector<8x128xf32>
    %605 = arith.addf %604, %603 : vector<8x128xf32>
    %cst_137 = arith.constant 5.000000e-01 : f32
    %606 = vector.broadcast %cst_137 : f32 to vector<8x128xf32>
    %607 = arith.mulf %606, %605 : vector<8x128xf32>
    %608 = math.tanh %600 : vector<8x128xf32>
    %609 = vector.extract_strided_slice %607 {offsets = [0, 0], sizes = [8, 32], strides = [1, 1]} : vector<8x128xf32> to vector<8x32xf32>
    %610 = vector.extract_strided_slice %607 {offsets = [0, 32], sizes = [8, 32], strides = [1, 1]} : vector<8x128xf32> to vector<8x32xf32>
    %611 = vector.extract_strided_slice %608 {offsets = [0, 64], sizes = [8, 32], strides = [1, 1]} : vector<8x128xf32> to vector<8x32xf32>
    %612 = vector.extract_strided_slice %607 {offsets = [0, 96], sizes = [8, 32], strides = [1, 1]} : vector<8x128xf32> to vector<8x32xf32>
    %613 = arith.mulf %610, %595 : vector<8x32xf32>
    %614 = arith.mulf %609, %611 : vector<8x32xf32>
    %615 = arith.addf %613, %614 : vector<8x32xf32>
    %616 = math.tanh %615 : vector<8x32xf32>
    %617 = arith.mulf %612, %616 : vector<8x32xf32>
    %618 = vector.extract_strided_slice %335 {offsets = [112, 0], sizes = [8, 128], strides = [1, 1]} : vector<128x128xf32> to vector<8x128xf32>
    %cst_138 = arith.constant dense<0.000000e+00> : vector<8x128xf32>
    %619 = tpu.matmul %617, %330, %cst_138 {dimension_numbers = #tpu.dot_dimension_numbers<[1], [0], [0], [1], [0, 0, 1, 1], [], []>} : vector<8x32xf32>, vector<32x128xf32>, vector<8x128xf32> -> vector<8x128xf32>
    %620 = arith.addf %618, %619 : vector<8x128xf32>
    %cst_139 = arith.constant 5.000000e-01 : f32
    %621 = vector.broadcast %cst_139 : f32 to vector<8x128xf32>
    %622 = arith.mulf %621, %620 : vector<8x128xf32>
    %623 = math.tanh %622 : vector<8x128xf32>
    %cst_140 = arith.constant 1.000000e+00 : f32
    %624 = vector.broadcast %cst_140 : f32 to vector<8x128xf32>
    %625 = arith.addf %624, %623 : vector<8x128xf32>
    %cst_141 = arith.constant 5.000000e-01 : f32
    %626 = vector.broadcast %cst_141 : f32 to vector<8x128xf32>
    %627 = arith.mulf %626, %625 : vector<8x128xf32>
    %628 = math.tanh %620 : vector<8x128xf32>
    %629 = vector.extract_strided_slice %627 {offsets = [0, 0], sizes = [8, 32], strides = [1, 1]} : vector<8x128xf32> to vector<8x32xf32>
    %630 = vector.extract_strided_slice %627 {offsets = [0, 32], sizes = [8, 32], strides = [1, 1]} : vector<8x128xf32> to vector<8x32xf32>
    %631 = vector.extract_strided_slice %628 {offsets = [0, 64], sizes = [8, 32], strides = [1, 1]} : vector<8x128xf32> to vector<8x32xf32>
    %632 = vector.extract_strided_slice %627 {offsets = [0, 96], sizes = [8, 32], strides = [1, 1]} : vector<8x128xf32> to vector<8x32xf32>
    %633 = arith.mulf %630, %615 : vector<8x32xf32>
    %634 = arith.mulf %629, %631 : vector<8x32xf32>
    %635 = arith.addf %633, %634 : vector<8x32xf32>
    %636 = math.tanh %635 : vector<8x32xf32>
    %637 = arith.mulf %632, %636 : vector<8x32xf32>
    %638 = vector.extract_strided_slice %335 {offsets = [120, 0], sizes = [8, 128], strides = [1, 1]} : vector<128x128xf32> to vector<8x128xf32>
    %cst_142 = arith.constant dense<0.000000e+00> : vector<8x128xf32>
    %639 = tpu.matmul %637, %330, %cst_142 {dimension_numbers = #tpu.dot_dimension_numbers<[1], [0], [0], [1], [0, 0, 1, 1], [], []>} : vector<8x32xf32>, vector<32x128xf32>, vector<8x128xf32> -> vector<8x128xf32>
    %640 = arith.addf %638, %639 : vector<8x128xf32>
    %cst_143 = arith.constant 5.000000e-01 : f32
    %641 = vector.broadcast %cst_143 : f32 to vector<8x128xf32>
    %642 = arith.mulf %641, %640 : vector<8x128xf32>
    %643 = math.tanh %642 : vector<8x128xf32>
    %cst_144 = arith.constant 1.000000e+00 : f32
    %644 = vector.broadcast %cst_144 : f32 to vector<8x128xf32>
    %645 = arith.addf %644, %643 : vector<8x128xf32>
    %cst_145 = arith.constant 5.000000e-01 : f32
    %646 = vector.broadcast %cst_145 : f32 to vector<8x128xf32>
    %647 = arith.mulf %646, %645 : vector<8x128xf32>
    %648 = math.tanh %640 : vector<8x128xf32>
    %649 = vector.extract_strided_slice %647 {offsets = [0, 0], sizes = [8, 32], strides = [1, 1]} : vector<8x128xf32> to vector<8x32xf32>
    %650 = vector.extract_strided_slice %647 {offsets = [0, 32], sizes = [8, 32], strides = [1, 1]} : vector<8x128xf32> to vector<8x32xf32>
    %651 = vector.extract_strided_slice %648 {offsets = [0, 64], sizes = [8, 32], strides = [1, 1]} : vector<8x128xf32> to vector<8x32xf32>
    %652 = vector.extract_strided_slice %647 {offsets = [0, 96], sizes = [8, 32], strides = [1, 1]} : vector<8x128xf32> to vector<8x32xf32>
    %653 = arith.mulf %650, %635 : vector<8x32xf32>
    %654 = arith.mulf %649, %651 : vector<8x32xf32>
    %655 = arith.addf %653, %654 : vector<8x32xf32>
    %656 = math.tanh %655 : vector<8x32xf32>
    %657 = arith.mulf %652, %656 : vector<8x32xf32>
    %658 = tpu.concatenate %357, %377, %397, %417, %437, %457, %477, %497, %517, %537, %557, %577, %597, %617, %637, %657 in 0 : vector<8x32xf32>, vector<8x32xf32>, vector<8x32xf32>, vector<8x32xf32>, vector<8x32xf32>, vector<8x32xf32>, vector<8x32xf32>, vector<8x32xf32>, vector<8x32xf32>, vector<8x32xf32>, vector<8x32xf32>, vector<8x32xf32>, vector<8x32xf32>, vector<8x32xf32>, vector<8x32xf32>, vector<8x32xf32> -> vector<128x32xf32>
    %c0_146 = arith.constant 0 : index
    %c0_147 = arith.constant 0 : index
    %659 = vector.load %arg10[%c0_146, %c0_147] : memref<32x128xf32, #tpu.memory_space<vmem>>, vector<32x128xf32>
    %c0_148 = arith.constant 0 : index
    %c0_149 = arith.constant 0 : index
    %660 = vector.load %arg9[%c0_148, %c0_149] : memref<32x128xf32, #tpu.memory_space<vmem>>, vector<32x128xf32>
    %cst_150 = arith.constant dense<0.000000e+00> : vector<128x128xf32>
    %661 = tpu.matmul %658, %660, %cst_150 {dimension_numbers = #tpu.dot_dimension_numbers<[1], [0], [0], [1], [0, 0, 1, 1], [], []>} : vector<128x32xf32>, vector<32x128xf32>, vector<128x128xf32> -> vector<128x128xf32>
    %c0_151 = arith.constant 0 : index
    %c0_152 = arith.constant 0 : index
    %662 = vector.load %arg11[%c0_151, %c0_152] : memref<1x128xf32, #tpu.memory_space<vmem>>, vector<1x128xf32>
    %663 = vector.broadcast %662 : vector<1x128xf32> to vector<128x128xf32>
    %664 = arith.addf %661, %663 : vector<128x128xf32>
    %cst_153 = arith.constant 0.000000e+00 : f32
    %665 = vector.broadcast %cst_153 : f32 to vector<8x32xf32>
    %cst_154 = arith.constant 0.000000e+00 : f32
    %666 = vector.broadcast %cst_154 : f32 to vector<8x32xf32>
    %667 = vector.extract_strided_slice %664 {offsets = [0, 0], sizes = [8, 128], strides = [1, 1]} : vector<128x128xf32> to vector<8x128xf32>
    %cst_155 = arith.constant dense<0.000000e+00> : vector<8x128xf32>
    %668 = tpu.matmul %665, %659, %cst_155 {dimension_numbers = #tpu.dot_dimension_numbers<[1], [0], [0], [1], [0, 0, 1, 1], [], []>} : vector<8x32xf32>, vector<32x128xf32>, vector<8x128xf32> -> vector<8x128xf32>
    %669 = arith.addf %667, %668 : vector<8x128xf32>
    %cst_156 = arith.constant 5.000000e-01 : f32
    %670 = vector.broadcast %cst_156 : f32 to vector<8x128xf32>
    %671 = arith.mulf %670, %669 : vector<8x128xf32>
    %672 = math.tanh %671 : vector<8x128xf32>
    %cst_157 = arith.constant 1.000000e+00 : f32
    %673 = vector.broadcast %cst_157 : f32 to vector<8x128xf32>
    %674 = arith.addf %673, %672 : vector<8x128xf32>
    %cst_158 = arith.constant 5.000000e-01 : f32
    %675 = vector.broadcast %cst_158 : f32 to vector<8x128xf32>
    %676 = arith.mulf %675, %674 : vector<8x128xf32>
    %677 = math.tanh %669 : vector<8x128xf32>
    %678 = vector.extract_strided_slice %676 {offsets = [0, 0], sizes = [8, 32], strides = [1, 1]} : vector<8x128xf32> to vector<8x32xf32>
    %679 = vector.extract_strided_slice %676 {offsets = [0, 32], sizes = [8, 32], strides = [1, 1]} : vector<8x128xf32> to vector<8x32xf32>
    %680 = vector.extract_strided_slice %677 {offsets = [0, 64], sizes = [8, 32], strides = [1, 1]} : vector<8x128xf32> to vector<8x32xf32>
    %681 = vector.extract_strided_slice %676 {offsets = [0, 96], sizes = [8, 32], strides = [1, 1]} : vector<8x128xf32> to vector<8x32xf32>
    %682 = arith.mulf %679, %666 : vector<8x32xf32>
    %683 = arith.mulf %678, %680 : vector<8x32xf32>
    %684 = arith.addf %682, %683 : vector<8x32xf32>
    %685 = math.tanh %684 : vector<8x32xf32>
    %686 = arith.mulf %681, %685 : vector<8x32xf32>
    %687 = vector.extract_strided_slice %664 {offsets = [8, 0], sizes = [8, 128], strides = [1, 1]} : vector<128x128xf32> to vector<8x128xf32>
    %cst_159 = arith.constant dense<0.000000e+00> : vector<8x128xf32>
    %688 = tpu.matmul %686, %659, %cst_159 {dimension_numbers = #tpu.dot_dimension_numbers<[1], [0], [0], [1], [0, 0, 1, 1], [], []>} : vector<8x32xf32>, vector<32x128xf32>, vector<8x128xf32> -> vector<8x128xf32>
    %689 = arith.addf %687, %688 : vector<8x128xf32>
    %cst_160 = arith.constant 5.000000e-01 : f32
    %690 = vector.broadcast %cst_160 : f32 to vector<8x128xf32>
    %691 = arith.mulf %690, %689 : vector<8x128xf32>
    %692 = math.tanh %691 : vector<8x128xf32>
    %cst_161 = arith.constant 1.000000e+00 : f32
    %693 = vector.broadcast %cst_161 : f32 to vector<8x128xf32>
    %694 = arith.addf %693, %692 : vector<8x128xf32>
    %cst_162 = arith.constant 5.000000e-01 : f32
    %695 = vector.broadcast %cst_162 : f32 to vector<8x128xf32>
    %696 = arith.mulf %695, %694 : vector<8x128xf32>
    %697 = math.tanh %689 : vector<8x128xf32>
    %698 = vector.extract_strided_slice %696 {offsets = [0, 0], sizes = [8, 32], strides = [1, 1]} : vector<8x128xf32> to vector<8x32xf32>
    %699 = vector.extract_strided_slice %696 {offsets = [0, 32], sizes = [8, 32], strides = [1, 1]} : vector<8x128xf32> to vector<8x32xf32>
    %700 = vector.extract_strided_slice %697 {offsets = [0, 64], sizes = [8, 32], strides = [1, 1]} : vector<8x128xf32> to vector<8x32xf32>
    %701 = vector.extract_strided_slice %696 {offsets = [0, 96], sizes = [8, 32], strides = [1, 1]} : vector<8x128xf32> to vector<8x32xf32>
    %702 = arith.mulf %699, %684 : vector<8x32xf32>
    %703 = arith.mulf %698, %700 : vector<8x32xf32>
    %704 = arith.addf %702, %703 : vector<8x32xf32>
    %705 = math.tanh %704 : vector<8x32xf32>
    %706 = arith.mulf %701, %705 : vector<8x32xf32>
    %707 = vector.extract_strided_slice %664 {offsets = [16, 0], sizes = [8, 128], strides = [1, 1]} : vector<128x128xf32> to vector<8x128xf32>
    %cst_163 = arith.constant dense<0.000000e+00> : vector<8x128xf32>
    %708 = tpu.matmul %706, %659, %cst_163 {dimension_numbers = #tpu.dot_dimension_numbers<[1], [0], [0], [1], [0, 0, 1, 1], [], []>} : vector<8x32xf32>, vector<32x128xf32>, vector<8x128xf32> -> vector<8x128xf32>
    %709 = arith.addf %707, %708 : vector<8x128xf32>
    %cst_164 = arith.constant 5.000000e-01 : f32
    %710 = vector.broadcast %cst_164 : f32 to vector<8x128xf32>
    %711 = arith.mulf %710, %709 : vector<8x128xf32>
    %712 = math.tanh %711 : vector<8x128xf32>
    %cst_165 = arith.constant 1.000000e+00 : f32
    %713 = vector.broadcast %cst_165 : f32 to vector<8x128xf32>
    %714 = arith.addf %713, %712 : vector<8x128xf32>
    %cst_166 = arith.constant 5.000000e-01 : f32
    %715 = vector.broadcast %cst_166 : f32 to vector<8x128xf32>
    %716 = arith.mulf %715, %714 : vector<8x128xf32>
    %717 = math.tanh %709 : vector<8x128xf32>
    %718 = vector.extract_strided_slice %716 {offsets = [0, 0], sizes = [8, 32], strides = [1, 1]} : vector<8x128xf32> to vector<8x32xf32>
    %719 = vector.extract_strided_slice %716 {offsets = [0, 32], sizes = [8, 32], strides = [1, 1]} : vector<8x128xf32> to vector<8x32xf32>
    %720 = vector.extract_strided_slice %717 {offsets = [0, 64], sizes = [8, 32], strides = [1, 1]} : vector<8x128xf32> to vector<8x32xf32>
    %721 = vector.extract_strided_slice %716 {offsets = [0, 96], sizes = [8, 32], strides = [1, 1]} : vector<8x128xf32> to vector<8x32xf32>
    %722 = arith.mulf %719, %704 : vector<8x32xf32>
    %723 = arith.mulf %718, %720 : vector<8x32xf32>
    %724 = arith.addf %722, %723 : vector<8x32xf32>
    %725 = math.tanh %724 : vector<8x32xf32>
    %726 = arith.mulf %721, %725 : vector<8x32xf32>
    %727 = vector.extract_strided_slice %664 {offsets = [24, 0], sizes = [8, 128], strides = [1, 1]} : vector<128x128xf32> to vector<8x128xf32>
    %cst_167 = arith.constant dense<0.000000e+00> : vector<8x128xf32>
    %728 = tpu.matmul %726, %659, %cst_167 {dimension_numbers = #tpu.dot_dimension_numbers<[1], [0], [0], [1], [0, 0, 1, 1], [], []>} : vector<8x32xf32>, vector<32x128xf32>, vector<8x128xf32> -> vector<8x128xf32>
    %729 = arith.addf %727, %728 : vector<8x128xf32>
    %cst_168 = arith.constant 5.000000e-01 : f32
    %730 = vector.broadcast %cst_168 : f32 to vector<8x128xf32>
    %731 = arith.mulf %730, %729 : vector<8x128xf32>
    %732 = math.tanh %731 : vector<8x128xf32>
    %cst_169 = arith.constant 1.000000e+00 : f32
    %733 = vector.broadcast %cst_169 : f32 to vector<8x128xf32>
    %734 = arith.addf %733, %732 : vector<8x128xf32>
    %cst_170 = arith.constant 5.000000e-01 : f32
    %735 = vector.broadcast %cst_170 : f32 to vector<8x128xf32>
    %736 = arith.mulf %735, %734 : vector<8x128xf32>
    %737 = math.tanh %729 : vector<8x128xf32>
    %738 = vector.extract_strided_slice %736 {offsets = [0, 0], sizes = [8, 32], strides = [1, 1]} : vector<8x128xf32> to vector<8x32xf32>
    %739 = vector.extract_strided_slice %736 {offsets = [0, 32], sizes = [8, 32], strides = [1, 1]} : vector<8x128xf32> to vector<8x32xf32>
    %740 = vector.extract_strided_slice %737 {offsets = [0, 64], sizes = [8, 32], strides = [1, 1]} : vector<8x128xf32> to vector<8x32xf32>
    %741 = vector.extract_strided_slice %736 {offsets = [0, 96], sizes = [8, 32], strides = [1, 1]} : vector<8x128xf32> to vector<8x32xf32>
    %742 = arith.mulf %739, %724 : vector<8x32xf32>
    %743 = arith.mulf %738, %740 : vector<8x32xf32>
    %744 = arith.addf %742, %743 : vector<8x32xf32>
    %745 = math.tanh %744 : vector<8x32xf32>
    %746 = arith.mulf %741, %745 : vector<8x32xf32>
    %747 = vector.extract_strided_slice %664 {offsets = [32, 0], sizes = [8, 128], strides = [1, 1]} : vector<128x128xf32> to vector<8x128xf32>
    %cst_171 = arith.constant dense<0.000000e+00> : vector<8x128xf32>
    %748 = tpu.matmul %746, %659, %cst_171 {dimension_numbers = #tpu.dot_dimension_numbers<[1], [0], [0], [1], [0, 0, 1, 1], [], []>} : vector<8x32xf32>, vector<32x128xf32>, vector<8x128xf32> -> vector<8x128xf32>
    %749 = arith.addf %747, %748 : vector<8x128xf32>
    %cst_172 = arith.constant 5.000000e-01 : f32
    %750 = vector.broadcast %cst_172 : f32 to vector<8x128xf32>
    %751 = arith.mulf %750, %749 : vector<8x128xf32>
    %752 = math.tanh %751 : vector<8x128xf32>
    %cst_173 = arith.constant 1.000000e+00 : f32
    %753 = vector.broadcast %cst_173 : f32 to vector<8x128xf32>
    %754 = arith.addf %753, %752 : vector<8x128xf32>
    %cst_174 = arith.constant 5.000000e-01 : f32
    %755 = vector.broadcast %cst_174 : f32 to vector<8x128xf32>
    %756 = arith.mulf %755, %754 : vector<8x128xf32>
    %757 = math.tanh %749 : vector<8x128xf32>
    %758 = vector.extract_strided_slice %756 {offsets = [0, 0], sizes = [8, 32], strides = [1, 1]} : vector<8x128xf32> to vector<8x32xf32>
    %759 = vector.extract_strided_slice %756 {offsets = [0, 32], sizes = [8, 32], strides = [1, 1]} : vector<8x128xf32> to vector<8x32xf32>
    %760 = vector.extract_strided_slice %757 {offsets = [0, 64], sizes = [8, 32], strides = [1, 1]} : vector<8x128xf32> to vector<8x32xf32>
    %761 = vector.extract_strided_slice %756 {offsets = [0, 96], sizes = [8, 32], strides = [1, 1]} : vector<8x128xf32> to vector<8x32xf32>
    %762 = arith.mulf %759, %744 : vector<8x32xf32>
    %763 = arith.mulf %758, %760 : vector<8x32xf32>
    %764 = arith.addf %762, %763 : vector<8x32xf32>
    %765 = math.tanh %764 : vector<8x32xf32>
    %766 = arith.mulf %761, %765 : vector<8x32xf32>
    %767 = vector.extract_strided_slice %664 {offsets = [40, 0], sizes = [8, 128], strides = [1, 1]} : vector<128x128xf32> to vector<8x128xf32>
    %cst_175 = arith.constant dense<0.000000e+00> : vector<8x128xf32>
    %768 = tpu.matmul %766, %659, %cst_175 {dimension_numbers = #tpu.dot_dimension_numbers<[1], [0], [0], [1], [0, 0, 1, 1], [], []>} : vector<8x32xf32>, vector<32x128xf32>, vector<8x128xf32> -> vector<8x128xf32>
    %769 = arith.addf %767, %768 : vector<8x128xf32>
    %cst_176 = arith.constant 5.000000e-01 : f32
    %770 = vector.broadcast %cst_176 : f32 to vector<8x128xf32>
    %771 = arith.mulf %770, %769 : vector<8x128xf32>
    %772 = math.tanh %771 : vector<8x128xf32>
    %cst_177 = arith.constant 1.000000e+00 : f32
    %773 = vector.broadcast %cst_177 : f32 to vector<8x128xf32>
    %774 = arith.addf %773, %772 : vector<8x128xf32>
    %cst_178 = arith.constant 5.000000e-01 : f32
    %775 = vector.broadcast %cst_178 : f32 to vector<8x128xf32>
    %776 = arith.mulf %775, %774 : vector<8x128xf32>
    %777 = math.tanh %769 : vector<8x128xf32>
    %778 = vector.extract_strided_slice %776 {offsets = [0, 0], sizes = [8, 32], strides = [1, 1]} : vector<8x128xf32> to vector<8x32xf32>
    %779 = vector.extract_strided_slice %776 {offsets = [0, 32], sizes = [8, 32], strides = [1, 1]} : vector<8x128xf32> to vector<8x32xf32>
    %780 = vector.extract_strided_slice %777 {offsets = [0, 64], sizes = [8, 32], strides = [1, 1]} : vector<8x128xf32> to vector<8x32xf32>
    %781 = vector.extract_strided_slice %776 {offsets = [0, 96], sizes = [8, 32], strides = [1, 1]} : vector<8x128xf32> to vector<8x32xf32>
    %782 = arith.mulf %779, %764 : vector<8x32xf32>
    %783 = arith.mulf %778, %780 : vector<8x32xf32>
    %784 = arith.addf %782, %783 : vector<8x32xf32>
    %785 = math.tanh %784 : vector<8x32xf32>
    %786 = arith.mulf %781, %785 : vector<8x32xf32>
    %787 = vector.extract_strided_slice %664 {offsets = [48, 0], sizes = [8, 128], strides = [1, 1]} : vector<128x128xf32> to vector<8x128xf32>
    %cst_179 = arith.constant dense<0.000000e+00> : vector<8x128xf32>
    %788 = tpu.matmul %786, %659, %cst_179 {dimension_numbers = #tpu.dot_dimension_numbers<[1], [0], [0], [1], [0, 0, 1, 1], [], []>} : vector<8x32xf32>, vector<32x128xf32>, vector<8x128xf32> -> vector<8x128xf32>
    %789 = arith.addf %787, %788 : vector<8x128xf32>
    %cst_180 = arith.constant 5.000000e-01 : f32
    %790 = vector.broadcast %cst_180 : f32 to vector<8x128xf32>
    %791 = arith.mulf %790, %789 : vector<8x128xf32>
    %792 = math.tanh %791 : vector<8x128xf32>
    %cst_181 = arith.constant 1.000000e+00 : f32
    %793 = vector.broadcast %cst_181 : f32 to vector<8x128xf32>
    %794 = arith.addf %793, %792 : vector<8x128xf32>
    %cst_182 = arith.constant 5.000000e-01 : f32
    %795 = vector.broadcast %cst_182 : f32 to vector<8x128xf32>
    %796 = arith.mulf %795, %794 : vector<8x128xf32>
    %797 = math.tanh %789 : vector<8x128xf32>
    %798 = vector.extract_strided_slice %796 {offsets = [0, 0], sizes = [8, 32], strides = [1, 1]} : vector<8x128xf32> to vector<8x32xf32>
    %799 = vector.extract_strided_slice %796 {offsets = [0, 32], sizes = [8, 32], strides = [1, 1]} : vector<8x128xf32> to vector<8x32xf32>
    %800 = vector.extract_strided_slice %797 {offsets = [0, 64], sizes = [8, 32], strides = [1, 1]} : vector<8x128xf32> to vector<8x32xf32>
    %801 = vector.extract_strided_slice %796 {offsets = [0, 96], sizes = [8, 32], strides = [1, 1]} : vector<8x128xf32> to vector<8x32xf32>
    %802 = arith.mulf %799, %784 : vector<8x32xf32>
    %803 = arith.mulf %798, %800 : vector<8x32xf32>
    %804 = arith.addf %802, %803 : vector<8x32xf32>
    %805 = math.tanh %804 : vector<8x32xf32>
    %806 = arith.mulf %801, %805 : vector<8x32xf32>
    %807 = vector.extract_strided_slice %664 {offsets = [56, 0], sizes = [8, 128], strides = [1, 1]} : vector<128x128xf32> to vector<8x128xf32>
    %cst_183 = arith.constant dense<0.000000e+00> : vector<8x128xf32>
    %808 = tpu.matmul %806, %659, %cst_183 {dimension_numbers = #tpu.dot_dimension_numbers<[1], [0], [0], [1], [0, 0, 1, 1], [], []>} : vector<8x32xf32>, vector<32x128xf32>, vector<8x128xf32> -> vector<8x128xf32>
    %809 = arith.addf %807, %808 : vector<8x128xf32>
    %cst_184 = arith.constant 5.000000e-01 : f32
    %810 = vector.broadcast %cst_184 : f32 to vector<8x128xf32>
    %811 = arith.mulf %810, %809 : vector<8x128xf32>
    %812 = math.tanh %811 : vector<8x128xf32>
    %cst_185 = arith.constant 1.000000e+00 : f32
    %813 = vector.broadcast %cst_185 : f32 to vector<8x128xf32>
    %814 = arith.addf %813, %812 : vector<8x128xf32>
    %cst_186 = arith.constant 5.000000e-01 : f32
    %815 = vector.broadcast %cst_186 : f32 to vector<8x128xf32>
    %816 = arith.mulf %815, %814 : vector<8x128xf32>
    %817 = math.tanh %809 : vector<8x128xf32>
    %818 = vector.extract_strided_slice %816 {offsets = [0, 0], sizes = [8, 32], strides = [1, 1]} : vector<8x128xf32> to vector<8x32xf32>
    %819 = vector.extract_strided_slice %816 {offsets = [0, 32], sizes = [8, 32], strides = [1, 1]} : vector<8x128xf32> to vector<8x32xf32>
    %820 = vector.extract_strided_slice %817 {offsets = [0, 64], sizes = [8, 32], strides = [1, 1]} : vector<8x128xf32> to vector<8x32xf32>
    %821 = vector.extract_strided_slice %816 {offsets = [0, 96], sizes = [8, 32], strides = [1, 1]} : vector<8x128xf32> to vector<8x32xf32>
    %822 = arith.mulf %819, %804 : vector<8x32xf32>
    %823 = arith.mulf %818, %820 : vector<8x32xf32>
    %824 = arith.addf %822, %823 : vector<8x32xf32>
    %825 = math.tanh %824 : vector<8x32xf32>
    %826 = arith.mulf %821, %825 : vector<8x32xf32>
    %827 = vector.extract_strided_slice %664 {offsets = [64, 0], sizes = [8, 128], strides = [1, 1]} : vector<128x128xf32> to vector<8x128xf32>
    %cst_187 = arith.constant dense<0.000000e+00> : vector<8x128xf32>
    %828 = tpu.matmul %826, %659, %cst_187 {dimension_numbers = #tpu.dot_dimension_numbers<[1], [0], [0], [1], [0, 0, 1, 1], [], []>} : vector<8x32xf32>, vector<32x128xf32>, vector<8x128xf32> -> vector<8x128xf32>
    %829 = arith.addf %827, %828 : vector<8x128xf32>
    %cst_188 = arith.constant 5.000000e-01 : f32
    %830 = vector.broadcast %cst_188 : f32 to vector<8x128xf32>
    %831 = arith.mulf %830, %829 : vector<8x128xf32>
    %832 = math.tanh %831 : vector<8x128xf32>
    %cst_189 = arith.constant 1.000000e+00 : f32
    %833 = vector.broadcast %cst_189 : f32 to vector<8x128xf32>
    %834 = arith.addf %833, %832 : vector<8x128xf32>
    %cst_190 = arith.constant 5.000000e-01 : f32
    %835 = vector.broadcast %cst_190 : f32 to vector<8x128xf32>
    %836 = arith.mulf %835, %834 : vector<8x128xf32>
    %837 = math.tanh %829 : vector<8x128xf32>
    %838 = vector.extract_strided_slice %836 {offsets = [0, 0], sizes = [8, 32], strides = [1, 1]} : vector<8x128xf32> to vector<8x32xf32>
    %839 = vector.extract_strided_slice %836 {offsets = [0, 32], sizes = [8, 32], strides = [1, 1]} : vector<8x128xf32> to vector<8x32xf32>
    %840 = vector.extract_strided_slice %837 {offsets = [0, 64], sizes = [8, 32], strides = [1, 1]} : vector<8x128xf32> to vector<8x32xf32>
    %841 = vector.extract_strided_slice %836 {offsets = [0, 96], sizes = [8, 32], strides = [1, 1]} : vector<8x128xf32> to vector<8x32xf32>
    %842 = arith.mulf %839, %824 : vector<8x32xf32>
    %843 = arith.mulf %838, %840 : vector<8x32xf32>
    %844 = arith.addf %842, %843 : vector<8x32xf32>
    %845 = math.tanh %844 : vector<8x32xf32>
    %846 = arith.mulf %841, %845 : vector<8x32xf32>
    %847 = vector.extract_strided_slice %664 {offsets = [72, 0], sizes = [8, 128], strides = [1, 1]} : vector<128x128xf32> to vector<8x128xf32>
    %cst_191 = arith.constant dense<0.000000e+00> : vector<8x128xf32>
    %848 = tpu.matmul %846, %659, %cst_191 {dimension_numbers = #tpu.dot_dimension_numbers<[1], [0], [0], [1], [0, 0, 1, 1], [], []>} : vector<8x32xf32>, vector<32x128xf32>, vector<8x128xf32> -> vector<8x128xf32>
    %849 = arith.addf %847, %848 : vector<8x128xf32>
    %cst_192 = arith.constant 5.000000e-01 : f32
    %850 = vector.broadcast %cst_192 : f32 to vector<8x128xf32>
    %851 = arith.mulf %850, %849 : vector<8x128xf32>
    %852 = math.tanh %851 : vector<8x128xf32>
    %cst_193 = arith.constant 1.000000e+00 : f32
    %853 = vector.broadcast %cst_193 : f32 to vector<8x128xf32>
    %854 = arith.addf %853, %852 : vector<8x128xf32>
    %cst_194 = arith.constant 5.000000e-01 : f32
    %855 = vector.broadcast %cst_194 : f32 to vector<8x128xf32>
    %856 = arith.mulf %855, %854 : vector<8x128xf32>
    %857 = math.tanh %849 : vector<8x128xf32>
    %858 = vector.extract_strided_slice %856 {offsets = [0, 0], sizes = [8, 32], strides = [1, 1]} : vector<8x128xf32> to vector<8x32xf32>
    %859 = vector.extract_strided_slice %856 {offsets = [0, 32], sizes = [8, 32], strides = [1, 1]} : vector<8x128xf32> to vector<8x32xf32>
    %860 = vector.extract_strided_slice %857 {offsets = [0, 64], sizes = [8, 32], strides = [1, 1]} : vector<8x128xf32> to vector<8x32xf32>
    %861 = vector.extract_strided_slice %856 {offsets = [0, 96], sizes = [8, 32], strides = [1, 1]} : vector<8x128xf32> to vector<8x32xf32>
    %862 = arith.mulf %859, %844 : vector<8x32xf32>
    %863 = arith.mulf %858, %860 : vector<8x32xf32>
    %864 = arith.addf %862, %863 : vector<8x32xf32>
    %865 = math.tanh %864 : vector<8x32xf32>
    %866 = arith.mulf %861, %865 : vector<8x32xf32>
    %867 = vector.extract_strided_slice %664 {offsets = [80, 0], sizes = [8, 128], strides = [1, 1]} : vector<128x128xf32> to vector<8x128xf32>
    %cst_195 = arith.constant dense<0.000000e+00> : vector<8x128xf32>
    %868 = tpu.matmul %866, %659, %cst_195 {dimension_numbers = #tpu.dot_dimension_numbers<[1], [0], [0], [1], [0, 0, 1, 1], [], []>} : vector<8x32xf32>, vector<32x128xf32>, vector<8x128xf32> -> vector<8x128xf32>
    %869 = arith.addf %867, %868 : vector<8x128xf32>
    %cst_196 = arith.constant 5.000000e-01 : f32
    %870 = vector.broadcast %cst_196 : f32 to vector<8x128xf32>
    %871 = arith.mulf %870, %869 : vector<8x128xf32>
    %872 = math.tanh %871 : vector<8x128xf32>
    %cst_197 = arith.constant 1.000000e+00 : f32
    %873 = vector.broadcast %cst_197 : f32 to vector<8x128xf32>
    %874 = arith.addf %873, %872 : vector<8x128xf32>
    %cst_198 = arith.constant 5.000000e-01 : f32
    %875 = vector.broadcast %cst_198 : f32 to vector<8x128xf32>
    %876 = arith.mulf %875, %874 : vector<8x128xf32>
    %877 = math.tanh %869 : vector<8x128xf32>
    %878 = vector.extract_strided_slice %876 {offsets = [0, 0], sizes = [8, 32], strides = [1, 1]} : vector<8x128xf32> to vector<8x32xf32>
    %879 = vector.extract_strided_slice %876 {offsets = [0, 32], sizes = [8, 32], strides = [1, 1]} : vector<8x128xf32> to vector<8x32xf32>
    %880 = vector.extract_strided_slice %877 {offsets = [0, 64], sizes = [8, 32], strides = [1, 1]} : vector<8x128xf32> to vector<8x32xf32>
    %881 = vector.extract_strided_slice %876 {offsets = [0, 96], sizes = [8, 32], strides = [1, 1]} : vector<8x128xf32> to vector<8x32xf32>
    %882 = arith.mulf %879, %864 : vector<8x32xf32>
    %883 = arith.mulf %878, %880 : vector<8x32xf32>
    %884 = arith.addf %882, %883 : vector<8x32xf32>
    %885 = math.tanh %884 : vector<8x32xf32>
    %886 = arith.mulf %881, %885 : vector<8x32xf32>
    %887 = vector.extract_strided_slice %664 {offsets = [88, 0], sizes = [8, 128], strides = [1, 1]} : vector<128x128xf32> to vector<8x128xf32>
    %cst_199 = arith.constant dense<0.000000e+00> : vector<8x128xf32>
    %888 = tpu.matmul %886, %659, %cst_199 {dimension_numbers = #tpu.dot_dimension_numbers<[1], [0], [0], [1], [0, 0, 1, 1], [], []>} : vector<8x32xf32>, vector<32x128xf32>, vector<8x128xf32> -> vector<8x128xf32>
    %889 = arith.addf %887, %888 : vector<8x128xf32>
    %cst_200 = arith.constant 5.000000e-01 : f32
    %890 = vector.broadcast %cst_200 : f32 to vector<8x128xf32>
    %891 = arith.mulf %890, %889 : vector<8x128xf32>
    %892 = math.tanh %891 : vector<8x128xf32>
    %cst_201 = arith.constant 1.000000e+00 : f32
    %893 = vector.broadcast %cst_201 : f32 to vector<8x128xf32>
    %894 = arith.addf %893, %892 : vector<8x128xf32>
    %cst_202 = arith.constant 5.000000e-01 : f32
    %895 = vector.broadcast %cst_202 : f32 to vector<8x128xf32>
    %896 = arith.mulf %895, %894 : vector<8x128xf32>
    %897 = math.tanh %889 : vector<8x128xf32>
    %898 = vector.extract_strided_slice %896 {offsets = [0, 0], sizes = [8, 32], strides = [1, 1]} : vector<8x128xf32> to vector<8x32xf32>
    %899 = vector.extract_strided_slice %896 {offsets = [0, 32], sizes = [8, 32], strides = [1, 1]} : vector<8x128xf32> to vector<8x32xf32>
    %900 = vector.extract_strided_slice %897 {offsets = [0, 64], sizes = [8, 32], strides = [1, 1]} : vector<8x128xf32> to vector<8x32xf32>
    %901 = vector.extract_strided_slice %896 {offsets = [0, 96], sizes = [8, 32], strides = [1, 1]} : vector<8x128xf32> to vector<8x32xf32>
    %902 = arith.mulf %899, %884 : vector<8x32xf32>
    %903 = arith.mulf %898, %900 : vector<8x32xf32>
    %904 = arith.addf %902, %903 : vector<8x32xf32>
    %905 = math.tanh %904 : vector<8x32xf32>
    %906 = arith.mulf %901, %905 : vector<8x32xf32>
    %907 = vector.extract_strided_slice %664 {offsets = [96, 0], sizes = [8, 128], strides = [1, 1]} : vector<128x128xf32> to vector<8x128xf32>
    %cst_203 = arith.constant dense<0.000000e+00> : vector<8x128xf32>
    %908 = tpu.matmul %906, %659, %cst_203 {dimension_numbers = #tpu.dot_dimension_numbers<[1], [0], [0], [1], [0, 0, 1, 1], [], []>} : vector<8x32xf32>, vector<32x128xf32>, vector<8x128xf32> -> vector<8x128xf32>
    %909 = arith.addf %907, %908 : vector<8x128xf32>
    %cst_204 = arith.constant 5.000000e-01 : f32
    %910 = vector.broadcast %cst_204 : f32 to vector<8x128xf32>
    %911 = arith.mulf %910, %909 : vector<8x128xf32>
    %912 = math.tanh %911 : vector<8x128xf32>
    %cst_205 = arith.constant 1.000000e+00 : f32
    %913 = vector.broadcast %cst_205 : f32 to vector<8x128xf32>
    %914 = arith.addf %913, %912 : vector<8x128xf32>
    %cst_206 = arith.constant 5.000000e-01 : f32
    %915 = vector.broadcast %cst_206 : f32 to vector<8x128xf32>
    %916 = arith.mulf %915, %914 : vector<8x128xf32>
    %917 = math.tanh %909 : vector<8x128xf32>
    %918 = vector.extract_strided_slice %916 {offsets = [0, 0], sizes = [8, 32], strides = [1, 1]} : vector<8x128xf32> to vector<8x32xf32>
    %919 = vector.extract_strided_slice %916 {offsets = [0, 32], sizes = [8, 32], strides = [1, 1]} : vector<8x128xf32> to vector<8x32xf32>
    %920 = vector.extract_strided_slice %917 {offsets = [0, 64], sizes = [8, 32], strides = [1, 1]} : vector<8x128xf32> to vector<8x32xf32>
    %921 = vector.extract_strided_slice %916 {offsets = [0, 96], sizes = [8, 32], strides = [1, 1]} : vector<8x128xf32> to vector<8x32xf32>
    %922 = arith.mulf %919, %904 : vector<8x32xf32>
    %923 = arith.mulf %918, %920 : vector<8x32xf32>
    %924 = arith.addf %922, %923 : vector<8x32xf32>
    %925 = math.tanh %924 : vector<8x32xf32>
    %926 = arith.mulf %921, %925 : vector<8x32xf32>
    %927 = vector.extract_strided_slice %664 {offsets = [104, 0], sizes = [8, 128], strides = [1, 1]} : vector<128x128xf32> to vector<8x128xf32>
    %cst_207 = arith.constant dense<0.000000e+00> : vector<8x128xf32>
    %928 = tpu.matmul %926, %659, %cst_207 {dimension_numbers = #tpu.dot_dimension_numbers<[1], [0], [0], [1], [0, 0, 1, 1], [], []>} : vector<8x32xf32>, vector<32x128xf32>, vector<8x128xf32> -> vector<8x128xf32>
    %929 = arith.addf %927, %928 : vector<8x128xf32>
    %cst_208 = arith.constant 5.000000e-01 : f32
    %930 = vector.broadcast %cst_208 : f32 to vector<8x128xf32>
    %931 = arith.mulf %930, %929 : vector<8x128xf32>
    %932 = math.tanh %931 : vector<8x128xf32>
    %cst_209 = arith.constant 1.000000e+00 : f32
    %933 = vector.broadcast %cst_209 : f32 to vector<8x128xf32>
    %934 = arith.addf %933, %932 : vector<8x128xf32>
    %cst_210 = arith.constant 5.000000e-01 : f32
    %935 = vector.broadcast %cst_210 : f32 to vector<8x128xf32>
    %936 = arith.mulf %935, %934 : vector<8x128xf32>
    %937 = math.tanh %929 : vector<8x128xf32>
    %938 = vector.extract_strided_slice %936 {offsets = [0, 0], sizes = [8, 32], strides = [1, 1]} : vector<8x128xf32> to vector<8x32xf32>
    %939 = vector.extract_strided_slice %936 {offsets = [0, 32], sizes = [8, 32], strides = [1, 1]} : vector<8x128xf32> to vector<8x32xf32>
    %940 = vector.extract_strided_slice %937 {offsets = [0, 64], sizes = [8, 32], strides = [1, 1]} : vector<8x128xf32> to vector<8x32xf32>
    %941 = vector.extract_strided_slice %936 {offsets = [0, 96], sizes = [8, 32], strides = [1, 1]} : vector<8x128xf32> to vector<8x32xf32>
    %942 = arith.mulf %939, %924 : vector<8x32xf32>
    %943 = arith.mulf %938, %940 : vector<8x32xf32>
    %944 = arith.addf %942, %943 : vector<8x32xf32>
    %945 = math.tanh %944 : vector<8x32xf32>
    %946 = arith.mulf %941, %945 : vector<8x32xf32>
    %947 = vector.extract_strided_slice %664 {offsets = [112, 0], sizes = [8, 128], strides = [1, 1]} : vector<128x128xf32> to vector<8x128xf32>
    %cst_211 = arith.constant dense<0.000000e+00> : vector<8x128xf32>
    %948 = tpu.matmul %946, %659, %cst_211 {dimension_numbers = #tpu.dot_dimension_numbers<[1], [0], [0], [1], [0, 0, 1, 1], [], []>} : vector<8x32xf32>, vector<32x128xf32>, vector<8x128xf32> -> vector<8x128xf32>
    %949 = arith.addf %947, %948 : vector<8x128xf32>
    %cst_212 = arith.constant 5.000000e-01 : f32
    %950 = vector.broadcast %cst_212 : f32 to vector<8x128xf32>
    %951 = arith.mulf %950, %949 : vector<8x128xf32>
    %952 = math.tanh %951 : vector<8x128xf32>
    %cst_213 = arith.constant 1.000000e+00 : f32
    %953 = vector.broadcast %cst_213 : f32 to vector<8x128xf32>
    %954 = arith.addf %953, %952 : vector<8x128xf32>
    %cst_214 = arith.constant 5.000000e-01 : f32
    %955 = vector.broadcast %cst_214 : f32 to vector<8x128xf32>
    %956 = arith.mulf %955, %954 : vector<8x128xf32>
    %957 = math.tanh %949 : vector<8x128xf32>
    %958 = vector.extract_strided_slice %956 {offsets = [0, 0], sizes = [8, 32], strides = [1, 1]} : vector<8x128xf32> to vector<8x32xf32>
    %959 = vector.extract_strided_slice %956 {offsets = [0, 32], sizes = [8, 32], strides = [1, 1]} : vector<8x128xf32> to vector<8x32xf32>
    %960 = vector.extract_strided_slice %957 {offsets = [0, 64], sizes = [8, 32], strides = [1, 1]} : vector<8x128xf32> to vector<8x32xf32>
    %961 = vector.extract_strided_slice %956 {offsets = [0, 96], sizes = [8, 32], strides = [1, 1]} : vector<8x128xf32> to vector<8x32xf32>
    %962 = arith.mulf %959, %944 : vector<8x32xf32>
    %963 = arith.mulf %958, %960 : vector<8x32xf32>
    %964 = arith.addf %962, %963 : vector<8x32xf32>
    %965 = math.tanh %964 : vector<8x32xf32>
    %966 = arith.mulf %961, %965 : vector<8x32xf32>
    %967 = vector.extract_strided_slice %664 {offsets = [120, 0], sizes = [8, 128], strides = [1, 1]} : vector<128x128xf32> to vector<8x128xf32>
    %cst_215 = arith.constant dense<0.000000e+00> : vector<8x128xf32>
    %968 = tpu.matmul %966, %659, %cst_215 {dimension_numbers = #tpu.dot_dimension_numbers<[1], [0], [0], [1], [0, 0, 1, 1], [], []>} : vector<8x32xf32>, vector<32x128xf32>, vector<8x128xf32> -> vector<8x128xf32>
    %969 = arith.addf %967, %968 : vector<8x128xf32>
    %cst_216 = arith.constant 5.000000e-01 : f32
    %970 = vector.broadcast %cst_216 : f32 to vector<8x128xf32>
    %971 = arith.mulf %970, %969 : vector<8x128xf32>
    %972 = math.tanh %971 : vector<8x128xf32>
    %cst_217 = arith.constant 1.000000e+00 : f32
    %973 = vector.broadcast %cst_217 : f32 to vector<8x128xf32>
    %974 = arith.addf %973, %972 : vector<8x128xf32>
    %cst_218 = arith.constant 5.000000e-01 : f32
    %975 = vector.broadcast %cst_218 : f32 to vector<8x128xf32>
    %976 = arith.mulf %975, %974 : vector<8x128xf32>
    %977 = math.tanh %969 : vector<8x128xf32>
    %978 = vector.extract_strided_slice %976 {offsets = [0, 0], sizes = [8, 32], strides = [1, 1]} : vector<8x128xf32> to vector<8x32xf32>
    %979 = vector.extract_strided_slice %976 {offsets = [0, 32], sizes = [8, 32], strides = [1, 1]} : vector<8x128xf32> to vector<8x32xf32>
    %980 = vector.extract_strided_slice %977 {offsets = [0, 64], sizes = [8, 32], strides = [1, 1]} : vector<8x128xf32> to vector<8x32xf32>
    %981 = vector.extract_strided_slice %976 {offsets = [0, 96], sizes = [8, 32], strides = [1, 1]} : vector<8x128xf32> to vector<8x32xf32>
    %982 = arith.mulf %979, %964 : vector<8x32xf32>
    %983 = arith.mulf %978, %980 : vector<8x32xf32>
    %984 = arith.addf %982, %983 : vector<8x32xf32>
    %985 = math.tanh %984 : vector<8x32xf32>
    %986 = arith.mulf %981, %985 : vector<8x32xf32>
    %987 = tpu.concatenate %686, %706, %726, %746, %766, %786, %806, %826, %846, %866, %886, %906, %926, %946, %966, %986 in 1 : vector<8x32xf32>, vector<8x32xf32>, vector<8x32xf32>, vector<8x32xf32>, vector<8x32xf32>, vector<8x32xf32>, vector<8x32xf32>, vector<8x32xf32>, vector<8x32xf32>, vector<8x32xf32>, vector<8x32xf32>, vector<8x32xf32>, vector<8x32xf32>, vector<8x32xf32>, vector<8x32xf32>, vector<8x32xf32> -> vector<8x512xf32>
    %c0_219 = arith.constant 0 : index
    %c0_220 = arith.constant 0 : index
    %988 = vector.load %arg12[%c0_219, %c0_220] : memref<512x384xf32, #tpu.memory_space<vmem>>, vector<512x384xf32>
    %cst_221 = arith.constant dense<0.000000e+00> : vector<8x384xf32>
    %989 = tpu.matmul %987, %988, %cst_221 {dimension_numbers = #tpu.dot_dimension_numbers<[1], [0], [0], [1], [0, 0, 1, 1], [], []>} : vector<8x512xf32>, vector<512x384xf32>, vector<8x384xf32> -> vector<8x384xf32>
    %c0_222 = arith.constant 0 : index
    %c0_223 = arith.constant 0 : index
    %990 = vector.load %arg13[%c0_222, %c0_223] : memref<1x384xf32, #tpu.memory_space<vmem>>, vector<1x384xf32>
    %991 = vector.broadcast %990 : vector<1x384xf32> to vector<8x384xf32>
    %992 = arith.addf %989, %991 : vector<8x384xf32>
    %c0_224 = arith.constant 0 : index
    %c0_225 = arith.constant 0 : index
    %993 = vector.load %arg2[%c0_224, %c0_225] : memref<8x1xf32, #tpu.memory_space<vmem>>, vector<8x1xf32>
    %994 = vector.broadcast %993 : vector<8x1xf32> to vector<8x384xf32>
    %995 = arith.mulf %992, %994 : vector<8x384xf32>
    %cst_226 = arith.constant dense<0.000000e+00> : vector<384xf32>
    %996 = vector.multi_reduction <add>, %995, %cst_226 [0] : vector<8x384xf32> to vector<384xf32>
    %997 = vector.shape_cast %996 : vector<384xf32> to vector<1x384xf32>
    %cst_227 = arith.constant 5.000000e-01 : f32
    %998 = vector.broadcast %cst_227 : f32 to vector<1x384xf32>
    %999 = arith.mulf %997, %998 : vector<1x384xf32>
    %1000 = vector.broadcast %999 : vector<1x384xf32> to vector<8x384xf32>
    %1001 = arith.subf %992, %1000 : vector<8x384xf32>
    %1002 = arith.mulf %1001, %1001 : vector<8x384xf32>
    %1003 = vector.broadcast %993 : vector<8x1xf32> to vector<8x384xf32>
    %1004 = arith.mulf %1002, %1003 : vector<8x384xf32>
    %cst_228 = arith.constant dense<0.000000e+00> : vector<384xf32>
    %1005 = vector.multi_reduction <add>, %1004, %cst_228 [0] : vector<8x384xf32> to vector<384xf32>
    %1006 = vector.shape_cast %1005 : vector<384xf32> to vector<1x384xf32>
    %cst_229 = arith.constant 5.000000e-01 : f32
    %1007 = vector.broadcast %cst_229 : f32 to vector<1x384xf32>
    %1008 = arith.mulf %1006, %1007 : vector<1x384xf32>
    %cst_230 = arith.constant 9.99999974E-6 : f32
    %1009 = vector.broadcast %cst_230 : f32 to vector<1x384xf32>
    %1010 = arith.addf %1008, %1009 : vector<1x384xf32>
    %1011 = math.rsqrt %1010 : vector<1x384xf32>
    %1012 = vector.broadcast %1011 : vector<1x384xf32> to vector<8x384xf32>
    %1013 = arith.mulf %1001, %1012 : vector<8x384xf32>
    %c0_231 = arith.constant 0 : index
    %c0_232 = arith.constant 0 : index
    %1014 = vector.load %arg14[%c0_231, %c0_232] : memref<1x384xf32, #tpu.memory_space<vmem>>, vector<1x384xf32>
    %1015 = vector.broadcast %1014 : vector<1x384xf32> to vector<8x384xf32>
    %1016 = arith.mulf %1013, %1015 : vector<8x384xf32>
    %c0_233 = arith.constant 0 : index
    %c0_234 = arith.constant 0 : index
    %1017 = vector.load %arg15[%c0_233, %c0_234] : memref<1x384xf32, #tpu.memory_space<vmem>>, vector<1x384xf32>
    %1018 = vector.broadcast %1017 : vector<1x384xf32> to vector<8x384xf32>
    %1019 = arith.addf %1016, %1018 : vector<8x384xf32>
    %cst_235 = arith.constant 0.000000e+00 : f32
    %1020 = vector.broadcast %cst_235 : f32 to vector<8x384xf32>
    %1021 = arith.maximumf %1019, %1020 : vector<8x384xf32>
    %c0_236 = arith.constant 0 : index
    %c0_237 = arith.constant 0 : index
    %1022 = vector.load %arg16[%c0_236, %c0_237] : memref<384x128xf32, #tpu.memory_space<vmem>>, vector<384x128xf32>
    %cst_238 = arith.constant dense<0.000000e+00> : vector<8x128xf32>
    %1023 = tpu.matmul %1021, %1022, %cst_238 {dimension_numbers = #tpu.dot_dimension_numbers<[1], [0], [0], [1], [0, 0, 1, 1], [], []>} : vector<8x384xf32>, vector<384x128xf32>, vector<8x128xf32> -> vector<8x128xf32>
    %c0_239 = arith.constant 0 : index
    %c0_240 = arith.constant 0 : index
    %1024 = vector.load %arg17[%c0_239, %c0_240] : memref<1x128xf32, #tpu.memory_space<vmem>>, vector<1x128xf32>
    %1025 = vector.broadcast %1024 : vector<1x128xf32> to vector<8x128xf32>
    %1026 = arith.addf %1023, %1025 : vector<8x128xf32>
    %c0_241 = arith.constant 0 : index
    %c0_242 = arith.constant 0 : index
    %1027 = vector.load %arg18[%c0_241, %c0_242] : memref<8x128xf32, #tpu.memory_space<vmem>>, vector<8x128xf32>
    tpu.vector_store %arg18[%c0_241, %c0_242], %1026 {strides = array<i32>} : memref<8x128xf32, #tpu.memory_space<vmem>>, vector<8x128xf32>,
    return
  }
  func.func @transform_0(%arg0: i32) -> (i32, i32) {
    %c0_i32 = arith.constant 0 : i32
    %c0_i32_0 = arith.constant 0 : i32
    %c0_i32_1 = arith.constant 0 : i32
    return %c0_i32, %c0_i32_0 : i32, i32
  }
  func.func @transform_1(%arg0: i32) -> (i32, i32) {
    %c0_i32 = arith.constant 0 : i32
    %c0_i32_0 = arith.constant 0 : i32
    %c0_i32_1 = arith.constant 0 : i32
    return %c0_i32, %c0_i32_0 : i32, i32
  }
  func.func @transform_2(%arg0: i32) -> (i32, i32) {
    %c0_i32 = arith.constant 0 : i32
    %c0_i32_0 = arith.constant 0 : i32
    %c0_i32_1 = arith.constant 0 : i32
    return %c0_i32, %c0_i32_0 : i32, i32
  }
  func.func @transform_3(%arg0: i32) -> (i32, i32) {
    %c0_i32 = arith.constant 0 : i32
    %c0_i32_0 = arith.constant 0 : i32
    %c0_i32_1 = arith.constant 0 : i32
    return %c0_i32, %c0_i32_0 : i32, i32
  }
  func.func @transform_4(%arg0: i32) -> (i32, i32) {
    %c0_i32 = arith.constant 0 : i32
    %c0_i32_0 = arith.constant 0 : i32
    %c0_i32_1 = arith.constant 0 : i32
    return %c0_i32, %c0_i32_0 : i32, i32
  }
  func.func @transform_5(%arg0: i32) -> (i32, i32) {
    %c0_i32 = arith.constant 0 : i32
    %c0_i32_0 = arith.constant 0 : i32
    %c0_i32_1 = arith.constant 0 : i32
    return %c0_i32, %c0_i32_0 : i32, i32
  }
  func.func @transform_6(%arg0: i32) -> (i32, i32) {
    %c0_i32 = arith.constant 0 : i32
    %c0_i32_0 = arith.constant 0 : i32
    %c0_i32_1 = arith.constant 0 : i32
    return %c0_i32, %c0_i32_0 : i32, i32
  }
  func.func @transform_7(%arg0: i32) -> (i32, i32) {
    %c0_i32 = arith.constant 0 : i32
    %c0_i32_0 = arith.constant 0 : i32
    %c0_i32_1 = arith.constant 0 : i32
    return %c0_i32, %c0_i32_0 : i32, i32
  }
  func.func @transform_8(%arg0: i32) -> (i32, i32) {
    %c0_i32 = arith.constant 0 : i32
    %c0_i32_0 = arith.constant 0 : i32
    %c0_i32_1 = arith.constant 0 : i32
    return %c0_i32, %c0_i32_0 : i32, i32
  }
  func.func @transform_9(%arg0: i32) -> (i32, i32) {
    %c0_i32 = arith.constant 0 : i32
    %c0_i32_0 = arith.constant 0 : i32
    %c0_i32_1 = arith.constant 0 : i32
    return %c0_i32, %c0_i32_0 : i32, i32
  }
  func.func @transform_10(%arg0: i32) -> (i32, i32) {
    %c0_i32 = arith.constant 0 : i32
    %c0_i32_0 = arith.constant 0 : i32
    %c0_i32_1 = arith.constant 0 : i32
    return %c0_i32, %c0_i32_0 : i32, i32
  }
  func.func @transform_11(%arg0: i32) -> (i32, i32) {
    %c0_i32 = arith.constant 0 : i32
    %c0_i32_0 = arith.constant 0 : i32
    %c0_i32_1 = arith.constant 0 : i32
    return %c0_i32, %c0_i32_0 : i32, i32
  }
  func.func @transform_12(%arg0: i32) -> (i32, i32) {
    %c0_i32 = arith.constant 0 : i32
    %c0_i32_0 = arith.constant 0 : i32
    %c0_i32_1 = arith.constant 0 : i32
    return %c0_i32, %c0_i32_0 : i32, i32
  }
  func.func @transform_13(%arg0: i32) -> (i32, i32) {
    %c0_i32 = arith.constant 0 : i32
    %c0_i32_0 = arith.constant 0 : i32
    %c0_i32_1 = arith.constant 0 : i32
    return %c0_i32, %c0_i32_0 : i32, i32
  }
  func.func @transform_14(%arg0: i32) -> (i32, i32) {
    %c0_i32 = arith.constant 0 : i32
    %c0_i32_0 = arith.constant 0 : i32
    %c0_i32_1 = arith.constant 0 : i32
    return %c0_i32, %c0_i32_0 : i32, i32
  }
  func.func @transform_15(%arg0: i32) -> (i32, i32) {
    %c0_i32 = arith.constant 0 : i32
    %c0_i32_0 = arith.constant 0 : i32
    %c0_i32_1 = arith.constant 0 : i32
    return %c0_i32, %c0_i32_0 : i32, i32
  }
  func.func @transform_16(%arg0: i32) -> (i32, i32) {
    %c0_i32 = arith.constant 0 : i32
    %c0_i32_0 = arith.constant 0 : i32
    %c0_i32_1 = arith.constant 0 : i32
    return %c0_i32, %c0_i32_0 : i32, i32
  }
  func.func @transform_17(%arg0: i32) -> (i32, i32) {
    %c0_i32 = arith.constant 0 : i32
    %c0_i32_0 = arith.constant 0 : i32
    %c0_i32_1 = arith.constant 0 : i32
    return %c0_i32, %c0_i32_0 : i32, i32
  }
}

</mosaic_0001>

<llo_original>
// kernel: lstm_model_forward.1
$region0: #{lstm_model_forward.1}
  #allocation0 [shape = 'u32[]', space=smem, size = 0x4, offset = 0x4, fixed_abs, tag = 'smem constant byte address 0x4 - core index']
  #allocation1 [shape = 'u32[144,128]{1,0:T(1,128)}', space=vmem, size = 0x12000, scoped, tag = 'internal scratch']
  %s0 = inlined_call_operand.vmem [shape: f32[128,128], index: 0, kind: input, shape index: {}]
  %s1 = inlined_call_operand.vmem [shape: f32[8,1], index: 1, kind: input, shape index: {}]
  %s2 = inlined_call_operand.vmem [shape: f32[128,128], index: 2, kind: input, shape index: {}]
  %s3 = inlined_call_operand.vmem [shape: f32[32,128], index: 3, kind: input, shape index: {}]
  %s4 = inlined_call_operand.vmem [shape: f32[1,128], index: 4, kind: input, shape index: {}]
  %s5 = inlined_call_operand.vmem [shape: f32[32,128], index: 5, kind: input, shape index: {}]
  %s6 = inlined_call_operand.vmem [shape: f32[32,128], index: 6, kind: input, shape index: {}]
  %s7 = inlined_call_operand.hbm [shape: f32[1,128], index: 7, kind: input, shape index: {}]
  %s8 = inlined_call_operand.vmem [shape: f32[32,128], index: 8, kind: input, shape index: {}]
  %s9 = inlined_call_operand.hbm [shape: f32[32,128], index: 9, kind: input, shape index: {}]
  %s10 = inlined_call_operand.hbm [shape: f32[1,128], index: 10, kind: input, shape index: {}]
  %s11 = inlined_call_operand.hbm [shape: f32[512,384], index: 11, kind: input, shape index: {}]
  %s12 = inlined_call_operand.vmem [shape: f32[1,384], index: 12, kind: input, shape index: {}]
  %s13 = inlined_call_operand.vmem [shape: f32[1,384], index: 13, kind: input, shape index: {}]
  %s14 = inlined_call_operand.vmem [shape: f32[1,384], index: 14, kind: input, shape index: {}]
  %s15 = inlined_call_operand.vmem [shape: f32[384,128], index: 15, kind: input, shape index: {}]
  %s16 = inlined_call_operand.hbm [shape: f32[1,128], index: 16, kind: input, shape index: {}]
  %s17 = inlined_call_operand.vmem [shape: f32[8,128], index: 17, kind: output, shape index: {}]
  %s18 = sld [smem:[#allocation0]]
  $region98: #{lstm_model_forward.1} parent=0
    _
  %s20 = ssub.s32 1, %s18
  %s21 = scalar_select 0, %s20, %s18
  $region1: #{lstm_model_forward.1} parent=0
    #allocation2 [shape = 'u8[512]{0}', space=vmem, size = 0x400, scoped, tag = 'input window, operand 7, single buffered']
    #allocation3 [shape = 's32[1]{0}', space=sflag, size = 0x4, scoped, tag = 'scoped memory for lstm_model_forward.1']
    #allocation4 [shape = 'u8[16384]{0}', space=vmem, size = 0x4000, scoped, tag = 'input window, operand 9, single buffered']
    #allocation5 [shape = 's32[1]{0}', space=sflag, size = 0x4, scoped, tag = 'scoped memory for lstm_model_forward.1']
    #allocation6 [shape = 'u8[512]{0}', space=vmem, size = 0x400, scoped, tag = 'input window, operand 10, single buffered']
    #allocation7 [shape = 'u8[786432]{0}', space=vmem, size = 0xc0000, scoped, tag = 'input window, operand 11, single buffered']
    #allocation8 [shape = 's32[1]{0}', space=sflag, size = 0x4, scoped, tag = 'scoped memory for lstm_model_forward.1']
    #allocation9 [shape = 'u8[512]{0}', space=vmem, size = 0x400, scoped, tag = 'input window, operand 16, single buffered']
    %22 = vsyncpa [#allocation3], 0
    %23 = vsyncpa [#allocation5], 0
    %24 = vsyncpa [#allocation8], 0
    // Predicated region
    $region2: #{lstm_model_forward.1} parent=1 // pred_check
      _
    $region3: #{lstm_model_forward.1} parent=1 // pred_check_branch
      %26 = sbr.rel (0) target = $region5
    $region4: #{lstm_model_forward.1} parent=1 // pred_region
      _
    $region5: #{lstm_model_forward.1} parent=1 // pred_fallthru
      _
    // Predicated region
    $region6: #{lstm_model_forward.1} parent=1 // pred_check
      _
    $region7: #{lstm_model_forward.1} parent=1 // pred_check_branch
      %28 = sbr.rel (0) target = $region9
    $region8: #{lstm_model_forward.1} parent=1 // pred_region
      _
    $region9: #{lstm_model_forward.1} parent=1 // pred_fallthru
      _
    // Predicated region
    $region10: #{lstm_model_forward.1} parent=1 // pred_check
      _
    $region11: #{lstm_model_forward.1} parent=1 // pred_check_branch
      %30 = sbr.rel (0) target = $region13
    $region12: #{lstm_model_forward.1} parent=1 // pred_region
      _
    $region13: #{lstm_model_forward.1} parent=1 // pred_fallthru
      _
    // Predicated region
    $region14: #{lstm_model_forward.1} parent=1 // pred_check
      _
    $region15: #{lstm_model_forward.1} parent=1 // pred_check_branch
      %32 = sbr.rel (0) target = $region17
    $region16: #{lstm_model_forward.1} parent=1 // pred_region
      _
    $region17: #{lstm_model_forward.1} parent=1 // pred_fallthru
      _
    // Predicated region
    $region18: #{lstm_model_forward.1} parent=1 // pred_check
      _
    $region19: #{lstm_model_forward.1} parent=1 // pred_check_branch
      %34 = sbr.rel (0) target = $region21
    $region20: #{lstm_model_forward.1} parent=1 // pred_region
      _
    $region21: #{lstm_model_forward.1} parent=1 // pred_fallthru
      _
    // Predicated region
    $region22: #{lstm_model_forward.1} parent=1 // pred_check
      _
    $region23: #{lstm_model_forward.1} parent=1 // pred_check_branch
      %36 = sbr.rel (0) target = $region25
    $region24: #{lstm_model_forward.1} parent=1 // pred_region
      _
    $region25: #{lstm_model_forward.1} parent=1 // pred_fallthru
      _
    // Predicated region
    $region26: #{lstm_model_forward.1} parent=1 // pred_check
      _
    $region27: #{lstm_model_forward.1} parent=1 // pred_check_branch
      %38 = sbr.rel (0) target = $region29
    $region28: #{lstm_model_forward.1} parent=1 // pred_region
      _
    $region29: #{lstm_model_forward.1} parent=1 // pred_fallthru
      _
    // Predicated region
    $region30: #{lstm_model_forward.1} parent=1 // pred_check
      _
    $region31: #{lstm_model_forward.1} parent=1 // pred_check_branch
      %40 = sbr.rel (0) target = $region33
    $region32: #{lstm_model_forward.1} parent=1 // pred_region
      %s42 = ssub.s32 16, 16
      %43 = vsyncadd [#allocation3], %s42
      %s45 = sshll.u32 [#allocation2], 4
      %s46 = int_to_ptr.vmem [resolvable:$true] %s45
      %48 = dma.hbm_to_vmem [thread:$0]  %s7, 16, %s46, [#allocation3]
    $region33: #{lstm_model_forward.1} parent=1 // pred_fallthru
      _
    // Predicated region
    $region34: #{lstm_model_forward.1} parent=1 // pred_check
      _
    $region35: #{lstm_model_forward.1} parent=1 // pred_check_branch
      %50 = sbr.rel (0) target = $region37
    $region36: #{lstm_model_forward.1} parent=1 // pred_region
      _
    $region37: #{lstm_model_forward.1} parent=1 // pred_fallthru
      _
    // Predicated region
    $region38: #{lstm_model_forward.1} parent=1 // pred_check
      _
    $region39: #{lstm_model_forward.1} parent=1 // pred_check_branch
      %52 = sbr.rel (0) target = $region41
    $region40: #{lstm_model_forward.1} parent=1 // pred_region
      %s54 = ssub.s32 512, 512
      %55 = vsyncadd [#allocation5], %s54
      %s56 = sshll.u32 [#allocation4], 4
      %s57 = int_to_ptr.vmem [resolvable:$true] %s56
      %62 = dma.hbm_to_vmem [thread:$0]  %s9, 512, %s57, [#allocation5], 128, 128, 8
    $region41: #{lstm_model_forward.1} parent=1 // pred_fallthru
      _
    // Predicated region
    $region42: #{lstm_model_forward.1} parent=1 // pred_check
      _
    $region43: #{lstm_model_forward.1} parent=1 // pred_check_branch
      %64 = sbr.rel (0) target = $region45
    $region44: #{lstm_model_forward.1} parent=1 // pred_region
      %s66 = ssub.s32 16, 16
      %67 = vsyncadd [#allocation5], %s66
      %s69 = sshll.u32 [#allocation6], 4
      %s70 = int_to_ptr.vmem [resolvable:$true] %s69
      %72 = dma.hbm_to_vmem [thread:$0]  %s10, 16, %s70, [#allocation5]
    $region45: #{lstm_model_forward.1} parent=1 // pred_fallthru
      _
    // Predicated region
    $region46: #{lstm_model_forward.1} parent=1 // pred_check
      _
    $region47: #{lstm_model_forward.1} parent=1 // pred_check_branch
      %74 = sbr.rel (0) target = $region49
    $region48: #{lstm_model_forward.1} parent=1 // pred_region
      %s76 = ssub.s32 24576, 24576
      %77 = vsyncadd [#allocation8], %s76
      %s78 = sshll.u32 [#allocation7], 4
      %s79 = int_to_ptr.vmem [resolvable:$true] %s78
      %84 = dma.hbm_to_vmem [thread:$0]  %s11, 24576, %s79, [#allocation8], 384, 384, 24
    $region49: #{lstm_model_forward.1} parent=1 // pred_fallthru
      _
    // Predicated region
    $region50: #{lstm_model_forward.1} parent=1 // pred_check
      _
    $region51: #{lstm_model_forward.1} parent=1 // pred_check_branch
      %86 = sbr.rel (0) target = $region53
    $region52: #{lstm_model_forward.1} parent=1 // pred_region
      _
    $region53: #{lstm_model_forward.1} parent=1 // pred_fallthru
      _
    // Predicated region
    $region54: #{lstm_model_forward.1} parent=1 // pred_check
      _
    $region55: #{lstm_model_forward.1} parent=1 // pred_check_branch
      %88 = sbr.rel (0) target = $region57
    $region56: #{lstm_model_forward.1} parent=1 // pred_region
      _
    $region57: #{lstm_model_forward.1} parent=1 // pred_fallthru
      _
    // Predicated region
    $region58: #{lstm_model_forward.1} parent=1 // pred_check
      _
    $region59: #{lstm_model_forward.1} parent=1 // pred_check_branch
      %90 = sbr.rel (0) target = $region61
    $region60: #{lstm_model_forward.1} parent=1 // pred_region
      _
    $region61: #{lstm_model_forward.1} parent=1 // pred_fallthru
      _
    // Predicated region
    $region62: #{lstm_model_forward.1} parent=1 // pred_check
      _
    $region63: #{lstm_model_forward.1} parent=1 // pred_check_branch
      %92 = sbr.rel (0) target = $region65
    $region64: #{lstm_model_forward.1} parent=1 // pred_region
      _
    $region65: #{lstm_model_forward.1} parent=1 // pred_fallthru
      _
    // Predicated region
    $region66: #{lstm_model_forward.1} parent=1 // pred_check
      _
    $region67: #{lstm_model_forward.1} parent=1 // pred_check_branch
      %94 = sbr.rel (0) target = $region69
    $region68: #{lstm_model_forward.1} parent=1 // pred_region
      %s96 = ssub.s32 16, 16
      %97 = vsyncadd [#allocation8], %s96
      %s99 = sshll.u32 [#allocation9], 4
      %s100 = int_to_ptr.vmem [resolvable:$true] %s99
      %102 = dma.hbm_to_vmem [thread:$0]  %s16, 16, %s100, [#allocation8]
    $region69: #{lstm_model_forward.1} parent=1 // pred_fallthru
      _
    // Predicated region
    $region70: #{lstm_model_forward.1} parent=1 // pred_check
      _
    $region71: #{lstm_model_forward.1} parent=1 // pred_check_branch
      %104 = sbr.rel (0) target = $region73
    $region72: #{lstm_model_forward.1} parent=1 // pred_region
      %105 = dma.done [#allocation3], 16
    $region73: #{lstm_model_forward.1} parent=1 // pred_fallthru
      _
    // Predicated region
    $region74: #{lstm_model_forward.1} parent=1 // pred_check
      _
    $region75: #{lstm_model_forward.1} parent=1 // pred_check_branch
      %107 = sbr.rel (0) target = $region77
    $region76: #{lstm_model_forward.1} parent=1 // pred_region
      %108 = dma.done [#allocation5], 512
    $region77: #{lstm_model_forward.1} parent=1 // pred_fallthru
      _
    // Predicated region
    $region78: #{lstm_model_forward.1} parent=1 // pred_check
      _
    $region79: #{lstm_model_forward.1} parent=1 // pred_check_branch
      %110 = sbr.rel (0) target = $region81
    $region80: #{lstm_model_forward.1} parent=1 // pred_region
      %111 = dma.done [#allocation5], 16
    $region81: #{lstm_model_forward.1} parent=1 // pred_fallthru
      _
    // Predicated region
    $region82: #{lstm_model_forward.1} parent=1 // pred_check
      _
    $region83: #{lstm_model_forward.1} parent=1 // pred_check_branch
      %113 = sbr.rel (0) target = $region85
    $region84: #{lstm_model_forward.1} parent=1 // pred_region
      %114 = dma.done [#allocation8], 24576
    $region85: #{lstm_model_forward.1} parent=1 // pred_fallthru
      _
    // Predicated region
    $region86: #{lstm_model_forward.1} parent=1 // pred_check
      _
    $region87: #{lstm_model_forward.1} parent=1 // pred_check_branch
      %116 = sbr.rel (0) target = $region89
    $region88: #{lstm_model_forward.1} parent=1 // pred_region
      %117 = dma.done [#allocation8], 16
    $region89: #{lstm_model_forward.1} parent=1 // pred_fallthru
      _
    %v118 = vld [vmem:[%s0] sm:$0xff]
    %v119 = vld [vmem:[%s0 + $0x8] sm:$0xff]
    %v120 = vld [vmem:[%s0 + $0x10] sm:$0xff]
    %v121 = vld [vmem:[%s0 + $0x18] sm:$0xff]
    %v122 = vld [vmem:[%s0 + $0x20] sm:$0xff]
    %v123 = vld [vmem:[%s0 + $0x28] sm:$0xff]
    %v124 = vld [vmem:[%s0 + $0x30] sm:$0xff]
    %v125 = vld [vmem:[%s0 + $0x38] sm:$0xff]
    %v126 = vld [vmem:[%s0 + $0x40] sm:$0xff]
    %v127 = vld [vmem:[%s0 + $0x48] sm:$0xff]
    %v128 = vld [vmem:[%s0 + $0x50] sm:$0xff]
    %v129 = vld [vmem:[%s0 + $0x58] sm:$0xff]
    %v130 = vld [vmem:[%s0 + $0x60] sm:$0xff]
    %v131 = vld [vmem:[%s0 + $0x68] sm:$0xff]
    %v132 = vld [vmem:[%s0 + $0x70] sm:$0xff]
    %v133 = vld [vmem:[%s0 + $0x78] sm:$0xff]
    %v134 = vld [vmem:[%s3] sm:$0xff]
    %v135 = vld [vmem:[%s3 + $0x8] sm:$0xff]
    %v136 = vld [vmem:[%s3 + $0x10] sm:$0xff]
    %v137 = vld [vmem:[%s3 + $0x18] sm:$0xff]
    %v138 = vld [vmem:[%s2] sm:$0xff]
    %v139 = vld [vmem:[%s2 + $0x8] sm:$0xff]
    %v140 = vld [vmem:[%s2 + $0x10] sm:$0xff]
    %v141 = vld [vmem:[%s2 + $0x18] sm:$0xff]
    %v142 = vld [vmem:[%s2 + $0x20] sm:$0xff]
    %v143 = vld [vmem:[%s2 + $0x28] sm:$0xff]
    %v144 = vld [vmem:[%s2 + $0x30] sm:$0xff]
    %v145 = vld [vmem:[%s2 + $0x38] sm:$0xff]
    %v146 = vld [vmem:[%s2 + $0x40] sm:$0xff]
    %v147 = vld [vmem:[%s2 + $0x48] sm:$0xff]
    %v148 = vld [vmem:[%s2 + $0x50] sm:$0xff]
    %v149 = vld [vmem:[%s2 + $0x58] sm:$0xff]
    %v150 = vld [vmem:[%s2 + $0x60] sm:$0xff]
    %v151 = vld [vmem:[%s2 + $0x68] sm:$0xff]
    %v152 = vld [vmem:[%s2 + $0x70] sm:$0xff]
    %v153 = vld [vmem:[%s2 + $0x78] sm:$0xff]
    %v154 = vld [vmem:[%s4] sm:$0x1]
    %v156 = vlaneseq
    %v157 = vshrl.u32 %v156, 7
    %v158 = vsub.s32 0, %v157
    %v159 = vrot.slane %v154, %v158
    %161 = vmatprep.subr.mxu0 0.0
    %162 = vmatpush1.msra.mxu0 %v138
    %163 = vmatprep.subr.mxu0 0.0
    %164 = vmatpush1.msra.mxu0 %v139
    %165 = vmatprep.subr.mxu0 0.0
    %166 = vmatpush1.msra.mxu0 %v140
    %167 = vmatprep.subr.mxu0 0.0
    %168 = vmatpush1.msra.mxu0 %v141
    %169 = vmatprep.subr.mxu0 0.0
    %170 = vmatpush1.msra.mxu0 %v142
    %171 = vmatprep.subr.mxu0 0.0
    %172 = vmatpush1.msra.mxu0 %v143
    %173 = vmatprep.subr.mxu0 0.0
    %174 = vmatpush1.msra.mxu0 %v144
    %175 = vmatprep.subr.mxu0 0.0
    %176 = vmatpush1.msra.mxu0 %v145
    %177 = vmatprep.subr.mxu0 0.0
    %178 = vmatpush1.msra.mxu0 %v146
    %179 = vmatprep.subr.mxu0 0.0
    %180 = vmatpush1.msra.mxu0 %v147
    %181 = vmatprep.subr.mxu0 0.0
    %182 = vmatpush1.msra.mxu0 %v148
    %183 = vmatprep.subr.mxu0 0.0
    %184 = vmatpush1.msra.mxu0 %v149
    %185 = vmatprep.subr.mxu0 0.0
    %186 = vmatpush1.msra.mxu0 %v150
    %187 = vmatprep.subr.mxu0 0.0
    %188 = vmatpush1.msra.mxu0 %v151
    %189 = vmatprep.subr.mxu0 0.0
    %190 = vmatpush1.msra.mxu0 %v152
    %191 = vmatprep.subr.mxu0 0.0
    %192 = vmatpush1.msra.mxu0 %v153
    %193 = vmatprep.subr.mxu0 0.0
    %194 = vmatpush1.msra.mxu0 0.0
    %195 = vmatprep.subr.mxu0 0.0
    %196 = vmatpush1.msra.mxu0 0.0
    %197 = vmatprep.subr.mxu0 0.0
    %198 = vmatpush1.msra.mxu0 0.0
    %199 = vmatprep.subr.mxu0 0.0
    %200 = vmatpush1.msra.mxu0 0.0
    %201 = vmatprep.subr.mxu0 0.0
    %202 = vmatpush1.msra.mxu0 0.0
    %203 = vmatprep.subr.mxu0 0.0
    %204 = vmatpush1.msra.mxu0 0.0
    %205 = vmatprep.subr.mxu0 0.0
    %206 = vmatpush1.msra.mxu0 0.0
    %207 = vmatprep.subr.mxu0 0.0
    %208 = vmatpush1.msra.mxu0 0.0
    %209 = vmatprep.subr.mxu0 0.0
    %210 = vmatpush1.msra.mxu0 0.0
    %211 = vmatprep.subr.mxu0 0.0
    %212 = vmatpush1.msra.mxu0 0.0
    %213 = vmatprep.subr.mxu0 0.0
    %214 = vmatpush1.msra.mxu0 0.0
    %215 = vmatprep.subr.mxu0 0.0
    %216 = vmatpush1.msra.mxu0 0.0
    %217 = vmatprep.subr.mxu0 0.0
    %218 = vmatpush1.msra.mxu0 0.0
    %219 = vmatprep.subr.mxu0 0.0
    %220 = vmatpush1.msra.mxu0 0.0
    %221 = vmatprep.subr.mxu0 0.0
    %222 = vmatpush1.msra.mxu0 0.0
    %223 = vmatprep.subr.mxu0 0.0
    %224 = vmatpush1.msra.mxu0 0.0
    %225 = vmatprep.mubr.f32.mxu0 0.0
    %226 = vmatmul.mubr.f32.gmra.mrb[0].mxu0 %v118
    %v227 = vpop.f32.mrb[0].mxu0
    %v228 = vadd.f32 %v159, %v227
    %v229 = vpop.f32.mrb[0].mxu0
    %230 = vmatprep.mubr.f32.mxu0 0.0
    %231 = vmatmul.mubr.f32.gmra.mrb[0].mxu0 %v119
    %v232 = vpop.f32.mrb[0].mxu0
    %v233 = vadd.f32 %v159, %v232
    %v234 = vpop.f32.mrb[0].mxu0
    %235 = vmatprep.mubr.f32.mxu0 0.0
    %236 = vmatmul.mubr.f32.gmra.mrb[0].mxu0 %v120
    %v237 = vpop.f32.mrb[0].mxu0
    %v238 = vadd.f32 %v159, %v237
    %v239 = vpop.f32.mrb[0].mxu0
    %240 = vmatprep.mubr.f32.mxu0 0.0
    %241 = vmatmul.mubr.f32.gmra.mrb[0].mxu0 %v121
    %v242 = vpop.f32.mrb[0].mxu0
    %v243 = vadd.f32 %v159, %v242
    %v244 = vpop.f32.mrb[0].mxu0
    %245 = vmatprep.mubr.f32.mxu0 0.0
    %246 = vmatmul.mubr.f32.gmra.mrb[0].mxu0 %v122
    %v247 = vpop.f32.mrb[0].mxu0
    %v248 = vadd.f32 %v159, %v247
    %v249 = vpop.f32.mrb[0].mxu0
    %250 = vmatprep.mubr.f32.mxu0 0.0
    %251 = vmatmul.mubr.f32.gmra.mrb[0].mxu0 %v123
    %v252 = vpop.f32.mrb[0].mxu0
    %v253 = vadd.f32 %v159, %v252
    %v254 = vpop.f32.mrb[0].mxu0
    %255 = vmatprep.mubr.f32.mxu0 0.0
    %256 = vmatmul.mubr.f32.gmra.mrb[0].mxu0 %v124
    %v257 = vpop.f32.mrb[0].mxu0
    %v258 = vadd.f32 %v159, %v257
    %v259 = vpop.f32.mrb[0].mxu0
    %260 = vmatprep.mubr.f32.mxu0 0.0
    %261 = vmatmul.mubr.f32.gmra.mrb[0].mxu0 %v125
    %v262 = vpop.f32.mrb[0].mxu0
    %v263 = vadd.f32 %v159, %v262
    %v264 = vpop.f32.mrb[0].mxu0
    %265 = vmatprep.mubr.f32.mxu0 0.0
    %266 = vmatmul.mubr.f32.gmra.mrb[0].mxu0 %v126
    %v267 = vpop.f32.mrb[0].mxu0
    %v268 = vadd.f32 %v159, %v267
    %v269 = vpop.f32.mrb[0].mxu0
    %270 = vmatprep.mubr.f32.mxu0 0.0
    %271 = vmatmul.mubr.f32.gmra.mrb[0].mxu0 %v127
    %v272 = vpop.f32.mrb[0].mxu0
    %v273 = vadd.f32 %v159, %v272
    %v274 = vpop.f32.mrb[0].mxu0
    %275 = vmatprep.mubr.f32.mxu0 0.0
    %276 = vmatmul.mubr.f32.gmra.mrb[0].mxu0 %v128
    %v277 = vpop.f32.mrb[0].mxu0
    %v278 = vadd.f32 %v159, %v277
    %v279 = vpop.f32.mrb[0].mxu0
    %280 = vmatprep.mubr.f32.mxu0 0.0
    %281 = vmatmul.mubr.f32.gmra.mrb[0].mxu0 %v129
    %v282 = vpop.f32.mrb[0].mxu0
    %v283 = vadd.f32 %v159, %v282
    %v284 = vpop.f32.mrb[0].mxu0
    %285 = vmatprep.mubr.f32.mxu0 0.0
    %286 = vmatmul.mubr.f32.gmra.mrb[0].mxu0 %v130
    %v287 = vpop.f32.mrb[0].mxu0
    %v288 = vadd.f32 %v159, %v287
    %v289 = vpop.f32.mrb[0].mxu0
    %290 = vmatprep.mubr.f32.mxu0 0.0
    %291 = vmatmul.mubr.f32.gmra.mrb[0].mxu0 %v131
    %v292 = vpop.f32.mrb[0].mxu0
    %v293 = vadd.f32 %v159, %v292
    %v294 = vpop.f32.mrb[0].mxu0
    %295 = vmatprep.mubr.f32.mxu0 0.0
    %296 = vmatmul.mubr.f32.gmra.mrb[0].mxu0 %v132
    %v297 = vpop.f32.mrb[0].mxu0
    %v298 = vadd.f32 %v159, %v297
    %v299 = vpop.f32.mrb[0].mxu0
    %300 = vmatprep.mubr.f32.mxu0 0.0
    %301 = vmatmul.mubr.f32.gmra.mrb[0].mxu0 %v133
    %v302 = vpop.f32.mrb[0].mxu0
    %v303 = vadd.f32 %v159, %v302
    %v304 = vpop.f32.mrb[0].mxu0
    %305 = vdwg.mxu0
    %vm306 = vcmask 261120
    %v308 = vsel %vm306, 0.0, 0
    %310 = vmatprep.subr.mxu0 0.0
    %311 = vmatpush1.msra.mxu0 %v134
    %312 = vmatprep.subr.mxu0 0.0
    %313 = vmatpush1.msra.mxu0 %v135
    %314 = vmatprep.subr.mxu0 0.0
    %315 = vmatpush1.msra.mxu0 %v136
    %316 = vmatprep.subr.mxu0 0.0
    %317 = vmatpush1.msra.mxu0 %v137
    %318 = vmatprep.subr.mxu0 0.0
    %319 = vmatpush1.msra.mxu0 0.0
    %320 = vmatprep.subr.mxu0 0.0
    %321 = vmatpush1.msra.mxu0 0.0
    %322 = vmatprep.subr.mxu0 0.0
    %323 = vmatpush1.msra.mxu0 0.0
    %324 = vmatprep.subr.mxu0 0.0
    %325 = vmatpush1.msra.mxu0 0.0
    %326 = vmatprep.subr.mxu0 0.0
    %327 = vmatpush1.msra.mxu0 0.0
    %328 = vmatprep.subr.mxu0 0.0
    %329 = vmatpush1.msra.mxu0 0.0
    %330 = vmatprep.subr.mxu0 0.0
    %331 = vmatpush1.msra.mxu0 0.0
    %332 = vmatprep.subr.mxu0 0.0
    %333 = vmatpush1.msra.mxu0 0.0
    %334 = vmatprep.subr.mxu0 0.0
    %335 = vmatpush1.msra.mxu0 0.0
    %336 = vmatprep.subr.mxu0 0.0
    %337 = vmatpush1.msra.mxu0 0.0
    %338 = vmatprep.subr.mxu0 0.0
    %339 = vmatpush1.msra.mxu0 0.0
    %340 = vmatprep.subr.mxu0 0.0
    %341 = vmatpush1.msra.mxu0 0.0
    %342 = vmatprep.subr.mxu0 0.0
    %343 = vmatpush1.msra.mxu0 0.0
    %344 = vmatprep.subr.mxu0 0.0
    %345 = vmatpush1.msra.mxu0 0.0
    %346 = vmatprep.subr.mxu0 0.0
    %347 = vmatpush1.msra.mxu0 0.0
    %348 = vmatprep.subr.mxu0 0.0
    %349 = vmatpush1.msra.mxu0 0.0
    %350 = vmatprep.subr.mxu0 0.0
    %351 = vmatpush1.msra.mxu0 0.0
    %352 = vmatprep.subr.mxu0 0.0
    %353 = vmatpush1.msra.mxu0 0.0
    %354 = vmatprep.subr.mxu0 0.0
    %355 = vmatpush1.msra.mxu0 0.0
    %356 = vmatprep.subr.mxu0 0.0
    %357 = vmatpush1.msra.mxu0 0.0
    %358 = vmatprep.subr.mxu0 0.0
    %359 = vmatpush1.msra.mxu0 0.0
    %360 = vmatprep.subr.mxu0 0.0
    %361 = vmatpush1.msra.mxu0 0.0
    %362 = vmatprep.subr.mxu0 0.0
    %363 = vmatpush1.msra.mxu0 0.0
    %364 = vmatprep.subr.mxu0 0.0
    %365 = vmatpush1.msra.mxu0 0.0
    %366 = vmatprep.subr.mxu0 0.0
    %367 = vmatpush1.msra.mxu0 0.0
    %368 = vmatprep.subr.mxu0 0.0
    %369 = vmatpush1.msra.mxu0 0.0
    %370 = vmatprep.subr.mxu0 0.0
    %371 = vmatpush1.msra.mxu0 0.0
    %372 = vmatprep.subr.mxu0 0.0
    %373 = vmatpush1.msra.mxu0 0.0
    %374 = vmatprep.mubr.f32.mxu0 0.0
    %375 = vmatmul.mubr.f32.gmra.mrb[0].mxu0 %v308
    %v376 = vpop.f32.mrb[0].mxu0
    %v377 = vadd.f32 0.0, %v376
    %v378 = vpop.f32.mrb[0].mxu0
    %379 = vdwg.mxu0
    %v380 = vadd.f32 %v228, %v377
    %v381 = vmul.f32 %v380, 0.5
    %v382 = vtanh.pop %v381
    %v383 = vadd.f32 %v382, 1.0
    %v384 = vmul.f32 %v383, 0.5
    %v385 = vtanh.pop %v380
    %v386 = vmul.f32 %v384, 0.0
    %388 = vrot.lane.b32.xlu0 %v385, 64
    %v389 = vpop.permute.xlu0 %388
    %v391 = vmul.f32 %v384, %v389
    %393 = vrot.lane.b32.xlu0 %v391, 32
    %v394 = vpop.permute.xlu0 %393
    %v396 = vadd.f32 %v386, %v394
    %v397 = vtanh.pop %v396
    %399 = vrot.lane.b32.xlu0 %v397, 64
    %v400 = vpop.permute.xlu0 %399
    %v402 = vmul.f32 %v384, %v400
    %404 = vrot.lane.b32.xlu0 %v402, 32
    %v405 = vpop.permute.xlu0 %404
    %v406 = vsel %vm306, %v405, 0
    %408 = vmatprep.subr.mxu0 0.0
    %409 = vmatpush1.msra.mxu0 %v134
    %410 = vmatprep.subr.mxu0 0.0
    %411 = vmatpush1.msra.mxu0 %v135
    %412 = vmatprep.subr.mxu0 0.0
    %413 = vmatpush1.msra.mxu0 %v136
    %414 = vmatprep.subr.mxu0 0.0
    %415 = vmatpush1.msra.mxu0 %v137
    %416 = vmatprep.subr.mxu0 0.0
    %417 = vmatpush1.msra.mxu0 0.0
    %418 = vmatprep.subr.mxu0 0.0
    %419 = vmatpush1.msra.mxu0 0.0
    %420 = vmatprep.subr.mxu0 0.0
    %421 = vmatpush1.msra.mxu0 0.0
    %422 = vmatprep.subr.mxu0 0.0
    %423 = vmatpush1.msra.mxu0 0.0
    %424 = vmatprep.subr.mxu0 0.0
    %425 = vmatpush1.msra.mxu0 0.0
    %426 = vmatprep.subr.mxu0 0.0
    %427 = vmatpush1.msra.mxu0 0.0
    %428 = vmatprep.subr.mxu0 0.0
    %429 = vmatpush1.msra.mxu0 0.0
    %430 = vmatprep.subr.mxu0 0.0
    %431 = vmatpush1.msra.mxu0 0.0
    %432 = vmatprep.subr.mxu0 0.0
    %433 = vmatpush1.msra.mxu0 0.0
    %434 = vmatprep.subr.mxu0 0.0
    %435 = vmatpush1.msra.mxu0 0.0
    %436 = vmatprep.subr.mxu0 0.0
    %437 = vmatpush1.msra.mxu0 0.0
    %438 = vmatprep.subr.mxu0 0.0
    %439 = vmatpush1.msra.mxu0 0.0
    %440 = vmatprep.subr.mxu0 0.0
    %441 = vmatpush1.msra.mxu0 0.0
    %442 = vmatprep.subr.mxu0 0.0
    %443 = vmatpush1.msra.mxu0 0.0
    %444 = vmatprep.subr.mxu0 0.0
    %445 = vmatpush1.msra.mxu0 0.0
    %446 = vmatprep.subr.mxu0 0.0
    %447 = vmatpush1.msra.mxu0 0.0
    %448 = vmatprep.subr.mxu0 0.0
    %449 = vmatpush1.msra.mxu0 0.0
    %450 = vmatprep.subr.mxu0 0.0
    %451 = vmatpush1.msra.mxu0 0.0
    %452 = vmatprep.subr.mxu0 0.0
    %453 = vmatpush1.msra.mxu0 0.0
    %454 = vmatprep.subr.mxu0 0.0
    %455 = vmatpush1.msra.mxu0 0.0
    %456 = vmatprep.subr.mxu0 0.0
    %457 = vmatpush1.msra.mxu0 0.0
    %458 = vmatprep.subr.mxu0 0.0
    %459 = vmatpush1.msra.mxu0 0.0
    %460 = vmatprep.subr.mxu0 0.0
    %461 = vmatpush1.msra.mxu0 0.0
    %462 = vmatprep.subr.mxu0 0.0
    %463 = vmatpush1.msra.mxu0 0.0
    %464 = vmatprep.subr.mxu0 0.0
    %465 = vmatpush1.msra.mxu0 0.0
    %466 = vmatprep.subr.mxu0 0.0
    %467 = vmatpush1.msra.mxu0 0.0
    %468 = vmatprep.subr.mxu0 0.0
    %469 = vmatpush1.msra.mxu0 0.0
    %470 = vmatprep.subr.mxu0 0.0
    %471 = vmatpush1.msra.mxu0 0.0
    %472 = vmatprep.mubr.f32.mxu0 0.0
    %473 = vmatmul.mubr.f32.gmra.mrb[0].mxu0 %v406
    %v474 = vpop.f32.mrb[0].mxu0
    %v475 = vadd.f32 0.0, %v474
    %v476 = vpop.f32.mrb[0].mxu0
    %477 = vdwg.mxu0
    %v478 = vadd.f32 %v233, %v475
    %v479 = vmul.f32 %v478, 0.5
    %v480 = vtanh.pop %v479
    %v481 = vadd.f32 %v480, 1.0
    %v482 = vmul.f32 %v481, 0.5
    %v483 = vtanh.pop %v478
    %v484 = vmul.f32 %v482, %v396
    %486 = vrot.lane.b32.xlu0 %v483, 64
    %v487 = vpop.permute.xlu0 %486
    %v489 = vmul.f32 %v482, %v487
    %491 = vrot.lane.b32.xlu0 %v489, 32
    %v492 = vpop.permute.xlu0 %491
    %v494 = vadd.f32 %v484, %v492
    %v495 = vtanh.pop %v494
    %497 = vrot.lane.b32.xlu0 %v495, 64
    %v498 = vpop.permute.xlu0 %497
    %v500 = vmul.f32 %v482, %v498
    %502 = vrot.lane.b32.xlu0 %v500, 32
    %v503 = vpop.permute.xlu0 %502
    %v504 = vsel %vm306, %v503, 0
    %506 = vmatprep.subr.mxu0 0.0
    %507 = vmatpush1.msra.mxu0 %v134
    %508 = vmatprep.subr.mxu0 0.0
    %509 = vmatpush1.msra.mxu0 %v135
    %510 = vmatprep.subr.mxu0 0.0
    %511 = vmatpush1.msra.mxu0 %v136
    %512 = vmatprep.subr.mxu0 0.0
    %513 = vmatpush1.msra.mxu0 %v137
    %514 = vmatprep.subr.mxu0 0.0
    %515 = vmatpush1.msra.mxu0 0.0
    %516 = vmatprep.subr.mxu0 0.0
    %517 = vmatpush1.msra.mxu0 0.0
    %518 = vmatprep.subr.mxu0 0.0
    %519 = vmatpush1.msra.mxu0 0.0
    %520 = vmatprep.subr.mxu0 0.0
    %521 = vmatpush1.msra.mxu0 0.0
    %522 = vmatprep.subr.mxu0 0.0
    %523 = vmatpush1.msra.mxu0 0.0
    %524 = vmatprep.subr.mxu0 0.0
    %525 = vmatpush1.msra.mxu0 0.0
    %526 = vmatprep.subr.mxu0 0.0
    %527 = vmatpush1.msra.mxu0 0.0
    %528 = vmatprep.subr.mxu0 0.0
    %529 = vmatpush1.msra.mxu0 0.0
    %530 = vmatprep.subr.mxu0 0.0
    %531 = vmatpush1.msra.mxu0 0.0
    %532 = vmatprep.subr.mxu0 0.0
    %533 = vmatpush1.msra.mxu0 0.0
    %534 = vmatprep.subr.mxu0 0.0
    %535 = vmatpush1.msra.mxu0 0.0
    %536 = vmatprep.subr.mxu0 0.0
    %537 = vmatpush1.msra.mxu0 0.0
    %538 = vmatprep.subr.mxu0 0.0
    %539 = vmatpush1.msra.mxu0 0.0
    %540 = vmatprep.subr.mxu0 0.0
    %541 = vmatpush1.msra.mxu0 0.0
    %542 = vmatprep.subr.mxu0 0.0
    %543 = vmatpush1.msra.mxu0 0.0
    %544 = vmatprep.subr.mxu0 0.0
    %545 = vmatpush1.msra.mxu0 0.0
    %546 = vmatprep.subr.mxu0 0.0
    %547 = vmatpush1.msra.mxu0 0.0
    %548 = vmatprep.subr.mxu0 0.0
    %549 = vmatpush1.msra.mxu0 0.0
    %550 = vmatprep.subr.mxu0 0.0
    %551 = vmatpush1.msra.mxu0 0.0
    %552 = vmatprep.subr.mxu0 0.0
    %553 = vmatpush1.msra.mxu0 0.0
    %554 = vmatprep.subr.mxu0 0.0
    %555 = vmatpush1.msra.mxu0 0.0
    %556 = vmatprep.subr.mxu0 0.0
    %557 = vmatpush1.msra.mxu0 0.0
    %558 = vmatprep.subr.mxu0 0.0
    %559 = vmatpush1.msra.mxu0 0.0
    %560 = vmatprep.subr.mxu0 0.0
    %561 = vmatpush1.msra.mxu0 0.0
    %562 = vmatprep.subr.mxu0 0.0
    %563 = vmatpush1.msra.mxu0 0.0
    %564 = vmatprep.subr.mxu0 0.0
    %565 = vmatpush1.msra.mxu0 0.0
    %566 = vmatprep.subr.mxu0 0.0
    %567 = vmatpush1.msra.mxu0 0.0
    %568 = vmatprep.subr.mxu0 0.0
    %569 = vmatpush1.msra.mxu0 0.0
    %570 = vmatprep.mubr.f32.mxu0 0.0
    %571 = vmatmul.mubr.f32.gmra.mrb[0].mxu0 %v504
    %v572 = vpop.f32.mrb[0].mxu0
    %v573 = vadd.f32 0.0, %v572
    %v574 = vpop.f32.mrb[0].mxu0
    %575 = vdwg.mxu0
    %v576 = vadd.f32 %v238, %v573
    %v577 = vmul.f32 %v576, 0.5
    %v578 = vtanh.pop %v577
    %v579 = vadd.f32 %v578, 1.0
    %v580 = vmul.f32 %v579, 0.5
    %v581 = vtanh.pop %v576
    %v582 = vmul.f32 %v580, %v494
    %584 = vrot.lane.b32.xlu0 %v581, 64
    %v585 = vpop.permute.xlu0 %584
    %v587 = vmul.f32 %v580, %v585
    %589 = vrot.lane.b32.xlu0 %v587, 32
    %v590 = vpop.permute.xlu0 %589
    %v592 = vadd.f32 %v582, %v590
    %v593 = vtanh.pop %v592
    %595 = vrot.lane.b32.xlu0 %v593, 64
    %v596 = vpop.permute.xlu0 %595
    %v598 = vmul.f32 %v580, %v596
    %600 = vrot.lane.b32.xlu0 %v598, 32
    %v601 = vpop.permute.xlu0 %600
    %v602 = vsel %vm306, %v601, 0
    %604 = vmatprep.subr.mxu0 0.0
    %605 = vmatpush1.msra.mxu0 %v134
    %606 = vmatprep.subr.mxu0 0.0
    %607 = vmatpush1.msra.mxu0 %v135
    %608 = vmatprep.subr.mxu0 0.0
    %609 = vmatpush1.msra.mxu0 %v136
    %610 = vmatprep.subr.mxu0 0.0
    %611 = vmatpush1.msra.mxu0 %v137
    %612 = vmatprep.subr.mxu0 0.0
    %613 = vmatpush1.msra.mxu0 0.0
    %614 = vmatprep.subr.mxu0 0.0
    %615 = vmatpush1.msra.mxu0 0.0
    %616 = vmatprep.subr.mxu0 0.0
    %617 = vmatpush1.msra.mxu0 0.0
    %618 = vmatprep.subr.mxu0 0.0
    %619 = vmatpush1.msra.mxu0 0.0
    %620 = vmatprep.subr.mxu0 0.0
    %621 = vmatpush1.msra.mxu0 0.0
    %622 = vmatprep.subr.mxu0 0.0
    %623 = vmatpush1.msra.mxu0 0.0
    %624 = vmatprep.subr.mxu0 0.0
    %625 = vmatpush1.msra.mxu0 0.0
    %626 = vmatprep.subr.mxu0 0.0
    %627 = vmatpush1.msra.mxu0 0.0
    %628 = vmatprep.subr.mxu0 0.0
    %629 = vmatpush1.msra.mxu0 0.0
    %630 = vmatprep.subr.mxu0 0.0
    %631 = vmatpush1.msra.mxu0 0.0
    %632 = vmatprep.subr.mxu0 0.0
    %633 = vmatpush1.msra.mxu0 0.0
    %634 = vmatprep.subr.mxu0 0.0
    %635 = vmatpush1.msra.mxu0 0.0
    %636 = vmatprep.subr.mxu0 0.0
    %637 = vmatpush1.msra.mxu0 0.0
    %638 = vmatprep.subr.mxu0 0.0
    %639 = vmatpush1.msra.mxu0 0.0
    %640 = vmatprep.subr.mxu0 0.0
    %641 = vmatpush1.msra.mxu0 0.0
    %642 = vmatprep.subr.mxu0 0.0
    %643 = vmatpush1.msra.mxu0 0.0
    %644 = vmatprep.subr.mxu0 0.0
    %645 = vmatpush1.msra.mxu0 0.0
    %646 = vmatprep.subr.mxu0 0.0
    %647 = vmatpush1.msra.mxu0 0.0
    %648 = vmatprep.subr.mxu0 0.0
    %649 = vmatpush1.msra.mxu0 0.0
    %650 = vmatprep.subr.mxu0 0.0
    %651 = vmatpush1.msra.mxu0 0.0
    %652 = vmatprep.subr.mxu0 0.0
    %653 = vmatpush1.msra.mxu0 0.0
    %654 = vmatprep.subr.mxu0 0.0
    %655 = vmatpush1.msra.mxu0 0.0
    %656 = vmatprep.subr.mxu0 0.0
    %657 = vmatpush1.msra.mxu0 0.0
    %658 = vmatprep.subr.mxu0 0.0
    %659 = vmatpush1.msra.mxu0 0.0
    %660 = vmatprep.subr.mxu0 0.0
    %661 = vmatpush1.msra.mxu0 0.0
    %662 = vmatprep.subr.mxu0 0.0
    %663 = vmatpush1.msra.mxu0 0.0
    %664 = vmatprep.subr.mxu0 0.0
    %665 = vmatpush1.msra.mxu0 0.0
    %666 = vmatprep.subr.mxu0 0.0
    %667 = vmatpush1.msra.mxu0 0.0
    %668 = vmatprep.mubr.f32.mxu0 0.0
    %669 = vmatmul.mubr.f32.gmra.mrb[0].mxu0 %v602
    %v670 = vpop.f32.mrb[0].mxu0
    %v671 = vadd.f32 0.0, %v670
    %v672 = vpop.f32.mrb[0].mxu0
    %673 = vdwg.mxu0
    %v674 = vadd.f32 %v243, %v671
    %v675 = vmul.f32 %v674, 0.5
    %v676 = vtanh.pop %v675
    %v677 = vadd.f32 %v676, 1.0
    %v678 = vmul.f32 %v677, 0.5
    %v679 = vtanh.pop %v674
    %v680 = vmul.f32 %v678, %v592
    %682 = vrot.lane.b32.xlu0 %v679, 64
    %v683 = vpop.permute.xlu0 %682
    %v685 = vmul.f32 %v678, %v683
    %687 = vrot.lane.b32.xlu0 %v685, 32
    %v688 = vpop.permute.xlu0 %687
    %v690 = vadd.f32 %v680, %v688
    %v691 = vtanh.pop %v690
    %693 = vrot.lane.b32.xlu0 %v691, 64
    %v694 = vpop.permute.xlu0 %693
    %v696 = vmul.f32 %v678, %v694
    %698 = vrot.lane.b32.xlu0 %v696, 32
    %v699 = vpop.permute.xlu0 %698
    %v700 = vsel %vm306, %v699, 0
    %702 = vmatprep.subr.mxu0 0.0
    %703 = vmatpush1.msra.mxu0 %v134
    %704 = vmatprep.subr.mxu0 0.0
    %705 = vmatpush1.msra.mxu0 %v135
    %706 = vmatprep.subr.mxu0 0.0
    %707 = vmatpush1.msra.mxu0 %v136
    %708 = vmatprep.subr.mxu0 0.0
    %709 = vmatpush1.msra.mxu0 %v137
    %710 = vmatprep.subr.mxu0 0.0
    %711 = vmatpush1.msra.mxu0 0.0
    %712 = vmatprep.subr.mxu0 0.0
    %713 = vmatpush1.msra.mxu0 0.0
    %714 = vmatprep.subr.mxu0 0.0
    %715 = vmatpush1.msra.mxu0 0.0
    %716 = vmatprep.subr.mxu0 0.0
    %717 = vmatpush1.msra.mxu0 0.0
    %718 = vmatprep.subr.mxu0 0.0
    %719 = vmatpush1.msra.mxu0 0.0
    %720 = vmatprep.subr.mxu0 0.0
    %721 = vmatpush1.msra.mxu0 0.0
    %722 = vmatprep.subr.mxu0 0.0
    %723 = vmatpush1.msra.mxu0 0.0
    %724 = vmatprep.subr.mxu0 0.0
    %725 = vmatpush1.msra.mxu0 0.0
    %726 = vmatprep.subr.mxu0 0.0
    %727 = vmatpush1.msra.mxu0 0.0
    %728 = vmatprep.subr.mxu0 0.0
    %729 = vmatpush1.msra.mxu0 0.0
    %730 = vmatprep.subr.mxu0 0.0
    %731 = vmatpush1.msra.mxu0 0.0
    %732 = vmatprep.subr.mxu0 0.0
    %733 = vmatpush1.msra.mxu0 0.0
    %734 = vmatprep.subr.mxu0 0.0
    %735 = vmatpush1.msra.mxu0 0.0
    %736 = vmatprep.subr.mxu0 0.0
    %737 = vmatpush1.msra.mxu0 0.0
    %738 = vmatprep.subr.mxu0 0.0
    %739 = vmatpush1.msra.mxu0 0.0
    %740 = vmatprep.subr.mxu0 0.0
    %741 = vmatpush1.msra.mxu0 0.0
    %742 = vmatprep.subr.mxu0 0.0
    %743 = vmatpush1.msra.mxu0 0.0
    %744 = vmatprep.subr.mxu0 0.0
    %745 = vmatpush1.msra.mxu0 0.0
    %746 = vmatprep.subr.mxu0 0.0
    %747 = vmatpush1.msra.mxu0 0.0
    %748 = vmatprep.subr.mxu0 0.0
    %749 = vmatpush1.msra.mxu0 0.0
    %750 = vmatprep.subr.mxu0 0.0
    %751 = vmatpush1.msra.mxu0 0.0
    %752 = vmatprep.subr.mxu0 0.0
    %753 = vmatpush1.msra.mxu0 0.0
    %754 = vmatprep.subr.mxu0 0.0
    %755 = vmatpush1.msra.mxu0 0.0
    %756 = vmatprep.subr.mxu0 0.0
    %757 = vmatpush1.msra.mxu0 0.0
    %758 = vmatprep.subr.mxu0 0.0
    %759 = vmatpush1.msra.mxu0 0.0
    %760 = vmatprep.subr.mxu0 0.0
    %761 = vmatpush1.msra.mxu0 0.0
    %762 = vmatprep.subr.mxu0 0.0
    %763 = vmatpush1.msra.mxu0 0.0
    %764 = vmatprep.subr.mxu0 0.0
    %765 = vmatpush1.msra.mxu0 0.0
    %766 = vmatprep.mubr.f32.mxu0 0.0
    %767 = vmatmul.mubr.f32.gmra.mrb[0].mxu0 %v700
    %v768 = vpop.f32.mrb[0].mxu0
    %v769 = vadd.f32 0.0, %v768
    %v770 = vpop.f32.mrb[0].mxu0
    %771 = vdwg.mxu0
    %v772 = vadd.f32 %v248, %v769
    %v773 = vmul.f32 %v772, 0.5
    %v774 = vtanh.pop %v773
    %v775 = vadd.f32 %v774, 1.0
    %v776 = vmul.f32 %v775, 0.5
    %v777 = vtanh.pop %v772
    %v778 = vmul.f32 %v776, %v690
    %780 = vrot.lane.b32.xlu0 %v777, 64
    %v781 = vpop.permute.xlu0 %780
    %v783 = vmul.f32 %v776, %v781
    %785 = vrot.lane.b32.xlu0 %v783, 32
    %v786 = vpop.permute.xlu0 %785
    %v788 = vadd.f32 %v778, %v786
    %v789 = vtanh.pop %v788
    %791 = vrot.lane.b32.xlu0 %v789, 64
    %v792 = vpop.permute.xlu0 %791
    %v794 = vmul.f32 %v776, %v792
    %796 = vrot.lane.b32.xlu0 %v794, 32
    %v797 = vpop.permute.xlu0 %796
    %v798 = vsel %vm306, %v797, 0
    %800 = vmatprep.subr.mxu0 0.0
    %801 = vmatpush1.msra.mxu0 %v134
    %802 = vmatprep.subr.mxu0 0.0
    %803 = vmatpush1.msra.mxu0 %v135
    %804 = vmatprep.subr.mxu0 0.0
    %805 = vmatpush1.msra.mxu0 %v136
    %806 = vmatprep.subr.mxu0 0.0
    %807 = vmatpush1.msra.mxu0 %v137
    %808 = vmatprep.subr.mxu0 0.0
    %809 = vmatpush1.msra.mxu0 0.0
    %810 = vmatprep.subr.mxu0 0.0
    %811 = vmatpush1.msra.mxu0 0.0
    %812 = vmatprep.subr.mxu0 0.0
    %813 = vmatpush1.msra.mxu0 0.0
    %814 = vmatprep.subr.mxu0 0.0
    %815 = vmatpush1.msra.mxu0 0.0
    %816 = vmatprep.subr.mxu0 0.0
    %817 = vmatpush1.msra.mxu0 0.0
    %818 = vmatprep.subr.mxu0 0.0
    %819 = vmatpush1.msra.mxu0 0.0
    %820 = vmatprep.subr.mxu0 0.0
    %821 = vmatpush1.msra.mxu0 0.0
    %822 = vmatprep.subr.mxu0 0.0
    %823 = vmatpush1.msra.mxu0 0.0
    %824 = vmatprep.subr.mxu0 0.0
    %825 = vmatpush1.msra.mxu0 0.0
    %826 = vmatprep.subr.mxu0 0.0
    %827 = vmatpush1.msra.mxu0 0.0
    %828 = vmatprep.subr.mxu0 0.0
    %829 = vmatpush1.msra.mxu0 0.0
    %830 = vmatprep.subr.mxu0 0.0
    %831 = vmatpush1.msra.mxu0 0.0
    %832 = vmatprep.subr.mxu0 0.0
    %833 = vmatpush1.msra.mxu0 0.0
    %834 = vmatprep.subr.mxu0 0.0
    %835 = vmatpush1.msra.mxu0 0.0
    %836 = vmatprep.subr.mxu0 0.0
    %837 = vmatpush1.msra.mxu0 0.0
    %838 = vmatprep.subr.mxu0 0.0
    %839 = vmatpush1.msra.mxu0 0.0
    %840 = vmatprep.subr.mxu0 0.0
    %841 = vmatpush1.msra.mxu0 0.0
    %842 = vmatprep.subr.mxu0 0.0
    %843 = vmatpush1.msra.mxu0 0.0
    %844 = vmatprep.subr.mxu0 0.0
    %845 = vmatpush1.msra.mxu0 0.0
    %846 = vmatprep.subr.mxu0 0.0
    %847 = vmatpush1.msra.mxu0 0.0
    %848 = vmatprep.subr.mxu0 0.0
    %849 = vmatpush1.msra.mxu0 0.0
    %850 = vmatprep.subr.mxu0 0.0
    %851 = vmatpush1.msra.mxu0 0.0
    %852 = vmatprep.subr.mxu0 0.0
    %853 = vmatpush1.msra.mxu0 0.0
    %854 = vmatprep.subr.mxu0 0.0
    %855 = vmatpush1.msra.mxu0 0.0
    %856 = vmatprep.subr.mxu0 0.0
    %857 = vmatpush1.msra.mxu0 0.0
    %858 = vmatprep.subr.mxu0 0.0
    %859 = vmatpush1.msra.mxu0 0.0
    %860 = vmatprep.subr.mxu0 0.0
    %861 = vmatpush1.msra.mxu0 0.0
    %862 = vmatprep.subr.mxu0 0.0
    %863 = vmatpush1.msra.mxu0 0.0
    %864 = vmatprep.mubr.f32.mxu0 0.0
    %865 = vmatmul.mubr.f32.gmra.mrb[0].mxu0 %v798
    %v866 = vpop.f32.mrb[0].mxu0
    %v867 = vadd.f32 0.0, %v866
    %v868 = vpop.f32.mrb[0].mxu0
    %869 = vdwg.mxu0
    %v870 = vadd.f32 %v253, %v867
    %v871 = vmul.f32 %v870, 0.5
    %v872 = vtanh.pop %v871
    %v873 = vadd.f32 %v872, 1.0
    %v874 = vmul.f32 %v873, 0.5
    %v875 = vtanh.pop %v870
    %v876 = vmul.f32 %v874, %v788
    %878 = vrot.lane.b32.xlu0 %v875, 64
    %v879 = vpop.permute.xlu0 %878
    %v881 = vmul.f32 %v874, %v879
    %883 = vrot.lane.b32.xlu0 %v881, 32
    %v884 = vpop.permute.xlu0 %883
    %v886 = vadd.f32 %v876, %v884
    %v887 = vtanh.pop %v886
    %889 = vrot.lane.b32.xlu0 %v887, 64
    %v890 = vpop.permute.xlu0 %889
    %v892 = vmul.f32 %v874, %v890
    %894 = vrot.lane.b32.xlu0 %v892, 32
    %v895 = vpop.permute.xlu0 %894
    %v896 = vsel %vm306, %v895, 0
    %898 = vmatprep.subr.mxu0 0.0
    %899 = vmatpush1.msra.mxu0 %v134
    %900 = vmatprep.subr.mxu0 0.0
    %901 = vmatpush1.msra.mxu0 %v135
    %902 = vmatprep.subr.mxu0 0.0
    %903 = vmatpush1.msra.mxu0 %v136
    %904 = vmatprep.subr.mxu0 0.0
    %905 = vmatpush1.msra.mxu0 %v137
    %906 = vmatprep.subr.mxu0 0.0
    %907 = vmatpush1.msra.mxu0 0.0
    %908 = vmatprep.subr.mxu0 0.0
    %909 = vmatpush1.msra.mxu0 0.0
    %910 = vmatprep.subr.mxu0 0.0
    %911 = vmatpush1.msra.mxu0 0.0
    %912 = vmatprep.subr.mxu0 0.0
    %913 = vmatpush1.msra.mxu0 0.0
    %914 = vmatprep.subr.mxu0 0.0
    %915 = vmatpush1.msra.mxu0 0.0
    %916 = vmatprep.subr.mxu0 0.0
    %917 = vmatpush1.msra.mxu0 0.0
    %918 = vmatprep.subr.mxu0 0.0
    %919 = vmatpush1.msra.mxu0 0.0
    %920 = vmatprep.subr.mxu0 0.0
    %921 = vmatpush1.msra.mxu0 0.0
    %922 = vmatprep.subr.mxu0 0.0
    %923 = vmatpush1.msra.mxu0 0.0
    %924 = vmatprep.subr.mxu0 0.0
    %925 = vmatpush1.msra.mxu0 0.0
    %926 = vmatprep.subr.mxu0 0.0
    %927 = vmatpush1.msra.mxu0 0.0
    %928 = vmatprep.subr.mxu0 0.0
    %929 = vmatpush1.msra.mxu0 0.0
    %930 = vmatprep.subr.mxu0 0.0
    %931 = vmatpush1.msra.mxu0 0.0
    %932 = vmatprep.subr.mxu0 0.0
    %933 = vmatpush1.msra.mxu0 0.0
    %934 = vmatprep.subr.mxu0 0.0
    %935 = vmatpush1.msra.mxu0 0.0
    %936 = vmatprep.subr.mxu0 0.0
    %937 = vmatpush1.msra.mxu0 0.0
    %938 = vmatprep.subr.mxu0 0.0
    %939 = vmatpush1.msra.mxu0 0.0
    %940 = vmatprep.subr.mxu0 0.0
    %941 = vmatpush1.msra.mxu0 0.0
    %942 = vmatprep.subr.mxu0 0.0
    %943 = vmatpush1.msra.mxu0 0.0
    %944 = vmatprep.subr.mxu0 0.0
    %945 = vmatpush1.msra.mxu0 0.0
    %946 = vmatprep.subr.mxu0 0.0
    %947 = vmatpush1.msra.mxu0 0.0
    %948 = vmatprep.subr.mxu0 0.0
    %949 = vmatpush1.msra.mxu0 0.0
    %950 = vmatprep.subr.mxu0 0.0
    %951 = vmatpush1.msra.mxu0 0.0
    %952 = vmatprep.subr.mxu0 0.0
    %953 = vmatpush1.msra.mxu0 0.0
    %954 = vmatprep.subr.mxu0 0.0
    %955 = vmatpush1.msra.mxu0 0.0
    %956 = vmatprep.subr.mxu0 0.0
    %957 = vmatpush1.msra.mxu0 0.0
    %958 = vmatprep.subr.mxu0 0.0
    %959 = vmatpush1.msra.mxu0 0.0
    %960 = vmatprep.subr.mxu0 0.0
    %961 = vmatpush1.msra.mxu0 0.0
    %962 = vmatprep.mubr.f32.mxu0 0.0
    %963 = vmatmul.mubr.f32.gmra.mrb[0].mxu0 %v896
    %v964 = vpop.f32.mrb[0].mxu0
    %v965 = vadd.f32 0.0, %v964
    %v966 = vpop.f32.mrb[0].mxu0
    %967 = vdwg.mxu0
    %v968 = vadd.f32 %v258, %v965
    %v969 = vmul.f32 %v968, 0.5
    %v970 = vtanh.pop %v969
    %v971 = vadd.f32 %v970, 1.0
    %v972 = vmul.f32 %v971, 0.5
    %v973 = vtanh.pop %v968
    %v974 = vmul.f32 %v972, %v886
    %976 = vrot.lane.b32.xlu0 %v973, 64
    %v977 = vpop.permute.xlu0 %976
    %v979 = vmul.f32 %v972, %v977
    %981 = vrot.lane.b32.xlu0 %v979, 32
    %v982 = vpop.permute.xlu0 %981
    %v984 = vadd.f32 %v974, %v982
    %v985 = vtanh.pop %v984
    %987 = vrot.lane.b32.xlu0 %v985, 64
    %v988 = vpop.permute.xlu0 %987
    %v990 = vmul.f32 %v972, %v988
    %992 = vrot.lane.b32.xlu0 %v990, 32
    %v993 = vpop.permute.xlu0 %992
    %v994 = vsel %vm306, %v993, 0
    %996 = vmatprep.subr.mxu0 0.0
    %997 = vmatpush1.msra.mxu0 %v134
    %998 = vmatprep.subr.mxu0 0.0
    %999 = vmatpush1.msra.mxu0 %v135
    %1000 = vmatprep.subr.mxu0 0.0
    %1001 = vmatpush1.msra.mxu0 %v136
    %1002 = vmatprep.subr.mxu0 0.0
    %1003 = vmatpush1.msra.mxu0 %v137
    %1004 = vmatprep.subr.mxu0 0.0
    %1005 = vmatpush1.msra.mxu0 0.0
    %1006 = vmatprep.subr.mxu0 0.0
    %1007 = vmatpush1.msra.mxu0 0.0
    %1008 = vmatprep.subr.mxu0 0.0
    %1009 = vmatpush1.msra.mxu0 0.0
    %1010 = vmatprep.subr.mxu0 0.0
    %1011 = vmatpush1.msra.mxu0 0.0
    %1012 = vmatprep.subr.mxu0 0.0
    %1013 = vmatpush1.msra.mxu0 0.0
    %1014 = vmatprep.subr.mxu0 0.0
    %1015 = vmatpush1.msra.mxu0 0.0
    %1016 = vmatprep.subr.mxu0 0.0
    %1017 = vmatpush1.msra.mxu0 0.0
    %1018 = vmatprep.subr.mxu0 0.0
    %1019 = vmatpush1.msra.mxu0 0.0
    %1020 = vmatprep.subr.mxu0 0.0
    %1021 = vmatpush1.msra.mxu0 0.0
    %1022 = vmatprep.subr.mxu0 0.0
    %1023 = vmatpush1.msra.mxu0 0.0
    %1024 = vmatprep.subr.mxu0 0.0
    %1025 = vmatpush1.msra.mxu0 0.0
    %1026 = vmatprep.subr.mxu0 0.0
    %1027 = vmatpush1.msra.mxu0 0.0
    %1028 = vmatprep.subr.mxu0 0.0
    %1029 = vmatpush1.msra.mxu0 0.0
    %1030 = vmatprep.subr.mxu0 0.0
    %1031 = vmatpush1.msra.mxu0 0.0
    %1032 = vmatprep.subr.mxu0 0.0
    %1033 = vmatpush1.msra.mxu0 0.0
    %1034 = vmatprep.subr.mxu0 0.0
    %1035 = vmatpush1.msra.mxu0 0.0
    %1036 = vmatprep.subr.mxu0 0.0
    %1037 = vmatpush1.msra.mxu0 0.0
    %1038 = vmatprep.subr.mxu0 0.0
    %1039 = vmatpush1.msra.mxu0 0.0
    %1040 = vmatprep.subr.mxu0 0.0
    %1041 = vmatpush1.msra.mxu0 0.0
    %1042 = vmatprep.subr.mxu0 0.0
    %1043 = vmatpush1.msra.mxu0 0.0
    %1044 = vmatprep.subr.mxu0 0.0
    %1045 = vmatpush1.msra.mxu0 0.0
    %1046 = vmatprep.subr.mxu0 0.0
    %1047 = vmatpush1.msra.mxu0 0.0
    %1048 = vmatprep.subr.mxu0 0.0
    %1049 = vmatpush1.msra.mxu0 0.0
    %1050 = vmatprep.subr.mxu0 0.0
    %1051 = vmatpush1.msra.mxu0 0.0
    %1052 = vmatprep.subr.mxu0 0.0
    %1053 = vmatpush1.msra.mxu0 0.0
    %1054 = vmatprep.subr.mxu0 0.0
    %1055 = vmatpush1.msra.mxu0 0.0
    %1056 = vmatprep.subr.mxu0 0.0
    %1057 = vmatpush1.msra.mxu0 0.0
    %1058 = vmatprep.subr.mxu0 0.0
    %1059 = vmatpush1.msra.mxu0 0.0
    %1060 = vmatprep.mubr.f32.mxu0 0.0
    %1061 = vmatmul.mubr.f32.gmra.mrb[0].mxu0 %v994
    %v1062 = vpop.f32.mrb[0].mxu0
    %v1063 = vadd.f32 0.0, %v1062
    %v1064 = vpop.f32.mrb[0].mxu0
    %1065 = vdwg.mxu0
    %v1066 = vadd.f32 %v263, %v1063
    %v1067 = vmul.f32 %v1066, 0.5
    %v1068 = vtanh.pop %v1067
    %v1069 = vadd.f32 %v1068, 1.0
    %v1070 = vmul.f32 %v1069, 0.5
    %v1071 = vtanh.pop %v1066
    %v1072 = vmul.f32 %v1070, %v984
    %1074 = vrot.lane.b32.xlu0 %v1071, 64
    %v1075 = vpop.permute.xlu0 %1074
    %v1077 = vmul.f32 %v1070, %v1075
    %1079 = vrot.lane.b32.xlu0 %v1077, 32
    %v1080 = vpop.permute.xlu0 %1079
    %v1082 = vadd.f32 %v1072, %v1080
    %v1083 = vtanh.pop %v1082
    %1085 = vrot.lane.b32.xlu0 %v1083, 64
    %v1086 = vpop.permute.xlu0 %1085
    %v1088 = vmul.f32 %v1070, %v1086
    %1090 = vrot.lane.b32.xlu0 %v1088, 32
    %v1091 = vpop.permute.xlu0 %1090
    %v1092 = vsel %vm306, %v1091, 0
    %1094 = vmatprep.subr.mxu0 0.0
    %1095 = vmatpush1.msra.mxu0 %v134
    %1096 = vmatprep.subr.mxu0 0.0
    %1097 = vmatpush1.msra.mxu0 %v135
    %1098 = vmatprep.subr.mxu0 0.0
    %1099 = vmatpush1.msra.mxu0 %v136
    %1100 = vmatprep.subr.mxu0 0.0
    %1101 = vmatpush1.msra.mxu0 %v137
    %1102 = vmatprep.subr.mxu0 0.0
    %1103 = vmatpush1.msra.mxu0 0.0
    %1104 = vmatprep.subr.mxu0 0.0
    %1105 = vmatpush1.msra.mxu0 0.0
    %1106 = vmatprep.subr.mxu0 0.0
    %1107 = vmatpush1.msra.mxu0 0.0
    %1108 = vmatprep.subr.mxu0 0.0
    %1109 = vmatpush1.msra.mxu0 0.0
    %1110 = vmatprep.subr.mxu0 0.0
    %1111 = vmatpush1.msra.mxu0 0.0
    %1112 = vmatprep.subr.mxu0 0.0
    %1113 = vmatpush1.msra.mxu0 0.0
    %1114 = vmatprep.subr.mxu0 0.0
    %1115 = vmatpush1.msra.mxu0 0.0
    %1116 = vmatprep.subr.mxu0 0.0
    %1117 = vmatpush1.msra.mxu0 0.0
    %1118 = vmatprep.subr.mxu0 0.0
    %1119 = vmatpush1.msra.mxu0 0.0
    %1120 = vmatprep.subr.mxu0 0.0
    %1121 = vmatpush1.msra.mxu0 0.0
    %1122 = vmatprep.subr.mxu0 0.0
    %1123 = vmatpush1.msra.mxu0 0.0
    %1124 = vmatprep.subr.mxu0 0.0
    %1125 = vmatpush1.msra.mxu0 0.0
    %1126 = vmatprep.subr.mxu0 0.0
    %1127 = vmatpush1.msra.mxu0 0.0
    %1128 = vmatprep.subr.mxu0 0.0
    %1129 = vmatpush1.msra.mxu0 0.0
    %1130 = vmatprep.subr.mxu0 0.0
    %1131 = vmatpush1.msra.mxu0 0.0
    %1132 = vmatprep.subr.mxu0 0.0
    %1133 = vmatpush1.msra.mxu0 0.0
    %1134 = vmatprep.subr.mxu0 0.0
    %1135 = vmatpush1.msra.mxu0 0.0
    %1136 = vmatprep.subr.mxu0 0.0
    %1137 = vmatpush1.msra.mxu0 0.0
    %1138 = vmatprep.subr.mxu0 0.0
    %1139 = vmatpush1.msra.mxu0 0.0
    %1140 = vmatprep.subr.mxu0 0.0
    %1141 = vmatpush1.msra.mxu0 0.0
    %1142 = vmatprep.subr.mxu0 0.0
    %1143 = vmatpush1.msra.mxu0 0.0
    %1144 = vmatprep.subr.mxu0 0.0
    %1145 = vmatpush1.msra.mxu0 0.0
    %1146 = vmatprep.subr.mxu0 0.0
    %1147 = vmatpush1.msra.mxu0 0.0
    %1148 = vmatprep.subr.mxu0 0.0
    %1149 = vmatpush1.msra.mxu0 0.0
    %1150 = vmatprep.subr.mxu0 0.0
    %1151 = vmatpush1.msra.mxu0 0.0
    %1152 = vmatprep.subr.mxu0 0.0
    %1153 = vmatpush1.msra.mxu0 0.0
    %1154 = vmatprep.subr.mxu0 0.0
    %1155 = vmatpush1.msra.mxu0 0.0
    %1156 = vmatprep.subr.mxu0 0.0
    %1157 = vmatpush1.msra.mxu0 0.0
    %1158 = vmatprep.mubr.f32.mxu0 0.0
    %1159 = vmatmul.mubr.f32.gmra.mrb[0].mxu0 %v1092
    %v1160 = vpop.f32.mrb[0].mxu0
    %v1161 = vadd.f32 0.0, %v1160
    %v1162 = vpop.f32.mrb[0].mxu0
    %1163 = vdwg.mxu0
    %v1164 = vadd.f32 %v268, %v1161
    %v1165 = vmul.f32 %v1164, 0.5
    %v1166 = vtanh.pop %v1165
    %v1167 = vadd.f32 %v1166, 1.0
    %v1168 = vmul.f32 %v1167, 0.5
    %v1169 = vtanh.pop %v1164
    %v1170 = vmul.f32 %v1168, %v1082
    %1172 = vrot.lane.b32.xlu0 %v1169, 64
    %v1173 = vpop.permute.xlu0 %1172
    %v1175 = vmul.f32 %v1168, %v1173
    %1177 = vrot.lane.b32.xlu0 %v1175, 32
    %v1178 = vpop.permute.xlu0 %1177
    %v1180 = vadd.f32 %v1170, %v1178
    %v1181 = vtanh.pop %v1180
    %1183 = vrot.lane.b32.xlu0 %v1181, 64
    %v1184 = vpop.permute.xlu0 %1183
    %v1186 = vmul.f32 %v1168, %v1184
    %1188 = vrot.lane.b32.xlu0 %v1186, 32
    %v1189 = vpop.permute.xlu0 %1188
    %v1190 = vsel %vm306, %v1189, 0
    %1192 = vmatprep.subr.mxu0 0.0
    %1193 = vmatpush1.msra.mxu0 %v134
    %1194 = vmatprep.subr.mxu0 0.0
    %1195 = vmatpush1.msra.mxu0 %v135
    %1196 = vmatprep.subr.mxu0 0.0
    %1197 = vmatpush1.msra.mxu0 %v136
    %1198 = vmatprep.subr.mxu0 0.0
    %1199 = vmatpush1.msra.mxu0 %v137
    %1200 = vmatprep.subr.mxu0 0.0
    %1201 = vmatpush1.msra.mxu0 0.0
    %1202 = vmatprep.subr.mxu0 0.0
    %1203 = vmatpush1.msra.mxu0 0.0
    %1204 = vmatprep.subr.mxu0 0.0
    %1205 = vmatpush1.msra.mxu0 0.0
    %1206 = vmatprep.subr.mxu0 0.0
    %1207 = vmatpush1.msra.mxu0 0.0
    %1208 = vmatprep.subr.mxu0 0.0
    %1209 = vmatpush1.msra.mxu0 0.0
    %1210 = vmatprep.subr.mxu0 0.0
    %1211 = vmatpush1.msra.mxu0 0.0
    %1212 = vmatprep.subr.mxu0 0.0
    %1213 = vmatpush1.msra.mxu0 0.0
    %1214 = vmatprep.subr.mxu0 0.0
    %1215 = vmatpush1.msra.mxu0 0.0
    %1216 = vmatprep.subr.mxu0 0.0
    %1217 = vmatpush1.msra.mxu0 0.0
    %1218 = vmatprep.subr.mxu0 0.0
    %1219 = vmatpush1.msra.mxu0 0.0
    %1220 = vmatprep.subr.mxu0 0.0
    %1221 = vmatpush1.msra.mxu0 0.0
    %1222 = vmatprep.subr.mxu0 0.0
    %1223 = vmatpush1.msra.mxu0 0.0
    %1224 = vmatprep.subr.mxu0 0.0
    %1225 = vmatpush1.msra.mxu0 0.0
    %1226 = vmatprep.subr.mxu0 0.0
    %1227 = vmatpush1.msra.mxu0 0.0
    %1228 = vmatprep.subr.mxu0 0.0
    %1229 = vmatpush1.msra.mxu0 0.0
    %1230 = vmatprep.subr.mxu0 0.0
    %1231 = vmatpush1.msra.mxu0 0.0
    %1232 = vmatprep.subr.mxu0 0.0
    %1233 = vmatpush1.msra.mxu0 0.0
    %1234 = vmatprep.subr.mxu0 0.0
    %1235 = vmatpush1.msra.mxu0 0.0
    %1236 = vmatprep.subr.mxu0 0.0
    %1237 = vmatpush1.msra.mxu0 0.0
    %1238 = vmatprep.subr.mxu0 0.0
    %1239 = vmatpush1.msra.mxu0 0.0
    %1240 = vmatprep.subr.mxu0 0.0
    %1241 = vmatpush1.msra.mxu0 0.0
    %1242 = vmatprep.subr.mxu0 0.0
    %1243 = vmatpush1.msra.mxu0 0.0
    %1244 = vmatprep.subr.mxu0 0.0
    %1245 = vmatpush1.msra.mxu0 0.0
    %1246 = vmatprep.subr.mxu0 0.0
    %1247 = vmatpush1.msra.mxu0 0.0
    %1248 = vmatprep.subr.mxu0 0.0
    %1249 = vmatpush1.msra.mxu0 0.0
    %1250 = vmatprep.subr.mxu0 0.0
    %1251 = vmatpush1.msra.mxu0 0.0
    %1252 = vmatprep.subr.mxu0 0.0
    %1253 = vmatpush1.msra.mxu0 0.0
    %1254 = vmatprep.subr.mxu0 0.0
    %1255 = vmatpush1.msra.mxu0 0.0
    %1256 = vmatprep.mubr.f32.mxu0 0.0
    %1257 = vmatmul.mubr.f32.gmra.mrb[0].mxu0 %v1190
    %v1258 = vpop.f32.mrb[0].mxu0
    %v1259 = vadd.f32 0.0, %v1258
    %v1260 = vpop.f32.mrb[0].mxu0
    %1261 = vdwg.mxu0
    %v1262 = vadd.f32 %v273, %v1259
    %v1263 = vmul.f32 %v1262, 0.5
    %v1264 = vtanh.pop %v1263
    %v1265 = vadd.f32 %v1264, 1.0
    %v1266 = vmul.f32 %v1265, 0.5
    %v1267 = vtanh.pop %v1262
    %v1268 = vmul.f32 %v1266, %v1180
    %1270 = vrot.lane.b32.xlu0 %v1267, 64
    %v1271 = vpop.permute.xlu0 %1270
    %v1273 = vmul.f32 %v1266, %v1271
    %1275 = vrot.lane.b32.xlu0 %v1273, 32
    %v1276 = vpop.permute.xlu0 %1275
    %v1278 = vadd.f32 %v1268, %v1276
    %v1279 = vtanh.pop %v1278
    %1281 = vrot.lane.b32.xlu0 %v1279, 64
    %v1282 = vpop.permute.xlu0 %1281
    %v1284 = vmul.f32 %v1266, %v1282
    %1286 = vrot.lane.b32.xlu0 %v1284, 32
    %v1287 = vpop.permute.xlu0 %1286
    %v1288 = vsel %vm306, %v1287, 0
    %1290 = vmatprep.subr.mxu0 0.0
    %1291 = vmatpush1.msra.mxu0 %v134
    %1292 = vmatprep.subr.mxu0 0.0
    %1293 = vmatpush1.msra.mxu0 %v135
    %1294 = vmatprep.subr.mxu0 0.0
    %1295 = vmatpush1.msra.mxu0 %v136
    %1296 = vmatprep.subr.mxu0 0.0
    %1297 = vmatpush1.msra.mxu0 %v137
    %1298 = vmatprep.subr.mxu0 0.0
    %1299 = vmatpush1.msra.mxu0 0.0
    %1300 = vmatprep.subr.mxu0 0.0
    %1301 = vmatpush1.msra.mxu0 0.0
    %1302 = vmatprep.subr.mxu0 0.0
    %1303 = vmatpush1.msra.mxu0 0.0
    %1304 = vmatprep.subr.mxu0 0.0
    %1305 = vmatpush1.msra.mxu0 0.0
    %1306 = vmatprep.subr.mxu0 0.0
    %1307 = vmatpush1.msra.mxu0 0.0
    %1308 = vmatprep.subr.mxu0 0.0
    %1309 = vmatpush1.msra.mxu0 0.0
    %1310 = vmatprep.subr.mxu0 0.0
    %1311 = vmatpush1.msra.mxu0 0.0
    %1312 = vmatprep.subr.mxu0 0.0
    %1313 = vmatpush1.msra.mxu0 0.0
    %1314 = vmatprep.subr.mxu0 0.0
    %1315 = vmatpush1.msra.mxu0 0.0
    %1316 = vmatprep.subr.mxu0 0.0
    %1317 = vmatpush1.msra.mxu0 0.0
    %1318 = vmatprep.subr.mxu0 0.0
    %1319 = vmatpush1.msra.mxu0 0.0
    %1320 = vmatprep.subr.mxu0 0.0
    %1321 = vmatpush1.msra.mxu0 0.0
    %1322 = vmatprep.subr.mxu0 0.0
    %1323 = vmatpush1.msra.mxu0 0.0
    %1324 = vmatprep.subr.mxu0 0.0
    %1325 = vmatpush1.msra.mxu0 0.0
    %1326 = vmatprep.subr.mxu0 0.0
    %1327 = vmatpush1.msra.mxu0 0.0
    %1328 = vmatprep.subr.mxu0 0.0
    %1329 = vmatpush1.msra.mxu0 0.0
    %1330 = vmatprep.subr.mxu0 0.0
    %1331 = vmatpush1.msra.mxu0 0.0
    %1332 = vmatprep.subr.mxu0 0.0
    %1333 = vmatpush1.msra.mxu0 0.0
    %1334 = vmatprep.subr.mxu0 0.0
    %1335 = vmatpush1.msra.mxu0 0.0
    %1336 = vmatprep.subr.mxu0 0.0
    %1337 = vmatpush1.msra.mxu0 0.0
    %1338 = vmatprep.subr.mxu0 0.0
    %1339 = vmatpush1.msra.mxu0 0.0
    %1340 = vmatprep.subr.mxu0 0.0
    %1341 = vmatpush1.msra.mxu0 0.0
    %1342 = vmatprep.subr.mxu0 0.0
    %1343 = vmatpush1.msra.mxu0 0.0
    %1344 = vmatprep.subr.mxu0 0.0
    %1345 = vmatpush1.msra.mxu0 0.0
    %1346 = vmatprep.subr.mxu0 0.0
    %1347 = vmatpush1.msra.mxu0 0.0
    %1348 = vmatprep.subr.mxu0 0.0
    %1349 = vmatpush1.msra.mxu0 0.0
    %1350 = vmatprep.subr.mxu0 0.0
    %1351 = vmatpush1.msra.mxu0 0.0
    %1352 = vmatprep.subr.mxu0 0.0
    %1353 = vmatpush1.msra.mxu0 0.0
    %1354 = vmatprep.mubr.f32.mxu0 0.0
    %1355 = vmatmul.mubr.f32.gmra.mrb[0].mxu0 %v1288
    %v1356 = vpop.f32.mrb[0].mxu0
    %v1357 = vadd.f32 0.0, %v1356
    %v1358 = vpop.f32.mrb[0].mxu0
    %1359 = vdwg.mxu0
    %v1360 = vadd.f32 %v278, %v1357
    %v1361 = vmul.f32 %v1360, 0.5
    %v1362 = vtanh.pop %v1361
    %v1363 = vadd.f32 %v1362, 1.0
    %v1364 = vmul.f32 %v1363, 0.5
    %v1365 = vtanh.pop %v1360
    %v1366 = vmul.f32 %v1364, %v1278
    %1368 = vrot.lane.b32.xlu0 %v1365, 64
    %v1369 = vpop.permute.xlu0 %1368
    %v1371 = vmul.f32 %v1364, %v1369
    %1373 = vrot.lane.b32.xlu0 %v1371, 32
    %v1374 = vpop.permute.xlu0 %1373
    %v1376 = vadd.f32 %v1366, %v1374
    %v1377 = vtanh.pop %v1376
    %1379 = vrot.lane.b32.xlu0 %v1377, 64
    %v1380 = vpop.permute.xlu0 %1379
    %v1382 = vmul.f32 %v1364, %v1380
    %1384 = vrot.lane.b32.xlu0 %v1382, 32
    %v1385 = vpop.permute.xlu0 %1384
    %v1386 = vsel %vm306, %v1385, 0
    %1388 = vmatprep.subr.mxu0 0.0
    %1389 = vmatpush1.msra.mxu0 %v134
    %1390 = vmatprep.subr.mxu0 0.0
    %1391 = vmatpush1.msra.mxu0 %v135
    %1392 = vmatprep.subr.mxu0 0.0
    %1393 = vmatpush1.msra.mxu0 %v136
    %1394 = vmatprep.subr.mxu0 0.0
    %1395 = vmatpush1.msra.mxu0 %v137
    %1396 = vmatprep.subr.mxu0 0.0
    %1397 = vmatpush1.msra.mxu0 0.0
    %1398 = vmatprep.subr.mxu0 0.0
    %1399 = vmatpush1.msra.mxu0 0.0
    %1400 = vmatprep.subr.mxu0 0.0
    %1401 = vmatpush1.msra.mxu0 0.0
    %1402 = vmatprep.subr.mxu0 0.0
    %1403 = vmatpush1.msra.mxu0 0.0
    %1404 = vmatprep.subr.mxu0 0.0
    %1405 = vmatpush1.msra.mxu0 0.0
    %1406 = vmatprep.subr.mxu0 0.0
    %1407 = vmatpush1.msra.mxu0 0.0
    %1408 = vmatprep.subr.mxu0 0.0
    %1409 = vmatpush1.msra.mxu0 0.0
    %1410 = vmatprep.subr.mxu0 0.0
    %1411 = vmatpush1.msra.mxu0 0.0
    %1412 = vmatprep.subr.mxu0 0.0
    %1413 = vmatpush1.msra.mxu0 0.0
    %1414 = vmatprep.subr.mxu0 0.0
    %1415 = vmatpush1.msra.mxu0 0.0
    %1416 = vmatprep.subr.mxu0 0.0
    %1417 = vmatpush1.msra.mxu0 0.0
    %1418 = vmatprep.subr.mxu0 0.0
    %1419 = vmatpush1.msra.mxu0 0.0
    %1420 = vmatprep.subr.mxu0 0.0
    %1421 = vmatpush1.msra.mxu0 0.0
    %1422 = vmatprep.subr.mxu0 0.0
    %1423 = vmatpush1.msra.mxu0 0.0
    %1424 = vmatprep.subr.mxu0 0.0
    %1425 = vmatpush1.msra.mxu0 0.0
    %1426 = vmatprep.subr.mxu0 0.0
    %1427 = vmatpush1.msra.mxu0 0.0
    %1428 = vmatprep.subr.mxu0 0.0
    %1429 = vmatpush1.msra.mxu0 0.0
    %1430 = vmatprep.subr.mxu0 0.0
    %1431 = vmatpush1.msra.mxu0 0.0
    %1432 = vmatprep.subr.mxu0 0.0
    %1433 = vmatpush1.msra.mxu0 0.0
    %1434 = vmatprep.subr.mxu0 0.0
    %1435 = vmatpush1.msra.mxu0 0.0
    %1436 = vmatprep.subr.mxu0 0.0
    %1437 = vmatpush1.msra.mxu0 0.0
    %1438 = vmatprep.subr.mxu0 0.0
    %1439 = vmatpush1.msra.mxu0 0.0
    %1440 = vmatprep.subr.mxu0 0.0
    %1441 = vmatpush1.msra.mxu0 0.0
    %1442 = vmatprep.subr.mxu0 0.0
    %1443 = vmatpush1.msra.mxu0 0.0
    %1444 = vmatprep.subr.mxu0 0.0
    %1445 = vmatpush1.msra.mxu0 0.0
    %1446 = vmatprep.subr.mxu0 0.0
    %1447 = vmatpush1.msra.mxu0 0.0
    %1448 = vmatprep.subr.mxu0 0.0
    %1449 = vmatpush1.msra.mxu0 0.0
    %1450 = vmatprep.subr.mxu0 0.0
    %1451 = vmatpush1.msra.mxu0 0.0
    %1452 = vmatprep.mubr.f32.mxu0 0.0
    %1453 = vmatmul.mubr.f32.gmra.mrb[0].mxu0 %v1386
    %v1454 = vpop.f32.mrb[0].mxu0
    %v1455 = vadd.f32 0.0, %v1454
    %v1456 = vpop.f32.mrb[0].mxu0
    %1457 = vdwg.mxu0
    %v1458 = vadd.f32 %v283, %v1455
    %v1459 = vmul.f32 %v1458, 0.5
    %v1460 = vtanh.pop %v1459
    %v1461 = vadd.f32 %v1460, 1.0
    %v1462 = vmul.f32 %v1461, 0.5
    %v1463 = vtanh.pop %v1458
    %v1464 = vmul.f32 %v1462, %v1376
    %1466 = vrot.lane.b32.xlu0 %v1463, 64
    %v1467 = vpop.permute.xlu0 %1466
    %v1469 = vmul.f32 %v1462, %v1467
    %1471 = vrot.lane.b32.xlu0 %v1469, 32
    %v1472 = vpop.permute.xlu0 %1471
    %v1474 = vadd.f32 %v1464, %v1472
    %v1475 = vtanh.pop %v1474
    %1477 = vrot.lane.b32.xlu0 %v1475, 64
    %v1478 = vpop.permute.xlu0 %1477
    %v1480 = vmul.f32 %v1462, %v1478
    %1482 = vrot.lane.b32.xlu0 %v1480, 32
    %v1483 = vpop.permute.xlu0 %1482
    %v1484 = vsel %vm306, %v1483, 0
    %1486 = vmatprep.subr.mxu0 0.0
    %1487 = vmatpush1.msra.mxu0 %v134
    %1488 = vmatprep.subr.mxu0 0.0
    %1489 = vmatpush1.msra.mxu0 %v135
    %1490 = vmatprep.subr.mxu0 0.0
    %1491 = vmatpush1.msra.mxu0 %v136
    %1492 = vmatprep.subr.mxu0 0.0
    %1493 = vmatpush1.msra.mxu0 %v137
    %1494 = vmatprep.subr.mxu0 0.0
    %1495 = vmatpush1.msra.mxu0 0.0
    %1496 = vmatprep.subr.mxu0 0.0
    %1497 = vmatpush1.msra.mxu0 0.0
    %1498 = vmatprep.subr.mxu0 0.0
    %1499 = vmatpush1.msra.mxu0 0.0
    %1500 = vmatprep.subr.mxu0 0.0
    %1501 = vmatpush1.msra.mxu0 0.0
    %1502 = vmatprep.subr.mxu0 0.0
    %1503 = vmatpush1.msra.mxu0 0.0
    %1504 = vmatprep.subr.mxu0 0.0
    %1505 = vmatpush1.msra.mxu0 0.0
    %1506 = vmatprep.subr.mxu0 0.0
    %1507 = vmatpush1.msra.mxu0 0.0
    %1508 = vmatprep.subr.mxu0 0.0
    %1509 = vmatpush1.msra.mxu0 0.0
    %1510 = vmatprep.subr.mxu0 0.0
    %1511 = vmatpush1.msra.mxu0 0.0
    %1512 = vmatprep.subr.mxu0 0.0
    %1513 = vmatpush1.msra.mxu0 0.0
    %1514 = vmatprep.subr.mxu0 0.0
    %1515 = vmatpush1.msra.mxu0 0.0
    %1516 = vmatprep.subr.mxu0 0.0
    %1517 = vmatpush1.msra.mxu0 0.0
    %1518 = vmatprep.subr.mxu0 0.0
    %1519 = vmatpush1.msra.mxu0 0.0
    %1520 = vmatprep.subr.mxu0 0.0
    %1521 = vmatpush1.msra.mxu0 0.0
    %1522 = vmatprep.subr.mxu0 0.0
    %1523 = vmatpush1.msra.mxu0 0.0
    %1524 = vmatprep.subr.mxu0 0.0
    %1525 = vmatpush1.msra.mxu0 0.0
    %1526 = vmatprep.subr.mxu0 0.0
    %1527 = vmatpush1.msra.mxu0 0.0
    %1528 = vmatprep.subr.mxu0 0.0
    %1529 = vmatpush1.msra.mxu0 0.0
    %1530 = vmatprep.subr.mxu0 0.0
    %1531 = vmatpush1.msra.mxu0 0.0
    %1532 = vmatprep.subr.mxu0 0.0
    %1533 = vmatpush1.msra.mxu0 0.0
    %1534 = vmatprep.subr.mxu0 0.0
    %1535 = vmatpush1.msra.mxu0 0.0
    %1536 = vmatprep.subr.mxu0 0.0
    %1537 = vmatpush1.msra.mxu0 0.0
    %1538 = vmatprep.subr.mxu0 0.0
    %1539 = vmatpush1.msra.mxu0 0.0
    %1540 = vmatprep.subr.mxu0 0.0
    %1541 = vmatpush1.msra.mxu0 0.0
    %1542 = vmatprep.subr.mxu0 0.0
    %1543 = vmatpush1.msra.mxu0 0.0
    %1544 = vmatprep.subr.mxu0 0.0
    %1545 = vmatpush1.msra.mxu0 0.0
    %1546 = vmatprep.subr.mxu0 0.0
    %1547 = vmatpush1.msra.mxu0 0.0
    %1548 = vmatprep.subr.mxu0 0.0
    %1549 = vmatpush1.msra.mxu0 0.0
    %1550 = vmatprep.mubr.f32.mxu0 0.0
    %1551 = vmatmul.mubr.f32.gmra.mrb[0].mxu0 %v1484
    %v1552 = vpop.f32.mrb[0].mxu0
    %v1553 = vadd.f32 0.0, %v1552
    %v1554 = vpop.f32.mrb[0].mxu0
    %1555 = vdwg.mxu0
    %v1556 = vadd.f32 %v288, %v1553
    %v1557 = vmul.f32 %v1556, 0.5
    %v1558 = vtanh.pop %v1557
    %v1559 = vadd.f32 %v1558, 1.0
    %v1560 = vmul.f32 %v1559, 0.5
    %v1561 = vtanh.pop %v1556
    %v1562 = vmul.f32 %v1560, %v1474
    %1564 = vrot.lane.b32.xlu0 %v1561, 64
    %v1565 = vpop.permute.xlu0 %1564
    %v1567 = vmul.f32 %v1560, %v1565
    %1569 = vrot.lane.b32.xlu0 %v1567, 32
    %v1570 = vpop.permute.xlu0 %1569
    %v1572 = vadd.f32 %v1562, %v1570
    %v1573 = vtanh.pop %v1572
    %1575 = vrot.lane.b32.xlu0 %v1573, 64
    %v1576 = vpop.permute.xlu0 %1575
    %v1578 = vmul.f32 %v1560, %v1576
    %1580 = vrot.lane.b32.xlu0 %v1578, 32
    %v1581 = vpop.permute.xlu0 %1580
    %v1582 = vsel %vm306, %v1581, 0
    %1584 = vmatprep.subr.mxu0 0.0
    %1585 = vmatpush1.msra.mxu0 %v134
    %1586 = vmatprep.subr.mxu0 0.0
    %1587 = vmatpush1.msra.mxu0 %v135
    %1588 = vmatprep.subr.mxu0 0.0
    %1589 = vmatpush1.msra.mxu0 %v136
    %1590 = vmatprep.subr.mxu0 0.0
    %1591 = vmatpush1.msra.mxu0 %v137
    %1592 = vmatprep.subr.mxu0 0.0
    %1593 = vmatpush1.msra.mxu0 0.0
    %1594 = vmatprep.subr.mxu0 0.0
    %1595 = vmatpush1.msra.mxu0 0.0
    %1596 = vmatprep.subr.mxu0 0.0
    %1597 = vmatpush1.msra.mxu0 0.0
    %1598 = vmatprep.subr.mxu0 0.0
    %1599 = vmatpush1.msra.mxu0 0.0
    %1600 = vmatprep.subr.mxu0 0.0
    %1601 = vmatpush1.msra.mxu0 0.0
    %1602 = vmatprep.subr.mxu0 0.0
    %1603 = vmatpush1.msra.mxu0 0.0
    %1604 = vmatprep.subr.mxu0 0.0
    %1605 = vmatpush1.msra.mxu0 0.0
    %1606 = vmatprep.subr.mxu0 0.0
    %1607 = vmatpush1.msra.mxu0 0.0
    %1608 = vmatprep.subr.mxu0 0.0
    %1609 = vmatpush1.msra.mxu0 0.0
    %1610 = vmatprep.subr.mxu0 0.0
    %1611 = vmatpush1.msra.mxu0 0.0
    %1612 = vmatprep.subr.mxu0 0.0
    %1613 = vmatpush1.msra.mxu0 0.0
    %1614 = vmatprep.subr.mxu0 0.0
    %1615 = vmatpush1.msra.mxu0 0.0
    %1616 = vmatprep.subr.mxu0 0.0
    %1617 = vmatpush1.msra.mxu0 0.0
    %1618 = vmatprep.subr.mxu0 0.0
    %1619 = vmatpush1.msra.mxu0 0.0
    %1620 = vmatprep.subr.mxu0 0.0
    %1621 = vmatpush1.msra.mxu0 0.0
    %1622 = vmatprep.subr.mxu0 0.0
    %1623 = vmatpush1.msra.mxu0 0.0
    %1624 = vmatprep.subr.mxu0 0.0
    %1625 = vmatpush1.msra.mxu0 0.0
    %1626 = vmatprep.subr.mxu0 0.0
    %1627 = vmatpush1.msra.mxu0 0.0
    %1628 = vmatprep.subr.mxu0 0.0
    %1629 = vmatpush1.msra.mxu0 0.0
    %1630 = vmatprep.subr.mxu0 0.0
    %1631 = vmatpush1.msra.mxu0 0.0
    %1632 = vmatprep.subr.mxu0 0.0
    %1633 = vmatpush1.msra.mxu0 0.0
    %1634 = vmatprep.subr.mxu0 0.0
    %1635 = vmatpush1.msra.mxu0 0.0
    %1636 = vmatprep.subr.mxu0 0.0
    %1637 = vmatpush1.msra.mxu0 0.0
    %1638 = vmatprep.subr.mxu0 0.0
    %1639 = vmatpush1.msra.mxu0 0.0
    %1640 = vmatprep.subr.mxu0 0.0
    %1641 = vmatpush1.msra.mxu0 0.0
    %1642 = vmatprep.subr.mxu0 0.0
    %1643 = vmatpush1.msra.mxu0 0.0
    %1644 = vmatprep.subr.mxu0 0.0
    %1645 = vmatpush1.msra.mxu0 0.0
    %1646 = vmatprep.subr.mxu0 0.0
    %1647 = vmatpush1.msra.mxu0 0.0
    %1648 = vmatprep.mubr.f32.mxu0 0.0
    %1649 = vmatmul.mubr.f32.gmra.mrb[0].mxu0 %v1582
    %v1650 = vpop.f32.mrb[0].mxu0
    %v1651 = vadd.f32 0.0, %v1650
    %v1652 = vpop.f32.mrb[0].mxu0
    %1653 = vdwg.mxu0
    %v1654 = vadd.f32 %v293, %v1651
    %v1655 = vmul.f32 %v1654, 0.5
    %v1656 = vtanh.pop %v1655
    %v1657 = vadd.f32 %v1656, 1.0
    %v1658 = vmul.f32 %v1657, 0.5
    %v1659 = vtanh.pop %v1654
    %v1660 = vmul.f32 %v1658, %v1572
    %1662 = vrot.lane.b32.xlu0 %v1659, 64
    %v1663 = vpop.permute.xlu0 %1662
    %v1665 = vmul.f32 %v1658, %v1663
    %1667 = vrot.lane.b32.xlu0 %v1665, 32
    %v1668 = vpop.permute.xlu0 %1667
    %v1670 = vadd.f32 %v1660, %v1668
    %v1671 = vtanh.pop %v1670
    %1673 = vrot.lane.b32.xlu0 %v1671, 64
    %v1674 = vpop.permute.xlu0 %1673
    %v1676 = vmul.f32 %v1658, %v1674
    %1678 = vrot.lane.b32.xlu0 %v1676, 32
    %v1679 = vpop.permute.xlu0 %1678
    %v1680 = vsel %vm306, %v1679, 0
    %1682 = vmatprep.subr.mxu0 0.0
    %1683 = vmatpush1.msra.mxu0 %v134
    %1684 = vmatprep.subr.mxu0 0.0
    %1685 = vmatpush1.msra.mxu0 %v135
    %1686 = vmatprep.subr.mxu0 0.0
    %1687 = vmatpush1.msra.mxu0 %v136
    %1688 = vmatprep.subr.mxu0 0.0
    %1689 = vmatpush1.msra.mxu0 %v137
    %1690 = vmatprep.subr.mxu0 0.0
    %1691 = vmatpush1.msra.mxu0 0.0
    %1692 = vmatprep.subr.mxu0 0.0
    %1693 = vmatpush1.msra.mxu0 0.0
    %1694 = vmatprep.subr.mxu0 0.0
    %1695 = vmatpush1.msra.mxu0 0.0
    %1696 = vmatprep.subr.mxu0 0.0
    %1697 = vmatpush1.msra.mxu0 0.0
    %1698 = vmatprep.subr.mxu0 0.0
    %1699 = vmatpush1.msra.mxu0 0.0
    %1700 = vmatprep.subr.mxu0 0.0
    %1701 = vmatpush1.msra.mxu0 0.0
    %1702 = vmatprep.subr.mxu0 0.0
    %1703 = vmatpush1.msra.mxu0 0.0
    %1704 = vmatprep.subr.mxu0 0.0
    %1705 = vmatpush1.msra.mxu0 0.0
    %1706 = vmatprep.subr.mxu0 0.0
    %1707 = vmatpush1.msra.mxu0 0.0
    %1708 = vmatprep.subr.mxu0 0.0
    %1709 = vmatpush1.msra.mxu0 0.0
    %1710 = vmatprep.subr.mxu0 0.0
    %1711 = vmatpush1.msra.mxu0 0.0
    %1712 = vmatprep.subr.mxu0 0.0
    %1713 = vmatpush1.msra.mxu0 0.0
    %1714 = vmatprep.subr.mxu0 0.0
    %1715 = vmatpush1.msra.mxu0 0.0
    %1716 = vmatprep.subr.mxu0 0.0
    %1717 = vmatpush1.msra.mxu0 0.0
    %1718 = vmatprep.subr.mxu0 0.0
    %1719 = vmatpush1.msra.mxu0 0.0
    %1720 = vmatprep.subr.mxu0 0.0
    %1721 = vmatpush1.msra.mxu0 0.0
    %1722 = vmatprep.subr.mxu0 0.0
    %1723 = vmatpush1.msra.mxu0 0.0
    %1724 = vmatprep.subr.mxu0 0.0
    %1725 = vmatpush1.msra.mxu0 0.0
    %1726 = vmatprep.subr.mxu0 0.0
    %1727 = vmatpush1.msra.mxu0 0.0
    %1728 = vmatprep.subr.mxu0 0.0
    %1729 = vmatpush1.msra.mxu0 0.0
    %1730 = vmatprep.subr.mxu0 0.0
    %1731 = vmatpush1.msra.mxu0 0.0
    %1732 = vmatprep.subr.mxu0 0.0
    %1733 = vmatpush1.msra.mxu0 0.0
    %1734 = vmatprep.subr.mxu0 0.0
    %1735 = vmatpush1.msra.mxu0 0.0
    %1736 = vmatprep.subr.mxu0 0.0
    %1737 = vmatpush1.msra.mxu0 0.0
    %1738 = vmatprep.subr.mxu0 0.0
    %1739 = vmatpush1.msra.mxu0 0.0
    %1740 = vmatprep.subr.mxu0 0.0
    %1741 = vmatpush1.msra.mxu0 0.0
    %1742 = vmatprep.subr.mxu0 0.0
    %1743 = vmatpush1.msra.mxu0 0.0
    %1744 = vmatprep.subr.mxu0 0.0
    %1745 = vmatpush1.msra.mxu0 0.0
    %1746 = vmatprep.mubr.f32.mxu0 0.0
    %1747 = vmatmul.mubr.f32.gmra.mrb[0].mxu0 %v1680
    %v1748 = vpop.f32.mrb[0].mxu0
    %v1749 = vadd.f32 0.0, %v1748
    %v1750 = vpop.f32.mrb[0].mxu0
    %1751 = vdwg.mxu0
    %v1752 = vadd.f32 %v298, %v1749
    %v1753 = vmul.f32 %v1752, 0.5
    %v1754 = vtanh.pop %v1753
    %v1755 = vadd.f32 %v1754, 1.0
    %v1756 = vmul.f32 %v1755, 0.5
    %v1757 = vtanh.pop %v1752
    %v1758 = vmul.f32 %v1756, %v1670
    %1760 = vrot.lane.b32.xlu0 %v1757, 64
    %v1761 = vpop.permute.xlu0 %1760
    %v1763 = vmul.f32 %v1756, %v1761
    %1765 = vrot.lane.b32.xlu0 %v1763, 32
    %v1766 = vpop.permute.xlu0 %1765
    %v1768 = vadd.f32 %v1758, %v1766
    %v1769 = vtanh.pop %v1768
    %1771 = vrot.lane.b32.xlu0 %v1769, 64
    %v1772 = vpop.permute.xlu0 %1771
    %v1774 = vmul.f32 %v1756, %v1772
    %1776 = vrot.lane.b32.xlu0 %v1774, 32
    %v1777 = vpop.permute.xlu0 %1776
    %v1778 = vsel %vm306, %v1777, 0
    %1780 = vmatprep.subr.mxu0 0.0
    %1781 = vmatpush1.msra.mxu0 %v134
    %1782 = vmatprep.subr.mxu0 0.0
    %1783 = vmatpush1.msra.mxu0 %v135
    %1784 = vmatprep.subr.mxu0 0.0
    %1785 = vmatpush1.msra.mxu0 %v136
    %1786 = vmatprep.subr.mxu0 0.0
    %1787 = vmatpush1.msra.mxu0 %v137
    %1788 = vmatprep.subr.mxu0 0.0
    %1789 = vmatpush1.msra.mxu0 0.0
    %1790 = vmatprep.subr.mxu0 0.0
    %1791 = vmatpush1.msra.mxu0 0.0
    %1792 = vmatprep.subr.mxu0 0.0
    %1793 = vmatpush1.msra.mxu0 0.0
    %1794 = vmatprep.subr.mxu0 0.0
    %1795 = vmatpush1.msra.mxu0 0.0
    %1796 = vmatprep.subr.mxu0 0.0
    %1797 = vmatpush1.msra.mxu0 0.0
    %1798 = vmatprep.subr.mxu0 0.0
    %1799 = vmatpush1.msra.mxu0 0.0
    %1800 = vmatprep.subr.mxu0 0.0
    %1801 = vmatpush1.msra.mxu0 0.0
    %1802 = vmatprep.subr.mxu0 0.0
    %1803 = vmatpush1.msra.mxu0 0.0
    %1804 = vmatprep.subr.mxu0 0.0
    %1805 = vmatpush1.msra.mxu0 0.0
    %1806 = vmatprep.subr.mxu0 0.0
    %1807 = vmatpush1.msra.mxu0 0.0
    %1808 = vmatprep.subr.mxu0 0.0
    %1809 = vmatpush1.msra.mxu0 0.0
    %1810 = vmatprep.subr.mxu0 0.0
    %1811 = vmatpush1.msra.mxu0 0.0
    %1812 = vmatprep.subr.mxu0 0.0
    %1813 = vmatpush1.msra.mxu0 0.0
    %1814 = vmatprep.subr.mxu0 0.0
    %1815 = vmatpush1.msra.mxu0 0.0
    %1816 = vmatprep.subr.mxu0 0.0
    %1817 = vmatpush1.msra.mxu0 0.0
    %1818 = vmatprep.subr.mxu0 0.0
    %1819 = vmatpush1.msra.mxu0 0.0
    %1820 = vmatprep.subr.mxu0 0.0
    %1821 = vmatpush1.msra.mxu0 0.0
    %1822 = vmatprep.subr.mxu0 0.0
    %1823 = vmatpush1.msra.mxu0 0.0
    %1824 = vmatprep.subr.mxu0 0.0
    %1825 = vmatpush1.msra.mxu0 0.0
    %1826 = vmatprep.subr.mxu0 0.0
    %1827 = vmatpush1.msra.mxu0 0.0
    %1828 = vmatprep.subr.mxu0 0.0
    %1829 = vmatpush1.msra.mxu0 0.0
    %1830 = vmatprep.subr.mxu0 0.0
    %1831 = vmatpush1.msra.mxu0 0.0
    %1832 = vmatprep.subr.mxu0 0.0
    %1833 = vmatpush1.msra.mxu0 0.0
    %1834 = vmatprep.subr.mxu0 0.0
    %1835 = vmatpush1.msra.mxu0 0.0
    %1836 = vmatprep.subr.mxu0 0.0
    %1837 = vmatpush1.msra.mxu0 0.0
    %1838 = vmatprep.subr.mxu0 0.0
    %1839 = vmatpush1.msra.mxu0 0.0
    %1840 = vmatprep.subr.mxu0 0.0
    %1841 = vmatpush1.msra.mxu0 0.0
    %1842 = vmatprep.subr.mxu0 0.0
    %1843 = vmatpush1.msra.mxu0 0.0
    %1844 = vmatprep.mubr.f32.mxu0 0.0
    %1845 = vmatmul.mubr.f32.gmra.mrb[0].mxu0 %v1778
    %v1846 = vpop.f32.mrb[0].mxu0
    %v1847 = vadd.f32 0.0, %v1846
    %v1848 = vpop.f32.mrb[0].mxu0
    %1849 = vdwg.mxu0
    %v1850 = vadd.f32 %v303, %v1847
    %v1851 = vmul.f32 %v1850, 0.5
    %v1852 = vtanh.pop %v1851
    %v1853 = vadd.f32 %v1852, 1.0
    %v1854 = vmul.f32 %v1853, 0.5
    %v1855 = vtanh.pop %v1850
    %v1856 = vmul.f32 %v1854, %v1768
    %1858 = vrot.lane.b32.xlu0 %v1855, 64
    %v1859 = vpop.permute.xlu0 %1858
    %v1861 = vmul.f32 %v1854, %v1859
    %1863 = vrot.lane.b32.xlu0 %v1861, 32
    %v1864 = vpop.permute.xlu0 %1863
    %v1866 = vadd.f32 %v1856, %v1864
    %v1867 = vtanh.pop %v1866
    %1869 = vrot.lane.b32.xlu0 %v1867, 64
    %v1870 = vpop.permute.xlu0 %1869
    %v1872 = vmul.f32 %v1854, %v1870
    %v1873 = vld [vmem:[%s6] sm:$0xff]
    %v1874 = vld [vmem:[%s6 + $0x8] sm:$0xff]
    %v1875 = vld [vmem:[%s6 + $0x10] sm:$0xff]
    %v1876 = vld [vmem:[%s6 + $0x18] sm:$0xff]
    %v1877 = vld [vmem:[%s5] sm:$0xff]
    %v1878 = vld [vmem:[%s5 + $0x8] sm:$0xff]
    %v1879 = vld [vmem:[%s5 + $0x10] sm:$0xff]
    %v1880 = vld [vmem:[%s5 + $0x18] sm:$0xff]
    %v1881 = vld [vmem:[#allocation2] sm:$0x1]
    %v1883 = vlaneseq
    %v1884 = vshrl.u32 %v1883, 7
    %v1885 = vsub.s32 0, %v1884
    %v1886 = vrot.slane %v1881, %v1885
    %1889 = vrot.lane.b32.xlu0 %v1872, 32
    %v1890 = vpop.permute.xlu0 %1889
    %v1891 = vsel %vm306, %v1890, 0
    %1893 = vmatprep.subr.mxu0 0.0
    %1894 = vmatpush1.msra.mxu0 %v1877
    %1895 = vmatprep.subr.mxu0 0.0
    %1896 = vmatpush1.msra.mxu0 %v1878
    %1897 = vmatprep.subr.mxu0 0.0
    %1898 = vmatpush1.msra.mxu0 %v1879
    %1899 = vmatprep.subr.mxu0 0.0
    %1900 = vmatpush1.msra.mxu0 %v1880
    %1901 = vmatprep.subr.mxu0 0.0
    %1902 = vmatpush1.msra.mxu0 0.0
    %1903 = vmatprep.subr.mxu0 0.0
    %1904 = vmatpush1.msra.mxu0 0.0
    %1905 = vmatprep.subr.mxu0 0.0
    %1906 = vmatpush1.msra.mxu0 0.0
    %1907 = vmatprep.subr.mxu0 0.0
    %1908 = vmatpush1.msra.mxu0 0.0
    %1909 = vmatprep.subr.mxu0 0.0
    %1910 = vmatpush1.msra.mxu0 0.0
    %1911 = vmatprep.subr.mxu0 0.0
    %1912 = vmatpush1.msra.mxu0 0.0
    %1913 = vmatprep.subr.mxu0 0.0
    %1914 = vmatpush1.msra.mxu0 0.0
    %1915 = vmatprep.subr.mxu0 0.0
    %1916 = vmatpush1.msra.mxu0 0.0
    %1917 = vmatprep.subr.mxu0 0.0
    %1918 = vmatpush1.msra.mxu0 0.0
    %1919 = vmatprep.subr.mxu0 0.0
    %1920 = vmatpush1.msra.mxu0 0.0
    %1921 = vmatprep.subr.mxu0 0.0
    %1922 = vmatpush1.msra.mxu0 0.0
    %1923 = vmatprep.subr.mxu0 0.0
    %1924 = vmatpush1.msra.mxu0 0.0
    %1925 = vmatprep.subr.mxu0 0.0
    %1926 = vmatpush1.msra.mxu0 0.0
    %1927 = vmatprep.subr.mxu0 0.0
    %1928 = vmatpush1.msra.mxu0 0.0
    %1929 = vmatprep.subr.mxu0 0.0
    %1930 = vmatpush1.msra.mxu0 0.0
    %1931 = vmatprep.subr.mxu0 0.0
    %1932 = vmatpush1.msra.mxu0 0.0
    %1933 = vmatprep.subr.mxu0 0.0
    %1934 = vmatpush1.msra.mxu0 0.0
    %1935 = vmatprep.subr.mxu0 0.0
    %1936 = vmatpush1.msra.mxu0 0.0
    %1937 = vmatprep.subr.mxu0 0.0
    %1938 = vmatpush1.msra.mxu0 0.0
    %1939 = vmatprep.subr.mxu0 0.0
    %1940 = vmatpush1.msra.mxu0 0.0
    %1941 = vmatprep.subr.mxu0 0.0
    %1942 = vmatpush1.msra.mxu0 0.0
    %1943 = vmatprep.subr.mxu0 0.0
    %1944 = vmatpush1.msra.mxu0 0.0
    %1945 = vmatprep.subr.mxu0 0.0
    %1946 = vmatpush1.msra.mxu0 0.0
    %1947 = vmatprep.subr.mxu0 0.0
    %1948 = vmatpush1.msra.mxu0 0.0
    %1949 = vmatprep.subr.mxu0 0.0
    %1950 = vmatpush1.msra.mxu0 0.0
    %1951 = vmatprep.subr.mxu0 0.0
    %1952 = vmatpush1.msra.mxu0 0.0
    %1953 = vmatprep.subr.mxu0 0.0
    %1954 = vmatpush1.msra.mxu0 0.0
    %1955 = vmatprep.subr.mxu0 0.0
    %1956 = vmatpush1.msra.mxu0 0.0
    %1957 = vmatprep.mubr.f32.mxu0 0.0
    %1958 = vmatmul.mubr.f32.gmra.mrb[0].mxu0 %v406
    %v1959 = vpop.f32.mrb[0].mxu0
    %v1960 = vadd.f32 %v1886, %v1959
    %v1961 = vpop.f32.mrb[0].mxu0
    %1962 = vmatprep.mubr.f32.mxu0 0.0
    %1963 = vmatmul.mubr.f32.gmra.mrb[0].mxu0 %v504
    %v1964 = vpop.f32.mrb[0].mxu0
    %v1965 = vadd.f32 %v1886, %v1964
    %v1966 = vpop.f32.mrb[0].mxu0
    %1967 = vmatprep.mubr.f32.mxu0 0.0
    %1968 = vmatmul.mubr.f32.gmra.mrb[0].mxu0 %v602
    %v1969 = vpop.f32.mrb[0].mxu0
    %v1970 = vadd.f32 %v1886, %v1969
    %v1971 = vpop.f32.mrb[0].mxu0
    %1972 = vmatprep.mubr.f32.mxu0 0.0
    %1973 = vmatmul.mubr.f32.gmra.mrb[0].mxu0 %v700
    %v1974 = vpop.f32.mrb[0].mxu0
    %v1975 = vadd.f32 %v1886, %v1974
    %v1976 = vpop.f32.mrb[0].mxu0
    %1977 = vmatprep.mubr.f32.mxu0 0.0
    %1978 = vmatmul.mubr.f32.gmra.mrb[0].mxu0 %v798
    %v1979 = vpop.f32.mrb[0].mxu0
    %v1980 = vadd.f32 %v1886, %v1979
    %v1981 = vpop.f32.mrb[0].mxu0
    %1982 = vmatprep.mubr.f32.mxu0 0.0
    %1983 = vmatmul.mubr.f32.gmra.mrb[0].mxu0 %v896
    %v1984 = vpop.f32.mrb[0].mxu0
    %v1985 = vadd.f32 %v1886, %v1984
    %v1986 = vpop.f32.mrb[0].mxu0
    %1987 = vmatprep.mubr.f32.mxu0 0.0
    %1988 = vmatmul.mubr.f32.gmra.mrb[0].mxu0 %v994
    %v1989 = vpop.f32.mrb[0].mxu0
    %v1990 = vadd.f32 %v1886, %v1989
    %v1991 = vpop.f32.mrb[0].mxu0
    %1992 = vmatprep.mubr.f32.mxu0 0.0
    %1993 = vmatmul.mubr.f32.gmra.mrb[0].mxu0 %v1092
    %v1994 = vpop.f32.mrb[0].mxu0
    %v1995 = vadd.f32 %v1886, %v1994
    %v1996 = vpop.f32.mrb[0].mxu0
    %1997 = vmatprep.mubr.f32.mxu0 0.0
    %1998 = vmatmul.mubr.f32.gmra.mrb[0].mxu0 %v1190
    %v1999 = vpop.f32.mrb[0].mxu0
    %v2000 = vadd.f32 %v1886, %v1999
    %v2001 = vpop.f32.mrb[0].mxu0
    %2002 = vmatprep.mubr.f32.mxu0 0.0
    %2003 = vmatmul.mubr.f32.gmra.mrb[0].mxu0 %v1288
    %v2004 = vpop.f32.mrb[0].mxu0
    %v2005 = vadd.f32 %v1886, %v2004
    %v2006 = vpop.f32.mrb[0].mxu0
    %2007 = vmatprep.mubr.f32.mxu0 0.0
    %2008 = vmatmul.mubr.f32.gmra.mrb[0].mxu0 %v1386
    %v2009 = vpop.f32.mrb[0].mxu0
    %v2010 = vadd.f32 %v1886, %v2009
    %v2011 = vpop.f32.mrb[0].mxu0
    %2012 = vmatprep.mubr.f32.mxu0 0.0
    %2013 = vmatmul.mubr.f32.gmra.mrb[0].mxu0 %v1484
    %v2014 = vpop.f32.mrb[0].mxu0
    %v2015 = vadd.f32 %v1886, %v2014
    %v2016 = vpop.f32.mrb[0].mxu0
    %2017 = vmatprep.mubr.f32.mxu0 0.0
    %2018 = vmatmul.mubr.f32.gmra.mrb[0].mxu0 %v1582
    %v2019 = vpop.f32.mrb[0].mxu0
    %v2020 = vadd.f32 %v1886, %v2019
    %v2021 = vpop.f32.mrb[0].mxu0
    %2022 = vmatprep.mubr.f32.mxu0 0.0
    %2023 = vmatmul.mubr.f32.gmra.mrb[0].mxu0 %v1680
    %v2024 = vpop.f32.mrb[0].mxu0
    %v2025 = vadd.f32 %v1886, %v2024
    %v2026 = vpop.f32.mrb[0].mxu0
    %2027 = vmatprep.mubr.f32.mxu0 0.0
    %2028 = vmatmul.mubr.f32.gmra.mrb[0].mxu0 %v1778
    %v2029 = vpop.f32.mrb[0].mxu0
    %v2030 = vadd.f32 %v1886, %v2029
    %v2031 = vpop.f32.mrb[0].mxu0
    %2032 = vmatprep.mubr.f32.mxu0 0.0
    %2033 = vmatmul.mubr.f32.gmra.mrb[0].mxu0 %v1891
    %v2034 = vpop.f32.mrb[0].mxu0
    %v2035 = vadd.f32 %v1886, %v2034
    %v2036 = vpop.f32.mrb[0].mxu0
    %2037 = vdwg.mxu0
    %2038 = vmatprep.subr.mxu0 0.0
    %2039 = vmatpush1.msra.mxu0 %v1873
    %2040 = vmatprep.subr.mxu0 0.0
    %2041 = vmatpush1.msra.mxu0 %v1874
    %2042 = vmatprep.subr.mxu0 0.0
    %2043 = vmatpush1.msra.mxu0 %v1875
    %2044 = vmatprep.subr.mxu0 0.0
    %2045 = vmatpush1.msra.mxu0 %v1876
    %2046 = vmatprep.subr.mxu0 0.0
    %2047 = vmatpush1.msra.mxu0 0.0
    %2048 = vmatprep.subr.mxu0 0.0
    %2049 = vmatpush1.msra.mxu0 0.0
    %2050 = vmatprep.subr.mxu0 0.0
    %2051 = vmatpush1.msra.mxu0 0.0
    %2052 = vmatprep.subr.mxu0 0.0
    %2053 = vmatpush1.msra.mxu0 0.0
    %2054 = vmatprep.subr.mxu0 0.0
    %2055 = vmatpush1.msra.mxu0 0.0
    %2056 = vmatprep.subr.mxu0 0.0
    %2057 = vmatpush1.msra.mxu0 0.0
    %2058 = vmatprep.subr.mxu0 0.0
    %2059 = vmatpush1.msra.mxu0 0.0
    %2060 = vmatprep.subr.mxu0 0.0
    %2061 = vmatpush1.msra.mxu0 0.0
    %2062 = vmatprep.subr.mxu0 0.0
    %2063 = vmatpush1.msra.mxu0 0.0
    %2064 = vmatprep.subr.mxu0 0.0
    %2065 = vmatpush1.msra.mxu0 0.0
    %2066 = vmatprep.subr.mxu0 0.0
    %2067 = vmatpush1.msra.mxu0 0.0
    %2068 = vmatprep.subr.mxu0 0.0
    %2069 = vmatpush1.msra.mxu0 0.0
    %2070 = vmatprep.subr.mxu0 0.0
    %2071 = vmatpush1.msra.mxu0 0.0
    %2072 = vmatprep.subr.mxu0 0.0
    %2073 = vmatpush1.msra.mxu0 0.0
    %2074 = vmatprep.subr.mxu0 0.0
    %2075 = vmatpush1.msra.mxu0 0.0
    %2076 = vmatprep.subr.mxu0 0.0
    %2077 = vmatpush1.msra.mxu0 0.0
    %2078 = vmatprep.subr.mxu0 0.0
    %2079 = vmatpush1.msra.mxu0 0.0
    %2080 = vmatprep.subr.mxu0 0.0
    %2081 = vmatpush1.msra.mxu0 0.0
    %2082 = vmatprep.subr.mxu0 0.0
    %2083 = vmatpush1.msra.mxu0 0.0
    %2084 = vmatprep.subr.mxu0 0.0
    %2085 = vmatpush1.msra.mxu0 0.0
    %2086 = vmatprep.subr.mxu0 0.0
    %2087 = vmatpush1.msra.mxu0 0.0
    %2088 = vmatprep.subr.mxu0 0.0
    %2089 = vmatpush1.msra.mxu0 0.0
    %2090 = vmatprep.subr.mxu0 0.0
    %2091 = vmatpush1.msra.mxu0 0.0
    %2092 = vmatprep.subr.mxu0 0.0
    %2093 = vmatpush1.msra.mxu0 0.0
    %2094 = vmatprep.subr.mxu0 0.0
    %2095 = vmatpush1.msra.mxu0 0.0
    %2096 = vmatprep.subr.mxu0 0.0
    %2097 = vmatpush1.msra.mxu0 0.0
    %2098 = vmatprep.subr.mxu0 0.0
    %2099 = vmatpush1.msra.mxu0 0.0
    %2100 = vmatprep.subr.mxu0 0.0
    %2101 = vmatpush1.msra.mxu0 0.0
    %2102 = vmatprep.mubr.f32.mxu0 0.0
    %2103 = vmatmul.mubr.f32.gmra.mrb[0].mxu0 %v308
    %v2104 = vpop.f32.mrb[0].mxu0
    %v2105 = vadd.f32 0.0, %v2104
    %v2106 = vpop.f32.mrb[0].mxu0
    %2107 = vdwg.mxu0
    %v2108 = vadd.f32 %v1960, %v2105
    %v2109 = vmul.f32 %v2108, 0.5
    %v2110 = vtanh.pop %v2109
    %v2111 = vadd.f32 %v2110, 1.0
    %v2112 = vmul.f32 %v2111, 0.5
    %v2113 = vtanh.pop %v2108
    %v2114 = vmul.f32 %v2112, 0.0
    %2116 = vrot.lane.b32.xlu0 %v2113, 64
    %v2117 = vpop.permute.xlu0 %2116
    %v2119 = vmul.f32 %v2112, %v2117
    %2121 = vrot.lane.b32.xlu0 %v2119, 32
    %v2122 = vpop.permute.xlu0 %2121
    %v2124 = vadd.f32 %v2114, %v2122
    %v2125 = vtanh.pop %v2124
    %2127 = vrot.lane.b32.xlu0 %v2125, 64
    %v2128 = vpop.permute.xlu0 %2127
    %v2130 = vmul.f32 %v2112, %v2128
    %2132 = vrot.lane.b32.xlu0 %v2130, 32
    %v2133 = vpop.permute.xlu0 %2132
    %v2134 = vsel %vm306, %v2133, 0
    %2136 = vmatprep.subr.mxu0 0.0
    %2137 = vmatpush1.msra.mxu0 %v1873
    %2138 = vmatprep.subr.mxu0 0.0
    %2139 = vmatpush1.msra.mxu0 %v1874
    %2140 = vmatprep.subr.mxu0 0.0
    %2141 = vmatpush1.msra.mxu0 %v1875
    %2142 = vmatprep.subr.mxu0 0.0
    %2143 = vmatpush1.msra.mxu0 %v1876
    %2144 = vmatprep.subr.mxu0 0.0
    %2145 = vmatpush1.msra.mxu0 0.0
    %2146 = vmatprep.subr.mxu0 0.0
    %2147 = vmatpush1.msra.mxu0 0.0
    %2148 = vmatprep.subr.mxu0 0.0
    %2149 = vmatpush1.msra.mxu0 0.0
    %2150 = vmatprep.subr.mxu0 0.0
    %2151 = vmatpush1.msra.mxu0 0.0
    %2152 = vmatprep.subr.mxu0 0.0
    %2153 = vmatpush1.msra.mxu0 0.0
    %2154 = vmatprep.subr.mxu0 0.0
    %2155 = vmatpush1.msra.mxu0 0.0
    %2156 = vmatprep.subr.mxu0 0.0
    %2157 = vmatpush1.msra.mxu0 0.0
    %2158 = vmatprep.subr.mxu0 0.0
    %2159 = vmatpush1.msra.mxu0 0.0
    %2160 = vmatprep.subr.mxu0 0.0
    %2161 = vmatpush1.msra.mxu0 0.0
    %2162 = vmatprep.subr.mxu0 0.0
    %2163 = vmatpush1.msra.mxu0 0.0
    %2164 = vmatprep.subr.mxu0 0.0
    %2165 = vmatpush1.msra.mxu0 0.0
    %2166 = vmatprep.subr.mxu0 0.0
    %2167 = vmatpush1.msra.mxu0 0.0
    %2168 = vmatprep.subr.mxu0 0.0
    %2169 = vmatpush1.msra.mxu0 0.0
    %2170 = vmatprep.subr.mxu0 0.0
    %2171 = vmatpush1.msra.mxu0 0.0
    %2172 = vmatprep.subr.mxu0 0.0
    %2173 = vmatpush1.msra.mxu0 0.0
    %2174 = vmatprep.subr.mxu0 0.0
    %2175 = vmatpush1.msra.mxu0 0.0
    %2176 = vmatprep.subr.mxu0 0.0
    %2177 = vmatpush1.msra.mxu0 0.0
    %2178 = vmatprep.subr.mxu0 0.0
    %2179 = vmatpush1.msra.mxu0 0.0
    %2180 = vmatprep.subr.mxu0 0.0
    %2181 = vmatpush1.msra.mxu0 0.0
    %2182 = vmatprep.subr.mxu0 0.0
    %2183 = vmatpush1.msra.mxu0 0.0
    %2184 = vmatprep.subr.mxu0 0.0
    %2185 = vmatpush1.msra.mxu0 0.0
    %2186 = vmatprep.subr.mxu0 0.0
    %2187 = vmatpush1.msra.mxu0 0.0
    %2188 = vmatprep.subr.mxu0 0.0
    %2189 = vmatpush1.msra.mxu0 0.0
    %2190 = vmatprep.subr.mxu0 0.0
    %2191 = vmatpush1.msra.mxu0 0.0
    %2192 = vmatprep.subr.mxu0 0.0
    %2193 = vmatpush1.msra.mxu0 0.0
    %2194 = vmatprep.subr.mxu0 0.0
    %2195 = vmatpush1.msra.mxu0 0.0
    %2196 = vmatprep.subr.mxu0 0.0
    %2197 = vmatpush1.msra.mxu0 0.0
    %2198 = vmatprep.subr.mxu0 0.0
    %2199 = vmatpush1.msra.mxu0 0.0
    %2200 = vmatprep.mubr.f32.mxu0 0.0
    %2201 = vmatmul.mubr.f32.gmra.mrb[0].mxu0 %v2134
    %v2202 = vpop.f32.mrb[0].mxu0
    %v2203 = vadd.f32 0.0, %v2202
    %v2204 = vpop.f32.mrb[0].mxu0
    %2205 = vdwg.mxu0
    %v2206 = vadd.f32 %v1965, %v2203
    %v2207 = vmul.f32 %v2206, 0.5
    %v2208 = vtanh.pop %v2207
    %v2209 = vadd.f32 %v2208, 1.0
    %v2210 = vmul.f32 %v2209, 0.5
    %v2211 = vtanh.pop %v2206
    %v2212 = vmul.f32 %v2210, %v2124
    %2214 = vrot.lane.b32.xlu0 %v2211, 64
    %v2215 = vpop.permute.xlu0 %2214
    %v2217 = vmul.f32 %v2210, %v2215
    %2219 = vrot.lane.b32.xlu0 %v2217, 32
    %v2220 = vpop.permute.xlu0 %2219
    %v2222 = vadd.f32 %v2212, %v2220
    %v2223 = vtanh.pop %v2222
    %2225 = vrot.lane.b32.xlu0 %v2223, 64
    %v2226 = vpop.permute.xlu0 %2225
    %v2228 = vmul.f32 %v2210, %v2226
    %2230 = vrot.lane.b32.xlu0 %v2228, 32
    %v2231 = vpop.permute.xlu0 %2230
    %v2232 = vsel %vm306, %v2231, 0
    %2234 = vmatprep.subr.mxu0 0.0
    %2235 = vmatpush1.msra.mxu0 %v1873
    %2236 = vmatprep.subr.mxu0 0.0
    %2237 = vmatpush1.msra.mxu0 %v1874
    %2238 = vmatprep.subr.mxu0 0.0
    %2239 = vmatpush1.msra.mxu0 %v1875
    %2240 = vmatprep.subr.mxu0 0.0
    %2241 = vmatpush1.msra.mxu0 %v1876
    %2242 = vmatprep.subr.mxu0 0.0
    %2243 = vmatpush1.msra.mxu0 0.0
    %2244 = vmatprep.subr.mxu0 0.0
    %2245 = vmatpush1.msra.mxu0 0.0
    %2246 = vmatprep.subr.mxu0 0.0
    %2247 = vmatpush1.msra.mxu0 0.0
    %2248 = vmatprep.subr.mxu0 0.0
    %2249 = vmatpush1.msra.mxu0 0.0
    %2250 = vmatprep.subr.mxu0 0.0
    %2251 = vmatpush1.msra.mxu0 0.0
    %2252 = vmatprep.subr.mxu0 0.0
    %2253 = vmatpush1.msra.mxu0 0.0
    %2254 = vmatprep.subr.mxu0 0.0
    %2255 = vmatpush1.msra.mxu0 0.0
    %2256 = vmatprep.subr.mxu0 0.0
    %2257 = vmatpush1.msra.mxu0 0.0
    %2258 = vmatprep.subr.mxu0 0.0
    %2259 = vmatpush1.msra.mxu0 0.0
    %2260 = vmatprep.subr.mxu0 0.0
    %2261 = vmatpush1.msra.mxu0 0.0
    %2262 = vmatprep.subr.mxu0 0.0
    %2263 = vmatpush1.msra.mxu0 0.0
    %2264 = vmatprep.subr.mxu0 0.0
    %2265 = vmatpush1.msra.mxu0 0.0
    %2266 = vmatprep.subr.mxu0 0.0
    %2267 = vmatpush1.msra.mxu0 0.0
    %2268 = vmatprep.subr.mxu0 0.0
    %2269 = vmatpush1.msra.mxu0 0.0
    %2270 = vmatprep.subr.mxu0 0.0
    %2271 = vmatpush1.msra.mxu0 0.0
    %2272 = vmatprep.subr.mxu0 0.0
    %2273 = vmatpush1.msra.mxu0 0.0
    %2274 = vmatprep.subr.mxu0 0.0
    %2275 = vmatpush1.msra.mxu0 0.0
    %2276 = vmatprep.subr.mxu0 0.0
    %2277 = vmatpush1.msra.mxu0 0.0
    %2278 = vmatprep.subr.mxu0 0.0
    %2279 = vmatpush1.msra.mxu0 0.0
    %2280 = vmatprep.subr.mxu0 0.0
    %2281 = vmatpush1.msra.mxu0 0.0
    %2282 = vmatprep.subr.mxu0 0.0
    %2283 = vmatpush1.msra.mxu0 0.0
    %2284 = vmatprep.subr.mxu0 0.0
    %2285 = vmatpush1.msra.mxu0 0.0
    %2286 = vmatprep.subr.mxu0 0.0
    %2287 = vmatpush1.msra.mxu0 0.0
    %2288 = vmatprep.subr.mxu0 0.0
    %2289 = vmatpush1.msra.mxu0 0.0
    %2290 = vmatprep.subr.mxu0 0.0
    %2291 = vmatpush1.msra.mxu0 0.0
    %2292 = vmatprep.subr.mxu0 0.0
    %2293 = vmatpush1.msra.mxu0 0.0
    %2294 = vmatprep.subr.mxu0 0.0
    %2295 = vmatpush1.msra.mxu0 0.0
    %2296 = vmatprep.subr.mxu0 0.0
    %2297 = vmatpush1.msra.mxu0 0.0
    %2298 = vmatprep.mubr.f32.mxu0 0.0
    %2299 = vmatmul.mubr.f32.gmra.mrb[0].mxu0 %v2232
    %v2300 = vpop.f32.mrb[0].mxu0
    %v2301 = vadd.f32 0.0, %v2300
    %v2302 = vpop.f32.mrb[0].mxu0
    %2303 = vdwg.mxu0
    %v2304 = vadd.f32 %v1970, %v2301
    %v2305 = vmul.f32 %v2304, 0.5
    %v2306 = vtanh.pop %v2305
    %v2307 = vadd.f32 %v2306, 1.0
    %v2308 = vmul.f32 %v2307, 0.5
    %v2309 = vtanh.pop %v2304
    %v2310 = vmul.f32 %v2308, %v2222
    %2312 = vrot.lane.b32.xlu0 %v2309, 64
    %v2313 = vpop.permute.xlu0 %2312
    %v2315 = vmul.f32 %v2308, %v2313
    %2317 = vrot.lane.b32.xlu0 %v2315, 32
    %v2318 = vpop.permute.xlu0 %2317
    %v2320 = vadd.f32 %v2310, %v2318
    %v2321 = vtanh.pop %v2320
    %2323 = vrot.lane.b32.xlu0 %v2321, 64
    %v2324 = vpop.permute.xlu0 %2323
    %v2326 = vmul.f32 %v2308, %v2324
    %2328 = vrot.lane.b32.xlu0 %v2326, 32
    %v2329 = vpop.permute.xlu0 %2328
    %v2330 = vsel %vm306, %v2329, 0
    %2332 = vmatprep.subr.mxu0 0.0
    %2333 = vmatpush1.msra.mxu0 %v1873
    %2334 = vmatprep.subr.mxu0 0.0
    %2335 = vmatpush1.msra.mxu0 %v1874
    %2336 = vmatprep.subr.mxu0 0.0
    %2337 = vmatpush1.msra.mxu0 %v1875
    %2338 = vmatprep.subr.mxu0 0.0
    %2339 = vmatpush1.msra.mxu0 %v1876
    %2340 = vmatprep.subr.mxu0 0.0
    %2341 = vmatpush1.msra.mxu0 0.0
    %2342 = vmatprep.subr.mxu0 0.0
    %2343 = vmatpush1.msra.mxu0 0.0
    %2344 = vmatprep.subr.mxu0 0.0
    %2345 = vmatpush1.msra.mxu0 0.0
    %2346 = vmatprep.subr.mxu0 0.0
    %2347 = vmatpush1.msra.mxu0 0.0
    %2348 = vmatprep.subr.mxu0 0.0
    %2349 = vmatpush1.msra.mxu0 0.0
    %2350 = vmatprep.subr.mxu0 0.0
    %2351 = vmatpush1.msra.mxu0 0.0
    %2352 = vmatprep.subr.mxu0 0.0
    %2353 = vmatpush1.msra.mxu0 0.0
    %2354 = vmatprep.subr.mxu0 0.0
    %2355 = vmatpush1.msra.mxu0 0.0
    %2356 = vmatprep.subr.mxu0 0.0
    %2357 = vmatpush1.msra.mxu0 0.0
    %2358 = vmatprep.subr.mxu0 0.0
    %2359 = vmatpush1.msra.mxu0 0.0
    %2360 = vmatprep.subr.mxu0 0.0
    %2361 = vmatpush1.msra.mxu0 0.0
    %2362 = vmatprep.subr.mxu0 0.0
    %2363 = vmatpush1.msra.mxu0 0.0
    %2364 = vmatprep.subr.mxu0 0.0
    %2365 = vmatpush1.msra.mxu0 0.0
    %2366 = vmatprep.subr.mxu0 0.0
    %2367 = vmatpush1.msra.mxu0 0.0
    %2368 = vmatprep.subr.mxu0 0.0
    %2369 = vmatpush1.msra.mxu0 0.0
    %2370 = vmatprep.subr.mxu0 0.0
    %2371 = vmatpush1.msra.mxu0 0.0
    %2372 = vmatprep.subr.mxu0 0.0
    %2373 = vmatpush1.msra.mxu0 0.0
    %2374 = vmatprep.subr.mxu0 0.0
    %2375 = vmatpush1.msra.mxu0 0.0
    %2376 = vmatprep.subr.mxu0 0.0
    %2377 = vmatpush1.msra.mxu0 0.0
    %2378 = vmatprep.subr.mxu0 0.0
    %2379 = vmatpush1.msra.mxu0 0.0
    %2380 = vmatprep.subr.mxu0 0.0
    %2381 = vmatpush1.msra.mxu0 0.0
    %2382 = vmatprep.subr.mxu0 0.0
    %2383 = vmatpush1.msra.mxu0 0.0
    %2384 = vmatprep.subr.mxu0 0.0
    %2385 = vmatpush1.msra.mxu0 0.0
    %2386 = vmatprep.subr.mxu0 0.0
    %2387 = vmatpush1.msra.mxu0 0.0
    %2388 = vmatprep.subr.mxu0 0.0
    %2389 = vmatpush1.msra.mxu0 0.0
    %2390 = vmatprep.subr.mxu0 0.0
    %2391 = vmatpush1.msra.mxu0 0.0
    %2392 = vmatprep.subr.mxu0 0.0
    %2393 = vmatpush1.msra.mxu0 0.0
    %2394 = vmatprep.subr.mxu0 0.0
    %2395 = vmatpush1.msra.mxu0 0.0
    %2396 = vmatprep.mubr.f32.mxu0 0.0
    %2397 = vmatmul.mubr.f32.gmra.mrb[0].mxu0 %v2330
    %v2398 = vpop.f32.mrb[0].mxu0
    %v2399 = vadd.f32 0.0, %v2398
    %v2400 = vpop.f32.mrb[0].mxu0
    %2401 = vdwg.mxu0
    %v2402 = vadd.f32 %v1975, %v2399
    %v2403 = vmul.f32 %v2402, 0.5
    %v2404 = vtanh.pop %v2403
    %v2405 = vadd.f32 %v2404, 1.0
    %v2406 = vmul.f32 %v2405, 0.5
    %v2407 = vtanh.pop %v2402
    %v2408 = vmul.f32 %v2406, %v2320
    %2410 = vrot.lane.b32.xlu0 %v2407, 64
    %v2411 = vpop.permute.xlu0 %2410
    %v2413 = vmul.f32 %v2406, %v2411
    %2415 = vrot.lane.b32.xlu0 %v2413, 32
    %v2416 = vpop.permute.xlu0 %2415
    %v2418 = vadd.f32 %v2408, %v2416
    %v2419 = vtanh.pop %v2418
    %2421 = vrot.lane.b32.xlu0 %v2419, 64
    %v2422 = vpop.permute.xlu0 %2421
    %v2424 = vmul.f32 %v2406, %v2422
    %2426 = vrot.lane.b32.xlu0 %v2424, 32
    %v2427 = vpop.permute.xlu0 %2426
    %v2428 = vsel %vm306, %v2427, 0
    %2430 = vmatprep.subr.mxu0 0.0
    %2431 = vmatpush1.msra.mxu0 %v1873
    %2432 = vmatprep.subr.mxu0 0.0
    %2433 = vmatpush1.msra.mxu0 %v1874
    %2434 = vmatprep.subr.mxu0 0.0
    %2435 = vmatpush1.msra.mxu0 %v1875
    %2436 = vmatprep.subr.mxu0 0.0
    %2437 = vmatpush1.msra.mxu0 %v1876
    %2438 = vmatprep.subr.mxu0 0.0
    %2439 = vmatpush1.msra.mxu0 0.0
    %2440 = vmatprep.subr.mxu0 0.0
    %2441 = vmatpush1.msra.mxu0 0.0
    %2442 = vmatprep.subr.mxu0 0.0
    %2443 = vmatpush1.msra.mxu0 0.0
    %2444 = vmatprep.subr.mxu0 0.0
    %2445 = vmatpush1.msra.mxu0 0.0
    %2446 = vmatprep.subr.mxu0 0.0
    %2447 = vmatpush1.msra.mxu0 0.0
    %2448 = vmatprep.subr.mxu0 0.0
    %2449 = vmatpush1.msra.mxu0 0.0
    %2450 = vmatprep.subr.mxu0 0.0
    %2451 = vmatpush1.msra.mxu0 0.0
    %2452 = vmatprep.subr.mxu0 0.0
    %2453 = vmatpush1.msra.mxu0 0.0
    %2454 = vmatprep.subr.mxu0 0.0
    %2455 = vmatpush1.msra.mxu0 0.0
    %2456 = vmatprep.subr.mxu0 0.0
    %2457 = vmatpush1.msra.mxu0 0.0
    %2458 = vmatprep.subr.mxu0 0.0
    %2459 = vmatpush1.msra.mxu0 0.0
    %2460 = vmatprep.subr.mxu0 0.0
    %2461 = vmatpush1.msra.mxu0 0.0
    %2462 = vmatprep.subr.mxu0 0.0
    %2463 = vmatpush1.msra.mxu0 0.0
    %2464 = vmatprep.subr.mxu0 0.0
    %2465 = vmatpush1.msra.mxu0 0.0
    %2466 = vmatprep.subr.mxu0 0.0
    %2467 = vmatpush1.msra.mxu0 0.0
    %2468 = vmatprep.subr.mxu0 0.0
    %2469 = vmatpush1.msra.mxu0 0.0
    %2470 = vmatprep.subr.mxu0 0.0
    %2471 = vmatpush1.msra.mxu0 0.0
    %2472 = vmatprep.subr.mxu0 0.0
    %2473 = vmatpush1.msra.mxu0 0.0
    %2474 = vmatprep.subr.mxu0 0.0
    %2475 = vmatpush1.msra.mxu0 0.0
    %2476 = vmatprep.subr.mxu0 0.0
    %2477 = vmatpush1.msra.mxu0 0.0
    %2478 = vmatprep.subr.mxu0 0.0
    %2479 = vmatpush1.msra.mxu0 0.0
    %2480 = vmatprep.subr.mxu0 0.0
    %2481 = vmatpush1.msra.mxu0 0.0
    %2482 = vmatprep.subr.mxu0 0.0
    %2483 = vmatpush1.msra.mxu0 0.0
    %2484 = vmatprep.subr.mxu0 0.0
    %2485 = vmatpush1.msra.mxu0 0.0
    %2486 = vmatprep.subr.mxu0 0.0
    %2487 = vmatpush1.msra.mxu0 0.0
    %2488 = vmatprep.subr.mxu0 0.0
    %2489 = vmatpush1.msra.mxu0 0.0
    %2490 = vmatprep.subr.mxu0 0.0
    %2491 = vmatpush1.msra.mxu0 0.0
    %2492 = vmatprep.subr.mxu0 0.0
    %2493 = vmatpush1.msra.mxu0 0.0
    %2494 = vmatprep.mubr.f32.mxu0 0.0
    %2495 = vmatmul.mubr.f32.gmra.mrb[0].mxu0 %v2428
    %v2496 = vpop.f32.mrb[0].mxu0
    %v2497 = vadd.f32 0.0, %v2496
    %v2498 = vpop.f32.mrb[0].mxu0
    %2499 = vdwg.mxu0
    %v2500 = vadd.f32 %v1980, %v2497
    %v2501 = vmul.f32 %v2500, 0.5
    %v2502 = vtanh.pop %v2501
    %v2503 = vadd.f32 %v2502, 1.0
    %v2504 = vmul.f32 %v2503, 0.5
    %v2505 = vtanh.pop %v2500
    %v2506 = vmul.f32 %v2504, %v2418
    %2508 = vrot.lane.b32.xlu0 %v2505, 64
    %v2509 = vpop.permute.xlu0 %2508
    %v2511 = vmul.f32 %v2504, %v2509
    %2513 = vrot.lane.b32.xlu0 %v2511, 32
    %v2514 = vpop.permute.xlu0 %2513
    %v2516 = vadd.f32 %v2506, %v2514
    %v2517 = vtanh.pop %v2516
    %2519 = vrot.lane.b32.xlu0 %v2517, 64
    %v2520 = vpop.permute.xlu0 %2519
    %v2522 = vmul.f32 %v2504, %v2520
    %2524 = vrot.lane.b32.xlu0 %v2522, 32
    %v2525 = vpop.permute.xlu0 %2524
    %v2526 = vsel %vm306, %v2525, 0
    %2528 = vmatprep.subr.mxu0 0.0
    %2529 = vmatpush1.msra.mxu0 %v1873
    %2530 = vmatprep.subr.mxu0 0.0
    %2531 = vmatpush1.msra.mxu0 %v1874
    %2532 = vmatprep.subr.mxu0 0.0
    %2533 = vmatpush1.msra.mxu0 %v1875
    %2534 = vmatprep.subr.mxu0 0.0
    %2535 = vmatpush1.msra.mxu0 %v1876
    %2536 = vmatprep.subr.mxu0 0.0
    %2537 = vmatpush1.msra.mxu0 0.0
    %2538 = vmatprep.subr.mxu0 0.0
    %2539 = vmatpush1.msra.mxu0 0.0
    %2540 = vmatprep.subr.mxu0 0.0
    %2541 = vmatpush1.msra.mxu0 0.0
    %2542 = vmatprep.subr.mxu0 0.0
    %2543 = vmatpush1.msra.mxu0 0.0
    %2544 = vmatprep.subr.mxu0 0.0
    %2545 = vmatpush1.msra.mxu0 0.0
    %2546 = vmatprep.subr.mxu0 0.0
    %2547 = vmatpush1.msra.mxu0 0.0
    %2548 = vmatprep.subr.mxu0 0.0
    %2549 = vmatpush1.msra.mxu0 0.0
    %2550 = vmatprep.subr.mxu0 0.0
    %2551 = vmatpush1.msra.mxu0 0.0
    %2552 = vmatprep.subr.mxu0 0.0
    %2553 = vmatpush1.msra.mxu0 0.0
    %2554 = vmatprep.subr.mxu0 0.0
    %2555 = vmatpush1.msra.mxu0 0.0
    %2556 = vmatprep.subr.mxu0 0.0
    %2557 = vmatpush1.msra.mxu0 0.0
    %2558 = vmatprep.subr.mxu0 0.0
    %2559 = vmatpush1.msra.mxu0 0.0
    %2560 = vmatprep.subr.mxu0 0.0
    %2561 = vmatpush1.msra.mxu0 0.0
    %2562 = vmatprep.subr.mxu0 0.0
    %2563 = vmatpush1.msra.mxu0 0.0
    %2564 = vmatprep.subr.mxu0 0.0
    %2565 = vmatpush1.msra.mxu0 0.0
    %2566 = vmatprep.subr.mxu0 0.0
    %2567 = vmatpush1.msra.mxu0 0.0
    %2568 = vmatprep.subr.mxu0 0.0
    %2569 = vmatpush1.msra.mxu0 0.0
    %2570 = vmatprep.subr.mxu0 0.0
    %2571 = vmatpush1.msra.mxu0 0.0
    %2572 = vmatprep.subr.mxu0 0.0
    %2573 = vmatpush1.msra.mxu0 0.0
    %2574 = vmatprep.subr.mxu0 0.0
    %2575 = vmatpush1.msra.mxu0 0.0
    %2576 = vmatprep.subr.mxu0 0.0
    %2577 = vmatpush1.msra.mxu0 0.0
    %2578 = vmatprep.subr.mxu0 0.0
    %2579 = vmatpush1.msra.mxu0 0.0
    %2580 = vmatprep.subr.mxu0 0.0
    %2581 = vmatpush1.msra.mxu0 0.0
    %2582 = vmatprep.subr.mxu0 0.0
    %2583 = vmatpush1.msra.mxu0 0.0
    %2584 = vmatprep.subr.mxu0 0.0
    %2585 = vmatpush1.msra.mxu0 0.0
    %2586 = vmatprep.subr.mxu0 0.0
    %2587 = vmatpush1.msra.mxu0 0.0
    %2588 = vmatprep.subr.mxu0 0.0
    %2589 = vmatpush1.msra.mxu0 0.0
    %2590 = vmatprep.subr.mxu0 0.0
    %2591 = vmatpush1.msra.mxu0 0.0
    %2592 = vmatprep.mubr.f32.mxu0 0.0
    %2593 = vmatmul.mubr.f32.gmra.mrb[0].mxu0 %v2526
    %v2594 = vpop.f32.mrb[0].mxu0
    %v2595 = vadd.f32 0.0, %v2594
    %v2596 = vpop.f32.mrb[0].mxu0
    %2597 = vdwg.mxu0
    %v2598 = vadd.f32 %v1985, %v2595
    %v2599 = vmul.f32 %v2598, 0.5
    %v2600 = vtanh.pop %v2599
    %v2601 = vadd.f32 %v2600, 1.0
    %v2602 = vmul.f32 %v2601, 0.5
    %v2603 = vtanh.pop %v2598
    %v2604 = vmul.f32 %v2602, %v2516
    %2606 = vrot.lane.b32.xlu0 %v2603, 64
    %v2607 = vpop.permute.xlu0 %2606
    %v2609 = vmul.f32 %v2602, %v2607
    %2611 = vrot.lane.b32.xlu0 %v2609, 32
    %v2612 = vpop.permute.xlu0 %2611
    %v2614 = vadd.f32 %v2604, %v2612
    %v2615 = vtanh.pop %v2614
    %2617 = vrot.lane.b32.xlu0 %v2615, 64
    %v2618 = vpop.permute.xlu0 %2617
    %v2620 = vmul.f32 %v2602, %v2618
    %2622 = vrot.lane.b32.xlu0 %v2620, 32
    %v2623 = vpop.permute.xlu0 %2622
    %v2624 = vsel %vm306, %v2623, 0
    %2626 = vmatprep.subr.mxu0 0.0
    %2627 = vmatpush1.msra.mxu0 %v1873
    %2628 = vmatprep.subr.mxu0 0.0
    %2629 = vmatpush1.msra.mxu0 %v1874
    %2630 = vmatprep.subr.mxu0 0.0
    %2631 = vmatpush1.msra.mxu0 %v1875
    %2632 = vmatprep.subr.mxu0 0.0
    %2633 = vmatpush1.msra.mxu0 %v1876
    %2634 = vmatprep.subr.mxu0 0.0
    %2635 = vmatpush1.msra.mxu0 0.0
    %2636 = vmatprep.subr.mxu0 0.0
    %2637 = vmatpush1.msra.mxu0 0.0
    %2638 = vmatprep.subr.mxu0 0.0
    %2639 = vmatpush1.msra.mxu0 0.0
    %2640 = vmatprep.subr.mxu0 0.0
    %2641 = vmatpush1.msra.mxu0 0.0
    %2642 = vmatprep.subr.mxu0 0.0
    %2643 = vmatpush1.msra.mxu0 0.0
    %2644 = vmatprep.subr.mxu0 0.0
    %2645 = vmatpush1.msra.mxu0 0.0
    %2646 = vmatprep.subr.mxu0 0.0
    %2647 = vmatpush1.msra.mxu0 0.0
    %2648 = vmatprep.subr.mxu0 0.0
    %2649 = vmatpush1.msra.mxu0 0.0
    %2650 = vmatprep.subr.mxu0 0.0
    %2651 = vmatpush1.msra.mxu0 0.0
    %2652 = vmatprep.subr.mxu0 0.0
    %2653 = vmatpush1.msra.mxu0 0.0
    %2654 = vmatprep.subr.mxu0 0.0
    %2655 = vmatpush1.msra.mxu0 0.0
    %2656 = vmatprep.subr.mxu0 0.0
    %2657 = vmatpush1.msra.mxu0 0.0
    %2658 = vmatprep.subr.mxu0 0.0
    %2659 = vmatpush1.msra.mxu0 0.0
    %2660 = vmatprep.subr.mxu0 0.0
    %2661 = vmatpush1.msra.mxu0 0.0
    %2662 = vmatprep.subr.mxu0 0.0
    %2663 = vmatpush1.msra.mxu0 0.0
    %2664 = vmatprep.subr.mxu0 0.0
    %2665 = vmatpush1.msra.mxu0 0.0
    %2666 = vmatprep.subr.mxu0 0.0
    %2667 = vmatpush1.msra.mxu0 0.0
    %2668 = vmatprep.subr.mxu0 0.0
    %2669 = vmatpush1.msra.mxu0 0.0
    %2670 = vmatprep.subr.mxu0 0.0
    %2671 = vmatpush1.msra.mxu0 0.0
    %2672 = vmatprep.subr.mxu0 0.0
    %2673 = vmatpush1.msra.mxu0 0.0
    %2674 = vmatprep.subr.mxu0 0.0
    %2675 = vmatpush1.msra.mxu0 0.0
    %2676 = vmatprep.subr.mxu0 0.0
    %2677 = vmatpush1.msra.mxu0 0.0
    %2678 = vmatprep.subr.mxu0 0.0
    %2679 = vmatpush1.msra.mxu0 0.0
    %2680 = vmatprep.subr.mxu0 0.0
    %2681 = vmatpush1.msra.mxu0 0.0
    %2682 = vmatprep.subr.mxu0 0.0
    %2683 = vmatpush1.msra.mxu0 0.0
    %2684 = vmatprep.subr.mxu0 0.0
    %2685 = vmatpush1.msra.mxu0 0.0
    %2686 = vmatprep.subr.mxu0 0.0
    %2687 = vmatpush1.msra.mxu0 0.0
    %2688 = vmatprep.subr.mxu0 0.0
    %2689 = vmatpush1.msra.mxu0 0.0
    %2690 = vmatprep.mubr.f32.mxu0 0.0
    %2691 = vmatmul.mubr.f32.gmra.mrb[0].mxu0 %v2624
    %v2692 = vpop.f32.mrb[0].mxu0
    %v2693 = vadd.f32 0.0, %v2692
    %v2694 = vpop.f32.mrb[0].mxu0
    %2695 = vdwg.mxu0
    %v2696 = vadd.f32 %v1990, %v2693
    %v2697 = vmul.f32 %v2696, 0.5
    %v2698 = vtanh.pop %v2697
    %v2699 = vadd.f32 %v2698, 1.0
    %v2700 = vmul.f32 %v2699, 0.5
    %v2701 = vtanh.pop %v2696
    %v2702 = vmul.f32 %v2700, %v2614
    %2704 = vrot.lane.b32.xlu0 %v2701, 64
    %v2705 = vpop.permute.xlu0 %2704
    %v2707 = vmul.f32 %v2700, %v2705
    %2709 = vrot.lane.b32.xlu0 %v2707, 32
    %v2710 = vpop.permute.xlu0 %2709
    %v2712 = vadd.f32 %v2702, %v2710
    %v2713 = vtanh.pop %v2712
    %2715 = vrot.lane.b32.xlu0 %v2713, 64
    %v2716 = vpop.permute.xlu0 %2715
    %v2718 = vmul.f32 %v2700, %v2716
    %2720 = vrot.lane.b32.xlu0 %v2718, 32
    %v2721 = vpop.permute.xlu0 %2720
    %v2722 = vsel %vm306, %v2721, 0
    %2724 = vmatprep.subr.mxu0 0.0
    %2725 = vmatpush1.msra.mxu0 %v1873
    %2726 = vmatprep.subr.mxu0 0.0
    %2727 = vmatpush1.msra.mxu0 %v1874
    %2728 = vmatprep.subr.mxu0 0.0
    %2729 = vmatpush1.msra.mxu0 %v1875
    %2730 = vmatprep.subr.mxu0 0.0
    %2731 = vmatpush1.msra.mxu0 %v1876
    %2732 = vmatprep.subr.mxu0 0.0
    %2733 = vmatpush1.msra.mxu0 0.0
    %2734 = vmatprep.subr.mxu0 0.0
    %2735 = vmatpush1.msra.mxu0 0.0
    %2736 = vmatprep.subr.mxu0 0.0
    %2737 = vmatpush1.msra.mxu0 0.0
    %2738 = vmatprep.subr.mxu0 0.0
    %2739 = vmatpush1.msra.mxu0 0.0
    %2740 = vmatprep.subr.mxu0 0.0
    %2741 = vmatpush1.msra.mxu0 0.0
    %2742 = vmatprep.subr.mxu0 0.0
    %2743 = vmatpush1.msra.mxu0 0.0
    %2744 = vmatprep.subr.mxu0 0.0
    %2745 = vmatpush1.msra.mxu0 0.0
    %2746 = vmatprep.subr.mxu0 0.0
    %2747 = vmatpush1.msra.mxu0 0.0
    %2748 = vmatprep.subr.mxu0 0.0
    %2749 = vmatpush1.msra.mxu0 0.0
    %2750 = vmatprep.subr.mxu0 0.0
    %2751 = vmatpush1.msra.mxu0 0.0
    %2752 = vmatprep.subr.mxu0 0.0
    %2753 = vmatpush1.msra.mxu0 0.0
    %2754 = vmatprep.subr.mxu0 0.0
    %2755 = vmatpush1.msra.mxu0 0.0
    %2756 = vmatprep.subr.mxu0 0.0
    %2757 = vmatpush1.msra.mxu0 0.0
    %2758 = vmatprep.subr.mxu0 0.0
    %2759 = vmatpush1.msra.mxu0 0.0
    %2760 = vmatprep.subr.mxu0 0.0
    %2761 = vmatpush1.msra.mxu0 0.0
    %2762 = vmatprep.subr.mxu0 0.0
    %2763 = vmatpush1.msra.mxu0 0.0
    %2764 = vmatprep.subr.mxu0 0.0
    %2765 = vmatpush1.msra.mxu0 0.0
    %2766 = vmatprep.subr.mxu0 0.0
    %2767 = vmatpush1.msra.mxu0 0.0
    %2768 = vmatprep.subr.mxu0 0.0
    %2769 = vmatpush1.msra.mxu0 0.0
    %2770 = vmatprep.subr.mxu0 0.0
    %2771 = vmatpush1.msra.mxu0 0.0
    %2772 = vmatprep.subr.mxu0 0.0
    %2773 = vmatpush1.msra.mxu0 0.0
    %2774 = vmatprep.subr.mxu0 0.0
    %2775 = vmatpush1.msra.mxu0 0.0
    %2776 = vmatprep.subr.mxu0 0.0
    %2777 = vmatpush1.msra.mxu0 0.0
    %2778 = vmatprep.subr.mxu0 0.0
    %2779 = vmatpush1.msra.mxu0 0.0
    %2780 = vmatprep.subr.mxu0 0.0
    %2781 = vmatpush1.msra.mxu0 0.0
    %2782 = vmatprep.subr.mxu0 0.0
    %2783 = vmatpush1.msra.mxu0 0.0
    %2784 = vmatprep.subr.mxu0 0.0
    %2785 = vmatpush1.msra.mxu0 0.0
    %2786 = vmatprep.subr.mxu0 0.0
    %2787 = vmatpush1.msra.mxu0 0.0
    %2788 = vmatprep.mubr.f32.mxu0 0.0
    %2789 = vmatmul.mubr.f32.gmra.mrb[0].mxu0 %v2722
    %v2790 = vpop.f32.mrb[0].mxu0
    %v2791 = vadd.f32 0.0, %v2790
    %v2792 = vpop.f32.mrb[0].mxu0
    %2793 = vdwg.mxu0
    %v2794 = vadd.f32 %v1995, %v2791
    %v2795 = vmul.f32 %v2794, 0.5
    %v2796 = vtanh.pop %v2795
    %v2797 = vadd.f32 %v2796, 1.0
    %v2798 = vmul.f32 %v2797, 0.5
    %v2799 = vtanh.pop %v2794
    %v2800 = vmul.f32 %v2798, %v2712
    %2802 = vrot.lane.b32.xlu0 %v2799, 64
    %v2803 = vpop.permute.xlu0 %2802
    %v2805 = vmul.f32 %v2798, %v2803
    %2807 = vrot.lane.b32.xlu0 %v2805, 32
    %v2808 = vpop.permute.xlu0 %2807
    %v2810 = vadd.f32 %v2800, %v2808
    %v2811 = vtanh.pop %v2810
    %2813 = vrot.lane.b32.xlu0 %v2811, 64
    %v2814 = vpop.permute.xlu0 %2813
    %v2816 = vmul.f32 %v2798, %v2814
    %2818 = vrot.lane.b32.xlu0 %v2816, 32
    %v2819 = vpop.permute.xlu0 %2818
    %v2820 = vsel %vm306, %v2819, 0
    %2822 = vmatprep.subr.mxu0 0.0
    %2823 = vmatpush1.msra.mxu0 %v1873
    %2824 = vmatprep.subr.mxu0 0.0
    %2825 = vmatpush1.msra.mxu0 %v1874
    %2826 = vmatprep.subr.mxu0 0.0
    %2827 = vmatpush1.msra.mxu0 %v1875
    %2828 = vmatprep.subr.mxu0 0.0
    %2829 = vmatpush1.msra.mxu0 %v1876
    %2830 = vmatprep.subr.mxu0 0.0
    %2831 = vmatpush1.msra.mxu0 0.0
    %2832 = vmatprep.subr.mxu0 0.0
    %2833 = vmatpush1.msra.mxu0 0.0
    %2834 = vmatprep.subr.mxu0 0.0
    %2835 = vmatpush1.msra.mxu0 0.0
    %2836 = vmatprep.subr.mxu0 0.0
    %2837 = vmatpush1.msra.mxu0 0.0
    %2838 = vmatprep.subr.mxu0 0.0
    %2839 = vmatpush1.msra.mxu0 0.0
    %2840 = vmatprep.subr.mxu0 0.0
    %2841 = vmatpush1.msra.mxu0 0.0
    %2842 = vmatprep.subr.mxu0 0.0
    %2843 = vmatpush1.msra.mxu0 0.0
    %2844 = vmatprep.subr.mxu0 0.0
    %2845 = vmatpush1.msra.mxu0 0.0
    %2846 = vmatprep.subr.mxu0 0.0
    %2847 = vmatpush1.msra.mxu0 0.0
    %2848 = vmatprep.subr.mxu0 0.0
    %2849 = vmatpush1.msra.mxu0 0.0
    %2850 = vmatprep.subr.mxu0 0.0
    %2851 = vmatpush1.msra.mxu0 0.0
    %2852 = vmatprep.subr.mxu0 0.0
    %2853 = vmatpush1.msra.mxu0 0.0
    %2854 = vmatprep.subr.mxu0 0.0
    %2855 = vmatpush1.msra.mxu0 0.0
    %2856 = vmatprep.subr.mxu0 0.0
    %2857 = vmatpush1.msra.mxu0 0.0
    %2858 = vmatprep.subr.mxu0 0.0
    %2859 = vmatpush1.msra.mxu0 0.0
    %2860 = vmatprep.subr.mxu0 0.0
    %2861 = vmatpush1.msra.mxu0 0.0
    %2862 = vmatprep.subr.mxu0 0.0
    %2863 = vmatpush1.msra.mxu0 0.0
    %2864 = vmatprep.subr.mxu0 0.0
    %2865 = vmatpush1.msra.mxu0 0.0
    %2866 = vmatprep.subr.mxu0 0.0
    %2867 = vmatpush1.msra.mxu0 0.0
    %2868 = vmatprep.subr.mxu0 0.0
    %2869 = vmatpush1.msra.mxu0 0.0
    %2870 = vmatprep.subr.mxu0 0.0
    %2871 = vmatpush1.msra.mxu0 0.0
    %2872 = vmatprep.subr.mxu0 0.0
    %2873 = vmatpush1.msra.mxu0 0.0
    %2874 = vmatprep.subr.mxu0 0.0
    %2875 = vmatpush1.msra.mxu0 0.0
    %2876 = vmatprep.subr.mxu0 0.0
    %2877 = vmatpush1.msra.mxu0 0.0
    %2878 = vmatprep.subr.mxu0 0.0
    %2879 = vmatpush1.msra.mxu0 0.0
    %2880 = vmatprep.subr.mxu0 0.0
    %2881 = vmatpush1.msra.mxu0 0.0
    %2882 = vmatprep.subr.mxu0 0.0
    %2883 = vmatpush1.msra.mxu0 0.0
    %2884 = vmatprep.subr.mxu0 0.0
    %2885 = vmatpush1.msra.mxu0 0.0
    %2886 = vmatprep.mubr.f32.mxu0 0.0
    %2887 = vmatmul.mubr.f32.gmra.mrb[0].mxu0 %v2820
    %v2888 = vpop.f32.mrb[0].mxu0
    %v2889 = vadd.f32 0.0, %v2888
    %v2890 = vpop.f32.mrb[0].mxu0
    %2891 = vdwg.mxu0
    %v2892 = vadd.f32 %v2000, %v2889
    %v2893 = vmul.f32 %v2892, 0.5
    %v2894 = vtanh.pop %v2893
    %v2895 = vadd.f32 %v2894, 1.0
    %v2896 = vmul.f32 %v2895, 0.5
    %v2897 = vtanh.pop %v2892
    %v2898 = vmul.f32 %v2896, %v2810
    %2900 = vrot.lane.b32.xlu0 %v2897, 64
    %v2901 = vpop.permute.xlu0 %2900
    %v2903 = vmul.f32 %v2896, %v2901
    %2905 = vrot.lane.b32.xlu0 %v2903, 32
    %v2906 = vpop.permute.xlu0 %2905
    %v2908 = vadd.f32 %v2898, %v2906
    %v2909 = vtanh.pop %v2908
    %2911 = vrot.lane.b32.xlu0 %v2909, 64
    %v2912 = vpop.permute.xlu0 %2911
    %v2914 = vmul.f32 %v2896, %v2912
    %2916 = vrot.lane.b32.xlu0 %v2914, 32
    %v2917 = vpop.permute.xlu0 %2916
    %v2918 = vsel %vm306, %v2917, 0
    %2920 = vmatprep.subr.mxu0 0.0
    %2921 = vmatpush1.msra.mxu0 %v1873
    %2922 = vmatprep.subr.mxu0 0.0
    %2923 = vmatpush1.msra.mxu0 %v1874
    %2924 = vmatprep.subr.mxu0 0.0
    %2925 = vmatpush1.msra.mxu0 %v1875
    %2926 = vmatprep.subr.mxu0 0.0
    %2927 = vmatpush1.msra.mxu0 %v1876
    %2928 = vmatprep.subr.mxu0 0.0
    %2929 = vmatpush1.msra.mxu0 0.0
    %2930 = vmatprep.subr.mxu0 0.0
    %2931 = vmatpush1.msra.mxu0 0.0
    %2932 = vmatprep.subr.mxu0 0.0
    %2933 = vmatpush1.msra.mxu0 0.0
    %2934 = vmatprep.subr.mxu0 0.0
    %2935 = vmatpush1.msra.mxu0 0.0
    %2936 = vmatprep.subr.mxu0 0.0
    %2937 = vmatpush1.msra.mxu0 0.0
    %2938 = vmatprep.subr.mxu0 0.0
    %2939 = vmatpush1.msra.mxu0 0.0
    %2940 = vmatprep.subr.mxu0 0.0
    %2941 = vmatpush1.msra.mxu0 0.0
    %2942 = vmatprep.subr.mxu0 0.0
    %2943 = vmatpush1.msra.mxu0 0.0
    %2944 = vmatprep.subr.mxu0 0.0
    %2945 = vmatpush1.msra.mxu0 0.0
    %2946 = vmatprep.subr.mxu0 0.0
    %2947 = vmatpush1.msra.mxu0 0.0
    %2948 = vmatprep.subr.mxu0 0.0
    %2949 = vmatpush1.msra.mxu0 0.0
    %2950 = vmatprep.subr.mxu0 0.0
    %2951 = vmatpush1.msra.mxu0 0.0
    %2952 = vmatprep.subr.mxu0 0.0
    %2953 = vmatpush1.msra.mxu0 0.0
    %2954 = vmatprep.subr.mxu0 0.0
    %2955 = vmatpush1.msra.mxu0 0.0
    %2956 = vmatprep.subr.mxu0 0.0
    %2957 = vmatpush1.msra.mxu0 0.0
    %2958 = vmatprep.subr.mxu0 0.0
    %2959 = vmatpush1.msra.mxu0 0.0
    %2960 = vmatprep.subr.mxu0 0.0
    %2961 = vmatpush1.msra.mxu0 0.0
    %2962 = vmatprep.subr.mxu0 0.0
    %2963 = vmatpush1.msra.mxu0 0.0
    %2964 = vmatprep.subr.mxu0 0.0
    %2965 = vmatpush1.msra.mxu0 0.0
    %2966 = vmatprep.subr.mxu0 0.0
    %2967 = vmatpush1.msra.mxu0 0.0
    %2968 = vmatprep.subr.mxu0 0.0
    %2969 = vmatpush1.msra.mxu0 0.0
    %2970 = vmatprep.subr.mxu0 0.0
    %2971 = vmatpush1.msra.mxu0 0.0
    %2972 = vmatprep.subr.mxu0 0.0
    %2973 = vmatpush1.msra.mxu0 0.0
    %2974 = vmatprep.subr.mxu0 0.0
    %2975 = vmatpush1.msra.mxu0 0.0
    %2976 = vmatprep.subr.mxu0 0.0
    %2977 = vmatpush1.msra.mxu0 0.0
    %2978 = vmatprep.subr.mxu0 0.0
    %2979 = vmatpush1.msra.mxu0 0.0
    %2980 = vmatprep.subr.mxu0 0.0
    %2981 = vmatpush1.msra.mxu0 0.0
    %2982 = vmatprep.subr.mxu0 0.0
    %2983 = vmatpush1.msra.mxu0 0.0
    %2984 = vmatprep.mubr.f32.mxu0 0.0
    %2985 = vmatmul.mubr.f32.gmra.mrb[0].mxu0 %v2918
    %v2986 = vpop.f32.mrb[0].mxu0
    %v2987 = vadd.f32 0.0, %v2986
    %v2988 = vpop.f32.mrb[0].mxu0
    %2989 = vdwg.mxu0
    %v2990 = vadd.f32 %v2005, %v2987
    %v2991 = vmul.f32 %v2990, 0.5
    %v2992 = vtanh.pop %v2991
    %v2993 = vadd.f32 %v2992, 1.0
    %v2994 = vmul.f32 %v2993, 0.5
    %v2995 = vtanh.pop %v2990
    %v2996 = vmul.f32 %v2994, %v2908
    %2998 = vrot.lane.b32.xlu0 %v2995, 64
    %v2999 = vpop.permute.xlu0 %2998
    %v3001 = vmul.f32 %v2994, %v2999
    %3003 = vrot.lane.b32.xlu0 %v3001, 32
    %v3004 = vpop.permute.xlu0 %3003
    %v3006 = vadd.f32 %v2996, %v3004
    %v3007 = vtanh.pop %v3006
    %3009 = vrot.lane.b32.xlu0 %v3007, 64
    %v3010 = vpop.permute.xlu0 %3009
    %v3012 = vmul.f32 %v2994, %v3010
    %3014 = vrot.lane.b32.xlu0 %v3012, 32
    %v3015 = vpop.permute.xlu0 %3014
    %v3016 = vsel %vm306, %v3015, 0
    %3018 = vmatprep.subr.mxu0 0.0
    %3019 = vmatpush1.msra.mxu0 %v1873
    %3020 = vmatprep.subr.mxu0 0.0
    %3021 = vmatpush1.msra.mxu0 %v1874
    %3022 = vmatprep.subr.mxu0 0.0
    %3023 = vmatpush1.msra.mxu0 %v1875
    %3024 = vmatprep.subr.mxu0 0.0
    %3025 = vmatpush1.msra.mxu0 %v1876
    %3026 = vmatprep.subr.mxu0 0.0
    %3027 = vmatpush1.msra.mxu0 0.0
    %3028 = vmatprep.subr.mxu0 0.0
    %3029 = vmatpush1.msra.mxu0 0.0
    %3030 = vmatprep.subr.mxu0 0.0
    %3031 = vmatpush1.msra.mxu0 0.0
    %3032 = vmatprep.subr.mxu0 0.0
    %3033 = vmatpush1.msra.mxu0 0.0
    %3034 = vmatprep.subr.mxu0 0.0
    %3035 = vmatpush1.msra.mxu0 0.0
    %3036 = vmatprep.subr.mxu0 0.0
    %3037 = vmatpush1.msra.mxu0 0.0
    %3038 = vmatprep.subr.mxu0 0.0
    %3039 = vmatpush1.msra.mxu0 0.0
    %3040 = vmatprep.subr.mxu0 0.0
    %3041 = vmatpush1.msra.mxu0 0.0
    %3042 = vmatprep.subr.mxu0 0.0
    %3043 = vmatpush1.msra.mxu0 0.0
    %3044 = vmatprep.subr.mxu0 0.0
    %3045 = vmatpush1.msra.mxu0 0.0
    %3046 = vmatprep.subr.mxu0 0.0
    %3047 = vmatpush1.msra.mxu0 0.0
    %3048 = vmatprep.subr.mxu0 0.0
    %3049 = vmatpush1.msra.mxu0 0.0
    %3050 = vmatprep.subr.mxu0 0.0
    %3051 = vmatpush1.msra.mxu0 0.0
    %3052 = vmatprep.subr.mxu0 0.0
    %3053 = vmatpush1.msra.mxu0 0.0
    %3054 = vmatprep.subr.mxu0 0.0
    %3055 = vmatpush1.msra.mxu0 0.0
    %3056 = vmatprep.subr.mxu0 0.0
    %3057 = vmatpush1.msra.mxu0 0.0
    %3058 = vmatprep.subr.mxu0 0.0
    %3059 = vmatpush1.msra.mxu0 0.0
    %3060 = vmatprep.subr.mxu0 0.0
    %3061 = vmatpush1.msra.mxu0 0.0
    %3062 = vmatprep.subr.mxu0 0.0
    %3063 = vmatpush1.msra.mxu0 0.0
    %3064 = vmatprep.subr.mxu0 0.0
    %3065 = vmatpush1.msra.mxu0 0.0
    %3066 = vmatprep.subr.mxu0 0.0
    %3067 = vmatpush1.msra.mxu0 0.0
    %3068 = vmatprep.subr.mxu0 0.0
    %3069 = vmatpush1.msra.mxu0 0.0
    %3070 = vmatprep.subr.mxu0 0.0
    %3071 = vmatpush1.msra.mxu0 0.0
    %3072 = vmatprep.subr.mxu0 0.0
    %3073 = vmatpush1.msra.mxu0 0.0
    %3074 = vmatprep.subr.mxu0 0.0
    %3075 = vmatpush1.msra.mxu0 0.0
    %3076 = vmatprep.subr.mxu0 0.0
    %3077 = vmatpush1.msra.mxu0 0.0
    %3078 = vmatprep.subr.mxu0 0.0
    %3079 = vmatpush1.msra.mxu0 0.0
    %3080 = vmatprep.subr.mxu0 0.0
    %3081 = vmatpush1.msra.mxu0 0.0
    %3082 = vmatprep.mubr.f32.mxu0 0.0
    %3083 = vmatmul.mubr.f32.gmra.mrb[0].mxu0 %v3016
    %v3084 = vpop.f32.mrb[0].mxu0
    %v3085 = vadd.f32 0.0, %v3084
    %v3086 = vpop.f32.mrb[0].mxu0
    %3087 = vdwg.mxu0
    %v3088 = vadd.f32 %v2010, %v3085
    %v3089 = vmul.f32 %v3088, 0.5
    %v3090 = vtanh.pop %v3089
    %v3091 = vadd.f32 %v3090, 1.0
    %v3092 = vmul.f32 %v3091, 0.5
    %v3093 = vtanh.pop %v3088
    %v3094 = vmul.f32 %v3092, %v3006
    %3096 = vrot.lane.b32.xlu0 %v3093, 64
    %v3097 = vpop.permute.xlu0 %3096
    %v3099 = vmul.f32 %v3092, %v3097
    %3101 = vrot.lane.b32.xlu0 %v3099, 32
    %v3102 = vpop.permute.xlu0 %3101
    %v3104 = vadd.f32 %v3094, %v3102
    %v3105 = vtanh.pop %v3104
    %3107 = vrot.lane.b32.xlu0 %v3105, 64
    %v3108 = vpop.permute.xlu0 %3107
    %v3110 = vmul.f32 %v3092, %v3108
    %3112 = vrot.lane.b32.xlu0 %v3110, 32
    %v3113 = vpop.permute.xlu0 %3112
    %v3114 = vsel %vm306, %v3113, 0
    %3116 = vmatprep.subr.mxu0 0.0
    %3117 = vmatpush1.msra.mxu0 %v1873
    %3118 = vmatprep.subr.mxu0 0.0
    %3119 = vmatpush1.msra.mxu0 %v1874
    %3120 = vmatprep.subr.mxu0 0.0
    %3121 = vmatpush1.msra.mxu0 %v1875
    %3122 = vmatprep.subr.mxu0 0.0
    %3123 = vmatpush1.msra.mxu0 %v1876
    %3124 = vmatprep.subr.mxu0 0.0
    %3125 = vmatpush1.msra.mxu0 0.0
    %3126 = vmatprep.subr.mxu0 0.0
    %3127 = vmatpush1.msra.mxu0 0.0
    %3128 = vmatprep.subr.mxu0 0.0
    %3129 = vmatpush1.msra.mxu0 0.0
    %3130 = vmatprep.subr.mxu0 0.0
    %3131 = vmatpush1.msra.mxu0 0.0
    %3132 = vmatprep.subr.mxu0 0.0
    %3133 = vmatpush1.msra.mxu0 0.0
    %3134 = vmatprep.subr.mxu0 0.0
    %3135 = vmatpush1.msra.mxu0 0.0
    %3136 = vmatprep.subr.mxu0 0.0
    %3137 = vmatpush1.msra.mxu0 0.0
    %3138 = vmatprep.subr.mxu0 0.0
    %3139 = vmatpush1.msra.mxu0 0.0
    %3140 = vmatprep.subr.mxu0 0.0
    %3141 = vmatpush1.msra.mxu0 0.0
    %3142 = vmatprep.subr.mxu0 0.0
    %3143 = vmatpush1.msra.mxu0 0.0
    %3144 = vmatprep.subr.mxu0 0.0
    %3145 = vmatpush1.msra.mxu0 0.0
    %3146 = vmatprep.subr.mxu0 0.0
    %3147 = vmatpush1.msra.mxu0 0.0
    %3148 = vmatprep.subr.mxu0 0.0
    %3149 = vmatpush1.msra.mxu0 0.0
    %3150 = vmatprep.subr.mxu0 0.0
    %3151 = vmatpush1.msra.mxu0 0.0
    %3152 = vmatprep.subr.mxu0 0.0
    %3153 = vmatpush1.msra.mxu0 0.0
    %3154 = vmatprep.subr.mxu0 0.0
    %3155 = vmatpush1.msra.mxu0 0.0
    %3156 = vmatprep.subr.mxu0 0.0
    %3157 = vmatpush1.msra.mxu0 0.0
    %3158 = vmatprep.subr.mxu0 0.0
    %3159 = vmatpush1.msra.mxu0 0.0
    %3160 = vmatprep.subr.mxu0 0.0
    %3161 = vmatpush1.msra.mxu0 0.0
    %3162 = vmatprep.subr.mxu0 0.0
    %3163 = vmatpush1.msra.mxu0 0.0
    %3164 = vmatprep.subr.mxu0 0.0
    %3165 = vmatpush1.msra.mxu0 0.0
    %3166 = vmatprep.subr.mxu0 0.0
    %3167 = vmatpush1.msra.mxu0 0.0
    %3168 = vmatprep.subr.mxu0 0.0
    %3169 = vmatpush1.msra.mxu0 0.0
    %3170 = vmatprep.subr.mxu0 0.0
    %3171 = vmatpush1.msra.mxu0 0.0
    %3172 = vmatprep.subr.mxu0 0.0
    %3173 = vmatpush1.msra.mxu0 0.0
    %3174 = vmatprep.subr.mxu0 0.0
    %3175 = vmatpush1.msra.mxu0 0.0
    %3176 = vmatprep.subr.mxu0 0.0
    %3177 = vmatpush1.msra.mxu0 0.0
    %3178 = vmatprep.subr.mxu0 0.0
    %3179 = vmatpush1.msra.mxu0 0.0
    %3180 = vmatprep.mubr.f32.mxu0 0.0
    %3181 = vmatmul.mubr.f32.gmra.mrb[0].mxu0 %v3114
    %v3182 = vpop.f32.mrb[0].mxu0
    %v3183 = vadd.f32 0.0, %v3182
    %v3184 = vpop.f32.mrb[0].mxu0
    %3185 = vdwg.mxu0
    %v3186 = vadd.f32 %v2015, %v3183
    %v3187 = vmul.f32 %v3186, 0.5
    %v3188 = vtanh.pop %v3187
    %v3189 = vadd.f32 %v3188, 1.0
    %v3190 = vmul.f32 %v3189, 0.5
    %v3191 = vtanh.pop %v3186
    %v3192 = vmul.f32 %v3190, %v3104
    %3194 = vrot.lane.b32.xlu0 %v3191, 64
    %v3195 = vpop.permute.xlu0 %3194
    %v3197 = vmul.f32 %v3190, %v3195
    %3199 = vrot.lane.b32.xlu0 %v3197, 32
    %v3200 = vpop.permute.xlu0 %3199
    %v3202 = vadd.f32 %v3192, %v3200
    %v3203 = vtanh.pop %v3202
    %3205 = vrot.lane.b32.xlu0 %v3203, 64
    %v3206 = vpop.permute.xlu0 %3205
    %v3208 = vmul.f32 %v3190, %v3206
    %3210 = vrot.lane.b32.xlu0 %v3208, 32
    %v3211 = vpop.permute.xlu0 %3210
    %v3212 = vsel %vm306, %v3211, 0
    %3214 = vmatprep.subr.mxu0 0.0
    %3215 = vmatpush1.msra.mxu0 %v1873
    %3216 = vmatprep.subr.mxu0 0.0
    %3217 = vmatpush1.msra.mxu0 %v1874
    %3218 = vmatprep.subr.mxu0 0.0
    %3219 = vmatpush1.msra.mxu0 %v1875
    %3220 = vmatprep.subr.mxu0 0.0
    %3221 = vmatpush1.msra.mxu0 %v1876
    %3222 = vmatprep.subr.mxu0 0.0
    %3223 = vmatpush1.msra.mxu0 0.0
    %3224 = vmatprep.subr.mxu0 0.0
    %3225 = vmatpush1.msra.mxu0 0.0
    %3226 = vmatprep.subr.mxu0 0.0
    %3227 = vmatpush1.msra.mxu0 0.0
    %3228 = vmatprep.subr.mxu0 0.0
    %3229 = vmatpush1.msra.mxu0 0.0
    %3230 = vmatprep.subr.mxu0 0.0
    %3231 = vmatpush1.msra.mxu0 0.0
    %3232 = vmatprep.subr.mxu0 0.0
    %3233 = vmatpush1.msra.mxu0 0.0
    %3234 = vmatprep.subr.mxu0 0.0
    %3235 = vmatpush1.msra.mxu0 0.0
    %3236 = vmatprep.subr.mxu0 0.0
    %3237 = vmatpush1.msra.mxu0 0.0
    %3238 = vmatprep.subr.mxu0 0.0
    %3239 = vmatpush1.msra.mxu0 0.0
    %3240 = vmatprep.subr.mxu0 0.0
    %3241 = vmatpush1.msra.mxu0 0.0
    %3242 = vmatprep.subr.mxu0 0.0
    %3243 = vmatpush1.msra.mxu0 0.0
    %3244 = vmatprep.subr.mxu0 0.0
    %3245 = vmatpush1.msra.mxu0 0.0
    %3246 = vmatprep.subr.mxu0 0.0
    %3247 = vmatpush1.msra.mxu0 0.0
    %3248 = vmatprep.subr.mxu0 0.0
    %3249 = vmatpush1.msra.mxu0 0.0
    %3250 = vmatprep.subr.mxu0 0.0
    %3251 = vmatpush1.msra.mxu0 0.0
    %3252 = vmatprep.subr.mxu0 0.0
    %3253 = vmatpush1.msra.mxu0 0.0
    %3254 = vmatprep.subr.mxu0 0.0
    %3255 = vmatpush1.msra.mxu0 0.0
    %3256 = vmatprep.subr.mxu0 0.0
    %3257 = vmatpush1.msra.mxu0 0.0
    %3258 = vmatprep.subr.mxu0 0.0
    %3259 = vmatpush1.msra.mxu0 0.0
    %3260 = vmatprep.subr.mxu0 0.0
    %3261 = vmatpush1.msra.mxu0 0.0
    %3262 = vmatprep.subr.mxu0 0.0
    %3263 = vmatpush1.msra.mxu0 0.0
    %3264 = vmatprep.subr.mxu0 0.0
    %3265 = vmatpush1.msra.mxu0 0.0
    %3266 = vmatprep.subr.mxu0 0.0
    %3267 = vmatpush1.msra.mxu0 0.0
    %3268 = vmatprep.subr.mxu0 0.0
    %3269 = vmatpush1.msra.mxu0 0.0
    %3270 = vmatprep.subr.mxu0 0.0
    %3271 = vmatpush1.msra.mxu0 0.0
    %3272 = vmatprep.subr.mxu0 0.0
    %3273 = vmatpush1.msra.mxu0 0.0
    %3274 = vmatprep.subr.mxu0 0.0
    %3275 = vmatpush1.msra.mxu0 0.0
    %3276 = vmatprep.subr.mxu0 0.0
    %3277 = vmatpush1.msra.mxu0 0.0
    %3278 = vmatprep.mubr.f32.mxu0 0.0
    %3279 = vmatmul.mubr.f32.gmra.mrb[0].mxu0 %v3212
    %v3280 = vpop.f32.mrb[0].mxu0
    %v3281 = vadd.f32 0.0, %v3280
    %v3282 = vpop.f32.mrb[0].mxu0
    %3283 = vdwg.mxu0
    %v3284 = vadd.f32 %v2020, %v3281
    %v3285 = vmul.f32 %v3284, 0.5
    %v3286 = vtanh.pop %v3285
    %v3287 = vadd.f32 %v3286, 1.0
    %v3288 = vmul.f32 %v3287, 0.5
    %v3289 = vtanh.pop %v3284
    %v3290 = vmul.f32 %v3288, %v3202
    %3292 = vrot.lane.b32.xlu0 %v3289, 64
    %v3293 = vpop.permute.xlu0 %3292
    %v3295 = vmul.f32 %v3288, %v3293
    %3297 = vrot.lane.b32.xlu0 %v3295, 32
    %v3298 = vpop.permute.xlu0 %3297
    %v3300 = vadd.f32 %v3290, %v3298
    %v3301 = vtanh.pop %v3300
    %3303 = vrot.lane.b32.xlu0 %v3301, 64
    %v3304 = vpop.permute.xlu0 %3303
    %v3306 = vmul.f32 %v3288, %v3304
    %3308 = vrot.lane.b32.xlu0 %v3306, 32
    %v3309 = vpop.permute.xlu0 %3308
    %v3310 = vsel %vm306, %v3309, 0
    %3312 = vmatprep.subr.mxu0 0.0
    %3313 = vmatpush1.msra.mxu0 %v1873
    %3314 = vmatprep.subr.mxu0 0.0
    %3315 = vmatpush1.msra.mxu0 %v1874
    %3316 = vmatprep.subr.mxu0 0.0
    %3317 = vmatpush1.msra.mxu0 %v1875
    %3318 = vmatprep.subr.mxu0 0.0
    %3319 = vmatpush1.msra.mxu0 %v1876
    %3320 = vmatprep.subr.mxu0 0.0
    %3321 = vmatpush1.msra.mxu0 0.0
    %3322 = vmatprep.subr.mxu0 0.0
    %3323 = vmatpush1.msra.mxu0 0.0
    %3324 = vmatprep.subr.mxu0 0.0
    %3325 = vmatpush1.msra.mxu0 0.0
    %3326 = vmatprep.subr.mxu0 0.0
    %3327 = vmatpush1.msra.mxu0 0.0
    %3328 = vmatprep.subr.mxu0 0.0
    %3329 = vmatpush1.msra.mxu0 0.0
    %3330 = vmatprep.subr.mxu0 0.0
    %3331 = vmatpush1.msra.mxu0 0.0
    %3332 = vmatprep.subr.mxu0 0.0
    %3333 = vmatpush1.msra.mxu0 0.0
    %3334 = vmatprep.subr.mxu0 0.0
    %3335 = vmatpush1.msra.mxu0 0.0
    %3336 = vmatprep.subr.mxu0 0.0
    %3337 = vmatpush1.msra.mxu0 0.0
    %3338 = vmatprep.subr.mxu0 0.0
    %3339 = vmatpush1.msra.mxu0 0.0
    %3340 = vmatprep.subr.mxu0 0.0
    %3341 = vmatpush1.msra.mxu0 0.0
    %3342 = vmatprep.subr.mxu0 0.0
    %3343 = vmatpush1.msra.mxu0 0.0
    %3344 = vmatprep.subr.mxu0 0.0
    %3345 = vmatpush1.msra.mxu0 0.0
    %3346 = vmatprep.subr.mxu0 0.0
    %3347 = vmatpush1.msra.mxu0 0.0
    %3348 = vmatprep.subr.mxu0 0.0
    %3349 = vmatpush1.msra.mxu0 0.0
    %3350 = vmatprep.subr.mxu0 0.0
    %3351 = vmatpush1.msra.mxu0 0.0
    %3352 = vmatprep.subr.mxu0 0.0
    %3353 = vmatpush1.msra.mxu0 0.0
    %3354 = vmatprep.subr.mxu0 0.0
    %3355 = vmatpush1.msra.mxu0 0.0
    %3356 = vmatprep.subr.mxu0 0.0
    %3357 = vmatpush1.msra.mxu0 0.0
    %3358 = vmatprep.subr.mxu0 0.0
    %3359 = vmatpush1.msra.mxu0 0.0
    %3360 = vmatprep.subr.mxu0 0.0
    %3361 = vmatpush1.msra.mxu0 0.0
    %3362 = vmatprep.subr.mxu0 0.0
    %3363 = vmatpush1.msra.mxu0 0.0
    %3364 = vmatprep.subr.mxu0 0.0
    %3365 = vmatpush1.msra.mxu0 0.0
    %3366 = vmatprep.subr.mxu0 0.0
    %3367 = vmatpush1.msra.mxu0 0.0
    %3368 = vmatprep.subr.mxu0 0.0
    %3369 = vmatpush1.msra.mxu0 0.0
    %3370 = vmatprep.subr.mxu0 0.0
    %3371 = vmatpush1.msra.mxu0 0.0
    %3372 = vmatprep.subr.mxu0 0.0
    %3373 = vmatpush1.msra.mxu0 0.0
    %3374 = vmatprep.subr.mxu0 0.0
    %3375 = vmatpush1.msra.mxu0 0.0
    %3376 = vmatprep.mubr.f32.mxu0 0.0
    %3377 = vmatmul.mubr.f32.gmra.mrb[0].mxu0 %v3310
    %v3378 = vpop.f32.mrb[0].mxu0
    %v3379 = vadd.f32 0.0, %v3378
    %v3380 = vpop.f32.mrb[0].mxu0
    %3381 = vdwg.mxu0
    %v3382 = vadd.f32 %v2025, %v3379
    %v3383 = vmul.f32 %v3382, 0.5
    %v3384 = vtanh.pop %v3383
    %v3385 = vadd.f32 %v3384, 1.0
    %v3386 = vmul.f32 %v3385, 0.5
    %v3387 = vtanh.pop %v3382
    %v3388 = vmul.f32 %v3386, %v3300
    %3390 = vrot.lane.b32.xlu0 %v3387, 64
    %v3391 = vpop.permute.xlu0 %3390
    %v3393 = vmul.f32 %v3386, %v3391
    %3395 = vrot.lane.b32.xlu0 %v3393, 32
    %v3396 = vpop.permute.xlu0 %3395
    %v3398 = vadd.f32 %v3388, %v3396
    %v3399 = vtanh.pop %v3398
    %3401 = vrot.lane.b32.xlu0 %v3399, 64
    %v3402 = vpop.permute.xlu0 %3401
    %v3404 = vmul.f32 %v3386, %v3402
    %3406 = vrot.lane.b32.xlu0 %v3404, 32
    %v3407 = vpop.permute.xlu0 %3406
    %v3408 = vsel %vm306, %v3407, 0
    %3410 = vmatprep.subr.mxu0 0.0
    %3411 = vmatpush1.msra.mxu0 %v1873
    %3412 = vmatprep.subr.mxu0 0.0
    %3413 = vmatpush1.msra.mxu0 %v1874
    %3414 = vmatprep.subr.mxu0 0.0
    %3415 = vmatpush1.msra.mxu0 %v1875
    %3416 = vmatprep.subr.mxu0 0.0
    %3417 = vmatpush1.msra.mxu0 %v1876
    %3418 = vmatprep.subr.mxu0 0.0
    %3419 = vmatpush1.msra.mxu0 0.0
    %3420 = vmatprep.subr.mxu0 0.0
    %3421 = vmatpush1.msra.mxu0 0.0
    %3422 = vmatprep.subr.mxu0 0.0
    %3423 = vmatpush1.msra.mxu0 0.0
    %3424 = vmatprep.subr.mxu0 0.0
    %3425 = vmatpush1.msra.mxu0 0.0
    %3426 = vmatprep.subr.mxu0 0.0
    %3427 = vmatpush1.msra.mxu0 0.0
    %3428 = vmatprep.subr.mxu0 0.0
    %3429 = vmatpush1.msra.mxu0 0.0
    %3430 = vmatprep.subr.mxu0 0.0
    %3431 = vmatpush1.msra.mxu0 0.0
    %3432 = vmatprep.subr.mxu0 0.0
    %3433 = vmatpush1.msra.mxu0 0.0
    %3434 = vmatprep.subr.mxu0 0.0
    %3435 = vmatpush1.msra.mxu0 0.0
    %3436 = vmatprep.subr.mxu0 0.0
    %3437 = vmatpush1.msra.mxu0 0.0
    %3438 = vmatprep.subr.mxu0 0.0
    %3439 = vmatpush1.msra.mxu0 0.0
    %3440 = vmatprep.subr.mxu0 0.0
    %3441 = vmatpush1.msra.mxu0 0.0
    %3442 = vmatprep.subr.mxu0 0.0
    %3443 = vmatpush1.msra.mxu0 0.0
    %3444 = vmatprep.subr.mxu0 0.0
    %3445 = vmatpush1.msra.mxu0 0.0
    %3446 = vmatprep.subr.mxu0 0.0
    %3447 = vmatpush1.msra.mxu0 0.0
    %3448 = vmatprep.subr.mxu0 0.0
    %3449 = vmatpush1.msra.mxu0 0.0
    %3450 = vmatprep.subr.mxu0 0.0
    %3451 = vmatpush1.msra.mxu0 0.0
    %3452 = vmatprep.subr.mxu0 0.0
    %3453 = vmatpush1.msra.mxu0 0.0
    %3454 = vmatprep.subr.mxu0 0.0
    %3455 = vmatpush1.msra.mxu0 0.0
    %3456 = vmatprep.subr.mxu0 0.0
    %3457 = vmatpush1.msra.mxu0 0.0
    %3458 = vmatprep.subr.mxu0 0.0
    %3459 = vmatpush1.msra.mxu0 0.0
    %3460 = vmatprep.subr.mxu0 0.0
    %3461 = vmatpush1.msra.mxu0 0.0
    %3462 = vmatprep.subr.mxu0 0.0
    %3463 = vmatpush1.msra.mxu0 0.0
    %3464 = vmatprep.subr.mxu0 0.0
    %3465 = vmatpush1.msra.mxu0 0.0
    %3466 = vmatprep.subr.mxu0 0.0
    %3467 = vmatpush1.msra.mxu0 0.0
    %3468 = vmatprep.subr.mxu0 0.0
    %3469 = vmatpush1.msra.mxu0 0.0
    %3470 = vmatprep.subr.mxu0 0.0
    %3471 = vmatpush1.msra.mxu0 0.0
    %3472 = vmatprep.subr.mxu0 0.0
    %3473 = vmatpush1.msra.mxu0 0.0
    %3474 = vmatprep.mubr.f32.mxu0 0.0
    %3475 = vmatmul.mubr.f32.gmra.mrb[0].mxu0 %v3408
    %v3476 = vpop.f32.mrb[0].mxu0
    %v3477 = vadd.f32 0.0, %v3476
    %v3478 = vpop.f32.mrb[0].mxu0
    %3479 = vdwg.mxu0
    %v3480 = vadd.f32 %v2030, %v3477
    %v3481 = vmul.f32 %v3480, 0.5
    %v3482 = vtanh.pop %v3481
    %v3483 = vadd.f32 %v3482, 1.0
    %v3484 = vmul.f32 %v3483, 0.5
    %v3485 = vtanh.pop %v3480
    %v3486 = vmul.f32 %v3484, %v3398
    %3488 = vrot.lane.b32.xlu0 %v3485, 64
    %v3489 = vpop.permute.xlu0 %3488
    %v3491 = vmul.f32 %v3484, %v3489
    %3493 = vrot.lane.b32.xlu0 %v3491, 32
    %v3494 = vpop.permute.xlu0 %3493
    %v3496 = vadd.f32 %v3486, %v3494
    %v3497 = vtanh.pop %v3496
    %3499 = vrot.lane.b32.xlu0 %v3497, 64
    %v3500 = vpop.permute.xlu0 %3499
    %v3502 = vmul.f32 %v3484, %v3500
    %3504 = vrot.lane.b32.xlu0 %v3502, 32
    %v3505 = vpop.permute.xlu0 %3504
    %v3506 = vsel %vm306, %v3505, 0
    %3508 = vmatprep.subr.mxu0 0.0
    %3509 = vmatpush1.msra.mxu0 %v1873
    %3510 = vmatprep.subr.mxu0 0.0
    %3511 = vmatpush1.msra.mxu0 %v1874
    %3512 = vmatprep.subr.mxu0 0.0
    %3513 = vmatpush1.msra.mxu0 %v1875
    %3514 = vmatprep.subr.mxu0 0.0
    %3515 = vmatpush1.msra.mxu0 %v1876
    %3516 = vmatprep.subr.mxu0 0.0
    %3517 = vmatpush1.msra.mxu0 0.0
    %3518 = vmatprep.subr.mxu0 0.0
    %3519 = vmatpush1.msra.mxu0 0.0
    %3520 = vmatprep.subr.mxu0 0.0
    %3521 = vmatpush1.msra.mxu0 0.0
    %3522 = vmatprep.subr.mxu0 0.0
    %3523 = vmatpush1.msra.mxu0 0.0
    %3524 = vmatprep.subr.mxu0 0.0
    %3525 = vmatpush1.msra.mxu0 0.0
    %3526 = vmatprep.subr.mxu0 0.0
    %3527 = vmatpush1.msra.mxu0 0.0
    %3528 = vmatprep.subr.mxu0 0.0
    %3529 = vmatpush1.msra.mxu0 0.0
    %3530 = vmatprep.subr.mxu0 0.0
    %3531 = vmatpush1.msra.mxu0 0.0
    %3532 = vmatprep.subr.mxu0 0.0
    %3533 = vmatpush1.msra.mxu0 0.0
    %3534 = vmatprep.subr.mxu0 0.0
    %3535 = vmatpush1.msra.mxu0 0.0
    %3536 = vmatprep.subr.mxu0 0.0
    %3537 = vmatpush1.msra.mxu0 0.0
    %3538 = vmatprep.subr.mxu0 0.0
    %3539 = vmatpush1.msra.mxu0 0.0
    %3540 = vmatprep.subr.mxu0 0.0
    %3541 = vmatpush1.msra.mxu0 0.0
    %3542 = vmatprep.subr.mxu0 0.0
    %3543 = vmatpush1.msra.mxu0 0.0
    %3544 = vmatprep.subr.mxu0 0.0
    %3545 = vmatpush1.msra.mxu0 0.0
    %3546 = vmatprep.subr.mxu0 0.0
    %3547 = vmatpush1.msra.mxu0 0.0
    %3548 = vmatprep.subr.mxu0 0.0
    %3549 = vmatpush1.msra.mxu0 0.0
    %3550 = vmatprep.subr.mxu0 0.0
    %3551 = vmatpush1.msra.mxu0 0.0
    %3552 = vmatprep.subr.mxu0 0.0
    %3553 = vmatpush1.msra.mxu0 0.0
    %3554 = vmatprep.subr.mxu0 0.0
    %3555 = vmatpush1.msra.mxu0 0.0
    %3556 = vmatprep.subr.mxu0 0.0
    %3557 = vmatpush1.msra.mxu0 0.0
    %3558 = vmatprep.subr.mxu0 0.0
    %3559 = vmatpush1.msra.mxu0 0.0
    %3560 = vmatprep.subr.mxu0 0.0
    %3561 = vmatpush1.msra.mxu0 0.0
    %3562 = vmatprep.subr.mxu0 0.0
    %3563 = vmatpush1.msra.mxu0 0.0
    %3564 = vmatprep.subr.mxu0 0.0
    %3565 = vmatpush1.msra.mxu0 0.0
    %3566 = vmatprep.subr.mxu0 0.0
    %3567 = vmatpush1.msra.mxu0 0.0
    %3568 = vmatprep.subr.mxu0 0.0
    %3569 = vmatpush1.msra.mxu0 0.0
    %3570 = vmatprep.subr.mxu0 0.0
    %3571 = vmatpush1.msra.mxu0 0.0
    %3572 = vmatprep.mubr.f32.mxu0 0.0
    %3573 = vmatmul.mubr.f32.gmra.mrb[0].mxu0 %v3506
    %v3574 = vpop.f32.mrb[0].mxu0
    %v3575 = vadd.f32 0.0, %v3574
    %v3576 = vpop.f32.mrb[0].mxu0
    %3577 = vdwg.mxu0
    %v3578 = vadd.f32 %v2035, %v3575
    %v3579 = vmul.f32 %v3578, 0.5
    %v3580 = vtanh.pop %v3579
    %v3581 = vadd.f32 %v3580, 1.0
    %v3582 = vmul.f32 %v3581, 0.5
    %v3583 = vtanh.pop %v3578
    %v3584 = vmul.f32 %v3582, %v3496
    %3586 = vrot.lane.b32.xlu0 %v3583, 64
    %v3587 = vpop.permute.xlu0 %3586
    %v3589 = vmul.f32 %v3582, %v3587
    %3591 = vrot.lane.b32.xlu0 %v3589, 32
    %v3592 = vpop.permute.xlu0 %3591
    %v3594 = vadd.f32 %v3584, %v3592
    %v3595 = vtanh.pop %v3594
    %3597 = vrot.lane.b32.xlu0 %v3595, 64
    %v3598 = vpop.permute.xlu0 %3597
    %v3600 = vmul.f32 %v3582, %v3598
    %v3601 = vld [vmem:[#allocation4] sm:$0xff]
    %v3602 = vld [vmem:[#allocation4 + $0x8] sm:$0xff]
    %v3603 = vld [vmem:[#allocation4 + $0x10] sm:$0xff]
    %v3604 = vld [vmem:[#allocation4 + $0x18] sm:$0xff]
    %v3605 = vld [vmem:[%s8] sm:$0xff]
    %v3606 = vld [vmem:[%s8 + $0x8] sm:$0xff]
    %v3607 = vld [vmem:[%s8 + $0x10] sm:$0xff]
    %v3608 = vld [vmem:[%s8 + $0x18] sm:$0xff]
    %v3609 = vld [vmem:[#allocation6] sm:$0x1]
    %v3611 = vlaneseq
    %v3612 = vshrl.u32 %v3611, 7
    %v3613 = vsub.s32 0, %v3612
    %v3614 = vrot.slane %v3609, %v3613
    %3617 = vrot.lane.b32.xlu0 %v3600, 32
    %v3618 = vpop.permute.xlu0 %3617
    %v3619 = vsel %vm306, %v3618, 0
    %3621 = vmatprep.subr.mxu0 0.0
    %3622 = vmatpush1.msra.mxu0 %v3605
    %3623 = vmatprep.subr.mxu0 0.0
    %3624 = vmatpush1.msra.mxu0 %v3606
    %3625 = vmatprep.subr.mxu0 0.0
    %3626 = vmatpush1.msra.mxu0 %v3607
    %3627 = vmatprep.subr.mxu0 0.0
    %3628 = vmatpush1.msra.mxu0 %v3608
    %3629 = vmatprep.subr.mxu0 0.0
    %3630 = vmatpush1.msra.mxu0 0.0
    %3631 = vmatprep.subr.mxu0 0.0
    %3632 = vmatpush1.msra.mxu0 0.0
    %3633 = vmatprep.subr.mxu0 0.0
    %3634 = vmatpush1.msra.mxu0 0.0
    %3635 = vmatprep.subr.mxu0 0.0
    %3636 = vmatpush1.msra.mxu0 0.0
    %3637 = vmatprep.subr.mxu0 0.0
    %3638 = vmatpush1.msra.mxu0 0.0
    %3639 = vmatprep.subr.mxu0 0.0
    %3640 = vmatpush1.msra.mxu0 0.0
    %3641 = vmatprep.subr.mxu0 0.0
    %3642 = vmatpush1.msra.mxu0 0.0
    %3643 = vmatprep.subr.mxu0 0.0
    %3644 = vmatpush1.msra.mxu0 0.0
    %3645 = vmatprep.subr.mxu0 0.0
    %3646 = vmatpush1.msra.mxu0 0.0
    %3647 = vmatprep.subr.mxu0 0.0
    %3648 = vmatpush1.msra.mxu0 0.0
    %3649 = vmatprep.subr.mxu0 0.0
    %3650 = vmatpush1.msra.mxu0 0.0
    %3651 = vmatprep.subr.mxu0 0.0
    %3652 = vmatpush1.msra.mxu0 0.0
    %3653 = vmatprep.subr.mxu0 0.0
    %3654 = vmatpush1.msra.mxu0 0.0
    %3655 = vmatprep.subr.mxu0 0.0
    %3656 = vmatpush1.msra.mxu0 0.0
    %3657 = vmatprep.subr.mxu0 0.0
    %3658 = vmatpush1.msra.mxu0 0.0
    %3659 = vmatprep.subr.mxu0 0.0
    %3660 = vmatpush1.msra.mxu0 0.0
    %3661 = vmatprep.subr.mxu0 0.0
    %3662 = vmatpush1.msra.mxu0 0.0
    %3663 = vmatprep.subr.mxu0 0.0
    %3664 = vmatpush1.msra.mxu0 0.0
    %3665 = vmatprep.subr.mxu0 0.0
    %3666 = vmatpush1.msra.mxu0 0.0
    %3667 = vmatprep.subr.mxu0 0.0
    %3668 = vmatpush1.msra.mxu0 0.0
    %3669 = vmatprep.subr.mxu0 0.0
    %3670 = vmatpush1.msra.mxu0 0.0
    %3671 = vmatprep.subr.mxu0 0.0
    %3672 = vmatpush1.msra.mxu0 0.0
    %3673 = vmatprep.subr.mxu0 0.0
    %3674 = vmatpush1.msra.mxu0 0.0
    %3675 = vmatprep.subr.mxu0 0.0
    %3676 = vmatpush1.msra.mxu0 0.0
    %3677 = vmatprep.subr.mxu0 0.0
    %3678 = vmatpush1.msra.mxu0 0.0
    %3679 = vmatprep.subr.mxu0 0.0
    %3680 = vmatpush1.msra.mxu0 0.0
    %3681 = vmatprep.subr.mxu0 0.0
    %3682 = vmatpush1.msra.mxu0 0.0
    %3683 = vmatprep.subr.mxu0 0.0
    %3684 = vmatpush1.msra.mxu0 0.0
    %3685 = vmatprep.mubr.f32.mxu0 0.0
    %3686 = vmatmul.mubr.f32.gmra.mrb[0].mxu0 %v2134
    %v3687 = vpop.f32.mrb[0].mxu0
    %v3688 = vadd.f32 %v3614, %v3687
    %v3689 = vpop.f32.mrb[0].mxu0
    %3690 = vmatprep.mubr.f32.mxu0 0.0
    %3691 = vmatmul.mubr.f32.gmra.mrb[0].mxu0 %v2232
    %v3692 = vpop.f32.mrb[0].mxu0
    %v3693 = vadd.f32 %v3614, %v3692
    %v3694 = vpop.f32.mrb[0].mxu0
    %3695 = vmatprep.mubr.f32.mxu0 0.0
    %3696 = vmatmul.mubr.f32.gmra.mrb[0].mxu0 %v2330
    %v3697 = vpop.f32.mrb[0].mxu0
    %v3698 = vadd.f32 %v3614, %v3697
    %v3699 = vpop.f32.mrb[0].mxu0
    %3700 = vmatprep.mubr.f32.mxu0 0.0
    %3701 = vmatmul.mubr.f32.gmra.mrb[0].mxu0 %v2428
    %v3702 = vpop.f32.mrb[0].mxu0
    %v3703 = vadd.f32 %v3614, %v3702
    %v3704 = vpop.f32.mrb[0].mxu0
    %3705 = vmatprep.mubr.f32.mxu0 0.0
    %3706 = vmatmul.mubr.f32.gmra.mrb[0].mxu0 %v2526
    %v3707 = vpop.f32.mrb[0].mxu0
    %v3708 = vadd.f32 %v3614, %v3707
    %v3709 = vpop.f32.mrb[0].mxu0
    %3710 = vmatprep.mubr.f32.mxu0 0.0
    %3711 = vmatmul.mubr.f32.gmra.mrb[0].mxu0 %v2624
    %v3712 = vpop.f32.mrb[0].mxu0
    %v3713 = vadd.f32 %v3614, %v3712
    %v3714 = vpop.f32.mrb[0].mxu0
    %3715 = vmatprep.mubr.f32.mxu0 0.0
    %3716 = vmatmul.mubr.f32.gmra.mrb[0].mxu0 %v2722
    %v3717 = vpop.f32.mrb[0].mxu0
    %v3718 = vadd.f32 %v3614, %v3717
    %v3719 = vpop.f32.mrb[0].mxu0
    %3720 = vmatprep.mubr.f32.mxu0 0.0
    %3721 = vmatmul.mubr.f32.gmra.mrb[0].mxu0 %v2820
    %v3722 = vpop.f32.mrb[0].mxu0
    %v3723 = vadd.f32 %v3614, %v3722
    %v3724 = vpop.f32.mrb[0].mxu0
    %3725 = vmatprep.mubr.f32.mxu0 0.0
    %3726 = vmatmul.mubr.f32.gmra.mrb[0].mxu0 %v2918
    %v3727 = vpop.f32.mrb[0].mxu0
    %v3728 = vadd.f32 %v3614, %v3727
    %v3729 = vpop.f32.mrb[0].mxu0
    %3730 = vmatprep.mubr.f32.mxu0 0.0
    %3731 = vmatmul.mubr.f32.gmra.mrb[0].mxu0 %v3016
    %v3732 = vpop.f32.mrb[0].mxu0
    %v3733 = vadd.f32 %v3614, %v3732
    %v3734 = vpop.f32.mrb[0].mxu0
    %3735 = vmatprep.mubr.f32.mxu0 0.0
    %3736 = vmatmul.mubr.f32.gmra.mrb[0].mxu0 %v3114
    %v3737 = vpop.f32.mrb[0].mxu0
    %v3738 = vadd.f32 %v3614, %v3737
    %v3739 = vpop.f32.mrb[0].mxu0
    %3740 = vmatprep.mubr.f32.mxu0 0.0
    %3741 = vmatmul.mubr.f32.gmra.mrb[0].mxu0 %v3212
    %v3742 = vpop.f32.mrb[0].mxu0
    %v3743 = vadd.f32 %v3614, %v3742
    %v3744 = vpop.f32.mrb[0].mxu0
    %3745 = vmatprep.mubr.f32.mxu0 0.0
    %3746 = vmatmul.mubr.f32.gmra.mrb[0].mxu0 %v3310
    %v3747 = vpop.f32.mrb[0].mxu0
    %v3748 = vadd.f32 %v3614, %v3747
    %v3749 = vpop.f32.mrb[0].mxu0
    %3750 = vmatprep.mubr.f32.mxu0 0.0
    %3751 = vmatmul.mubr.f32.gmra.mrb[0].mxu0 %v3408
    %v3752 = vpop.f32.mrb[0].mxu0
    %v3753 = vadd.f32 %v3614, %v3752
    %v3754 = vpop.f32.mrb[0].mxu0
    %3755 = vmatprep.mubr.f32.mxu0 0.0
    %3756 = vmatmul.mubr.f32.gmra.mrb[0].mxu0 %v3506
    %v3757 = vpop.f32.mrb[0].mxu0
    %v3758 = vadd.f32 %v3614, %v3757
    %v3759 = vpop.f32.mrb[0].mxu0
    %3760 = vmatprep.mubr.f32.mxu0 0.0
    %3761 = vmatmul.mubr.f32.gmra.mrb[0].mxu0 %v3619
    %v3762 = vpop.f32.mrb[0].mxu0
    %v3763 = vadd.f32 %v3614, %v3762
    %v3764 = vpop.f32.mrb[0].mxu0
    %3765 = vdwg.mxu0
    %3766 = vmatprep.subr.mxu0 0.0
    %3767 = vmatpush1.msra.mxu0 %v3601
    %3768 = vmatprep.subr.mxu0 0.0
    %3769 = vmatpush1.msra.mxu0 %v3602
    %3770 = vmatprep.subr.mxu0 0.0
    %3771 = vmatpush1.msra.mxu0 %v3603
    %3772 = vmatprep.subr.mxu0 0.0
    %3773 = vmatpush1.msra.mxu0 %v3604
    %3774 = vmatprep.subr.mxu0 0.0
    %3775 = vmatpush1.msra.mxu0 0.0
    %3776 = vmatprep.subr.mxu0 0.0
    %3777 = vmatpush1.msra.mxu0 0.0
    %3778 = vmatprep.subr.mxu0 0.0
    %3779 = vmatpush1.msra.mxu0 0.0
    %3780 = vmatprep.subr.mxu0 0.0
    %3781 = vmatpush1.msra.mxu0 0.0
    %3782 = vmatprep.subr.mxu0 0.0
    %3783 = vmatpush1.msra.mxu0 0.0
    %3784 = vmatprep.subr.mxu0 0.0
    %3785 = vmatpush1.msra.mxu0 0.0
    %3786 = vmatprep.subr.mxu0 0.0
    %3787 = vmatpush1.msra.mxu0 0.0
    %3788 = vmatprep.subr.mxu0 0.0
    %3789 = vmatpush1.msra.mxu0 0.0
    %3790 = vmatprep.subr.mxu0 0.0
    %3791 = vmatpush1.msra.mxu0 0.0
    %3792 = vmatprep.subr.mxu0 0.0
    %3793 = vmatpush1.msra.mxu0 0.0
    %3794 = vmatprep.subr.mxu0 0.0
    %3795 = vmatpush1.msra.mxu0 0.0
    %3796 = vmatprep.subr.mxu0 0.0
    %3797 = vmatpush1.msra.mxu0 0.0
    %3798 = vmatprep.subr.mxu0 0.0
    %3799 = vmatpush1.msra.mxu0 0.0
    %3800 = vmatprep.subr.mxu0 0.0
    %3801 = vmatpush1.msra.mxu0 0.0
    %3802 = vmatprep.subr.mxu0 0.0
    %3803 = vmatpush1.msra.mxu0 0.0
    %3804 = vmatprep.subr.mxu0 0.0
    %3805 = vmatpush1.msra.mxu0 0.0
    %3806 = vmatprep.subr.mxu0 0.0
    %3807 = vmatpush1.msra.mxu0 0.0
    %3808 = vmatprep.subr.mxu0 0.0
    %3809 = vmatpush1.msra.mxu0 0.0
    %3810 = vmatprep.subr.mxu0 0.0
    %3811 = vmatpush1.msra.mxu0 0.0
    %3812 = vmatprep.subr.mxu0 0.0
    %3813 = vmatpush1.msra.mxu0 0.0
    %3814 = vmatprep.subr.mxu0 0.0
    %3815 = vmatpush1.msra.mxu0 0.0
    %3816 = vmatprep.subr.mxu0 0.0
    %3817 = vmatpush1.msra.mxu0 0.0
    %3818 = vmatprep.subr.mxu0 0.0
    %3819 = vmatpush1.msra.mxu0 0.0
    %3820 = vmatprep.subr.mxu0 0.0
    %3821 = vmatpush1.msra.mxu0 0.0
    %3822 = vmatprep.subr.mxu0 0.0
    %3823 = vmatpush1.msra.mxu0 0.0
    %3824 = vmatprep.subr.mxu0 0.0
    %3825 = vmatpush1.msra.mxu0 0.0
    %3826 = vmatprep.subr.mxu0 0.0
    %3827 = vmatpush1.msra.mxu0 0.0
    %3828 = vmatprep.subr.mxu0 0.0
    %3829 = vmatpush1.msra.mxu0 0.0
    %3830 = vmatprep.mubr.f32.mxu0 0.0
    %3831 = vmatmul.mubr.f32.gmra.mrb[0].mxu0 %v308
    %v3832 = vpop.f32.mrb[0].mxu0
    %v3833 = vadd.f32 0.0, %v3832
    %v3834 = vpop.f32.mrb[0].mxu0
    %3835 = vdwg.mxu0
    %v3836 = vadd.f32 %v3688, %v3833
    %v3837 = vmul.f32 %v3836, 0.5
    %v3838 = vtanh.pop %v3837
    %v3839 = vadd.f32 %v3838, 1.0
    %v3840 = vmul.f32 %v3839, 0.5
    %v3841 = vtanh.pop %v3836
    %v3842 = vmul.f32 %v3840, 0.0
    %3844 = vrot.lane.b32.xlu0 %v3841, 64
    %v3845 = vpop.permute.xlu0 %3844
    %v3847 = vmul.f32 %v3840, %v3845
    %3849 = vrot.lane.b32.xlu0 %v3847, 32
    %v3850 = vpop.permute.xlu0 %3849
    %v3852 = vadd.f32 %v3842, %v3850
    %v3853 = vtanh.pop %v3852
    %3855 = vrot.lane.b32.xlu0 %v3853, 64
    %v3856 = vpop.permute.xlu0 %3855
    %v3858 = vmul.f32 %v3840, %v3856
    %3860 = vrot.lane.b32.xlu0 %v3858, 32
    %v3861 = vpop.permute.xlu0 %3860
    %v3862 = vsel %vm306, %v3861, 0
    %3864 = vmatprep.subr.mxu0 0.0
    %3865 = vmatpush1.msra.mxu0 %v3601
    %3866 = vmatprep.subr.mxu0 0.0
    %3867 = vmatpush1.msra.mxu0 %v3602
    %3868 = vmatprep.subr.mxu0 0.0
    %3869 = vmatpush1.msra.mxu0 %v3603
    %3870 = vmatprep.subr.mxu0 0.0
    %3871 = vmatpush1.msra.mxu0 %v3604
    %3872 = vmatprep.subr.mxu0 0.0
    %3873 = vmatpush1.msra.mxu0 0.0
    %3874 = vmatprep.subr.mxu0 0.0
    %3875 = vmatpush1.msra.mxu0 0.0
    %3876 = vmatprep.subr.mxu0 0.0
    %3877 = vmatpush1.msra.mxu0 0.0
    %3878 = vmatprep.subr.mxu0 0.0
    %3879 = vmatpush1.msra.mxu0 0.0
    %3880 = vmatprep.subr.mxu0 0.0
    %3881 = vmatpush1.msra.mxu0 0.0
    %3882 = vmatprep.subr.mxu0 0.0
    %3883 = vmatpush1.msra.mxu0 0.0
    %3884 = vmatprep.subr.mxu0 0.0
    %3885 = vmatpush1.msra.mxu0 0.0
    %3886 = vmatprep.subr.mxu0 0.0
    %3887 = vmatpush1.msra.mxu0 0.0
    %3888 = vmatprep.subr.mxu0 0.0
    %3889 = vmatpush1.msra.mxu0 0.0
    %3890 = vmatprep.subr.mxu0 0.0
    %3891 = vmatpush1.msra.mxu0 0.0
    %3892 = vmatprep.subr.mxu0 0.0
    %3893 = vmatpush1.msra.mxu0 0.0
    %3894 = vmatprep.subr.mxu0 0.0
    %3895 = vmatpush1.msra.mxu0 0.0
    %3896 = vmatprep.subr.mxu0 0.0
    %3897 = vmatpush1.msra.mxu0 0.0
    %3898 = vmatprep.subr.mxu0 0.0
    %3899 = vmatpush1.msra.mxu0 0.0
    %3900 = vmatprep.subr.mxu0 0.0
    %3901 = vmatpush1.msra.mxu0 0.0
    %3902 = vmatprep.subr.mxu0 0.0
    %3903 = vmatpush1.msra.mxu0 0.0
    %3904 = vmatprep.subr.mxu0 0.0
    %3905 = vmatpush1.msra.mxu0 0.0
    %3906 = vmatprep.subr.mxu0 0.0
    %3907 = vmatpush1.msra.mxu0 0.0
    %3908 = vmatprep.subr.mxu0 0.0
    %3909 = vmatpush1.msra.mxu0 0.0
    %3910 = vmatprep.subr.mxu0 0.0
    %3911 = vmatpush1.msra.mxu0 0.0
    %3912 = vmatprep.subr.mxu0 0.0
    %3913 = vmatpush1.msra.mxu0 0.0
    %3914 = vmatprep.subr.mxu0 0.0
    %3915 = vmatpush1.msra.mxu0 0.0
    %3916 = vmatprep.subr.mxu0 0.0
    %3917 = vmatpush1.msra.mxu0 0.0
    %3918 = vmatprep.subr.mxu0 0.0
    %3919 = vmatpush1.msra.mxu0 0.0
    %3920 = vmatprep.subr.mxu0 0.0
    %3921 = vmatpush1.msra.mxu0 0.0
    %3922 = vmatprep.subr.mxu0 0.0
    %3923 = vmatpush1.msra.mxu0 0.0
    %3924 = vmatprep.subr.mxu0 0.0
    %3925 = vmatpush1.msra.mxu0 0.0
    %3926 = vmatprep.subr.mxu0 0.0
    %3927 = vmatpush1.msra.mxu0 0.0
    %3928 = vmatprep.mubr.f32.mxu0 0.0
    %3929 = vmatmul.mubr.f32.gmra.mrb[0].mxu0 %v3862
    %v3930 = vpop.f32.mrb[0].mxu0
    %v3931 = vadd.f32 0.0, %v3930
    %v3932 = vpop.f32.mrb[0].mxu0
    %3933 = vdwg.mxu0
    %v3934 = vadd.f32 %v3693, %v3931
    %v3935 = vmul.f32 %v3934, 0.5
    %v3936 = vtanh.pop %v3935
    %v3937 = vadd.f32 %v3936, 1.0
    %v3938 = vmul.f32 %v3937, 0.5
    %v3939 = vtanh.pop %v3934
    %v3940 = vmul.f32 %v3938, %v3852
    %3942 = vrot.lane.b32.xlu0 %v3939, 64
    %v3943 = vpop.permute.xlu0 %3942
    %v3945 = vmul.f32 %v3938, %v3943
    %3947 = vrot.lane.b32.xlu0 %v3945, 32
    %v3948 = vpop.permute.xlu0 %3947
    %v3950 = vadd.f32 %v3940, %v3948
    %v3951 = vtanh.pop %v3950
    %3953 = vrot.lane.b32.xlu0 %v3951, 64
    %v3954 = vpop.permute.xlu0 %3953
    %v3956 = vmul.f32 %v3938, %v3954
    %3958 = vrot.lane.b32.xlu0 %v3956, 32
    %v3959 = vpop.permute.xlu0 %3958
    %v3960 = vsel %vm306, %v3959, 0
    %3962 = vmatprep.subr.mxu0 0.0
    %3963 = vmatpush1.msra.mxu0 %v3601
    %3964 = vmatprep.subr.mxu0 0.0
    %3965 = vmatpush1.msra.mxu0 %v3602
    %3966 = vmatprep.subr.mxu0 0.0
    %3967 = vmatpush1.msra.mxu0 %v3603
    %3968 = vmatprep.subr.mxu0 0.0
    %3969 = vmatpush1.msra.mxu0 %v3604
    %3970 = vmatprep.subr.mxu0 0.0
    %3971 = vmatpush1.msra.mxu0 0.0
    %3972 = vmatprep.subr.mxu0 0.0
    %3973 = vmatpush1.msra.mxu0 0.0
    %3974 = vmatprep.subr.mxu0 0.0
    %3975 = vmatpush1.msra.mxu0 0.0
    %3976 = vmatprep.subr.mxu0 0.0
    %3977 = vmatpush1.msra.mxu0 0.0
    %3978 = vmatprep.subr.mxu0 0.0
    %3979 = vmatpush1.msra.mxu0 0.0
    %3980 = vmatprep.subr.mxu0 0.0
    %3981 = vmatpush1.msra.mxu0 0.0
    %3982 = vmatprep.subr.mxu0 0.0
    %3983 = vmatpush1.msra.mxu0 0.0
    %3984 = vmatprep.subr.mxu0 0.0
    %3985 = vmatpush1.msra.mxu0 0.0
    %3986 = vmatprep.subr.mxu0 0.0
    %3987 = vmatpush1.msra.mxu0 0.0
    %3988 = vmatprep.subr.mxu0 0.0
    %3989 = vmatpush1.msra.mxu0 0.0
    %3990 = vmatprep.subr.mxu0 0.0
    %3991 = vmatpush1.msra.mxu0 0.0
    %3992 = vmatprep.subr.mxu0 0.0
    %3993 = vmatpush1.msra.mxu0 0.0
    %3994 = vmatprep.subr.mxu0 0.0
    %3995 = vmatpush1.msra.mxu0 0.0
    %3996 = vmatprep.subr.mxu0 0.0
    %3997 = vmatpush1.msra.mxu0 0.0
    %3998 = vmatprep.subr.mxu0 0.0
    %3999 = vmatpush1.msra.mxu0 0.0
    %4000 = vmatprep.subr.mxu0 0.0
    %4001 = vmatpush1.msra.mxu0 0.0
    %4002 = vmatprep.subr.mxu0 0.0
    %4003 = vmatpush1.msra.mxu0 0.0
    %4004 = vmatprep.subr.mxu0 0.0
    %4005 = vmatpush1.msra.mxu0 0.0
    %4006 = vmatprep.subr.mxu0 0.0
    %4007 = vmatpush1.msra.mxu0 0.0
    %4008 = vmatprep.subr.mxu0 0.0
    %4009 = vmatpush1.msra.mxu0 0.0
    %4010 = vmatprep.subr.mxu0 0.0
    %4011 = vmatpush1.msra.mxu0 0.0
    %4012 = vmatprep.subr.mxu0 0.0
    %4013 = vmatpush1.msra.mxu0 0.0
    %4014 = vmatprep.subr.mxu0 0.0
    %4015 = vmatpush1.msra.mxu0 0.0
    %4016 = vmatprep.subr.mxu0 0.0
    %4017 = vmatpush1.msra.mxu0 0.0
    %4018 = vmatprep.subr.mxu0 0.0
    %4019 = vmatpush1.msra.mxu0 0.0
    %4020 = vmatprep.subr.mxu0 0.0
    %4021 = vmatpush1.msra.mxu0 0.0
    %4022 = vmatprep.subr.mxu0 0.0
    %4023 = vmatpush1.msra.mxu0 0.0
    %4024 = vmatprep.subr.mxu0 0.0
    %4025 = vmatpush1.msra.mxu0 0.0
    %4026 = vmatprep.mubr.f32.mxu0 0.0
    %4027 = vmatmul.mubr.f32.gmra.mrb[0].mxu0 %v3960
    %v4028 = vpop.f32.mrb[0].mxu0
    %v4029 = vadd.f32 0.0, %v4028
    %v4030 = vpop.f32.mrb[0].mxu0
    %4031 = vdwg.mxu0
    %v4032 = vadd.f32 %v3698, %v4029
    %v4033 = vmul.f32 %v4032, 0.5
    %v4034 = vtanh.pop %v4033
    %v4035 = vadd.f32 %v4034, 1.0
    %v4036 = vmul.f32 %v4035, 0.5
    %v4037 = vtanh.pop %v4032
    %v4038 = vmul.f32 %v4036, %v3950
    %4040 = vrot.lane.b32.xlu0 %v4037, 64
    %v4041 = vpop.permute.xlu0 %4040
    %v4043 = vmul.f32 %v4036, %v4041
    %4045 = vrot.lane.b32.xlu0 %v4043, 32
    %v4046 = vpop.permute.xlu0 %4045
    %v4048 = vadd.f32 %v4038, %v4046
    %v4049 = vtanh.pop %v4048
    %4051 = vrot.lane.b32.xlu0 %v4049, 64
    %v4052 = vpop.permute.xlu0 %4051
    %v4054 = vmul.f32 %v4036, %v4052
    %4056 = vrot.lane.b32.xlu0 %v4054, 32
    %v4057 = vpop.permute.xlu0 %4056
    %v4058 = vsel %vm306, %v4057, 0
    %4060 = vmatprep.subr.mxu0 0.0
    %4061 = vmatpush1.msra.mxu0 %v3601
    %4062 = vmatprep.subr.mxu0 0.0
    %4063 = vmatpush1.msra.mxu0 %v3602
    %4064 = vmatprep.subr.mxu0 0.0
    %4065 = vmatpush1.msra.mxu0 %v3603
    %4066 = vmatprep.subr.mxu0 0.0
    %4067 = vmatpush1.msra.mxu0 %v3604
    %4068 = vmatprep.subr.mxu0 0.0
    %4069 = vmatpush1.msra.mxu0 0.0
    %4070 = vmatprep.subr.mxu0 0.0
    %4071 = vmatpush1.msra.mxu0 0.0
    %4072 = vmatprep.subr.mxu0 0.0
    %4073 = vmatpush1.msra.mxu0 0.0
    %4074 = vmatprep.subr.mxu0 0.0
    %4075 = vmatpush1.msra.mxu0 0.0
    %4076 = vmatprep.subr.mxu0 0.0
    %4077 = vmatpush1.msra.mxu0 0.0
    %4078 = vmatprep.subr.mxu0 0.0
    %4079 = vmatpush1.msra.mxu0 0.0
    %4080 = vmatprep.subr.mxu0 0.0
    %4081 = vmatpush1.msra.mxu0 0.0
    %4082 = vmatprep.subr.mxu0 0.0
    %4083 = vmatpush1.msra.mxu0 0.0
    %4084 = vmatprep.subr.mxu0 0.0
    %4085 = vmatpush1.msra.mxu0 0.0
    %4086 = vmatprep.subr.mxu0 0.0
    %4087 = vmatpush1.msra.mxu0 0.0
    %4088 = vmatprep.subr.mxu0 0.0
    %4089 = vmatpush1.msra.mxu0 0.0
    %4090 = vmatprep.subr.mxu0 0.0
    %4091 = vmatpush1.msra.mxu0 0.0
    %4092 = vmatprep.subr.mxu0 0.0
    %4093 = vmatpush1.msra.mxu0 0.0
    %4094 = vmatprep.subr.mxu0 0.0
    %4095 = vmatpush1.msra.mxu0 0.0
    %4096 = vmatprep.subr.mxu0 0.0
    %4097 = vmatpush1.msra.mxu0 0.0
    %4098 = vmatprep.subr.mxu0 0.0
    %4099 = vmatpush1.msra.mxu0 0.0
    %4100 = vmatprep.subr.mxu0 0.0
    %4101 = vmatpush1.msra.mxu0 0.0
    %4102 = vmatprep.subr.mxu0 0.0
    %4103 = vmatpush1.msra.mxu0 0.0
    %4104 = vmatprep.subr.mxu0 0.0
    %4105 = vmatpush1.msra.mxu0 0.0
    %4106 = vmatprep.subr.mxu0 0.0
    %4107 = vmatpush1.msra.mxu0 0.0
    %4108 = vmatprep.subr.mxu0 0.0
    %4109 = vmatpush1.msra.mxu0 0.0
    %4110 = vmatprep.subr.mxu0 0.0
    %4111 = vmatpush1.msra.mxu0 0.0
    %4112 = vmatprep.subr.mxu0 0.0
    %4113 = vmatpush1.msra.mxu0 0.0
    %4114 = vmatprep.subr.mxu0 0.0
    %4115 = vmatpush1.msra.mxu0 0.0
    %4116 = vmatprep.subr.mxu0 0.0
    %4117 = vmatpush1.msra.mxu0 0.0
    %4118 = vmatprep.subr.mxu0 0.0
    %4119 = vmatpush1.msra.mxu0 0.0
    %4120 = vmatprep.subr.mxu0 0.0
    %4121 = vmatpush1.msra.mxu0 0.0
    %4122 = vmatprep.subr.mxu0 0.0
    %4123 = vmatpush1.msra.mxu0 0.0
    %4124 = vmatprep.mubr.f32.mxu0 0.0
    %4125 = vmatmul.mubr.f32.gmra.mrb[0].mxu0 %v4058
    %v4126 = vpop.f32.mrb[0].mxu0
    %v4127 = vadd.f32 0.0, %v4126
    %v4128 = vpop.f32.mrb[0].mxu0
    %4129 = vdwg.mxu0
    %v4130 = vadd.f32 %v3703, %v4127
    %v4131 = vmul.f32 %v4130, 0.5
    %v4132 = vtanh.pop %v4131
    %v4133 = vadd.f32 %v4132, 1.0
    %v4134 = vmul.f32 %v4133, 0.5
    %v4135 = vtanh.pop %v4130
    %v4136 = vmul.f32 %v4134, %v4048
    %4138 = vrot.lane.b32.xlu0 %v4135, 64
    %v4139 = vpop.permute.xlu0 %4138
    %v4141 = vmul.f32 %v4134, %v4139
    %4143 = vrot.lane.b32.xlu0 %v4141, 32
    %v4144 = vpop.permute.xlu0 %4143
    %v4146 = vadd.f32 %v4136, %v4144
    %v4147 = vtanh.pop %v4146
    %4149 = vrot.lane.b32.xlu0 %v4147, 64
    %v4150 = vpop.permute.xlu0 %4149
    %v4152 = vmul.f32 %v4134, %v4150
    %4154 = vrot.lane.b32.xlu0 %v4152, 32
    %v4155 = vpop.permute.xlu0 %4154
    %v4156 = vsel %vm306, %v4155, 0
    %4158 = vmatprep.subr.mxu0 0.0
    %4159 = vmatpush1.msra.mxu0 %v3601
    %4160 = vmatprep.subr.mxu0 0.0
    %4161 = vmatpush1.msra.mxu0 %v3602
    %4162 = vmatprep.subr.mxu0 0.0
    %4163 = vmatpush1.msra.mxu0 %v3603
    %4164 = vmatprep.subr.mxu0 0.0
    %4165 = vmatpush1.msra.mxu0 %v3604
    %4166 = vmatprep.subr.mxu0 0.0
    %4167 = vmatpush1.msra.mxu0 0.0
    %4168 = vmatprep.subr.mxu0 0.0
    %4169 = vmatpush1.msra.mxu0 0.0
    %4170 = vmatprep.subr.mxu0 0.0
    %4171 = vmatpush1.msra.mxu0 0.0
    %4172 = vmatprep.subr.mxu0 0.0
    %4173 = vmatpush1.msra.mxu0 0.0
    %4174 = vmatprep.subr.mxu0 0.0
    %4175 = vmatpush1.msra.mxu0 0.0
    %4176 = vmatprep.subr.mxu0 0.0
    %4177 = vmatpush1.msra.mxu0 0.0
    %4178 = vmatprep.subr.mxu0 0.0
    %4179 = vmatpush1.msra.mxu0 0.0
    %4180 = vmatprep.subr.mxu0 0.0
    %4181 = vmatpush1.msra.mxu0 0.0
    %4182 = vmatprep.subr.mxu0 0.0
    %4183 = vmatpush1.msra.mxu0 0.0
    %4184 = vmatprep.subr.mxu0 0.0
    %4185 = vmatpush1.msra.mxu0 0.0
    %4186 = vmatprep.subr.mxu0 0.0
    %4187 = vmatpush1.msra.mxu0 0.0
    %4188 = vmatprep.subr.mxu0 0.0
    %4189 = vmatpush1.msra.mxu0 0.0
    %4190 = vmatprep.subr.mxu0 0.0
    %4191 = vmatpush1.msra.mxu0 0.0
    %4192 = vmatprep.subr.mxu0 0.0
    %4193 = vmatpush1.msra.mxu0 0.0
    %4194 = vmatprep.subr.mxu0 0.0
    %4195 = vmatpush1.msra.mxu0 0.0
    %4196 = vmatprep.subr.mxu0 0.0
    %4197 = vmatpush1.msra.mxu0 0.0
    %4198 = vmatprep.subr.mxu0 0.0
    %4199 = vmatpush1.msra.mxu0 0.0
    %4200 = vmatprep.subr.mxu0 0.0
    %4201 = vmatpush1.msra.mxu0 0.0
    %4202 = vmatprep.subr.mxu0 0.0
    %4203 = vmatpush1.msra.mxu0 0.0
    %4204 = vmatprep.subr.mxu0 0.0
    %4205 = vmatpush1.msra.mxu0 0.0
    %4206 = vmatprep.subr.mxu0 0.0
    %4207 = vmatpush1.msra.mxu0 0.0
    %4208 = vmatprep.subr.mxu0 0.0
    %4209 = vmatpush1.msra.mxu0 0.0
    %4210 = vmatprep.subr.mxu0 0.0
    %4211 = vmatpush1.msra.mxu0 0.0
    %4212 = vmatprep.subr.mxu0 0.0
    %4213 = vmatpush1.msra.mxu0 0.0
    %4214 = vmatprep.subr.mxu0 0.0
    %4215 = vmatpush1.msra.mxu0 0.0
    %4216 = vmatprep.subr.mxu0 0.0
    %4217 = vmatpush1.msra.mxu0 0.0
    %4218 = vmatprep.subr.mxu0 0.0
    %4219 = vmatpush1.msra.mxu0 0.0
    %4220 = vmatprep.subr.mxu0 0.0
    %4221 = vmatpush1.msra.mxu0 0.0
    %4222 = vmatprep.mubr.f32.mxu0 0.0
    %4223 = vmatmul.mubr.f32.gmra.mrb[0].mxu0 %v4156
    %v4224 = vpop.f32.mrb[0].mxu0
    %v4225 = vadd.f32 0.0, %v4224
    %v4226 = vpop.f32.mrb[0].mxu0
    %4227 = vdwg.mxu0
    %v4228 = vadd.f32 %v3708, %v4225
    %v4229 = vmul.f32 %v4228, 0.5
    %v4230 = vtanh.pop %v4229
    %v4231 = vadd.f32 %v4230, 1.0
    %v4232 = vmul.f32 %v4231, 0.5
    %v4233 = vtanh.pop %v4228
    %v4234 = vmul.f32 %v4232, %v4146
    %4236 = vrot.lane.b32.xlu0 %v4233, 64
    %v4237 = vpop.permute.xlu0 %4236
    %v4239 = vmul.f32 %v4232, %v4237
    %4241 = vrot.lane.b32.xlu0 %v4239, 32
    %v4242 = vpop.permute.xlu0 %4241
    %v4244 = vadd.f32 %v4234, %v4242
    %v4245 = vtanh.pop %v4244
    %4247 = vrot.lane.b32.xlu0 %v4245, 64
    %v4248 = vpop.permute.xlu0 %4247
    %v4250 = vmul.f32 %v4232, %v4248
    %4252 = vrot.lane.b32.xlu0 %v4250, 32
    %v4253 = vpop.permute.xlu0 %4252
    %v4254 = vsel %vm306, %v4253, 0
    %4256 = vmatprep.subr.mxu0 0.0
    %4257 = vmatpush1.msra.mxu0 %v3601
    %4258 = vmatprep.subr.mxu0 0.0
    %4259 = vmatpush1.msra.mxu0 %v3602
    %4260 = vmatprep.subr.mxu0 0.0
    %4261 = vmatpush1.msra.mxu0 %v3603
    %4262 = vmatprep.subr.mxu0 0.0
    %4263 = vmatpush1.msra.mxu0 %v3604
    %4264 = vmatprep.subr.mxu0 0.0
    %4265 = vmatpush1.msra.mxu0 0.0
    %4266 = vmatprep.subr.mxu0 0.0
    %4267 = vmatpush1.msra.mxu0 0.0
    %4268 = vmatprep.subr.mxu0 0.0
    %4269 = vmatpush1.msra.mxu0 0.0
    %4270 = vmatprep.subr.mxu0 0.0
    %4271 = vmatpush1.msra.mxu0 0.0
    %4272 = vmatprep.subr.mxu0 0.0
    %4273 = vmatpush1.msra.mxu0 0.0
    %4274 = vmatprep.subr.mxu0 0.0
    %4275 = vmatpush1.msra.mxu0 0.0
    %4276 = vmatprep.subr.mxu0 0.0
    %4277 = vmatpush1.msra.mxu0 0.0
    %4278 = vmatprep.subr.mxu0 0.0
    %4279 = vmatpush1.msra.mxu0 0.0
    %4280 = vmatprep.subr.mxu0 0.0
    %4281 = vmatpush1.msra.mxu0 0.0
    %4282 = vmatprep.subr.mxu0 0.0
    %4283 = vmatpush1.msra.mxu0 0.0
    %4284 = vmatprep.subr.mxu0 0.0
    %4285 = vmatpush1.msra.mxu0 0.0
    %4286 = vmatprep.subr.mxu0 0.0
    %4287 = vmatpush1.msra.mxu0 0.0
    %4288 = vmatprep.subr.mxu0 0.0
    %4289 = vmatpush1.msra.mxu0 0.0
    %4290 = vmatprep.subr.mxu0 0.0
    %4291 = vmatpush1.msra.mxu0 0.0
    %4292 = vmatprep.subr.mxu0 0.0
    %4293 = vmatpush1.msra.mxu0 0.0
    %4294 = vmatprep.subr.mxu0 0.0
    %4295 = vmatpush1.msra.mxu0 0.0
    %4296 = vmatprep.subr.mxu0 0.0
    %4297 = vmatpush1.msra.mxu0 0.0
    %4298 = vmatprep.subr.mxu0 0.0
    %4299 = vmatpush1.msra.mxu0 0.0
    %4300 = vmatprep.subr.mxu0 0.0
    %4301 = vmatpush1.msra.mxu0 0.0
    %4302 = vmatprep.subr.mxu0 0.0
    %4303 = vmatpush1.msra.mxu0 0.0
    %4304 = vmatprep.subr.mxu0 0.0
    %4305 = vmatpush1.msra.mxu0 0.0
    %4306 = vmatprep.subr.mxu0 0.0
    %4307 = vmatpush1.msra.mxu0 0.0
    %4308 = vmatprep.subr.mxu0 0.0
    %4309 = vmatpush1.msra.mxu0 0.0
    %4310 = vmatprep.subr.mxu0 0.0
    %4311 = vmatpush1.msra.mxu0 0.0
    %4312 = vmatprep.subr.mxu0 0.0
    %4313 = vmatpush1.msra.mxu0 0.0
    %4314 = vmatprep.subr.mxu0 0.0
    %4315 = vmatpush1.msra.mxu0 0.0
    %4316 = vmatprep.subr.mxu0 0.0
    %4317 = vmatpush1.msra.mxu0 0.0
    %4318 = vmatprep.subr.mxu0 0.0
    %4319 = vmatpush1.msra.mxu0 0.0
    %4320 = vmatprep.mubr.f32.mxu0 0.0
    %4321 = vmatmul.mubr.f32.gmra.mrb[0].mxu0 %v4254
    %v4322 = vpop.f32.mrb[0].mxu0
    %v4323 = vadd.f32 0.0, %v4322
    %v4324 = vpop.f32.mrb[0].mxu0
    %4325 = vdwg.mxu0
    %v4326 = vadd.f32 %v3713, %v4323
    %v4327 = vmul.f32 %v4326, 0.5
    %v4328 = vtanh.pop %v4327
    %v4329 = vadd.f32 %v4328, 1.0
    %v4330 = vmul.f32 %v4329, 0.5
    %v4331 = vtanh.pop %v4326
    %v4332 = vmul.f32 %v4330, %v4244
    %4334 = vrot.lane.b32.xlu0 %v4331, 64
    %v4335 = vpop.permute.xlu0 %4334
    %v4337 = vmul.f32 %v4330, %v4335
    %4339 = vrot.lane.b32.xlu0 %v4337, 32
    %v4340 = vpop.permute.xlu0 %4339
    %v4342 = vadd.f32 %v4332, %v4340
    %v4343 = vtanh.pop %v4342
    %4345 = vrot.lane.b32.xlu0 %v4343, 64
    %v4346 = vpop.permute.xlu0 %4345
    %v4348 = vmul.f32 %v4330, %v4346
    %4350 = vrot.lane.b32.xlu0 %v4348, 32
    %v4351 = vpop.permute.xlu0 %4350
    %v4352 = vsel %vm306, %v4351, 0
    %4354 = vmatprep.subr.mxu0 0.0
    %4355 = vmatpush1.msra.mxu0 %v3601
    %4356 = vmatprep.subr.mxu0 0.0
    %4357 = vmatpush1.msra.mxu0 %v3602
    %4358 = vmatprep.subr.mxu0 0.0
    %4359 = vmatpush1.msra.mxu0 %v3603
    %4360 = vmatprep.subr.mxu0 0.0
    %4361 = vmatpush1.msra.mxu0 %v3604
    %4362 = vmatprep.subr.mxu0 0.0
    %4363 = vmatpush1.msra.mxu0 0.0
    %4364 = vmatprep.subr.mxu0 0.0
    %4365 = vmatpush1.msra.mxu0 0.0
    %4366 = vmatprep.subr.mxu0 0.0
    %4367 = vmatpush1.msra.mxu0 0.0
    %4368 = vmatprep.subr.mxu0 0.0
    %4369 = vmatpush1.msra.mxu0 0.0
    %4370 = vmatprep.subr.mxu0 0.0
    %4371 = vmatpush1.msra.mxu0 0.0
    %4372 = vmatprep.subr.mxu0 0.0
    %4373 = vmatpush1.msra.mxu0 0.0
    %4374 = vmatprep.subr.mxu0 0.0
    %4375 = vmatpush1.msra.mxu0 0.0
    %4376 = vmatprep.subr.mxu0 0.0
    %4377 = vmatpush1.msra.mxu0 0.0
    %4378 = vmatprep.subr.mxu0 0.0
    %4379 = vmatpush1.msra.mxu0 0.0
    %4380 = vmatprep.subr.mxu0 0.0
    %4381 = vmatpush1.msra.mxu0 0.0
    %4382 = vmatprep.subr.mxu0 0.0
    %4383 = vmatpush1.msra.mxu0 0.0
    %4384 = vmatprep.subr.mxu0 0.0
    %4385 = vmatpush1.msra.mxu0 0.0
    %4386 = vmatprep.subr.mxu0 0.0
    %4387 = vmatpush1.msra.mxu0 0.0
    %4388 = vmatprep.subr.mxu0 0.0
    %4389 = vmatpush1.msra.mxu0 0.0
    %4390 = vmatprep.subr.mxu0 0.0
    %4391 = vmatpush1.msra.mxu0 0.0
    %4392 = vmatprep.subr.mxu0 0.0
    %4393 = vmatpush1.msra.mxu0 0.0
    %4394 = vmatprep.subr.mxu0 0.0
    %4395 = vmatpush1.msra.mxu0 0.0
    %4396 = vmatprep.subr.mxu0 0.0
    %4397 = vmatpush1.msra.mxu0 0.0
    %4398 = vmatprep.subr.mxu0 0.0
    %4399 = vmatpush1.msra.mxu0 0.0
    %4400 = vmatprep.subr.mxu0 0.0
    %4401 = vmatpush1.msra.mxu0 0.0
    %4402 = vmatprep.subr.mxu0 0.0
    %4403 = vmatpush1.msra.mxu0 0.0
    %4404 = vmatprep.subr.mxu0 0.0
    %4405 = vmatpush1.msra.mxu0 0.0
    %4406 = vmatprep.subr.mxu0 0.0
    %4407 = vmatpush1.msra.mxu0 0.0
    %4408 = vmatprep.subr.mxu0 0.0
    %4409 = vmatpush1.msra.mxu0 0.0
    %4410 = vmatprep.subr.mxu0 0.0
    %4411 = vmatpush1.msra.mxu0 0.0
    %4412 = vmatprep.subr.mxu0 0.0
    %4413 = vmatpush1.msra.mxu0 0.0
    %4414 = vmatprep.subr.mxu0 0.0
    %4415 = vmatpush1.msra.mxu0 0.0
    %4416 = vmatprep.subr.mxu0 0.0
    %4417 = vmatpush1.msra.mxu0 0.0
    %4418 = vmatprep.mubr.f32.mxu0 0.0
    %4419 = vmatmul.mubr.f32.gmra.mrb[0].mxu0 %v4352
    %v4420 = vpop.f32.mrb[0].mxu0
    %v4421 = vadd.f32 0.0, %v4420
    %v4422 = vpop.f32.mrb[0].mxu0
    %4423 = vdwg.mxu0
    %v4424 = vadd.f32 %v3718, %v4421
    %v4425 = vmul.f32 %v4424, 0.5
    %v4426 = vtanh.pop %v4425
    %v4427 = vadd.f32 %v4426, 1.0
    %v4428 = vmul.f32 %v4427, 0.5
    %v4429 = vtanh.pop %v4424
    %v4430 = vmul.f32 %v4428, %v4342
    %4432 = vrot.lane.b32.xlu0 %v4429, 64
    %v4433 = vpop.permute.xlu0 %4432
    %v4435 = vmul.f32 %v4428, %v4433
    %4437 = vrot.lane.b32.xlu0 %v4435, 32
    %v4438 = vpop.permute.xlu0 %4437
    %v4440 = vadd.f32 %v4430, %v4438
    %v4441 = vtanh.pop %v4440
    %4443 = vrot.lane.b32.xlu0 %v4441, 64
    %v4444 = vpop.permute.xlu0 %4443
    %v4446 = vmul.f32 %v4428, %v4444
    %4448 = vrot.lane.b32.xlu0 %v4446, 32
    %v4449 = vpop.permute.xlu0 %4448
    %v4450 = vsel %vm306, %v4449, 0
    %4452 = vmatprep.subr.mxu0 0.0
    %4453 = vmatpush1.msra.mxu0 %v3601
    %4454 = vmatprep.subr.mxu0 0.0
    %4455 = vmatpush1.msra.mxu0 %v3602
    %4456 = vmatprep.subr.mxu0 0.0
    %4457 = vmatpush1.msra.mxu0 %v3603
    %4458 = vmatprep.subr.mxu0 0.0
    %4459 = vmatpush1.msra.mxu0 %v3604
    %4460 = vmatprep.subr.mxu0 0.0
    %4461 = vmatpush1.msra.mxu0 0.0
    %4462 = vmatprep.subr.mxu0 0.0
    %4463 = vmatpush1.msra.mxu0 0.0
    %4464 = vmatprep.subr.mxu0 0.0
    %4465 = vmatpush1.msra.mxu0 0.0
    %4466 = vmatprep.subr.mxu0 0.0
    %4467 = vmatpush1.msra.mxu0 0.0
    %4468 = vmatprep.subr.mxu0 0.0
    %4469 = vmatpush1.msra.mxu0 0.0
    %4470 = vmatprep.subr.mxu0 0.0
    %4471 = vmatpush1.msra.mxu0 0.0
    %4472 = vmatprep.subr.mxu0 0.0
    %4473 = vmatpush1.msra.mxu0 0.0
    %4474 = vmatprep.subr.mxu0 0.0
    %4475 = vmatpush1.msra.mxu0 0.0
    %4476 = vmatprep.subr.mxu0 0.0
    %4477 = vmatpush1.msra.mxu0 0.0
    %4478 = vmatprep.subr.mxu0 0.0
    %4479 = vmatpush1.msra.mxu0 0.0
    %4480 = vmatprep.subr.mxu0 0.0
    %4481 = vmatpush1.msra.mxu0 0.0
    %4482 = vmatprep.subr.mxu0 0.0
    %4483 = vmatpush1.msra.mxu0 0.0
    %4484 = vmatprep.subr.mxu0 0.0
    %4485 = vmatpush1.msra.mxu0 0.0
    %4486 = vmatprep.subr.mxu0 0.0
    %4487 = vmatpush1.msra.mxu0 0.0
    %4488 = vmatprep.subr.mxu0 0.0
    %4489 = vmatpush1.msra.mxu0 0.0
    %4490 = vmatprep.subr.mxu0 0.0
    %4491 = vmatpush1.msra.mxu0 0.0
    %4492 = vmatprep.subr.mxu0 0.0
    %4493 = vmatpush1.msra.mxu0 0.0
    %4494 = vmatprep.subr.mxu0 0.0
    %4495 = vmatpush1.msra.mxu0 0.0
    %4496 = vmatprep.subr.mxu0 0.0
    %4497 = vmatpush1.msra.mxu0 0.0
    %4498 = vmatprep.subr.mxu0 0.0
    %4499 = vmatpush1.msra.mxu0 0.0
    %4500 = vmatprep.subr.mxu0 0.0
    %4501 = vmatpush1.msra.mxu0 0.0
    %4502 = vmatprep.subr.mxu0 0.0
    %4503 = vmatpush1.msra.mxu0 0.0
    %4504 = vmatprep.subr.mxu0 0.0
    %4505 = vmatpush1.msra.mxu0 0.0
    %4506 = vmatprep.subr.mxu0 0.0
    %4507 = vmatpush1.msra.mxu0 0.0
    %4508 = vmatprep.subr.mxu0 0.0
    %4509 = vmatpush1.msra.mxu0 0.0
    %4510 = vmatprep.subr.mxu0 0.0
    %4511 = vmatpush1.msra.mxu0 0.0
    %4512 = vmatprep.subr.mxu0 0.0
    %4513 = vmatpush1.msra.mxu0 0.0
    %4514 = vmatprep.subr.mxu0 0.0
    %4515 = vmatpush1.msra.mxu0 0.0
    %4516 = vmatprep.mubr.f32.mxu0 0.0
    %4517 = vmatmul.mubr.f32.gmra.mrb[0].mxu0 %v4450
    %v4518 = vpop.f32.mrb[0].mxu0
    %v4519 = vadd.f32 0.0, %v4518
    %v4520 = vpop.f32.mrb[0].mxu0
    %4521 = vdwg.mxu0
    %v4522 = vadd.f32 %v3723, %v4519
    %v4523 = vmul.f32 %v4522, 0.5
    %v4524 = vtanh.pop %v4523
    %v4525 = vadd.f32 %v4524, 1.0
    %v4526 = vmul.f32 %v4525, 0.5
    %v4527 = vtanh.pop %v4522
    %v4528 = vmul.f32 %v4526, %v4440
    %4530 = vrot.lane.b32.xlu0 %v4527, 64
    %v4531 = vpop.permute.xlu0 %4530
    %v4533 = vmul.f32 %v4526, %v4531
    %4535 = vrot.lane.b32.xlu0 %v4533, 32
    %v4536 = vpop.permute.xlu0 %4535
    %v4538 = vadd.f32 %v4528, %v4536
    %v4539 = vtanh.pop %v4538
    %4541 = vrot.lane.b32.xlu0 %v4539, 64
    %v4542 = vpop.permute.xlu0 %4541
    %v4544 = vmul.f32 %v4526, %v4542
    %4546 = vrot.lane.b32.xlu0 %v4544, 32
    %v4547 = vpop.permute.xlu0 %4546
    %v4548 = vsel %vm306, %v4547, 0
    %4550 = vmatprep.subr.mxu0 0.0
    %4551 = vmatpush1.msra.mxu0 %v3601
    %4552 = vmatprep.subr.mxu0 0.0
    %4553 = vmatpush1.msra.mxu0 %v3602
    %4554 = vmatprep.subr.mxu0 0.0
    %4555 = vmatpush1.msra.mxu0 %v3603
    %4556 = vmatprep.subr.mxu0 0.0
    %4557 = vmatpush1.msra.mxu0 %v3604
    %4558 = vmatprep.subr.mxu0 0.0
    %4559 = vmatpush1.msra.mxu0 0.0
    %4560 = vmatprep.subr.mxu0 0.0
    %4561 = vmatpush1.msra.mxu0 0.0
    %4562 = vmatprep.subr.mxu0 0.0
    %4563 = vmatpush1.msra.mxu0 0.0
    %4564 = vmatprep.subr.mxu0 0.0
    %4565 = vmatpush1.msra.mxu0 0.0
    %4566 = vmatprep.subr.mxu0 0.0
    %4567 = vmatpush1.msra.mxu0 0.0
    %4568 = vmatprep.subr.mxu0 0.0
    %4569 = vmatpush1.msra.mxu0 0.0
    %4570 = vmatprep.subr.mxu0 0.0
    %4571 = vmatpush1.msra.mxu0 0.0
    %4572 = vmatprep.subr.mxu0 0.0
    %4573 = vmatpush1.msra.mxu0 0.0
    %4574 = vmatprep.subr.mxu0 0.0
    %4575 = vmatpush1.msra.mxu0 0.0
    %4576 = vmatprep.subr.mxu0 0.0
    %4577 = vmatpush1.msra.mxu0 0.0
    %4578 = vmatprep.subr.mxu0 0.0
    %4579 = vmatpush1.msra.mxu0 0.0
    %4580 = vmatprep.subr.mxu0 0.0
    %4581 = vmatpush1.msra.mxu0 0.0
    %4582 = vmatprep.subr.mxu0 0.0
    %4583 = vmatpush1.msra.mxu0 0.0
    %4584 = vmatprep.subr.mxu0 0.0
    %4585 = vmatpush1.msra.mxu0 0.0
    %4586 = vmatprep.subr.mxu0 0.0
    %4587 = vmatpush1.msra.mxu0 0.0
    %4588 = vmatprep.subr.mxu0 0.0
    %4589 = vmatpush1.msra.mxu0 0.0
    %4590 = vmatprep.subr.mxu0 0.0
    %4591 = vmatpush1.msra.mxu0 0.0
    %4592 = vmatprep.subr.mxu0 0.0
    %4593 = vmatpush1.msra.mxu0 0.0
    %4594 = vmatprep.subr.mxu0 0.0
    %4595 = vmatpush1.msra.mxu0 0.0
    %4596 = vmatprep.subr.mxu0 0.0
    %4597 = vmatpush1.msra.mxu0 0.0
    %4598 = vmatprep.subr.mxu0 0.0
    %4599 = vmatpush1.msra.mxu0 0.0
    %4600 = vmatprep.subr.mxu0 0.0
    %4601 = vmatpush1.msra.mxu0 0.0
    %4602 = vmatprep.subr.mxu0 0.0
    %4603 = vmatpush1.msra.mxu0 0.0
    %4604 = vmatprep.subr.mxu0 0.0
    %4605 = vmatpush1.msra.mxu0 0.0
    %4606 = vmatprep.subr.mxu0 0.0
    %4607 = vmatpush1.msra.mxu0 0.0
    %4608 = vmatprep.subr.mxu0 0.0
    %4609 = vmatpush1.msra.mxu0 0.0
    %4610 = vmatprep.subr.mxu0 0.0
    %4611 = vmatpush1.msra.mxu0 0.0
    %4612 = vmatprep.subr.mxu0 0.0
    %4613 = vmatpush1.msra.mxu0 0.0
    %4614 = vmatprep.mubr.f32.mxu0 0.0
    %4615 = vmatmul.mubr.f32.gmra.mrb[0].mxu0 %v4548
    %v4616 = vpop.f32.mrb[0].mxu0
    %v4617 = vadd.f32 0.0, %v4616
    %v4618 = vpop.f32.mrb[0].mxu0
    %4619 = vdwg.mxu0
    %v4620 = vadd.f32 %v3728, %v4617
    %v4621 = vmul.f32 %v4620, 0.5
    %v4622 = vtanh.pop %v4621
    %v4623 = vadd.f32 %v4622, 1.0
    %v4624 = vmul.f32 %v4623, 0.5
    %v4625 = vtanh.pop %v4620
    %v4626 = vmul.f32 %v4624, %v4538
    %4628 = vrot.lane.b32.xlu0 %v4625, 64
    %v4629 = vpop.permute.xlu0 %4628
    %v4631 = vmul.f32 %v4624, %v4629
    %4633 = vrot.lane.b32.xlu0 %v4631, 32
    %v4634 = vpop.permute.xlu0 %4633
    %v4636 = vadd.f32 %v4626, %v4634
    %v4637 = vtanh.pop %v4636
    %4639 = vrot.lane.b32.xlu0 %v4637, 64
    %v4640 = vpop.permute.xlu0 %4639
    %v4642 = vmul.f32 %v4624, %v4640
    %4644 = vrot.lane.b32.xlu0 %v4642, 32
    %v4645 = vpop.permute.xlu0 %4644
    %v4646 = vsel %vm306, %v4645, 0
    %4648 = vmatprep.subr.mxu0 0.0
    %4649 = vmatpush1.msra.mxu0 %v3601
    %4650 = vmatprep.subr.mxu0 0.0
    %4651 = vmatpush1.msra.mxu0 %v3602
    %4652 = vmatprep.subr.mxu0 0.0
    %4653 = vmatpush1.msra.mxu0 %v3603
    %4654 = vmatprep.subr.mxu0 0.0
    %4655 = vmatpush1.msra.mxu0 %v3604
    %4656 = vmatprep.subr.mxu0 0.0
    %4657 = vmatpush1.msra.mxu0 0.0
    %4658 = vmatprep.subr.mxu0 0.0
    %4659 = vmatpush1.msra.mxu0 0.0
    %4660 = vmatprep.subr.mxu0 0.0
    %4661 = vmatpush1.msra.mxu0 0.0
    %4662 = vmatprep.subr.mxu0 0.0
    %4663 = vmatpush1.msra.mxu0 0.0
    %4664 = vmatprep.subr.mxu0 0.0
    %4665 = vmatpush1.msra.mxu0 0.0
    %4666 = vmatprep.subr.mxu0 0.0
    %4667 = vmatpush1.msra.mxu0 0.0
    %4668 = vmatprep.subr.mxu0 0.0
    %4669 = vmatpush1.msra.mxu0 0.0
    %4670 = vmatprep.subr.mxu0 0.0
    %4671 = vmatpush1.msra.mxu0 0.0
    %4672 = vmatprep.subr.mxu0 0.0
    %4673 = vmatpush1.msra.mxu0 0.0
    %4674 = vmatprep.subr.mxu0 0.0
    %4675 = vmatpush1.msra.mxu0 0.0
    %4676 = vmatprep.subr.mxu0 0.0
    %4677 = vmatpush1.msra.mxu0 0.0
    %4678 = vmatprep.subr.mxu0 0.0
    %4679 = vmatpush1.msra.mxu0 0.0
    %4680 = vmatprep.subr.mxu0 0.0
    %4681 = vmatpush1.msra.mxu0 0.0
    %4682 = vmatprep.subr.mxu0 0.0
    %4683 = vmatpush1.msra.mxu0 0.0
    %4684 = vmatprep.subr.mxu0 0.0
    %4685 = vmatpush1.msra.mxu0 0.0
    %4686 = vmatprep.subr.mxu0 0.0
    %4687 = vmatpush1.msra.mxu0 0.0
    %4688 = vmatprep.subr.mxu0 0.0
    %4689 = vmatpush1.msra.mxu0 0.0
    %4690 = vmatprep.subr.mxu0 0.0
    %4691 = vmatpush1.msra.mxu0 0.0
    %4692 = vmatprep.subr.mxu0 0.0
    %4693 = vmatpush1.msra.mxu0 0.0
    %4694 = vmatprep.subr.mxu0 0.0
    %4695 = vmatpush1.msra.mxu0 0.0
    %4696 = vmatprep.subr.mxu0 0.0
    %4697 = vmatpush1.msra.mxu0 0.0
    %4698 = vmatprep.subr.mxu0 0.0
    %4699 = vmatpush1.msra.mxu0 0.0
    %4700 = vmatprep.subr.mxu0 0.0
    %4701 = vmatpush1.msra.mxu0 0.0
    %4702 = vmatprep.subr.mxu0 0.0
    %4703 = vmatpush1.msra.mxu0 0.0
    %4704 = vmatprep.subr.mxu0 0.0
    %4705 = vmatpush1.msra.mxu0 0.0
    %4706 = vmatprep.subr.mxu0 0.0
    %4707 = vmatpush1.msra.mxu0 0.0
    %4708 = vmatprep.subr.mxu0 0.0
    %4709 = vmatpush1.msra.mxu0 0.0
    %4710 = vmatprep.subr.mxu0 0.0
    %4711 = vmatpush1.msra.mxu0 0.0
    %4712 = vmatprep.mubr.f32.mxu0 0.0
    %4713 = vmatmul.mubr.f32.gmra.mrb[0].mxu0 %v4646
    %v4714 = vpop.f32.mrb[0].mxu0
    %v4715 = vadd.f32 0.0, %v4714
    %v4716 = vpop.f32.mrb[0].mxu0
    %4717 = vdwg.mxu0
    %v4718 = vadd.f32 %v3733, %v4715
    %v4719 = vmul.f32 %v4718, 0.5
    %v4720 = vtanh.pop %v4719
    %v4721 = vadd.f32 %v4720, 1.0
    %v4722 = vmul.f32 %v4721, 0.5
    %v4723 = vtanh.pop %v4718
    %v4724 = vmul.f32 %v4722, %v4636
    %4726 = vrot.lane.b32.xlu0 %v4723, 64
    %v4727 = vpop.permute.xlu0 %4726
    %v4729 = vmul.f32 %v4722, %v4727
    %4731 = vrot.lane.b32.xlu0 %v4729, 32
    %v4732 = vpop.permute.xlu0 %4731
    %v4734 = vadd.f32 %v4724, %v4732
    %v4735 = vtanh.pop %v4734
    %4737 = vrot.lane.b32.xlu0 %v4735, 64
    %v4738 = vpop.permute.xlu0 %4737
    %v4740 = vmul.f32 %v4722, %v4738
    %4742 = vrot.lane.b32.xlu0 %v4740, 32
    %v4743 = vpop.permute.xlu0 %4742
    %v4744 = vsel %vm306, %v4743, 0
    %4746 = vmatprep.subr.mxu0 0.0
    %4747 = vmatpush1.msra.mxu0 %v3601
    %4748 = vmatprep.subr.mxu0 0.0
    %4749 = vmatpush1.msra.mxu0 %v3602
    %4750 = vmatprep.subr.mxu0 0.0
    %4751 = vmatpush1.msra.mxu0 %v3603
    %4752 = vmatprep.subr.mxu0 0.0
    %4753 = vmatpush1.msra.mxu0 %v3604
    %4754 = vmatprep.subr.mxu0 0.0
    %4755 = vmatpush1.msra.mxu0 0.0
    %4756 = vmatprep.subr.mxu0 0.0
    %4757 = vmatpush1.msra.mxu0 0.0
    %4758 = vmatprep.subr.mxu0 0.0
    %4759 = vmatpush1.msra.mxu0 0.0
    %4760 = vmatprep.subr.mxu0 0.0
    %4761 = vmatpush1.msra.mxu0 0.0
    %4762 = vmatprep.subr.mxu0 0.0
    %4763 = vmatpush1.msra.mxu0 0.0
    %4764 = vmatprep.subr.mxu0 0.0
    %4765 = vmatpush1.msra.mxu0 0.0
    %4766 = vmatprep.subr.mxu0 0.0
    %4767 = vmatpush1.msra.mxu0 0.0
    %4768 = vmatprep.subr.mxu0 0.0
    %4769 = vmatpush1.msra.mxu0 0.0
    %4770 = vmatprep.subr.mxu0 0.0
    %4771 = vmatpush1.msra.mxu0 0.0
    %4772 = vmatprep.subr.mxu0 0.0
    %4773 = vmatpush1.msra.mxu0 0.0
    %4774 = vmatprep.subr.mxu0 0.0
    %4775 = vmatpush1.msra.mxu0 0.0
    %4776 = vmatprep.subr.mxu0 0.0
    %4777 = vmatpush1.msra.mxu0 0.0
    %4778 = vmatprep.subr.mxu0 0.0
    %4779 = vmatpush1.msra.mxu0 0.0
    %4780 = vmatprep.subr.mxu0 0.0
    %4781 = vmatpush1.msra.mxu0 0.0
    %4782 = vmatprep.subr.mxu0 0.0
    %4783 = vmatpush1.msra.mxu0 0.0
    %4784 = vmatprep.subr.mxu0 0.0
    %4785 = vmatpush1.msra.mxu0 0.0
    %4786 = vmatprep.subr.mxu0 0.0
    %4787 = vmatpush1.msra.mxu0 0.0
    %4788 = vmatprep.subr.mxu0 0.0
    %4789 = vmatpush1.msra.mxu0 0.0
    %4790 = vmatprep.subr.mxu0 0.0
    %4791 = vmatpush1.msra.mxu0 0.0
    %4792 = vmatprep.subr.mxu0 0.0
    %4793 = vmatpush1.msra.mxu0 0.0
    %4794 = vmatprep.subr.mxu0 0.0
    %4795 = vmatpush1.msra.mxu0 0.0
    %4796 = vmatprep.subr.mxu0 0.0
    %4797 = vmatpush1.msra.mxu0 0.0
    %4798 = vmatprep.subr.mxu0 0.0
    %4799 = vmatpush1.msra.mxu0 0.0
    %4800 = vmatprep.subr.mxu0 0.0
    %4801 = vmatpush1.msra.mxu0 0.0
    %4802 = vmatprep.subr.mxu0 0.0
    %4803 = vmatpush1.msra.mxu0 0.0
    %4804 = vmatprep.subr.mxu0 0.0
    %4805 = vmatpush1.msra.mxu0 0.0
    %4806 = vmatprep.subr.mxu0 0.0
    %4807 = vmatpush1.msra.mxu0 0.0
    %4808 = vmatprep.subr.mxu0 0.0
    %4809 = vmatpush1.msra.mxu0 0.0
    %4810 = vmatprep.mubr.f32.mxu0 0.0
    %4811 = vmatmul.mubr.f32.gmra.mrb[0].mxu0 %v4744
    %v4812 = vpop.f32.mrb[0].mxu0
    %v4813 = vadd.f32 0.0, %v4812
    %v4814 = vpop.f32.mrb[0].mxu0
    %4815 = vdwg.mxu0
    %v4816 = vadd.f32 %v3738, %v4813
    %v4817 = vmul.f32 %v4816, 0.5
    %v4818 = vtanh.pop %v4817
    %v4819 = vadd.f32 %v4818, 1.0
    %v4820 = vmul.f32 %v4819, 0.5
    %v4821 = vtanh.pop %v4816
    %v4822 = vmul.f32 %v4820, %v4734
    %4824 = vrot.lane.b32.xlu0 %v4821, 64
    %v4825 = vpop.permute.xlu0 %4824
    %v4827 = vmul.f32 %v4820, %v4825
    %4829 = vrot.lane.b32.xlu0 %v4827, 32
    %v4830 = vpop.permute.xlu0 %4829
    %v4832 = vadd.f32 %v4822, %v4830
    %v4833 = vtanh.pop %v4832
    %4835 = vrot.lane.b32.xlu0 %v4833, 64
    %v4836 = vpop.permute.xlu0 %4835
    %v4838 = vmul.f32 %v4820, %v4836
    %4840 = vrot.lane.b32.xlu0 %v4838, 32
    %v4841 = vpop.permute.xlu0 %4840
    %v4842 = vsel %vm306, %v4841, 0
    %4844 = vmatprep.subr.mxu0 0.0
    %4845 = vmatpush1.msra.mxu0 %v3601
    %4846 = vmatprep.subr.mxu0 0.0
    %4847 = vmatpush1.msra.mxu0 %v3602
    %4848 = vmatprep.subr.mxu0 0.0
    %4849 = vmatpush1.msra.mxu0 %v3603
    %4850 = vmatprep.subr.mxu0 0.0
    %4851 = vmatpush1.msra.mxu0 %v3604
    %4852 = vmatprep.subr.mxu0 0.0
    %4853 = vmatpush1.msra.mxu0 0.0
    %4854 = vmatprep.subr.mxu0 0.0
    %4855 = vmatpush1.msra.mxu0 0.0
    %4856 = vmatprep.subr.mxu0 0.0
    %4857 = vmatpush1.msra.mxu0 0.0
    %4858 = vmatprep.subr.mxu0 0.0
    %4859 = vmatpush1.msra.mxu0 0.0
    %4860 = vmatprep.subr.mxu0 0.0
    %4861 = vmatpush1.msra.mxu0 0.0
    %4862 = vmatprep.subr.mxu0 0.0
    %4863 = vmatpush1.msra.mxu0 0.0
    %4864 = vmatprep.subr.mxu0 0.0
    %4865 = vmatpush1.msra.mxu0 0.0
    %4866 = vmatprep.subr.mxu0 0.0
    %4867 = vmatpush1.msra.mxu0 0.0
    %4868 = vmatprep.subr.mxu0 0.0
    %4869 = vmatpush1.msra.mxu0 0.0
    %4870 = vmatprep.subr.mxu0 0.0
    %4871 = vmatpush1.msra.mxu0 0.0
    %4872 = vmatprep.subr.mxu0 0.0
    %4873 = vmatpush1.msra.mxu0 0.0
    %4874 = vmatprep.subr.mxu0 0.0
    %4875 = vmatpush1.msra.mxu0 0.0
    %4876 = vmatprep.subr.mxu0 0.0
    %4877 = vmatpush1.msra.mxu0 0.0
    %4878 = vmatprep.subr.mxu0 0.0
    %4879 = vmatpush1.msra.mxu0 0.0
    %4880 = vmatprep.subr.mxu0 0.0
    %4881 = vmatpush1.msra.mxu0 0.0
    %4882 = vmatprep.subr.mxu0 0.0
    %4883 = vmatpush1.msra.mxu0 0.0
    %4884 = vmatprep.subr.mxu0 0.0
    %4885 = vmatpush1.msra.mxu0 0.0
    %4886 = vmatprep.subr.mxu0 0.0
    %4887 = vmatpush1.msra.mxu0 0.0
    %4888 = vmatprep.subr.mxu0 0.0
    %4889 = vmatpush1.msra.mxu0 0.0
    %4890 = vmatprep.subr.mxu0 0.0
    %4891 = vmatpush1.msra.mxu0 0.0
    %4892 = vmatprep.subr.mxu0 0.0
    %4893 = vmatpush1.msra.mxu0 0.0
    %4894 = vmatprep.subr.mxu0 0.0
    %4895 = vmatpush1.msra.mxu0 0.0
    %4896 = vmatprep.subr.mxu0 0.0
    %4897 = vmatpush1.msra.mxu0 0.0
    %4898 = vmatprep.subr.mxu0 0.0
    %4899 = vmatpush1.msra.mxu0 0.0
    %4900 = vmatprep.subr.mxu0 0.0
    %4901 = vmatpush1.msra.mxu0 0.0
    %4902 = vmatprep.subr.mxu0 0.0
    %4903 = vmatpush1.msra.mxu0 0.0
    %4904 = vmatprep.subr.mxu0 0.0
    %4905 = vmatpush1.msra.mxu0 0.0
    %4906 = vmatprep.subr.mxu0 0.0
    %4907 = vmatpush1.msra.mxu0 0.0
    %4908 = vmatprep.mubr.f32.mxu0 0.0
    %4909 = vmatmul.mubr.f32.gmra.mrb[0].mxu0 %v4842
    %v4910 = vpop.f32.mrb[0].mxu0
    %v4911 = vadd.f32 0.0, %v4910
    %v4912 = vpop.f32.mrb[0].mxu0
    %4913 = vdwg.mxu0
    %v4914 = vadd.f32 %v3743, %v4911
    %v4915 = vmul.f32 %v4914, 0.5
    %v4916 = vtanh.pop %v4915
    %v4917 = vadd.f32 %v4916, 1.0
    %v4918 = vmul.f32 %v4917, 0.5
    %v4919 = vtanh.pop %v4914
    %v4920 = vmul.f32 %v4918, %v4832
    %4922 = vrot.lane.b32.xlu0 %v4919, 64
    %v4923 = vpop.permute.xlu0 %4922
    %v4925 = vmul.f32 %v4918, %v4923
    %4927 = vrot.lane.b32.xlu0 %v4925, 32
    %v4928 = vpop.permute.xlu0 %4927
    %v4930 = vadd.f32 %v4920, %v4928
    %v4931 = vtanh.pop %v4930
    %4933 = vrot.lane.b32.xlu0 %v4931, 64
    %v4934 = vpop.permute.xlu0 %4933
    %v4936 = vmul.f32 %v4918, %v4934
    %4938 = vrot.lane.b32.xlu0 %v4936, 32
    %v4939 = vpop.permute.xlu0 %4938
    %v4940 = vsel %vm306, %v4939, 0
    %4942 = vmatprep.subr.mxu0 0.0
    %4943 = vmatpush1.msra.mxu0 %v3601
    %4944 = vmatprep.subr.mxu0 0.0
    %4945 = vmatpush1.msra.mxu0 %v3602
    %4946 = vmatprep.subr.mxu0 0.0
    %4947 = vmatpush1.msra.mxu0 %v3603
    %4948 = vmatprep.subr.mxu0 0.0
    %4949 = vmatpush1.msra.mxu0 %v3604
    %4950 = vmatprep.subr.mxu0 0.0
    %4951 = vmatpush1.msra.mxu0 0.0
    %4952 = vmatprep.subr.mxu0 0.0
    %4953 = vmatpush1.msra.mxu0 0.0
    %4954 = vmatprep.subr.mxu0 0.0
    %4955 = vmatpush1.msra.mxu0 0.0
    %4956 = vmatprep.subr.mxu0 0.0
    %4957 = vmatpush1.msra.mxu0 0.0
    %4958 = vmatprep.subr.mxu0 0.0
    %4959 = vmatpush1.msra.mxu0 0.0
    %4960 = vmatprep.subr.mxu0 0.0
    %4961 = vmatpush1.msra.mxu0 0.0
    %4962 = vmatprep.subr.mxu0 0.0
    %4963 = vmatpush1.msra.mxu0 0.0
    %4964 = vmatprep.subr.mxu0 0.0
    %4965 = vmatpush1.msra.mxu0 0.0
    %4966 = vmatprep.subr.mxu0 0.0
    %4967 = vmatpush1.msra.mxu0 0.0
    %4968 = vmatprep.subr.mxu0 0.0
    %4969 = vmatpush1.msra.mxu0 0.0
    %4970 = vmatprep.subr.mxu0 0.0
    %4971 = vmatpush1.msra.mxu0 0.0
    %4972 = vmatprep.subr.mxu0 0.0
    %4973 = vmatpush1.msra.mxu0 0.0
    %4974 = vmatprep.subr.mxu0 0.0
    %4975 = vmatpush1.msra.mxu0 0.0
    %4976 = vmatprep.subr.mxu0 0.0
    %4977 = vmatpush1.msra.mxu0 0.0
    %4978 = vmatprep.subr.mxu0 0.0
    %4979 = vmatpush1.msra.mxu0 0.0
    %4980 = vmatprep.subr.mxu0 0.0
    %4981 = vmatpush1.msra.mxu0 0.0
    %4982 = vmatprep.subr.mxu0 0.0
    %4983 = vmatpush1.msra.mxu0 0.0
    %4984 = vmatprep.subr.mxu0 0.0
    %4985 = vmatpush1.msra.mxu0 0.0
    %4986 = vmatprep.subr.mxu0 0.0
    %4987 = vmatpush1.msra.mxu0 0.0
    %4988 = vmatprep.subr.mxu0 0.0
    %4989 = vmatpush1.msra.mxu0 0.0
    %4990 = vmatprep.subr.mxu0 0.0
    %4991 = vmatpush1.msra.mxu0 0.0
    %4992 = vmatprep.subr.mxu0 0.0
    %4993 = vmatpush1.msra.mxu0 0.0
    %4994 = vmatprep.subr.mxu0 0.0
    %4995 = vmatpush1.msra.mxu0 0.0
    %4996 = vmatprep.subr.mxu0 0.0
    %4997 = vmatpush1.msra.mxu0 0.0
    %4998 = vmatprep.subr.mxu0 0.0
    %4999 = vmatpush1.msra.mxu0 0.0
    %5000 = vmatprep.subr.mxu0 0.0
    %5001 = vmatpush1.msra.mxu0 0.0
    %5002 = vmatprep.subr.mxu0 0.0
    %5003 = vmatpush1.msra.mxu0 0.0
    %5004 = vmatprep.subr.mxu0 0.0
    %5005 = vmatpush1.msra.mxu0 0.0
    %5006 = vmatprep.mubr.f32.mxu0 0.0
    %5007 = vmatmul.mubr.f32.gmra.mrb[0].mxu0 %v4940
    %v5008 = vpop.f32.mrb[0].mxu0
    %v5009 = vadd.f32 0.0, %v5008
    %v5010 = vpop.f32.mrb[0].mxu0
    %5011 = vdwg.mxu0
    %v5012 = vadd.f32 %v3748, %v5009
    %v5013 = vmul.f32 %v5012, 0.5
    %v5014 = vtanh.pop %v5013
    %v5015 = vadd.f32 %v5014, 1.0
    %v5016 = vmul.f32 %v5015, 0.5
    %v5017 = vtanh.pop %v5012
    %v5018 = vmul.f32 %v5016, %v4930
    %5020 = vrot.lane.b32.xlu0 %v5017, 64
    %v5021 = vpop.permute.xlu0 %5020
    %v5023 = vmul.f32 %v5016, %v5021
    %5025 = vrot.lane.b32.xlu0 %v5023, 32
    %v5026 = vpop.permute.xlu0 %5025
    %v5028 = vadd.f32 %v5018, %v5026
    %v5029 = vtanh.pop %v5028
    %5031 = vrot.lane.b32.xlu0 %v5029, 64
    %v5032 = vpop.permute.xlu0 %5031
    %v5034 = vmul.f32 %v5016, %v5032
    %5036 = vrot.lane.b32.xlu0 %v5034, 32
    %v5037 = vpop.permute.xlu0 %5036
    %v5038 = vsel %vm306, %v5037, 0
    %5040 = vmatprep.subr.mxu0 0.0
    %5041 = vmatpush1.msra.mxu0 %v3601
    %5042 = vmatprep.subr.mxu0 0.0
    %5043 = vmatpush1.msra.mxu0 %v3602
    %5044 = vmatprep.subr.mxu0 0.0
    %5045 = vmatpush1.msra.mxu0 %v3603
    %5046 = vmatprep.subr.mxu0 0.0
    %5047 = vmatpush1.msra.mxu0 %v3604
    %5048 = vmatprep.subr.mxu0 0.0
    %5049 = vmatpush1.msra.mxu0 0.0
    %5050 = vmatprep.subr.mxu0 0.0
    %5051 = vmatpush1.msra.mxu0 0.0
    %5052 = vmatprep.subr.mxu0 0.0
    %5053 = vmatpush1.msra.mxu0 0.0
    %5054 = vmatprep.subr.mxu0 0.0
    %5055 = vmatpush1.msra.mxu0 0.0
    %5056 = vmatprep.subr.mxu0 0.0
    %5057 = vmatpush1.msra.mxu0 0.0
    %5058 = vmatprep.subr.mxu0 0.0
    %5059 = vmatpush1.msra.mxu0 0.0
    %5060 = vmatprep.subr.mxu0 0.0
    %5061 = vmatpush1.msra.mxu0 0.0
    %5062 = vmatprep.subr.mxu0 0.0
    %5063 = vmatpush1.msra.mxu0 0.0
    %5064 = vmatprep.subr.mxu0 0.0
    %5065 = vmatpush1.msra.mxu0 0.0
    %5066 = vmatprep.subr.mxu0 0.0
    %5067 = vmatpush1.msra.mxu0 0.0
    %5068 = vmatprep.subr.mxu0 0.0
    %5069 = vmatpush1.msra.mxu0 0.0
    %5070 = vmatprep.subr.mxu0 0.0
    %5071 = vmatpush1.msra.mxu0 0.0
    %5072 = vmatprep.subr.mxu0 0.0
    %5073 = vmatpush1.msra.mxu0 0.0
    %5074 = vmatprep.subr.mxu0 0.0
    %5075 = vmatpush1.msra.mxu0 0.0
    %5076 = vmatprep.subr.mxu0 0.0
    %5077 = vmatpush1.msra.mxu0 0.0
    %5078 = vmatprep.subr.mxu0 0.0
    %5079 = vmatpush1.msra.mxu0 0.0
    %5080 = vmatprep.subr.mxu0 0.0
    %5081 = vmatpush1.msra.mxu0 0.0
    %5082 = vmatprep.subr.mxu0 0.0
    %5083 = vmatpush1.msra.mxu0 0.0
    %5084 = vmatprep.subr.mxu0 0.0
    %5085 = vmatpush1.msra.mxu0 0.0
    %5086 = vmatprep.subr.mxu0 0.0
    %5087 = vmatpush1.msra.mxu0 0.0
    %5088 = vmatprep.subr.mxu0 0.0
    %5089 = vmatpush1.msra.mxu0 0.0
    %5090 = vmatprep.subr.mxu0 0.0
    %5091 = vmatpush1.msra.mxu0 0.0
    %5092 = vmatprep.subr.mxu0 0.0
    %5093 = vmatpush1.msra.mxu0 0.0
    %5094 = vmatprep.subr.mxu0 0.0
    %5095 = vmatpush1.msra.mxu0 0.0
    %5096 = vmatprep.subr.mxu0 0.0
    %5097 = vmatpush1.msra.mxu0 0.0
    %5098 = vmatprep.subr.mxu0 0.0
    %5099 = vmatpush1.msra.mxu0 0.0
    %5100 = vmatprep.subr.mxu0 0.0
    %5101 = vmatpush1.msra.mxu0 0.0
    %5102 = vmatprep.subr.mxu0 0.0
    %5103 = vmatpush1.msra.mxu0 0.0
    %5104 = vmatprep.mubr.f32.mxu0 0.0
    %5105 = vmatmul.mubr.f32.gmra.mrb[0].mxu0 %v5038
    %v5106 = vpop.f32.mrb[0].mxu0
    %v5107 = vadd.f32 0.0, %v5106
    %v5108 = vpop.f32.mrb[0].mxu0
    %5109 = vdwg.mxu0
    %v5110 = vadd.f32 %v3753, %v5107
    %v5111 = vmul.f32 %v5110, 0.5
    %v5112 = vtanh.pop %v5111
    %v5113 = vadd.f32 %v5112, 1.0
    %v5114 = vmul.f32 %v5113, 0.5
    %v5115 = vtanh.pop %v5110
    %v5116 = vmul.f32 %v5114, %v5028
    %5118 = vrot.lane.b32.xlu0 %v5115, 64
    %v5119 = vpop.permute.xlu0 %5118
    %v5121 = vmul.f32 %v5114, %v5119
    %5123 = vrot.lane.b32.xlu0 %v5121, 32
    %v5124 = vpop.permute.xlu0 %5123
    %v5126 = vadd.f32 %v5116, %v5124
    %v5127 = vtanh.pop %v5126
    %5129 = vrot.lane.b32.xlu0 %v5127, 64
    %v5130 = vpop.permute.xlu0 %5129
    %v5132 = vmul.f32 %v5114, %v5130
    %5134 = vrot.lane.b32.xlu0 %v5132, 32
    %v5135 = vpop.permute.xlu0 %5134
    %v5136 = vsel %vm306, %v5135, 0
    %5138 = vmatprep.subr.mxu0 0.0
    %5139 = vmatpush1.msra.mxu0 %v3601
    %5140 = vmatprep.subr.mxu0 0.0
    %5141 = vmatpush1.msra.mxu0 %v3602
    %5142 = vmatprep.subr.mxu0 0.0
    %5143 = vmatpush1.msra.mxu0 %v3603
    %5144 = vmatprep.subr.mxu0 0.0
    %5145 = vmatpush1.msra.mxu0 %v3604
    %5146 = vmatprep.subr.mxu0 0.0
    %5147 = vmatpush1.msra.mxu0 0.0
    %5148 = vmatprep.subr.mxu0 0.0
    %5149 = vmatpush1.msra.mxu0 0.0
    %5150 = vmatprep.subr.mxu0 0.0
    %5151 = vmatpush1.msra.mxu0 0.0
    %5152 = vmatprep.subr.mxu0 0.0
    %5153 = vmatpush1.msra.mxu0 0.0
    %5154 = vmatprep.subr.mxu0 0.0
    %5155 = vmatpush1.msra.mxu0 0.0
    %5156 = vmatprep.subr.mxu0 0.0
    %5157 = vmatpush1.msra.mxu0 0.0
    %5158 = vmatprep.subr.mxu0 0.0
    %5159 = vmatpush1.msra.mxu0 0.0
    %5160 = vmatprep.subr.mxu0 0.0
    %5161 = vmatpush1.msra.mxu0 0.0
    %5162 = vmatprep.subr.mxu0 0.0
    %5163 = vmatpush1.msra.mxu0 0.0
    %5164 = vmatprep.subr.mxu0 0.0
    %5165 = vmatpush1.msra.mxu0 0.0
    %5166 = vmatprep.subr.mxu0 0.0
    %5167 = vmatpush1.msra.mxu0 0.0
    %5168 = vmatprep.subr.mxu0 0.0
    %5169 = vmatpush1.msra.mxu0 0.0
    %5170 = vmatprep.subr.mxu0 0.0
    %5171 = vmatpush1.msra.mxu0 0.0
    %5172 = vmatprep.subr.mxu0 0.0
    %5173 = vmatpush1.msra.mxu0 0.0
    %5174 = vmatprep.subr.mxu0 0.0
    %5175 = vmatpush1.msra.mxu0 0.0
    %5176 = vmatprep.subr.mxu0 0.0
    %5177 = vmatpush1.msra.mxu0 0.0
    %5178 = vmatprep.subr.mxu0 0.0
    %5179 = vmatpush1.msra.mxu0 0.0
    %5180 = vmatprep.subr.mxu0 0.0
    %5181 = vmatpush1.msra.mxu0 0.0
    %5182 = vmatprep.subr.mxu0 0.0
    %5183 = vmatpush1.msra.mxu0 0.0
    %5184 = vmatprep.subr.mxu0 0.0
    %5185 = vmatpush1.msra.mxu0 0.0
    %5186 = vmatprep.subr.mxu0 0.0
    %5187 = vmatpush1.msra.mxu0 0.0
    %5188 = vmatprep.subr.mxu0 0.0
    %5189 = vmatpush1.msra.mxu0 0.0
    %5190 = vmatprep.subr.mxu0 0.0
    %5191 = vmatpush1.msra.mxu0 0.0
    %5192 = vmatprep.subr.mxu0 0.0
    %5193 = vmatpush1.msra.mxu0 0.0
    %5194 = vmatprep.subr.mxu0 0.0
    %5195 = vmatpush1.msra.mxu0 0.0
    %5196 = vmatprep.subr.mxu0 0.0
    %5197 = vmatpush1.msra.mxu0 0.0
    %5198 = vmatprep.subr.mxu0 0.0
    %5199 = vmatpush1.msra.mxu0 0.0
    %5200 = vmatprep.subr.mxu0 0.0
    %5201 = vmatpush1.msra.mxu0 0.0
    %5202 = vmatprep.mubr.f32.mxu0 0.0
    %5203 = vmatmul.mubr.f32.gmra.mrb[0].mxu0 %v5136
    %v5204 = vpop.f32.mrb[0].mxu0
    %v5205 = vadd.f32 0.0, %v5204
    %v5206 = vpop.f32.mrb[0].mxu0
    %5207 = vdwg.mxu0
    %v5208 = vadd.f32 %v3758, %v5205
    %v5209 = vmul.f32 %v5208, 0.5
    %v5210 = vtanh.pop %v5209
    %v5211 = vadd.f32 %v5210, 1.0
    %v5212 = vmul.f32 %v5211, 0.5
    %v5213 = vtanh.pop %v5208
    %v5214 = vmul.f32 %v5212, %v5126
    %5216 = vrot.lane.b32.xlu0 %v5213, 64
    %v5217 = vpop.permute.xlu0 %5216
    %v5219 = vmul.f32 %v5212, %v5217
    %5221 = vrot.lane.b32.xlu0 %v5219, 32
    %v5222 = vpop.permute.xlu0 %5221
    %v5224 = vadd.f32 %v5214, %v5222
    %v5225 = vtanh.pop %v5224
    %5227 = vrot.lane.b32.xlu0 %v5225, 64
    %v5228 = vpop.permute.xlu0 %5227
    %v5230 = vmul.f32 %v5212, %v5228
    %5232 = vrot.lane.b32.xlu0 %v5230, 32
    %v5233 = vpop.permute.xlu0 %5232
    %v5234 = vsel %vm306, %v5233, 0
    %5236 = vmatprep.subr.mxu0 0.0
    %5237 = vmatpush1.msra.mxu0 %v3601
    %5238 = vmatprep.subr.mxu0 0.0
    %5239 = vmatpush1.msra.mxu0 %v3602
    %5240 = vmatprep.subr.mxu0 0.0
    %5241 = vmatpush1.msra.mxu0 %v3603
    %5242 = vmatprep.subr.mxu0 0.0
    %5243 = vmatpush1.msra.mxu0 %v3604
    %5244 = vmatprep.subr.mxu0 0.0
    %5245 = vmatpush1.msra.mxu0 0.0
    %5246 = vmatprep.subr.mxu0 0.0
    %5247 = vmatpush1.msra.mxu0 0.0
    %5248 = vmatprep.subr.mxu0 0.0
    %5249 = vmatpush1.msra.mxu0 0.0
    %5250 = vmatprep.subr.mxu0 0.0
    %5251 = vmatpush1.msra.mxu0 0.0
    %5252 = vmatprep.subr.mxu0 0.0
    %5253 = vmatpush1.msra.mxu0 0.0
    %5254 = vmatprep.subr.mxu0 0.0
    %5255 = vmatpush1.msra.mxu0 0.0
    %5256 = vmatprep.subr.mxu0 0.0
    %5257 = vmatpush1.msra.mxu0 0.0
    %5258 = vmatprep.subr.mxu0 0.0
    %5259 = vmatpush1.msra.mxu0 0.0
    %5260 = vmatprep.subr.mxu0 0.0
    %5261 = vmatpush1.msra.mxu0 0.0
    %5262 = vmatprep.subr.mxu0 0.0
    %5263 = vmatpush1.msra.mxu0 0.0
    %5264 = vmatprep.subr.mxu0 0.0
    %5265 = vmatpush1.msra.mxu0 0.0
    %5266 = vmatprep.subr.mxu0 0.0
    %5267 = vmatpush1.msra.mxu0 0.0
    %5268 = vmatprep.subr.mxu0 0.0
    %5269 = vmatpush1.msra.mxu0 0.0
    %5270 = vmatprep.subr.mxu0 0.0
    %5271 = vmatpush1.msra.mxu0 0.0
    %5272 = vmatprep.subr.mxu0 0.0
    %5273 = vmatpush1.msra.mxu0 0.0
    %5274 = vmatprep.subr.mxu0 0.0
    %5275 = vmatpush1.msra.mxu0 0.0
    %5276 = vmatprep.subr.mxu0 0.0
    %5277 = vmatpush1.msra.mxu0 0.0
    %5278 = vmatprep.subr.mxu0 0.0
    %5279 = vmatpush1.msra.mxu0 0.0
    %5280 = vmatprep.subr.mxu0 0.0
    %5281 = vmatpush1.msra.mxu0 0.0
    %5282 = vmatprep.subr.mxu0 0.0
    %5283 = vmatpush1.msra.mxu0 0.0
    %5284 = vmatprep.subr.mxu0 0.0
    %5285 = vmatpush1.msra.mxu0 0.0
    %5286 = vmatprep.subr.mxu0 0.0
    %5287 = vmatpush1.msra.mxu0 0.0
    %5288 = vmatprep.subr.mxu0 0.0
    %5289 = vmatpush1.msra.mxu0 0.0
    %5290 = vmatprep.subr.mxu0 0.0
    %5291 = vmatpush1.msra.mxu0 0.0
    %5292 = vmatprep.subr.mxu0 0.0
    %5293 = vmatpush1.msra.mxu0 0.0
    %5294 = vmatprep.subr.mxu0 0.0
    %5295 = vmatpush1.msra.mxu0 0.0
    %5296 = vmatprep.subr.mxu0 0.0
    %5297 = vmatpush1.msra.mxu0 0.0
    %5298 = vmatprep.subr.mxu0 0.0
    %5299 = vmatpush1.msra.mxu0 0.0
    %5300 = vmatprep.mubr.f32.mxu0 0.0
    %5301 = vmatmul.mubr.f32.gmra.mrb[0].mxu0 %v5234
    %v5302 = vpop.f32.mrb[0].mxu0
    %v5303 = vadd.f32 0.0, %v5302
    %v5304 = vpop.f32.mrb[0].mxu0
    %5305 = vdwg.mxu0
    %v5306 = vadd.f32 %v3763, %v5303
    %v5307 = vmul.f32 %v5306, 0.5
    %v5308 = vtanh.pop %v5307
    %v5309 = vadd.f32 %v5308, 1.0
    %v5310 = vmul.f32 %v5309, 0.5
    %v5311 = vtanh.pop %v5306
    %v5312 = vmul.f32 %v5310, %v5224
    %5314 = vrot.lane.b32.xlu0 %v5311, 64
    %v5315 = vpop.permute.xlu0 %5314
    %v5317 = vmul.f32 %v5310, %v5315
    %5319 = vrot.lane.b32.xlu0 %v5317, 32
    %v5320 = vpop.permute.xlu0 %5319
    %v5322 = vadd.f32 %v5312, %v5320
    %v5323 = vtanh.pop %v5322
    %5325 = vrot.lane.b32.xlu0 %v5323, 64
    %v5326 = vpop.permute.xlu0 %5325
    %v5328 = vmul.f32 %v5310, %v5326
    %5330 = vrot.lane.b32.xlu0 %v3956, 64
    %v5331 = vpop.permute.xlu0 %5330
    %5333 = vrot.lane.b32.xlu0 %v4054, 96
    %v5334 = vpop.permute.xlu0 %5333
    %5337 = vrot.lane.b32.xlu0 %v4348, 64
    %v5338 = vpop.permute.xlu0 %5337
    %5340 = vrot.lane.b32.xlu0 %v4446, 96
    %v5341 = vpop.permute.xlu0 %5340
    %5344 = vrot.lane.b32.xlu0 %v4740, 64
    %v5345 = vpop.permute.xlu0 %5344
    %5347 = vrot.lane.b32.xlu0 %v4838, 96
    %v5348 = vpop.permute.xlu0 %5347
    %5351 = vrot.lane.b32.xlu0 %v5132, 64
    %v5352 = vpop.permute.xlu0 %5351
    %5354 = vrot.lane.b32.xlu0 %v5230, 96
    %v5355 = vpop.permute.xlu0 %5354
    %v5357 = vsel %vm306, %v3861, %v5331
    %vm5358 = vcmask 523264
    %v5359 = vsel %vm5358, %v5357, %v5334
    %vm5360 = vcmask 785408
    %v5361 = vsel %vm5360, %v5359, %v4152
    %v5362 = vsel %vm306, %v4253, %v5338
    %v5363 = vsel %vm5358, %v5362, %v5341
    %v5364 = vsel %vm5360, %v5363, %v4544
    %v5365 = vsel %vm306, %v4645, %v5345
    %v5366 = vsel %vm5358, %v5365, %v5348
    %v5367 = vsel %vm5360, %v5366, %v4936
    %v5368 = vsel %vm306, %v5037, %v5352
    %v5369 = vsel %vm5358, %v5368, %v5355
    %v5370 = vsel %vm5360, %v5369, %v5328
    %v5371 = vld [vmem:[#allocation7] sm:$0xff]
    %v5372 = vld [vmem:[#allocation7 + $0x8] sm:$0xff]
    %v5373 = vld [vmem:[#allocation7 + $0x10] sm:$0xff]
    %v5374 = vld [vmem:[#allocation7 + $0x18] sm:$0xff]
    %v5375 = vld [vmem:[#allocation7 + $0x20] sm:$0xff]
    %v5376 = vld [vmem:[#allocation7 + $0x28] sm:$0xff]
    %v5377 = vld [vmem:[#allocation7 + $0x30] sm:$0xff]
    %v5378 = vld [vmem:[#allocation7 + $0x38] sm:$0xff]
    %v5379 = vld [vmem:[#allocation7 + $0x40] sm:$0xff]
    %v5380 = vld [vmem:[#allocation7 + $0x48] sm:$0xff]
    %v5381 = vld [vmem:[#allocation7 + $0x50] sm:$0xff]
    %v5382 = vld [vmem:[#allocation7 + $0x58] sm:$0xff]
    %v5383 = vld [vmem:[#allocation7 + $0x60] sm:$0xff]
    %v5384 = vld [vmem:[#allocation7 + $0x68] sm:$0xff]
    %v5385 = vld [vmem:[#allocation7 + $0x70] sm:$0xff]
    %v5386 = vld [vmem:[#allocation7 + $0x78] sm:$0xff]
    %v5387 = vld [vmem:[#allocation7 + $0x80] sm:$0xff]
    %v5388 = vld [vmem:[#allocation7 + $0x88] sm:$0xff]
    %v5389 = vld [vmem:[#allocation7 + $0x90] sm:$0xff]
    %v5390 = vld [vmem:[#allocation7 + $0x98] sm:$0xff]
    %v5391 = vld [vmem:[#allocation7 + $0xa0] sm:$0xff]
    %v5392 = vld [vmem:[#allocation7 + $0xa8] sm:$0xff]
    %v5393 = vld [vmem:[#allocation7 + $0xb0] sm:$0xff]
    %v5394 = vld [vmem:[#allocation7 + $0xb8] sm:$0xff]
    %v5395 = vld [vmem:[#allocation7 + $0xc0] sm:$0xff]
    %v5396 = vld [vmem:[#allocation7 + $0xc8] sm:$0xff]
    %v5397 = vld [vmem:[#allocation7 + $0xd0] sm:$0xff]
    %v5398 = vld [vmem:[#allocation7 + $0xd8] sm:$0xff]
    %v5399 = vld [vmem:[#allocation7 + $0xe0] sm:$0xff]
    %v5400 = vld [vmem:[#allocation7 + $0xe8] sm:$0xff]
    %v5401 = vld [vmem:[#allocation7 + $0xf0] sm:$0xff]
    %v5402 = vld [vmem:[#allocation7 + $0xf8] sm:$0xff]
    %v5403 = vld [vmem:[#allocation7 + $0x100] sm:$0xff]
    %v5404 = vld [vmem:[#allocation7 + $0x108] sm:$0xff]
    %v5405 = vld [vmem:[#allocation7 + $0x110] sm:$0xff]
    %v5406 = vld [vmem:[#allocation7 + $0x118] sm:$0xff]
    %v5407 = vld [vmem:[#allocation7 + $0x120] sm:$0xff]
    %v5408 = vld [vmem:[#allocation7 + $0x128] sm:$0xff]
    %v5409 = vld [vmem:[#allocation7 + $0x130] sm:$0xff]
    %v5410 = vld [vmem:[#allocation7 + $0x138] sm:$0xff]
    %v5411 = vld [vmem:[#allocation7 + $0x140] sm:$0xff]
    %v5412 = vld [vmem:[#allocation7 + $0x148] sm:$0xff]
    %v5413 = vld [vmem:[#allocation7 + $0x150] sm:$0xff]
    %v5414 = vld [vmem:[#allocation7 + $0x158] sm:$0xff]
    %v5415 = vld [vmem:[#allocation7 + $0x160] sm:$0xff]
    %v5416 = vld [vmem:[#allocation7 + $0x168] sm:$0xff]
    %v5417 = vld [vmem:[#allocation7 + $0x170] sm:$0xff]
    %v5418 = vld [vmem:[#allocation7 + $0x178] sm:$0xff]
    %v5419 = vld [vmem:[#allocation7 + $0x180] sm:$0xff]
    %v5420 = vld [vmem:[#allocation7 + $0x188] sm:$0xff]
    %v5421 = vld [vmem:[#allocation7 + $0x190] sm:$0xff]
    %v5422 = vld [vmem:[#allocation7 + $0x198] sm:$0xff]
    %v5423 = vld [vmem:[#allocation7 + $0x1a0] sm:$0xff]
    %v5424 = vld [vmem:[#allocation7 + $0x1a8] sm:$0xff]
    %v5425 = vld [vmem:[#allocation7 + $0x1b0] sm:$0xff]
    %v5426 = vld [vmem:[#allocation7 + $0x1b8] sm:$0xff]
    %v5427 = vld [vmem:[#allocation7 + $0x1c0] sm:$0xff]
    %v5428 = vld [vmem:[#allocation7 + $0x1c8] sm:$0xff]
    %v5429 = vld [vmem:[#allocation7 + $0x1d0] sm:$0xff]
    %v5430 = vld [vmem:[#allocation7 + $0x1d8] sm:$0xff]
    %v5431 = vld [vmem:[#allocation7 + $0x1e0] sm:$0xff]
    %v5432 = vld [vmem:[#allocation7 + $0x1e8] sm:$0xff]
    %v5433 = vld [vmem:[#allocation7 + $0x1f0] sm:$0xff]
    %v5434 = vld [vmem:[#allocation7 + $0x1f8] sm:$0xff]
    %v5435 = vld [vmem:[#allocation7 + $0x200] sm:$0xff]
    %v5436 = vld [vmem:[#allocation7 + $0x208] sm:$0xff]
    %v5437 = vld [vmem:[#allocation7 + $0x210] sm:$0xff]
    %v5438 = vld [vmem:[#allocation7 + $0x218] sm:$0xff]
    %v5439 = vld [vmem:[#allocation7 + $0x220] sm:$0xff]
    %v5440 = vld [vmem:[#allocation7 + $0x228] sm:$0xff]
    %v5441 = vld [vmem:[#allocation7 + $0x230] sm:$0xff]
    %v5442 = vld [vmem:[#allocation7 + $0x238] sm:$0xff]
    %v5443 = vld [vmem:[#allocation7 + $0x240] sm:$0xff]
    %v5444 = vld [vmem:[#allocation7 + $0x248] sm:$0xff]
    %v5445 = vld [vmem:[#allocation7 + $0x250] sm:$0xff]
    %v5446 = vld [vmem:[#allocation7 + $0x258] sm:$0xff]
    %v5447 = vld [vmem:[#allocation7 + $0x260] sm:$0xff]
    %v5448 = vld [vmem:[#allocation7 + $0x268] sm:$0xff]
    %v5449 = vld [vmem:[#allocation7 + $0x270] sm:$0xff]
    %v5450 = vld [vmem:[#allocation7 + $0x278] sm:$0xff]
    %v5451 = vld [vmem:[#allocation7 + $0x280] sm:$0xff]
    %v5452 = vld [vmem:[#allocation7 + $0x288] sm:$0xff]
    %v5453 = vld [vmem:[#allocation7 + $0x290] sm:$0xff]
    %v5454 = vld [vmem:[#allocation7 + $0x298] sm:$0xff]
    %v5455 = vld [vmem:[#allocation7 + $0x2a0] sm:$0xff]
    %v5456 = vld [vmem:[#allocation7 + $0x2a8] sm:$0xff]
    %v5457 = vld [vmem:[#allocation7 + $0x2b0] sm:$0xff]
    %v5458 = vld [vmem:[#allocation7 + $0x2b8] sm:$0xff]
    %v5459 = vld [vmem:[#allocation7 + $0x2c0] sm:$0xff]
    %v5460 = vld [vmem:[#allocation7 + $0x2c8] sm:$0xff]
    %v5461 = vld [vmem:[#allocation7 + $0x2d0] sm:$0xff]
    %v5462 = vld [vmem:[#allocation7 + $0x2d8] sm:$0xff]
    %v5463 = vld [vmem:[#allocation7 + $0x2e0] sm:$0xff]
    %v5464 = vld [vmem:[#allocation7 + $0x2e8] sm:$0xff]
    %v5465 = vld [vmem:[#allocation7 + $0x2f0] sm:$0xff]
    %v5466 = vld [vmem:[#allocation7 + $0x2f8] sm:$0xff]
    %v5467 = vld [vmem:[#allocation7 + $0x300] sm:$0xff]
    %v5468 = vld [vmem:[#allocation7 + $0x308] sm:$0xff]
    %v5469 = vld [vmem:[#allocation7 + $0x310] sm:$0xff]
    %v5470 = vld [vmem:[#allocation7 + $0x318] sm:$0xff]
    %v5471 = vld [vmem:[#allocation7 + $0x320] sm:$0xff]
    %v5472 = vld [vmem:[#allocation7 + $0x328] sm:$0xff]
    %v5473 = vld [vmem:[#allocation7 + $0x330] sm:$0xff]
    %v5474 = vld [vmem:[#allocation7 + $0x338] sm:$0xff]
    %v5475 = vld [vmem:[#allocation7 + $0x340] sm:$0xff]
    %v5476 = vld [vmem:[#allocation7 + $0x348] sm:$0xff]
    %v5477 = vld [vmem:[#allocation7 + $0x350] sm:$0xff]
    %v5478 = vld [vmem:[#allocation7 + $0x358] sm:$0xff]
    %v5479 = vld [vmem:[#allocation7 + $0x360] sm:$0xff]
    %v5480 = vld [vmem:[#allocation7 + $0x368] sm:$0xff]
    %v5481 = vld [vmem:[#allocation7 + $0x370] sm:$0xff]
    %v5482 = vld [vmem:[#allocation7 + $0x378] sm:$0xff]
    %v5483 = vld [vmem:[#allocation7 + $0x380] sm:$0xff]
    %v5484 = vld [vmem:[#allocation7 + $0x388] sm:$0xff]
    %v5485 = vld [vmem:[#allocation7 + $0x390] sm:$0xff]
    %v5486 = vld [vmem:[#allocation7 + $0x398] sm:$0xff]
    %v5487 = vld [vmem:[#allocation7 + $0x3a0] sm:$0xff]
    %v5488 = vld [vmem:[#allocation7 + $0x3a8] sm:$0xff]
    %v5489 = vld [vmem:[#allocation7 + $0x3b0] sm:$0xff]
    %v5490 = vld [vmem:[#allocation7 + $0x3b8] sm:$0xff]
    %v5491 = vld [vmem:[#allocation7 + $0x3c0] sm:$0xff]
    %v5492 = vld [vmem:[#allocation7 + $0x3c8] sm:$0xff]
    %v5493 = vld [vmem:[#allocation7 + $0x3d0] sm:$0xff]
    %v5494 = vld [vmem:[#allocation7 + $0x3d8] sm:$0xff]
    %v5495 = vld [vmem:[#allocation7 + $0x3e0] sm:$0xff]
    %v5496 = vld [vmem:[#allocation7 + $0x3e8] sm:$0xff]
    %v5497 = vld [vmem:[#allocation7 + $0x3f0] sm:$0xff]
    %v5498 = vld [vmem:[#allocation7 + $0x3f8] sm:$0xff]
    %v5499 = vld [vmem:[#allocation7 + $0x400] sm:$0xff]
    %v5500 = vld [vmem:[#allocation7 + $0x408] sm:$0xff]
    %v5501 = vld [vmem:[#allocation7 + $0x410] sm:$0xff]
    %v5502 = vld [vmem:[#allocation7 + $0x418] sm:$0xff]
    %v5503 = vld [vmem:[#allocation7 + $0x420] sm:$0xff]
    %v5504 = vld [vmem:[#allocation7 + $0x428] sm:$0xff]
    %v5505 = vld [vmem:[#allocation7 + $0x430] sm:$0xff]
    %v5506 = vld [vmem:[#allocation7 + $0x438] sm:$0xff]
    %v5507 = vld [vmem:[#allocation7 + $0x440] sm:$0xff]
    %v5508 = vld [vmem:[#allocation7 + $0x448] sm:$0xff]
    %v5509 = vld [vmem:[#allocation7 + $0x450] sm:$0xff]
    %v5510 = vld [vmem:[#allocation7 + $0x458] sm:$0xff]
    %v5511 = vld [vmem:[#allocation7 + $0x460] sm:$0xff]
    %v5512 = vld [vmem:[#allocation7 + $0x468] sm:$0xff]
    %v5513 = vld [vmem:[#allocation7 + $0x470] sm:$0xff]
    %v5514 = vld [vmem:[#allocation7 + $0x478] sm:$0xff]
    %v5515 = vld [vmem:[#allocation7 + $0x480] sm:$0xff]
    %v5516 = vld [vmem:[#allocation7 + $0x488] sm:$0xff]
    %v5517 = vld [vmem:[#allocation7 + $0x490] sm:$0xff]
    %v5518 = vld [vmem:[#allocation7 + $0x498] sm:$0xff]
    %v5519 = vld [vmem:[#allocation7 + $0x4a0] sm:$0xff]
    %v5520 = vld [vmem:[#allocation7 + $0x4a8] sm:$0xff]
    %v5521 = vld [vmem:[#allocation7 + $0x4b0] sm:$0xff]
    %v5522 = vld [vmem:[#allocation7 + $0x4b8] sm:$0xff]
    %v5523 = vld [vmem:[#allocation7 + $0x4c0] sm:$0xff]
    %v5524 = vld [vmem:[#allocation7 + $0x4c8] sm:$0xff]
    %v5525 = vld [vmem:[#allocation7 + $0x4d0] sm:$0xff]
    %v5526 = vld [vmem:[#allocation7 + $0x4d8] sm:$0xff]
    %v5527 = vld [vmem:[#allocation7 + $0x4e0] sm:$0xff]
    %v5528 = vld [vmem:[#allocation7 + $0x4e8] sm:$0xff]
    %v5529 = vld [vmem:[#allocation7 + $0x4f0] sm:$0xff]
    %v5530 = vld [vmem:[#allocation7 + $0x4f8] sm:$0xff]
    %v5531 = vld [vmem:[#allocation7 + $0x500] sm:$0xff]
    %v5532 = vld [vmem:[#allocation7 + $0x508] sm:$0xff]
    %v5533 = vld [vmem:[#allocation7 + $0x510] sm:$0xff]
    %v5534 = vld [vmem:[#allocation7 + $0x518] sm:$0xff]
    %v5535 = vld [vmem:[#allocation7 + $0x520] sm:$0xff]
    %v5536 = vld [vmem:[#allocation7 + $0x528] sm:$0xff]
    %v5537 = vld [vmem:[#allocation7 + $0x530] sm:$0xff]
    %v5538 = vld [vmem:[#allocation7 + $0x538] sm:$0xff]
    %v5539 = vld [vmem:[#allocation7 + $0x540] sm:$0xff]
    %v5540 = vld [vmem:[#allocation7 + $0x548] sm:$0xff]
    %v5541 = vld [vmem:[#allocation7 + $0x550] sm:$0xff]
    %v5542 = vld [vmem:[#allocation7 + $0x558] sm:$0xff]
    %v5543 = vld [vmem:[#allocation7 + $0x560] sm:$0xff]
    %v5544 = vld [vmem:[#allocation7 + $0x568] sm:$0xff]
    %v5545 = vld [vmem:[#allocation7 + $0x570] sm:$0xff]
    %v5546 = vld [vmem:[#allocation7 + $0x578] sm:$0xff]
    %v5547 = vld [vmem:[#allocation7 + $0x580] sm:$0xff]
    %v5548 = vld [vmem:[#allocation7 + $0x588] sm:$0xff]
    %v5549 = vld [vmem:[#allocation7 + $0x590] sm:$0xff]
    %v5550 = vld [vmem:[#allocation7 + $0x598] sm:$0xff]
    %v5551 = vld [vmem:[#allocation7 + $0x5a0] sm:$0xff]
    %v5552 = vld [vmem:[#allocation7 + $0x5a8] sm:$0xff]
    %v5553 = vld [vmem:[#allocation7 + $0x5b0] sm:$0xff]
    %v5554 = vld [vmem:[#allocation7 + $0x5b8] sm:$0xff]
    %v5555 = vld [vmem:[#allocation7 + $0x5c0] sm:$0xff]
    %v5556 = vld [vmem:[#allocation7 + $0x5c8] sm:$0xff]
    %v5557 = vld [vmem:[#allocation7 + $0x5d0] sm:$0xff]
    %v5558 = vld [vmem:[#allocation7 + $0x5d8] sm:$0xff]
    %v5559 = vld [vmem:[#allocation7 + $0x5e0] sm:$0xff]
    %v5560 = vld [vmem:[#allocation7 + $0x5e8] sm:$0xff]
    %v5561 = vld [vmem:[#allocation7 + $0x5f0] sm:$0xff]
    %v5562 = vld [vmem:[#allocation7 + $0x5f8] sm:$0xff]
    %v5563 = vld [vmem:[%s12] sm:$0x7]
    %v5565 = vlaneseq
    %v5566 = vshrl.u32 %v5565, 7
    %v5567 = vsub.s32 0, %v5566
    %v5568 = vrot.slane %v5563, %v5567
    %v5569 = vlaneseq
    %v5570 = vshrl.u32 %v5569, 7
    %v5571 = vsub.s32 1, %v5570
    %v5572 = vrot.slane %v5563, %v5571
    %v5573 = vlaneseq
    %v5574 = vshrl.u32 %v5573, 7
    %v5575 = vsub.s32 2, %v5574
    %v5576 = vrot.slane %v5563, %v5575
    %5580 = vmatprep.subr.mxu0 %v5372
    %5581 = vmatpush1.msra.mxu0 %v5371
    %5582 = vmatprep.subr.mxu0 %v5375
    %5583 = vmatpush1.msra.mxu0 %v5374
    %5584 = vmatprep.subr.mxu0 %v5378
    %5585 = vmatpush1.msra.mxu0 %v5377
    %5586 = vmatprep.subr.mxu0 %v5381
    %5587 = vmatpush1.msra.mxu0 %v5380
    %5588 = vmatprep.subr.mxu0 %v5384
    %5589 = vmatpush1.msra.mxu0 %v5383
    %5590 = vmatprep.subr.mxu0 %v5387
    %5591 = vmatpush1.msra.mxu0 %v5386
    %5592 = vmatprep.subr.mxu0 %v5390
    %5593 = vmatpush1.msra.mxu0 %v5389
    %5594 = vmatprep.subr.mxu0 %v5393
    %5595 = vmatpush1.msra.mxu0 %v5392
    %5596 = vmatprep.subr.mxu0 %v5396
    %5597 = vmatpush1.msra.mxu0 %v5395
    %5598 = vmatprep.subr.mxu0 %v5399
    %5599 = vmatpush1.msra.mxu0 %v5398
    %5600 = vmatprep.subr.mxu0 %v5402
    %5601 = vmatpush1.msra.mxu0 %v5401
    %5602 = vmatprep.subr.mxu0 %v5405
    %5603 = vmatpush1.msra.mxu0 %v5404
    %5604 = vmatprep.subr.mxu0 %v5408
    %5605 = vmatpush1.msra.mxu0 %v5407
    %5606 = vmatprep.subr.mxu0 %v5411
    %5607 = vmatpush1.msra.mxu0 %v5410
    %5608 = vmatprep.subr.mxu0 %v5414
    %5609 = vmatpush1.msra.mxu0 %v5413
    %5610 = vmatprep.subr.mxu0 %v5417
    %5611 = vmatpush1.msra.mxu0 %v5416
    %5612 = vmatprep.subr.mxu0 %v5420
    %5613 = vmatpush1.msra.mxu0 %v5419
    %5614 = vmatprep.subr.mxu0 %v5423
    %5615 = vmatpush1.msra.mxu0 %v5422
    %5616 = vmatprep.subr.mxu0 %v5426
    %5617 = vmatpush1.msra.mxu0 %v5425
    %5618 = vmatprep.subr.mxu0 %v5429
    %5619 = vmatpush1.msra.mxu0 %v5428
    %5620 = vmatprep.subr.mxu0 %v5432
    %5621 = vmatpush1.msra.mxu0 %v5431
    %5622 = vmatprep.subr.mxu0 %v5435
    %5623 = vmatpush1.msra.mxu0 %v5434
    %5624 = vmatprep.subr.mxu0 %v5438
    %5625 = vmatpush1.msra.mxu0 %v5437
    %5626 = vmatprep.subr.mxu0 %v5441
    %5627 = vmatpush1.msra.mxu0 %v5440
    %5628 = vmatprep.subr.mxu0 %v5444
    %5629 = vmatpush1.msra.mxu0 %v5443
    %5630 = vmatprep.subr.mxu0 %v5447
    %5631 = vmatpush1.msra.mxu0 %v5446
    %5632 = vmatprep.subr.mxu0 %v5450
    %5633 = vmatpush1.msra.mxu0 %v5449
    %5634 = vmatprep.subr.mxu0 %v5453
    %5635 = vmatpush1.msra.mxu0 %v5452
    %5636 = vmatprep.subr.mxu0 %v5456
    %5637 = vmatpush1.msra.mxu0 %v5455
    %5638 = vmatprep.subr.mxu0 %v5459
    %5639 = vmatpush1.msra.mxu0 %v5458
    %5640 = vmatprep.subr.mxu0 %v5462
    %5641 = vmatpush1.msra.mxu0 %v5461
    %5642 = vmatprep.subr.mxu0 %v5465
    %5643 = vmatpush1.msra.mxu0 %v5464
    %5644 = vmatprep.mubr.f32.mxu0 %v5364
    %5645 = vmatmul.mubr.f32.gmra.mrb[0].mxu0 %v5361
    %v5646 = vpop.f32.mrb[0].mxu0
    %v5647 = vadd.f32 %v5568, %v5646
    %v5648 = vpop.f32.mrb[0].mxu0
    %v5649 = vadd.f32 %v5572, %v5648
    %5650 = vdwg.mxu0
    %5651 = vmatprep.subr.mxu0 %v5468
    %5652 = vmatpush1.msra.mxu0 %v5467
    %5653 = vmatprep.subr.mxu0 %v5471
    %5654 = vmatpush1.msra.mxu0 %v5470
    %5655 = vmatprep.subr.mxu0 %v5474
    %5656 = vmatpush1.msra.mxu0 %v5473
    %5657 = vmatprep.subr.mxu0 %v5477
    %5658 = vmatpush1.msra.mxu0 %v5476
    %5659 = vmatprep.subr.mxu0 %v5480
    %5660 = vmatpush1.msra.mxu0 %v5479
    %5661 = vmatprep.subr.mxu0 %v5483
    %5662 = vmatpush1.msra.mxu0 %v5482
    %5663 = vmatprep.subr.mxu0 %v5486
    %5664 = vmatpush1.msra.mxu0 %v5485
    %5665 = vmatprep.subr.mxu0 %v5489
    %5666 = vmatpush1.msra.mxu0 %v5488
    %5667 = vmatprep.subr.mxu0 %v5492
    %5668 = vmatpush1.msra.mxu0 %v5491
    %5669 = vmatprep.subr.mxu0 %v5495
    %5670 = vmatpush1.msra.mxu0 %v5494
    %5671 = vmatprep.subr.mxu0 %v5498
    %5672 = vmatpush1.msra.mxu0 %v5497
    %5673 = vmatprep.subr.mxu0 %v5501
    %5674 = vmatpush1.msra.mxu0 %v5500
    %5675 = vmatprep.subr.mxu0 %v5504
    %5676 = vmatpush1.msra.mxu0 %v5503
    %5677 = vmatprep.subr.mxu0 %v5507
    %5678 = vmatpush1.msra.mxu0 %v5506
    %5679 = vmatprep.subr.mxu0 %v5510
    %5680 = vmatpush1.msra.mxu0 %v5509
    %5681 = vmatprep.subr.mxu0 %v5513
    %5682 = vmatpush1.msra.mxu0 %v5512
    %5683 = vmatprep.subr.mxu0 %v5516
    %5684 = vmatpush1.msra.mxu0 %v5515
    %5685 = vmatprep.subr.mxu0 %v5519
    %5686 = vmatpush1.msra.mxu0 %v5518
    %5687 = vmatprep.subr.mxu0 %v5522
    %5688 = vmatpush1.msra.mxu0 %v5521
    %5689 = vmatprep.subr.mxu0 %v5525
    %5690 = vmatpush1.msra.mxu0 %v5524
    %5691 = vmatprep.subr.mxu0 %v5528
    %5692 = vmatpush1.msra.mxu0 %v5527
    %5693 = vmatprep.subr.mxu0 %v5531
    %5694 = vmatpush1.msra.mxu0 %v5530
    %5695 = vmatprep.subr.mxu0 %v5534
    %5696 = vmatpush1.msra.mxu0 %v5533
    %5697 = vmatprep.subr.mxu0 %v5537
    %5698 = vmatpush1.msra.mxu0 %v5536
    %5699 = vmatprep.subr.mxu0 %v5540
    %5700 = vmatpush1.msra.mxu0 %v5539
    %5701 = vmatprep.subr.mxu0 %v5543
    %5702 = vmatpush1.msra.mxu0 %v5542
    %5703 = vmatprep.subr.mxu0 %v5546
    %5704 = vmatpush1.msra.mxu0 %v5545
    %5705 = vmatprep.subr.mxu0 %v5549
    %5706 = vmatpush1.msra.mxu0 %v5548
    %5707 = vmatprep.subr.mxu0 %v5552
    %5708 = vmatpush1.msra.mxu0 %v5551
    %5709 = vmatprep.subr.mxu0 %v5555
    %5710 = vmatpush1.msra.mxu0 %v5554
    %5711 = vmatprep.subr.mxu0 %v5558
    %5712 = vmatpush1.msra.mxu0 %v5557
    %5713 = vmatprep.subr.mxu0 %v5561
    %5714 = vmatpush1.msra.mxu0 %v5560
    %5715 = vmatprep.mubr.f32.mxu0 %v5370
    %5716 = vmatmul.mubr.f32.gmra.mrb[0].mxu0 %v5367
    %v5717 = vpop.f32.mrb[0].mxu0
    %v5718 = vadd.f32 %v5647, %v5717
    %v5719 = vpop.f32.mrb[0].mxu0
    %v5720 = vadd.f32 %v5649, %v5719
    %5721 = vdwg.mxu0
    %5722 = vmatprep.subr.mxu0 0.0
    %5723 = vmatpush1.msra.mxu0 %v5373
    %5724 = vmatprep.subr.mxu0 0.0
    %5725 = vmatpush1.msra.mxu0 %v5376
    %5726 = vmatprep.subr.mxu0 0.0
    %5727 = vmatpush1.msra.mxu0 %v5379
    %5728 = vmatprep.subr.mxu0 0.0
    %5729 = vmatpush1.msra.mxu0 %v5382
    %5730 = vmatprep.subr.mxu0 0.0
    %5731 = vmatpush1.msra.mxu0 %v5385
    %5732 = vmatprep.subr.mxu0 0.0
    %5733 = vmatpush1.msra.mxu0 %v5388
    %5734 = vmatprep.subr.mxu0 0.0
    %5735 = vmatpush1.msra.mxu0 %v5391
    %5736 = vmatprep.subr.mxu0 0.0
    %5737 = vmatpush1.msra.mxu0 %v5394
    %5738 = vmatprep.subr.mxu0 0.0
    %5739 = vmatpush1.msra.mxu0 %v5397
    %5740 = vmatprep.subr.mxu0 0.0
    %5741 = vmatpush1.msra.mxu0 %v5400
    %5742 = vmatprep.subr.mxu0 0.0
    %5743 = vmatpush1.msra.mxu0 %v5403
    %5744 = vmatprep.subr.mxu0 0.0
    %5745 = vmatpush1.msra.mxu0 %v5406
    %5746 = vmatprep.subr.mxu0 0.0
    %5747 = vmatpush1.msra.mxu0 %v5409
    %5748 = vmatprep.subr.mxu0 0.0
    %5749 = vmatpush1.msra.mxu0 %v5412
    %5750 = vmatprep.subr.mxu0 0.0
    %5751 = vmatpush1.msra.mxu0 %v5415
    %5752 = vmatprep.subr.mxu0 0.0
    %5753 = vmatpush1.msra.mxu0 %v5418
    %5754 = vmatprep.subr.mxu0 0.0
    %5755 = vmatpush1.msra.mxu0 %v5421
    %5756 = vmatprep.subr.mxu0 0.0
    %5757 = vmatpush1.msra.mxu0 %v5424
    %5758 = vmatprep.subr.mxu0 0.0
    %5759 = vmatpush1.msra.mxu0 %v5427
    %5760 = vmatprep.subr.mxu0 0.0
    %5761 = vmatpush1.msra.mxu0 %v5430
    %5762 = vmatprep.subr.mxu0 0.0
    %5763 = vmatpush1.msra.mxu0 %v5433
    %5764 = vmatprep.subr.mxu0 0.0
    %5765 = vmatpush1.msra.mxu0 %v5436
    %5766 = vmatprep.subr.mxu0 0.0
    %5767 = vmatpush1.msra.mxu0 %v5439
    %5768 = vmatprep.subr.mxu0 0.0
    %5769 = vmatpush1.msra.mxu0 %v5442
    %5770 = vmatprep.subr.mxu0 0.0
    %5771 = vmatpush1.msra.mxu0 %v5445
    %5772 = vmatprep.subr.mxu0 0.0
    %5773 = vmatpush1.msra.mxu0 %v5448
    %5774 = vmatprep.subr.mxu0 0.0
    %5775 = vmatpush1.msra.mxu0 %v5451
    %5776 = vmatprep.subr.mxu0 0.0
    %5777 = vmatpush1.msra.mxu0 %v5454
    %5778 = vmatprep.subr.mxu0 0.0
    %5779 = vmatpush1.msra.mxu0 %v5457
    %5780 = vmatprep.subr.mxu0 0.0
    %5781 = vmatpush1.msra.mxu0 %v5460
    %5782 = vmatprep.subr.mxu0 0.0
    %5783 = vmatpush1.msra.mxu0 %v5463
    %5784 = vmatprep.subr.mxu0 0.0
    %5785 = vmatpush1.msra.mxu0 %v5466
    %5786 = vmatprep.mubr.f32.mxu0 %v5364
    %5787 = vmatmul.mubr.f32.gmra.mrb[0].mxu0 %v5361
    %v5788 = vpop.f32.mrb[0].mxu0
    %v5789 = vadd.f32 %v5576, %v5788
    %v5790 = vpop.f32.mrb[0].mxu0
    %5791 = vdwg.mxu0
    %5792 = vmatprep.subr.mxu0 0.0
    %5793 = vmatpush1.msra.mxu0 %v5469
    %5794 = vmatprep.subr.mxu0 0.0
    %5795 = vmatpush1.msra.mxu0 %v5472
    %5796 = vmatprep.subr.mxu0 0.0
    %5797 = vmatpush1.msra.mxu0 %v5475
    %5798 = vmatprep.subr.mxu0 0.0
    %5799 = vmatpush1.msra.mxu0 %v5478
    %5800 = vmatprep.subr.mxu0 0.0
    %5801 = vmatpush1.msra.mxu0 %v5481
    %5802 = vmatprep.subr.mxu0 0.0
    %5803 = vmatpush1.msra.mxu0 %v5484
    %5804 = vmatprep.subr.mxu0 0.0
    %5805 = vmatpush1.msra.mxu0 %v5487
    %5806 = vmatprep.subr.mxu0 0.0
    %5807 = vmatpush1.msra.mxu0 %v5490
    %5808 = vmatprep.subr.mxu0 0.0
    %5809 = vmatpush1.msra.mxu0 %v5493
    %5810 = vmatprep.subr.mxu0 0.0
    %5811 = vmatpush1.msra.mxu0 %v5496
    %5812 = vmatprep.subr.mxu0 0.0
    %5813 = vmatpush1.msra.mxu0 %v5499
    %5814 = vmatprep.subr.mxu0 0.0
    %5815 = vmatpush1.msra.mxu0 %v5502
    %5816 = vmatprep.subr.mxu0 0.0
    %5817 = vmatpush1.msra.mxu0 %v5505
    %5818 = vmatprep.subr.mxu0 0.0
    %5819 = vmatpush1.msra.mxu0 %v5508
    %5820 = vmatprep.subr.mxu0 0.0
    %5821 = vmatpush1.msra.mxu0 %v5511
    %5822 = vmatprep.subr.mxu0 0.0
    %5823 = vmatpush1.msra.mxu0 %v5514
    %5824 = vmatprep.subr.mxu0 0.0
    %5825 = vmatpush1.msra.mxu0 %v5517
    %5826 = vmatprep.subr.mxu0 0.0
    %5827 = vmatpush1.msra.mxu0 %v5520
    %5828 = vmatprep.subr.mxu0 0.0
    %5829 = vmatpush1.msra.mxu0 %v5523
    %5830 = vmatprep.subr.mxu0 0.0
    %5831 = vmatpush1.msra.mxu0 %v5526
    %5832 = vmatprep.subr.mxu0 0.0
    %5833 = vmatpush1.msra.mxu0 %v5529
    %5834 = vmatprep.subr.mxu0 0.0
    %5835 = vmatpush1.msra.mxu0 %v5532
    %5836 = vmatprep.subr.mxu0 0.0
    %5837 = vmatpush1.msra.mxu0 %v5535
    %5838 = vmatprep.subr.mxu0 0.0
    %5839 = vmatpush1.msra.mxu0 %v5538
    %5840 = vmatprep.subr.mxu0 0.0
    %5841 = vmatpush1.msra.mxu0 %v5541
    %5842 = vmatprep.subr.mxu0 0.0
    %5843 = vmatpush1.msra.mxu0 %v5544
    %5844 = vmatprep.subr.mxu0 0.0
    %5845 = vmatpush1.msra.mxu0 %v5547
    %5846 = vmatprep.subr.mxu0 0.0
    %5847 = vmatpush1.msra.mxu0 %v5550
    %5848 = vmatprep.subr.mxu0 0.0
    %5849 = vmatpush1.msra.mxu0 %v5553
    %5850 = vmatprep.subr.mxu0 0.0
    %5851 = vmatpush1.msra.mxu0 %v5556
    %5852 = vmatprep.subr.mxu0 0.0
    %5853 = vmatpush1.msra.mxu0 %v5559
    %5854 = vmatprep.subr.mxu0 0.0
    %5855 = vmatpush1.msra.mxu0 %v5562
    %5856 = vmatprep.mubr.f32.mxu0 %v5370
    %5857 = vmatmul.mubr.f32.gmra.mrb[0].mxu0 %v5367
    %v5858 = vpop.f32.mrb[0].mxu0
    %v5859 = vadd.f32 %v5789, %v5858
    %v5860 = vpop.f32.mrb[0].mxu0
    %5861 = vdwg.mxu0
    %v5862 = vld [vmem:[%s1] sm:$0xff]
    %5864 = vset.pattern.permute.xlu0 0
    %5865 = vperm.xlu0 %5864, %v5862
    %v5866 = vpop.permute.xlu0 %5865
    %v5868 = vmul.f32 %v5718, %v5866
    %v5869 = vmul.f32 %v5720, %v5866
    %v5870 = vmul.f32 %v5859, %v5866
    %v5871 = vrot.slane %v5868, 4
    %v5872 = vadd.f32 %v5868, %v5871
    %v5873 = vrot.slane %v5872, 2
    %v5874 = vadd.f32 %v5872, %v5873
    %v5875 = vrot.slane %v5874, 1
    %v5876 = vadd.f32 %v5874, %v5875
    %v5877 = vrot.slane %v5869, 4
    %v5878 = vadd.f32 %v5869, %v5877
    %v5879 = vrot.slane %v5878, 2
    %v5880 = vadd.f32 %v5878, %v5879
    %v5881 = vrot.slane %v5880, 1
    %v5882 = vadd.f32 %v5880, %v5881
    %v5883 = vrot.slane %v5870, 4
    %v5884 = vadd.f32 %v5870, %v5883
    %v5885 = vrot.slane %v5884, 2
    %v5886 = vadd.f32 %v5884, %v5885
    %v5887 = vrot.slane %v5886, 1
    %v5888 = vadd.f32 %v5886, %v5887
    %v5889 = vmul.f32 %v5876, 0.5
    %v5890 = vmul.f32 %v5882, 0.5
    %v5891 = vmul.f32 %v5888, 0.5
    %v5892 = vsub.f32 %v5718, %v5889
    %v5893 = vsub.f32 %v5720, %v5890
    %v5894 = vsub.f32 %v5859, %v5891
    %v5895 = vmul.f32 %v5892, %v5892
    %v5896 = vmul.f32 %v5893, %v5893
    %v5897 = vmul.f32 %v5894, %v5894
    %v5898 = vmul.f32 %v5895, %v5866
    %v5899 = vmul.f32 %v5896, %v5866
    %v5900 = vmul.f32 %v5897, %v5866
    %v5901 = vrot.slane %v5898, 4
    %v5902 = vadd.f32 %v5898, %v5901
    %v5903 = vrot.slane %v5902, 2
    %v5904 = vadd.f32 %v5902, %v5903
    %v5905 = vrot.slane %v5904, 1
    %v5906 = vadd.f32 %v5904, %v5905
    %v5907 = vrot.slane %v5899, 4
    %v5908 = vadd.f32 %v5899, %v5907
    %v5909 = vrot.slane %v5908, 2
    %v5910 = vadd.f32 %v5908, %v5909
    %v5911 = vrot.slane %v5910, 1
    %v5912 = vadd.f32 %v5910, %v5911
    %v5913 = vrot.slane %v5900, 4
    %v5914 = vadd.f32 %v5900, %v5913
    %v5915 = vrot.slane %v5914, 2
    %v5916 = vadd.f32 %v5914, %v5915
    %v5917 = vrot.slane %v5916, 1
    %v5918 = vadd.f32 %v5916, %v5917
    %v5919 = vmul.f32 %v5906, 0.5
    %v5920 = vmul.f32 %v5912, 0.5
    %v5921 = vmul.f32 %v5918, 0.5
    %v5922 = vadd.f32 %v5919, 1e-05
    %v5923 = vadd.f32 %v5920, 1e-05
    %v5924 = vadd.f32 %v5921, 1e-05
    %v5925 = vrsqrt.pop %v5922
    %v5926 = vrsqrt.pop %v5923
    %v5927 = vrsqrt.pop %v5924
    %v5928 = vmul.f32 %v5892, %v5925
    %v5929 = vmul.f32 %v5893, %v5926
    %v5930 = vmul.f32 %v5894, %v5927
    %v5931 = vld [vmem:[%s13] sm:$0x7]
    %v5933 = vlaneseq
    %v5934 = vshrl.u32 %v5933, 7
    %v5935 = vsub.s32 0, %v5934
    %v5936 = vrot.slane %v5931, %v5935
    %v5937 = vlaneseq
    %v5938 = vshrl.u32 %v5937, 7
    %v5939 = vsub.s32 1, %v5938
    %v5940 = vrot.slane %v5931, %v5939
    %v5941 = vlaneseq
    %v5942 = vshrl.u32 %v5941, 7
    %v5943 = vsub.s32 2, %v5942
    %v5944 = vrot.slane %v5931, %v5943
    %v5948 = vmul.f32 %v5928, %v5936
    %v5949 = vmul.f32 %v5929, %v5940
    %v5950 = vmul.f32 %v5930, %v5944
    %v5951 = vld [vmem:[%s14] sm:$0x7]
    %v5953 = vlaneseq
    %v5954 = vshrl.u32 %v5953, 7
    %v5955 = vsub.s32 0, %v5954
    %v5956 = vrot.slane %v5951, %v5955
    %v5957 = vlaneseq
    %v5958 = vshrl.u32 %v5957, 7
    %v5959 = vsub.s32 1, %v5958
    %v5960 = vrot.slane %v5951, %v5959
    %v5961 = vlaneseq
    %v5962 = vshrl.u32 %v5961, 7
    %v5963 = vsub.s32 2, %v5962
    %v5964 = vrot.slane %v5951, %v5963
    %v5968 = vadd.f32 %v5948, %v5956
    %v5969 = vadd.f32 %v5949, %v5960
    %v5970 = vadd.f32 %v5950, %v5964
    %v5971 = vmax.f32 %v5968, 0.0
    %v5972 = vmax.f32 %v5969, 0.0
    %v5973 = vmax.f32 %v5970, 0.0
    %v5974 = vld [vmem:[%s15] sm:$0xff]
    %v5975 = vld [vmem:[%s15 + $0x8] sm:$0xff]
    %v5976 = vld [vmem:[%s15 + $0x10] sm:$0xff]
    %v5977 = vld [vmem:[%s15 + $0x18] sm:$0xff]
    %v5978 = vld [vmem:[%s15 + $0x20] sm:$0xff]
    %v5979 = vld [vmem:[%s15 + $0x28] sm:$0xff]
    %v5980 = vld [vmem:[%s15 + $0x30] sm:$0xff]
    %v5981 = vld [vmem:[%s15 + $0x38] sm:$0xff]
    %v5982 = vld [vmem:[%s15 + $0x40] sm:$0xff]
    %v5983 = vld [vmem:[%s15 + $0x48] sm:$0xff]
    %v5984 = vld [vmem:[%s15 + $0x50] sm:$0xff]
    %v5985 = vld [vmem:[%s15 + $0x58] sm:$0xff]
    %v5986 = vld [vmem:[%s15 + $0x60] sm:$0xff]
    %v5987 = vld [vmem:[%s15 + $0x68] sm:$0xff]
    %v5988 = vld [vmem:[%s15 + $0x70] sm:$0xff]
    %v5989 = vld [vmem:[%s15 + $0x78] sm:$0xff]
    %v5990 = vld [vmem:[%s15 + $0x80] sm:$0xff]
    %v5991 = vld [vmem:[%s15 + $0x88] sm:$0xff]
    %v5992 = vld [vmem:[%s15 + $0x90] sm:$0xff]
    %v5993 = vld [vmem:[%s15 + $0x98] sm:$0xff]
    %v5994 = vld [vmem:[%s15 + $0xa0] sm:$0xff]
    %v5995 = vld [vmem:[%s15 + $0xa8] sm:$0xff]
    %v5996 = vld [vmem:[%s15 + $0xb0] sm:$0xff]
    %v5997 = vld [vmem:[%s15 + $0xb8] sm:$0xff]
    %v5998 = vld [vmem:[%s15 + $0xc0] sm:$0xff]
    %v5999 = vld [vmem:[%s15 + $0xc8] sm:$0xff]
    %v6000 = vld [vmem:[%s15 + $0xd0] sm:$0xff]
    %v6001 = vld [vmem:[%s15 + $0xd8] sm:$0xff]
    %v6002 = vld [vmem:[%s15 + $0xe0] sm:$0xff]
    %v6003 = vld [vmem:[%s15 + $0xe8] sm:$0xff]
    %v6004 = vld [vmem:[%s15 + $0xf0] sm:$0xff]
    %v6005 = vld [vmem:[%s15 + $0xf8] sm:$0xff]
    %v6006 = vld [vmem:[%s15 + $0x100] sm:$0xff]
    %v6007 = vld [vmem:[%s15 + $0x108] sm:$0xff]
    %v6008 = vld [vmem:[%s15 + $0x110] sm:$0xff]
    %v6009 = vld [vmem:[%s15 + $0x118] sm:$0xff]
    %v6010 = vld [vmem:[%s15 + $0x120] sm:$0xff]
    %v6011 = vld [vmem:[%s15 + $0x128] sm:$0xff]
    %v6012 = vld [vmem:[%s15 + $0x130] sm:$0xff]
    %v6013 = vld [vmem:[%s15 + $0x138] sm:$0xff]
    %v6014 = vld [vmem:[%s15 + $0x140] sm:$0xff]
    %v6015 = vld [vmem:[%s15 + $0x148] sm:$0xff]
    %v6016 = vld [vmem:[%s15 + $0x150] sm:$0xff]
    %v6017 = vld [vmem:[%s15 + $0x158] sm:$0xff]
    %v6018 = vld [vmem:[%s15 + $0x160] sm:$0xff]
    %v6019 = vld [vmem:[%s15 + $0x168] sm:$0xff]
    %v6020 = vld [vmem:[%s15 + $0x170] sm:$0xff]
    %v6021 = vld [vmem:[%s15 + $0x178] sm:$0xff]
    %v6022 = vld [vmem:[#allocation9] sm:$0x1]
    %v6024 = vlaneseq
    %v6025 = vshrl.u32 %v6024, 7
    %v6026 = vsub.s32 0, %v6025
    %v6027 = vrot.slane %v6022, %v6026
    %6029 = vmatprep.subr.mxu0 0.0
    %6030 = vmatpush1.msra.mxu0 %v5974
    %6031 = vmatprep.subr.mxu0 0.0
    %6032 = vmatpush1.msra.mxu0 %v5975
    %6033 = vmatprep.subr.mxu0 0.0
    %6034 = vmatpush1.msra.mxu0 %v5976
    %6035 = vmatprep.subr.mxu0 0.0
    %6036 = vmatpush1.msra.mxu0 %v5977
    %6037 = vmatprep.subr.mxu0 0.0
    %6038 = vmatpush1.msra.mxu0 %v5978
    %6039 = vmatprep.subr.mxu0 0.0
    %6040 = vmatpush1.msra.mxu0 %v5979
    %6041 = vmatprep.subr.mxu0 0.0
    %6042 = vmatpush1.msra.mxu0 %v5980
    %6043 = vmatprep.subr.mxu0 0.0
    %6044 = vmatpush1.msra.mxu0 %v5981
    %6045 = vmatprep.subr.mxu0 0.0
    %6046 = vmatpush1.msra.mxu0 %v5982
    %6047 = vmatprep.subr.mxu0 0.0
    %6048 = vmatpush1.msra.mxu0 %v5983
    %6049 = vmatprep.subr.mxu0 0.0
    %6050 = vmatpush1.msra.mxu0 %v5984
    %6051 = vmatprep.subr.mxu0 0.0
    %6052 = vmatpush1.msra.mxu0 %v5985
    %6053 = vmatprep.subr.mxu0 0.0
    %6054 = vmatpush1.msra.mxu0 %v5986
    %6055 = vmatprep.subr.mxu0 0.0
    %6056 = vmatpush1.msra.mxu0 %v5987
    %6057 = vmatprep.subr.mxu0 0.0
    %6058 = vmatpush1.msra.mxu0 %v5988
    %6059 = vmatprep.subr.mxu0 0.0
    %6060 = vmatpush1.msra.mxu0 %v5989
    %6061 = vmatprep.subr.mxu0 0.0
    %6062 = vmatpush1.msra.mxu0 %v5990
    %6063 = vmatprep.subr.mxu0 0.0
    %6064 = vmatpush1.msra.mxu0 %v5991
    %6065 = vmatprep.subr.mxu0 0.0
    %6066 = vmatpush1.msra.mxu0 %v5992
    %6067 = vmatprep.subr.mxu0 0.0
    %6068 = vmatpush1.msra.mxu0 %v5993
    %6069 = vmatprep.subr.mxu0 0.0
    %6070 = vmatpush1.msra.mxu0 %v5994
    %6071 = vmatprep.subr.mxu0 0.0
    %6072 = vmatpush1.msra.mxu0 %v5995
    %6073 = vmatprep.subr.mxu0 0.0
    %6074 = vmatpush1.msra.mxu0 %v5996
    %6075 = vmatprep.subr.mxu0 0.0
    %6076 = vmatpush1.msra.mxu0 %v5997
    %6077 = vmatprep.subr.mxu0 0.0
    %6078 = vmatpush1.msra.mxu0 %v5998
    %6079 = vmatprep.subr.mxu0 0.0
    %6080 = vmatpush1.msra.mxu0 %v5999
    %6081 = vmatprep.subr.mxu0 0.0
    %6082 = vmatpush1.msra.mxu0 %v6000
    %6083 = vmatprep.subr.mxu0 0.0
    %6084 = vmatpush1.msra.mxu0 %v6001
    %6085 = vmatprep.subr.mxu0 0.0
    %6086 = vmatpush1.msra.mxu0 %v6002
    %6087 = vmatprep.subr.mxu0 0.0
    %6088 = vmatpush1.msra.mxu0 %v6003
    %6089 = vmatprep.subr.mxu0 0.0
    %6090 = vmatpush1.msra.mxu0 %v6004
    %6091 = vmatprep.subr.mxu0 0.0
    %6092 = vmatpush1.msra.mxu0 %v6005
    %6093 = vmatprep.mubr.f32.mxu0 %v5972
    %6094 = vmatmul.mubr.f32.gmra.mrb[0].mxu0 %v5971
    %v6095 = vpop.f32.mrb[0].mxu0
    %v6096 = vadd.f32 %v6027, %v6095
    %v6097 = vpop.f32.mrb[0].mxu0
    %6098 = vdwg.mxu0
    %6099 = vmatprep.subr.mxu0 0.0
    %6100 = vmatpush1.msra.mxu0 %v6006
    %6101 = vmatprep.subr.mxu0 0.0
    %6102 = vmatpush1.msra.mxu0 %v6007
    %6103 = vmatprep.subr.mxu0 0.0
    %6104 = vmatpush1.msra.mxu0 %v6008
    %6105 = vmatprep.subr.mxu0 0.0
    %6106 = vmatpush1.msra.mxu0 %v6009
    %6107 = vmatprep.subr.mxu0 0.0
    %6108 = vmatpush1.msra.mxu0 %v6010
    %6109 = vmatprep.subr.mxu0 0.0
    %6110 = vmatpush1.msra.mxu0 %v6011
    %6111 = vmatprep.subr.mxu0 0.0
    %6112 = vmatpush1.msra.mxu0 %v6012
    %6113 = vmatprep.subr.mxu0 0.0
    %6114 = vmatpush1.msra.mxu0 %v6013
    %6115 = vmatprep.subr.mxu0 0.0
    %6116 = vmatpush1.msra.mxu0 %v6014
    %6117 = vmatprep.subr.mxu0 0.0
    %6118 = vmatpush1.msra.mxu0 %v6015
    %6119 = vmatprep.subr.mxu0 0.0
    %6120 = vmatpush1.msra.mxu0 %v6016
    %6121 = vmatprep.subr.mxu0 0.0
    %6122 = vmatpush1.msra.mxu0 %v6017
    %6123 = vmatprep.subr.mxu0 0.0
    %6124 = vmatpush1.msra.mxu0 %v6018
    %6125 = vmatprep.subr.mxu0 0.0
    %6126 = vmatpush1.msra.mxu0 %v6019
    %6127 = vmatprep.subr.mxu0 0.0
    %6128 = vmatpush1.msra.mxu0 %v6020
    %6129 = vmatprep.subr.mxu0 0.0
    %6130 = vmatpush1.msra.mxu0 %v6021
    %6131 = vmatprep.subr.mxu0 0.0
    %6132 = vmatpush1.msra.mxu0 0.0
    %6133 = vmatprep.subr.mxu0 0.0
    %6134 = vmatpush1.msra.mxu0 0.0
    %6135 = vmatprep.subr.mxu0 0.0
    %6136 = vmatpush1.msra.mxu0 0.0
    %6137 = vmatprep.subr.mxu0 0.0
    %6138 = vmatpush1.msra.mxu0 0.0
    %6139 = vmatprep.subr.mxu0 0.0
    %6140 = vmatpush1.msra.mxu0 0.0
    %6141 = vmatprep.subr.mxu0 0.0
    %6142 = vmatpush1.msra.mxu0 0.0
    %6143 = vmatprep.subr.mxu0 0.0
    %6144 = vmatpush1.msra.mxu0 0.0
    %6145 = vmatprep.subr.mxu0 0.0
    %6146 = vmatpush1.msra.mxu0 0.0
    %6147 = vmatprep.subr.mxu0 0.0
    %6148 = vmatpush1.msra.mxu0 0.0
    %6149 = vmatprep.subr.mxu0 0.0
    %6150 = vmatpush1.msra.mxu0 0.0
    %6151 = vmatprep.subr.mxu0 0.0
    %6152 = vmatpush1.msra.mxu0 0.0
    %6153 = vmatprep.subr.mxu0 0.0
    %6154 = vmatpush1.msra.mxu0 0.0
    %6155 = vmatprep.subr.mxu0 0.0
    %6156 = vmatpush1.msra.mxu0 0.0
    %6157 = vmatprep.subr.mxu0 0.0
    %6158 = vmatpush1.msra.mxu0 0.0
    %6159 = vmatprep.subr.mxu0 0.0
    %6160 = vmatpush1.msra.mxu0 0.0
    %6161 = vmatprep.subr.mxu0 0.0
    %6162 = vmatpush1.msra.mxu0 0.0
    %6163 = vmatprep.mubr.f32.mxu0 0.0
    %6164 = vmatmul.mubr.f32.gmra.mrb[0].mxu0 %v5973
    %v6165 = vpop.f32.mrb[0].mxu0
    %v6166 = vadd.f32 %v6096, %v6165
    %v6167 = vpop.f32.mrb[0].mxu0
    %6168 = vdwg.mxu0
    %6169 = vst [vmem:[%s17] sm:$0xff] %v6166
    // Predicated region
    $region90: #{lstm_model_forward.1} parent=1 // pred_check
      _
    $region91: #{lstm_model_forward.1} parent=1 // pred_check_branch
      %6171 = sbr.rel (0) target = $region93
    $region92: #{lstm_model_forward.1} parent=1 // pred_region
      _
    $region93: #{lstm_model_forward.1} parent=1 // pred_fallthru
      _
    // Predicated region
    $region94: #{lstm_model_forward.1} parent=1 // pred_check
      _
    $region95: #{lstm_model_forward.1} parent=1 // pred_check_branch
      %6173 = sbr.rel (0) target = $region97
    $region96: #{lstm_model_forward.1} parent=1 // pred_region
      _
    $region97: #{lstm_model_forward.1} parent=1 // pred_fallthru
      _
    %6174 = vsyncpa [#allocation3], 1
    %6175 = vsyncpa [#allocation5], 1
    %6176 = vsyncpa [#allocation8], 1

</llo_original>
